<compile_context>
chip_gen: v7x
topology: tpu7x:2x2x1
jax: 0.10.0
libtpu: 0.0.40
codegen_flags: <defaults>
</compile_context>

<pallas_src>
import functools

import jax
import jax.numpy as jnp
from jax.experimental import pallas as pl
from jax.experimental.pallas import tpu as pltpu


# ------------------------------ Pallas kernel -------------------------------

def _inception_kernel(x_ref, w1_ref, b1_ref, w2_ref, b2_ref,
                      w3a_ref, b3a_ref, w3b_ref, b3b_ref,
                      w4_ref, b4_ref, o_ref,
                      px_sc, p2_sc, p3a_sc, p3b_sc,
                      *, H, W, ch1x1, ch3x3red, ch3x3, ch5x5red, ch5x5,
                      pool_proj):
    """Whole Inception block for one image.

    x_ref : (1, Cin, H, W)          input image (NCHW block)
    w1    : (ch1x1+ch3x3red+ch5x5red, Cin) bf16  fused 1x1 weights (BN folded)
    w2    : (ch3x3, 9*ch3x3red) bf16             branch2 3x3
    w3a   : (ch5x5, 9*ch5x5red) bf16             branch3 first 3x3
    w3b   : (ch5x5, 9*ch5x5)   bf16              branch3 second 3x3
    w4    : (pool_proj, Cin)   bf16              branch4 1x1 (after max-pool)
    b*    : (Cout, 1) f32 folded BN biases
    o_ref : (1, Ctotal, H*W)   channel-major, lane-dense output
    """
    HW = H * W
    Hp, Wp = H + 2, W + 2
    cin = x_ref.shape[1]

    x = x_ref[0].astype(jnp.float32)            # (Cin, H, W)
    x_flat = x.reshape(cin, HW)                 # (Cin, H*W)

    # ---- fused 1x1 convs on x: branch1 | branch2-reduce | branch3-reduce ---
    y1 = jnp.dot(w1_ref[...], x_flat.astype(jnp.bfloat16),
                 preferred_element_type=jnp.float32)
    y1 = jnp.maximum(y1 + b1_ref[...], 0.0)     # (C1sum, H*W) f32
    r1 = y1[:ch1x1]                             # branch1 output
    r2 = y1[ch1x1:ch1x1 + ch3x3red]             # branch2 reduce
    r3 = y1[ch1x1 + ch3x3red:]                  # branch3 reduce

    # ---- 3x3 conv: zero-pad into VMEM scratch, single im2col MXU matmul ----
    def conv3x3(pad_ref, y_flat, w_ref, b_ref):
        C = y_flat.shape[0]
        pad_ref[...] = jnp.zeros((C, Hp, Wp), jnp.float32)
        pad_ref[:, 1:H + 1, 1:W + 1] = y_flat.reshape(C, H, W)
        p = pad_ref[...]
        taps = [p[:, kh:kh + H, kw:kw + W].reshape(C, HW)
                for kh in range(3) for kw in range(3)]
        patches = jnp.concatenate(taps, axis=0).astype(jnp.bfloat16)  # (9C,HW)
        acc = jnp.dot(w_ref[...], patches, preferred_element_type=jnp.float32)
        return jnp.maximum(acc + b_ref[...], 0.0)                     # (Co,HW)

    b2 = conv3x3(p2_sc, r2, w2_ref, b2_ref)       # branch2: 1x1 -> 3x3
    t3 = conv3x3(p3a_sc, r3, w3a_ref, b3a_ref)    # branch3: 1x1 -> 3x3
    b3 = conv3x3(p3b_sc, t3, w3b_ref, b3b_ref)    #               -> 3x3

    # ---- branch4: 3x3 max-pool (stride 1, pad 1, -inf halo) then 1x1 -------
    px_sc[...] = jnp.full((cin, Hp, Wp), -jnp.inf, jnp.float32)
    px_sc[:, 1:H + 1, 1:W + 1] = x
    px = px_sc[...]
    pooled = px[:, 0:H, 0:W]
    for kh in range(3):
        for kw in range(3):
            if kh == 0 and kw == 0:
                continue
            pooled = jnp.maximum(pooled, px[:, kh:kh + H, kw:kw + W])
    y4 = jnp.dot(w4_ref[...], pooled.reshape(cin, HW).astype(jnp.bfloat16),
                 preferred_element_type=jnp.float32)
    b4 = jnp.maximum(y4 + b4_ref[...], 0.0)

    # ---- channel concat: lane-dense (Cout, H*W) stores ---------------------
    o1 = ch1x1
    o2 = o1 + ch3x3
    o3 = o2 + ch5x5
    o_ref[0, 0:o1, :] = r1.astype(o_ref.dtype)
    o_ref[0, o1:o2, :] = b2.astype(o_ref.dtype)
    o_ref[0, o2:o3, :] = b3.astype(o_ref.dtype)
    o_ref[0, o3:o3 + pool_proj, :] = b4.astype(o_ref.dtype)


# ----------------------------- weight folding --------------------------------

def _fold_1x1(p):
    """(1,1,Cin,Cout) HWIO conv + folded BN -> (Cout,Cin) bf16, (Cout,1) f32."""
    w = (p["w"][0, 0] * p["scale"]).T
    return w.astype(jnp.bfloat16), p["bias"].reshape(-1, 1).astype(jnp.float32)


def _fold_3x3(p):
    """(3,3,Cin,Cout) HWIO conv + folded BN -> (Cout,9*Cin) bf16, (Cout,1) f32.

    Column order matches the in-kernel im2col: tap (kh,kw) major, cin minor.
    """
    w = p["w"] * p["scale"]                       # (3,3,Cin,Cout)
    cout = w.shape[-1]
    wt = jnp.transpose(w, (3, 0, 1, 2)).reshape(cout, -1)
    return wt.astype(jnp.bfloat16), p["bias"].reshape(-1, 1).astype(jnp.float32)


# -------------------------------- wrapper ------------------------------------

def inception_forward(x_nchw, params):
    """Inception block forward. Input/output are NCHW, like the PyTorch module."""
    N, Cin, H, W = x_nchw.shape
    HW = H * W

    ch1x1 = params["b1"]["w"].shape[-1]
    ch3x3red = params["b2_1"]["w"].shape[-1]
    ch3x3 = params["b2_2"]["w"].shape[-1]
    ch5x5red = params["b3_1"]["w"].shape[-1]
    ch5x5 = params["b3_2"]["w"].shape[-1]
    pool_proj = params["b4"]["w"].shape[-1]
    c1sum = ch1x1 + ch3x3red + ch5x5red
    c_total = ch1x1 + ch3x3 + ch5x5 + pool_proj

    # Fuse the three 1x1 convs that all read x into one weight matrix.
    w_b1, bias_b1 = _fold_1x1(params["b1"])
    w_b21, bias_b21 = _fold_1x1(params["b2_1"])
    w_b31, bias_b31 = _fold_1x1(params["b3_1"])
    w1 = jnp.concatenate([w_b1, w_b21, w_b31], axis=0)            # (c1sum, Cin)
    bias1 = jnp.concatenate([bias_b1, bias_b21, bias_b31], axis=0)

    w2, bias2 = _fold_3x3(params["b2_2"])
    w3a, bias3a = _fold_3x3(params["b3_2"])
    w3b, bias3b = _fold_3x3(params["b3_3"])
    w4, bias4 = _fold_1x1(params["b4"])

    kernel = functools.partial(
        _inception_kernel, H=H, W=W, ch1x1=ch1x1, ch3x3red=ch3x3red,
        ch3x3=ch3x3, ch5x5red=ch5x5red, ch5x5=ch5x5, pool_proj=pool_proj)

    flops = 2 * N * HW * (Cin * (c1sum + pool_proj)
                          + 9 * ch3x3red * ch3x3
                          + 9 * ch5x5red * ch5x5
                          + 9 * ch5x5 * ch5x5)
    weight_bytes = 2 * (w1.size + w2.size + w3a.size + w3b.size + w4.size)
    bytes_accessed = 4 * N * HW * (Cin + c_total) + int(weight_bytes)

    def full(a):
        return pl.BlockSpec(a.shape, lambda n: (0, 0))

    # NOTE: at these demo sizes whole-image blocks fit easily in VMEM.
    # TODO(synk): at real GoogLeNet sizes add an H-tile grid axis with a halo.
    out = pl.pallas_call(
        kernel,
        out_shape=jax.ShapeDtypeStruct((N, c_total, HW), x_nchw.dtype),
        grid=(N,),
        in_specs=[
            pl.BlockSpec((1, Cin, H, W), lambda n: (n, 0, 0, 0)),
            full(w1), full(bias1),
            full(w2), full(bias2),
            full(w3a), full(bias3a),
            full(w3b), full(bias3b),
            full(w4), full(bias4),
        ],
        out_specs=pl.BlockSpec((1, c_total, HW), lambda n: (n, 0, 0)),
        scratch_shapes=[
            pltpu.VMEM((Cin, H + 2, W + 2), jnp.float32),       # -inf padded x
            pltpu.VMEM((ch3x3red, H + 2, W + 2), jnp.float32),  # branch2 interm.
            pltpu.VMEM((ch5x5red, H + 2, W + 2), jnp.float32),  # branch3 stage 1
            pltpu.VMEM((ch5x5, H + 2, W + 2), jnp.float32),     # branch3 stage 2
        ],
        compiler_params=pltpu.CompilerParams(
            dimension_semantics=("parallel",)),
        cost_estimate=pl.CostEstimate(flops=flops, transcendentals=0,
                                      bytes_accessed=bytes_accessed),
    )(x_nchw, w1, bias1, w2, bias2, w3a, bias3a, w3b, bias3b, w4, bias4)

    # Output is already channel-major: just restore the spatial dims (NCHW).
    return out.reshape(N, c_total, H, W)


# ---------------------------- parameter setup --------------------------------

def make_basic_conv_params(key, in_ch, out_ch, ksize):
    """Synthetic BasicConv2d params; BN (eval-mode) pre-folded to scale/bias.

    Only jnp arrays go into the pytree (static ints would be traced by jit).
    """
    k1, k2, k3, k4, k5 = jax.random.split(key, 5)
    w = jax.random.normal(k1, (ksize, ksize, in_ch, out_ch), jnp.float32) * 0.1
    gamma = 1.0 + 0.1 * jax.random.normal(k2, (out_ch,), jnp.float32)
    beta = 0.1 * jax.random.normal(k3, (out_ch,), jnp.float32)
    mean = 0.1 * jax.random.normal(k4, (out_ch,), jnp.float32)
    var = 0.5 + jnp.abs(jax.random.normal(k5, (out_ch,), jnp.float32)) * 0.1
    eps = 0.001
    scale = gamma / jnp.sqrt(var + eps)
    bias = beta - mean * scale
    return {"w": w, "scale": scale, "bias": bias}


def make_inception_params(key, in_channels, ch1x1, ch3x3red, ch3x3,
                          ch5x5red, ch5x5, pool_proj):
    keys = jax.random.split(key, 7)
    return {
        "b1":   make_basic_conv_params(keys[0], in_channels, ch1x1, 1),
        "b2_1": make_basic_conv_params(keys[1], in_channels, ch3x3red, 1),
        "b2_2": make_basic_conv_params(keys[2], ch3x3red, ch3x3, 3),
        "b3_1": make_basic_conv_params(keys[3], in_channels, ch5x5red, 1),
        "b3_2": make_basic_conv_params(keys[4], ch5x5red, ch5x5, 3),
        "b3_3": make_basic_conv_params(keys[5], ch5x5, ch5x5, 3),
        "b4":   make_basic_conv_params(keys[6], in_channels, pool_proj, 1),
    }


# --------------------------- plain-JAX reference -----------------------------

def _ref_basic_conv(x_nchw, p, pad):
    y = jax.lax.conv_general_dilated(
        x_nchw, p["w"], window_strides=(1, 1),
        padding=[(pad, pad), (pad, pad)],
        dimension_numbers=("NCHW", "HWIO", "NCHW"))
    y = y * p["scale"][None, :, None, None] + p["bias"][None, :, None, None]
    return jnp.maximum(y, 0.0)


def inception_ref(x_nchw, params):
    b1 = _ref_basic_conv(x_nchw, params["b1"], 0)
    b2 = _ref_basic_conv(_ref_basic_conv(x_nchw, params["b2_1"], 0),
                         params["b2_2"], 1)
    t = _ref_basic_conv(x_nchw, params["b3_1"], 0)
    t = _ref_basic_conv(t, params["b3_2"], 1)
    b3 = _ref_basic_conv(t, params["b3_3"], 1)
    pooled = jax.lax.reduce_window(x_nchw, -jnp.inf, jax.lax.max,
                                   (1, 1, 3, 3), (1, 1, 1, 1),
                                   [(0, 0), (0, 0), (1, 1), (1, 1)])
    b4 = _ref_basic_conv(pooled, params["b4"], 0)
    return jnp.concatenate([b1, b2, b3, b4], axis=1)


# ---------------------------------- main --------------------------------------

if __name__ == "__main__":
    key = jax.random.PRNGKey(0)
    kx, kp = jax.random.split(key)

    # Inception(in_channels=4, ch1x1=8, ch3x3red=4, ch3x3=8,
    #           ch5x5red=4, ch5x5=8, pool_proj=8)
    N, C, H, W = 2, 4, 16, 16
    x = jax.random.normal(kx, (N, C, H, W), jnp.float32)
    params = make_inception_params(kp, C, 8, 4, 8, 4, 8, 8)

    out = jax.jit(inception_forward)(x, params)
    out = jax.block_until_ready(out)
    assert out.shape == (N, 8 + 8 + 8 + 8, H, W), out.shape

    ref = inception_ref(x, params)
    assert jnp.allclose(out, ref, atol=5e-2, rtol=5e-2), (
        float(jnp.max(jnp.abs(out - ref))))

    print("KERNEL_OK")
</pallas_src>

<mosaic_0001>
module attributes {stable_mosaic.version = 11 : i64} {
  func.func @_inception_kernel(%arg0: i32, %arg1: memref<1x4x16x16xf32, #tpu.memory_space<vmem>>, %arg2: memref<16x4xbf16, #tpu.memory_space<vmem>>, %arg3: memref<16x1xf32, #tpu.memory_space<vmem>>, %arg4: memref<8x36xbf16, #tpu.memory_space<vmem>>, %arg5: memref<8x1xf32, #tpu.memory_space<vmem>>, %arg6: memref<8x36xbf16, #tpu.memory_space<vmem>>, %arg7: memref<8x1xf32, #tpu.memory_space<vmem>>, %arg8: memref<8x72xbf16, #tpu.memory_space<vmem>>, %arg9: memref<8x1xf32, #tpu.memory_space<vmem>>, %arg10: memref<8x4xbf16, #tpu.memory_space<vmem>>, %arg11: memref<8x1xf32, #tpu.memory_space<vmem>>, %arg12: memref<1x32x256xf32, #tpu.memory_space<vmem>>, %arg13: memref<4x18x18xf32, #tpu.memory_space<vmem>>, %arg14: memref<4x18x18xf32, #tpu.memory_space<vmem>>, %arg15: memref<4x18x18xf32, #tpu.memory_space<vmem>>, %arg16: memref<8x18x18xf32, #tpu.memory_space<vmem>>) attributes {dimension_semantics = [#tpu.dimension_semantics<parallel>], iteration_bounds = array<i64: 2>, scalar_prefetch = 0 : i64, scratch_operands = 4 : i64, tpu.core_type = #tpu.core_type<tc>, window_params = [{transform_indices = @transform_0, window_bounds = array<i64: 1, 4, 16, 16>}, {pipeline_mode = #tpu.pipeline_mode<synchronous>, transform_indices = @transform_1, window_bounds = array<i64: 16, 4>}, {pipeline_mode = #tpu.pipeline_mode<synchronous>, transform_indices = @transform_2, window_bounds = array<i64: 16, 1>}, {pipeline_mode = #tpu.pipeline_mode<synchronous>, transform_indices = @transform_3, window_bounds = array<i64: 8, 36>}, {pipeline_mode = #tpu.pipeline_mode<synchronous>, transform_indices = @transform_4, window_bounds = array<i64: 8, 1>}, {pipeline_mode = #tpu.pipeline_mode<synchronous>, transform_indices = @transform_5, window_bounds = array<i64: 8, 36>}, {pipeline_mode = #tpu.pipeline_mode<synchronous>, transform_indices = @transform_6, window_bounds = array<i64: 8, 1>}, {pipeline_mode = #tpu.pipeline_mode<synchronous>, transform_indices = @transform_7, window_bounds = array<i64: 8, 72>}, {pipeline_mode = #tpu.pipeline_mode<synchronous>, transform_indices = @transform_8, window_bounds = array<i64: 8, 1>}, {pipeline_mode = #tpu.pipeline_mode<synchronous>, transform_indices = @transform_9, window_bounds = array<i64: 8, 4>}, {pipeline_mode = #tpu.pipeline_mode<synchronous>, transform_indices = @transform_10, window_bounds = array<i64: 8, 1>}, {transform_indices = @transform_11, window_bounds = array<i64: 1, 32, 256>}]} {
    %c0 = arith.constant 0 : index
    %c0_0 = arith.constant 0 : index
    %c0_1 = arith.constant 0 : index
    %c0_2 = arith.constant 0 : index
    %0 = vector.load %arg1[%c0, %c0_0, %c0_1, %c0_2] : memref<1x4x16x16xf32, #tpu.memory_space<vmem>>, vector<1x4x16x16xf32>
    %1 = vector.shape_cast %0 : vector<1x4x16x16xf32> to vector<4x16x16xf32>
    %2 = vector.shape_cast %1 : vector<4x16x16xf32> to vector<4x256xf32>
    %c0_3 = arith.constant 0 : index
    %c0_4 = arith.constant 0 : index
    %3 = vector.load %arg2[%c0_3, %c0_4] : memref<16x4xbf16, #tpu.memory_space<vmem>>, vector<16x4xbf16>
    %4 = arith.truncf %2 : vector<4x256xf32> to vector<4x256xbf16>
    %cst = arith.constant dense<0.000000e+00> : vector<16x256xf32>
    %5 = tpu.matmul %3, %4, %cst {dimension_numbers = #tpu.dot_dimension_numbers<[1], [0], [0], [1], [0, 0, 1, 1], [], []>} : vector<16x4xbf16>, vector<4x256xbf16>, vector<16x256xf32> -> vector<16x256xf32>
    %c0_5 = arith.constant 0 : index
    %c0_6 = arith.constant 0 : index
    %6 = vector.load %arg3[%c0_5, %c0_6] : memref<16x1xf32, #tpu.memory_space<vmem>>, vector<16x1xf32>
    %7 = vector.broadcast %6 : vector<16x1xf32> to vector<16x256xf32>
    %8 = arith.addf %5, %7 : vector<16x256xf32>
    %cst_7 = arith.constant 0.000000e+00 : f32
    %9 = vector.broadcast %cst_7 : f32 to vector<16x256xf32>
    %10 = arith.maximumf %8, %9 : vector<16x256xf32>
    %11 = vector.extract_strided_slice %10 {offsets = [0, 0], sizes = [8, 256], strides = [1, 1]} : vector<16x256xf32> to vector<8x256xf32>
    %12 = vector.extract_strided_slice %10 {offsets = [8, 0], sizes = [4, 256], strides = [1, 1]} : vector<16x256xf32> to vector<4x256xf32>
    %13 = vector.extract_strided_slice %10 {offsets = [12, 0], sizes = [4, 256], strides = [1, 1]} : vector<16x256xf32> to vector<4x256xf32>
    %cst_8 = arith.constant 0.000000e+00 : f32
    %14 = vector.broadcast %cst_8 : f32 to vector<4x18x18xf32>
    %c0_9 = arith.constant 0 : index
    %c0_10 = arith.constant 0 : index
    %c0_11 = arith.constant 0 : index
    %15 = vector.load %arg14[%c0_9, %c0_10, %c0_11] : memref<4x18x18xf32, #tpu.memory_space<vmem>>, vector<4x18x18xf32>
    tpu.vector_store %arg14[%c0_9, %c0_10, %c0_11], %14 {strides = array<i32>} : memref<4x18x18xf32, #tpu.memory_space<vmem>>, vector<4x18x18xf32>,
    %16 = vector.shape_cast %12 : vector<4x256xf32> to vector<4x16x16xf32>
    %c0_12 = arith.constant 0 : index
    %c1 = arith.constant 1 : index
    %c1_13 = arith.constant 1 : index
    %17 = vector.load %arg14[%c0_12, %c1, %c1_13] : memref<4x18x18xf32, #tpu.memory_space<vmem>>, vector<4x16x16xf32>
    tpu.vector_store %arg14[%c0_12, %c1, %c1_13], %16 {strides = array<i32>} : memref<4x18x18xf32, #tpu.memory_space<vmem>>, vector<4x16x16xf32>,
    %c0_14 = arith.constant 0 : index
    %c0_15 = arith.constant 0 : index
    %c0_16 = arith.constant 0 : index
    %18 = vector.load %arg14[%c0_14, %c0_15, %c0_16] : memref<4x18x18xf32, #tpu.memory_space<vmem>>, vector<4x18x18xf32>
    %19 = vector.extract_strided_slice %18 {offsets = [0, 0, 0], sizes = [4, 16, 16], strides = [1, 1, 1]} : vector<4x18x18xf32> to vector<4x16x16xf32>
    %20 = vector.shape_cast %19 : vector<4x16x16xf32> to vector<4x256xf32>
    %21 = vector.extract_strided_slice %18 {offsets = [0, 0, 1], sizes = [4, 16, 16], strides = [1, 1, 1]} : vector<4x18x18xf32> to vector<4x16x16xf32>
    %22 = vector.shape_cast %21 : vector<4x16x16xf32> to vector<4x256xf32>
    %23 = vector.extract_strided_slice %18 {offsets = [0, 0, 2], sizes = [4, 16, 16], strides = [1, 1, 1]} : vector<4x18x18xf32> to vector<4x16x16xf32>
    %24 = vector.shape_cast %23 : vector<4x16x16xf32> to vector<4x256xf32>
    %25 = vector.extract_strided_slice %18 {offsets = [0, 1, 0], sizes = [4, 16, 16], strides = [1, 1, 1]} : vector<4x18x18xf32> to vector<4x16x16xf32>
    %26 = vector.shape_cast %25 : vector<4x16x16xf32> to vector<4x256xf32>
    %27 = vector.extract_strided_slice %18 {offsets = [0, 1, 1], sizes = [4, 16, 16], strides = [1, 1, 1]} : vector<4x18x18xf32> to vector<4x16x16xf32>
    %28 = vector.shape_cast %27 : vector<4x16x16xf32> to vector<4x256xf32>
    %29 = vector.extract_strided_slice %18 {offsets = [0, 1, 2], sizes = [4, 16, 16], strides = [1, 1, 1]} : vector<4x18x18xf32> to vector<4x16x16xf32>
    %30 = vector.shape_cast %29 : vector<4x16x16xf32> to vector<4x256xf32>
    %31 = vector.extract_strided_slice %18 {offsets = [0, 2, 0], sizes = [4, 16, 16], strides = [1, 1, 1]} : vector<4x18x18xf32> to vector<4x16x16xf32>
    %32 = vector.shape_cast %31 : vector<4x16x16xf32> to vector<4x256xf32>
    %33 = vector.extract_strided_slice %18 {offsets = [0, 2, 1], sizes = [4, 16, 16], strides = [1, 1, 1]} : vector<4x18x18xf32> to vector<4x16x16xf32>
    %34 = vector.shape_cast %33 : vector<4x16x16xf32> to vector<4x256xf32>
    %35 = vector.extract_strided_slice %18 {offsets = [0, 2, 2], sizes = [4, 16, 16], strides = [1, 1, 1]} : vector<4x18x18xf32> to vector<4x16x16xf32>
    %36 = vector.shape_cast %35 : vector<4x16x16xf32> to vector<4x256xf32>
    %37 = tpu.concatenate %20, %22, %24, %26, %28, %30, %32, %34, %36 in 0 : vector<4x256xf32>, vector<4x256xf32>, vector<4x256xf32>, vector<4x256xf32>, vector<4x256xf32>, vector<4x256xf32>, vector<4x256xf32>, vector<4x256xf32>, vector<4x256xf32> -> vector<36x256xf32>
    %38 = arith.truncf %37 : vector<36x256xf32> to vector<36x256xbf16>
    %c0_17 = arith.constant 0 : index
    %c0_18 = arith.constant 0 : index
    %39 = vector.load %arg4[%c0_17, %c0_18] : memref<8x36xbf16, #tpu.memory_space<vmem>>, vector<8x36xbf16>
    %cst_19 = arith.constant dense<0.000000e+00> : vector<8x256xf32>
    %40 = tpu.matmul %39, %38, %cst_19 {dimension_numbers = #tpu.dot_dimension_numbers<[1], [0], [0], [1], [0, 0, 1, 1], [], []>} : vector<8x36xbf16>, vector<36x256xbf16>, vector<8x256xf32> -> vector<8x256xf32>
    %c0_20 = arith.constant 0 : index
    %c0_21 = arith.constant 0 : index
    %41 = vector.load %arg5[%c0_20, %c0_21] : memref<8x1xf32, #tpu.memory_space<vmem>>, vector<8x1xf32>
    %42 = vector.broadcast %41 : vector<8x1xf32> to vector<8x256xf32>
    %43 = arith.addf %40, %42 : vector<8x256xf32>
    %cst_22 = arith.constant 0.000000e+00 : f32
    %44 = vector.broadcast %cst_22 : f32 to vector<8x256xf32>
    %45 = arith.maximumf %43, %44 : vector<8x256xf32>
    %cst_23 = arith.constant 0.000000e+00 : f32
    %46 = vector.broadcast %cst_23 : f32 to vector<4x18x18xf32>
    %c0_24 = arith.constant 0 : index
    %c0_25 = arith.constant 0 : index
    %c0_26 = arith.constant 0 : index
    %47 = vector.load %arg15[%c0_24, %c0_25, %c0_26] : memref<4x18x18xf32, #tpu.memory_space<vmem>>, vector<4x18x18xf32>
    tpu.vector_store %arg15[%c0_24, %c0_25, %c0_26], %46 {strides = array<i32>} : memref<4x18x18xf32, #tpu.memory_space<vmem>>, vector<4x18x18xf32>,
    %48 = vector.shape_cast %13 : vector<4x256xf32> to vector<4x16x16xf32>
    %c0_27 = arith.constant 0 : index
    %c1_28 = arith.constant 1 : index
    %c1_29 = arith.constant 1 : index
    %49 = vector.load %arg15[%c0_27, %c1_28, %c1_29] : memref<4x18x18xf32, #tpu.memory_space<vmem>>, vector<4x16x16xf32>
    tpu.vector_store %arg15[%c0_27, %c1_28, %c1_29], %48 {strides = array<i32>} : memref<4x18x18xf32, #tpu.memory_space<vmem>>, vector<4x16x16xf32>,
    %c0_30 = arith.constant 0 : index
    %c0_31 = arith.constant 0 : index
    %c0_32 = arith.constant 0 : index
    %50 = vector.load %arg15[%c0_30, %c0_31, %c0_32] : memref<4x18x18xf32, #tpu.memory_space<vmem>>, vector<4x18x18xf32>
    %51 = vector.extract_strided_slice %50 {offsets = [0, 0, 0], sizes = [4, 16, 16], strides = [1, 1, 1]} : vector<4x18x18xf32> to vector<4x16x16xf32>
    %52 = vector.shape_cast %51 : vector<4x16x16xf32> to vector<4x256xf32>
    %53 = vector.extract_strided_slice %50 {offsets = [0, 0, 1], sizes = [4, 16, 16], strides = [1, 1, 1]} : vector<4x18x18xf32> to vector<4x16x16xf32>
    %54 = vector.shape_cast %53 : vector<4x16x16xf32> to vector<4x256xf32>
    %55 = vector.extract_strided_slice %50 {offsets = [0, 0, 2], sizes = [4, 16, 16], strides = [1, 1, 1]} : vector<4x18x18xf32> to vector<4x16x16xf32>
    %56 = vector.shape_cast %55 : vector<4x16x16xf32> to vector<4x256xf32>
    %57 = vector.extract_strided_slice %50 {offsets = [0, 1, 0], sizes = [4, 16, 16], strides = [1, 1, 1]} : vector<4x18x18xf32> to vector<4x16x16xf32>
    %58 = vector.shape_cast %57 : vector<4x16x16xf32> to vector<4x256xf32>
    %59 = vector.extract_strided_slice %50 {offsets = [0, 1, 1], sizes = [4, 16, 16], strides = [1, 1, 1]} : vector<4x18x18xf32> to vector<4x16x16xf32>
    %60 = vector.shape_cast %59 : vector<4x16x16xf32> to vector<4x256xf32>
    %61 = vector.extract_strided_slice %50 {offsets = [0, 1, 2], sizes = [4, 16, 16], strides = [1, 1, 1]} : vector<4x18x18xf32> to vector<4x16x16xf32>
    %62 = vector.shape_cast %61 : vector<4x16x16xf32> to vector<4x256xf32>
    %63 = vector.extract_strided_slice %50 {offsets = [0, 2, 0], sizes = [4, 16, 16], strides = [1, 1, 1]} : vector<4x18x18xf32> to vector<4x16x16xf32>
    %64 = vector.shape_cast %63 : vector<4x16x16xf32> to vector<4x256xf32>
    %65 = vector.extract_strided_slice %50 {offsets = [0, 2, 1], sizes = [4, 16, 16], strides = [1, 1, 1]} : vector<4x18x18xf32> to vector<4x16x16xf32>
    %66 = vector.shape_cast %65 : vector<4x16x16xf32> to vector<4x256xf32>
    %67 = vector.extract_strided_slice %50 {offsets = [0, 2, 2], sizes = [4, 16, 16], strides = [1, 1, 1]} : vector<4x18x18xf32> to vector<4x16x16xf32>
    %68 = vector.shape_cast %67 : vector<4x16x16xf32> to vector<4x256xf32>
    %69 = tpu.concatenate %52, %54, %56, %58, %60, %62, %64, %66, %68 in 0 : vector<4x256xf32>, vector<4x256xf32>, vector<4x256xf32>, vector<4x256xf32>, vector<4x256xf32>, vector<4x256xf32>, vector<4x256xf32>, vector<4x256xf32>, vector<4x256xf32> -> vector<36x256xf32>
    %70 = arith.truncf %69 : vector<36x256xf32> to vector<36x256xbf16>
    %c0_33 = arith.constant 0 : index
    %c0_34 = arith.constant 0 : index
    %71 = vector.load %arg6[%c0_33, %c0_34] : memref<8x36xbf16, #tpu.memory_space<vmem>>, vector<8x36xbf16>
    %cst_35 = arith.constant dense<0.000000e+00> : vector<8x256xf32>
    %72 = tpu.matmul %71, %70, %cst_35 {dimension_numbers = #tpu.dot_dimension_numbers<[1], [0], [0], [1], [0, 0, 1, 1], [], []>} : vector<8x36xbf16>, vector<36x256xbf16>, vector<8x256xf32> -> vector<8x256xf32>
    %c0_36 = arith.constant 0 : index
    %c0_37 = arith.constant 0 : index
    %73 = vector.load %arg7[%c0_36, %c0_37] : memref<8x1xf32, #tpu.memory_space<vmem>>, vector<8x1xf32>
    %74 = vector.broadcast %73 : vector<8x1xf32> to vector<8x256xf32>
    %75 = arith.addf %72, %74 : vector<8x256xf32>
    %cst_38 = arith.constant 0.000000e+00 : f32
    %76 = vector.broadcast %cst_38 : f32 to vector<8x256xf32>
    %77 = arith.maximumf %75, %76 : vector<8x256xf32>
    %cst_39 = arith.constant 0.000000e+00 : f32
    %78 = vector.broadcast %cst_39 : f32 to vector<8x18x18xf32>
    %c0_40 = arith.constant 0 : index
    %c0_41 = arith.constant 0 : index
    %c0_42 = arith.constant 0 : index
    %79 = vector.load %arg16[%c0_40, %c0_41, %c0_42] : memref<8x18x18xf32, #tpu.memory_space<vmem>>, vector<8x18x18xf32>
    tpu.vector_store %arg16[%c0_40, %c0_41, %c0_42], %78 {strides = array<i32>} : memref<8x18x18xf32, #tpu.memory_space<vmem>>, vector<8x18x18xf32>,
    %80 = vector.shape_cast %77 : vector<8x256xf32> to vector<8x16x16xf32>
    %c0_43 = arith.constant 0 : index
    %c1_44 = arith.constant 1 : index
    %c1_45 = arith.constant 1 : index
    %81 = vector.load %arg16[%c0_43, %c1_44, %c1_45] : memref<8x18x18xf32, #tpu.memory_space<vmem>>, vector<8x16x16xf32>
    tpu.vector_store %arg16[%c0_43, %c1_44, %c1_45], %80 {strides = array<i32>} : memref<8x18x18xf32, #tpu.memory_space<vmem>>, vector<8x16x16xf32>,
    %c0_46 = arith.constant 0 : index
    %c0_47 = arith.constant 0 : index
    %c0_48 = arith.constant 0 : index
    %82 = vector.load %arg16[%c0_46, %c0_47, %c0_48] : memref<8x18x18xf32, #tpu.memory_space<vmem>>, vector<8x18x18xf32>
    %83 = vector.extract_strided_slice %82 {offsets = [0, 0, 0], sizes = [8, 16, 16], strides = [1, 1, 1]} : vector<8x18x18xf32> to vector<8x16x16xf32>
    %84 = vector.shape_cast %83 : vector<8x16x16xf32> to vector<8x256xf32>
    %85 = vector.extract_strided_slice %82 {offsets = [0, 0, 1], sizes = [8, 16, 16], strides = [1, 1, 1]} : vector<8x18x18xf32> to vector<8x16x16xf32>
    %86 = vector.shape_cast %85 : vector<8x16x16xf32> to vector<8x256xf32>
    %87 = vector.extract_strided_slice %82 {offsets = [0, 0, 2], sizes = [8, 16, 16], strides = [1, 1, 1]} : vector<8x18x18xf32> to vector<8x16x16xf32>
    %88 = vector.shape_cast %87 : vector<8x16x16xf32> to vector<8x256xf32>
    %89 = vector.extract_strided_slice %82 {offsets = [0, 1, 0], sizes = [8, 16, 16], strides = [1, 1, 1]} : vector<8x18x18xf32> to vector<8x16x16xf32>
    %90 = vector.shape_cast %89 : vector<8x16x16xf32> to vector<8x256xf32>
    %91 = vector.extract_strided_slice %82 {offsets = [0, 1, 1], sizes = [8, 16, 16], strides = [1, 1, 1]} : vector<8x18x18xf32> to vector<8x16x16xf32>
    %92 = vector.shape_cast %91 : vector<8x16x16xf32> to vector<8x256xf32>
    %93 = vector.extract_strided_slice %82 {offsets = [0, 1, 2], sizes = [8, 16, 16], strides = [1, 1, 1]} : vector<8x18x18xf32> to vector<8x16x16xf32>
    %94 = vector.shape_cast %93 : vector<8x16x16xf32> to vector<8x256xf32>
    %95 = vector.extract_strided_slice %82 {offsets = [0, 2, 0], sizes = [8, 16, 16], strides = [1, 1, 1]} : vector<8x18x18xf32> to vector<8x16x16xf32>
    %96 = vector.shape_cast %95 : vector<8x16x16xf32> to vector<8x256xf32>
    %97 = vector.extract_strided_slice %82 {offsets = [0, 2, 1], sizes = [8, 16, 16], strides = [1, 1, 1]} : vector<8x18x18xf32> to vector<8x16x16xf32>
    %98 = vector.shape_cast %97 : vector<8x16x16xf32> to vector<8x256xf32>
    %99 = vector.extract_strided_slice %82 {offsets = [0, 2, 2], sizes = [8, 16, 16], strides = [1, 1, 1]} : vector<8x18x18xf32> to vector<8x16x16xf32>
    %100 = vector.shape_cast %99 : vector<8x16x16xf32> to vector<8x256xf32>
    %101 = tpu.concatenate %84, %86, %88, %90, %92, %94, %96, %98, %100 in 0 : vector<8x256xf32>, vector<8x256xf32>, vector<8x256xf32>, vector<8x256xf32>, vector<8x256xf32>, vector<8x256xf32>, vector<8x256xf32>, vector<8x256xf32>, vector<8x256xf32> -> vector<72x256xf32>
    %102 = arith.truncf %101 : vector<72x256xf32> to vector<72x256xbf16>
    %c0_49 = arith.constant 0 : index
    %c0_50 = arith.constant 0 : index
    %103 = vector.load %arg8[%c0_49, %c0_50] : memref<8x72xbf16, #tpu.memory_space<vmem>>, vector<8x72xbf16>
    %cst_51 = arith.constant dense<0.000000e+00> : vector<8x256xf32>
    %104 = tpu.matmul %103, %102, %cst_51 {dimension_numbers = #tpu.dot_dimension_numbers<[1], [0], [0], [1], [0, 0, 1, 1], [], []>} : vector<8x72xbf16>, vector<72x256xbf16>, vector<8x256xf32> -> vector<8x256xf32>
    %c0_52 = arith.constant 0 : index
    %c0_53 = arith.constant 0 : index
    %105 = vector.load %arg9[%c0_52, %c0_53] : memref<8x1xf32, #tpu.memory_space<vmem>>, vector<8x1xf32>
    %106 = vector.broadcast %105 : vector<8x1xf32> to vector<8x256xf32>
    %107 = arith.addf %104, %106 : vector<8x256xf32>
    %cst_54 = arith.constant 0.000000e+00 : f32
    %108 = vector.broadcast %cst_54 : f32 to vector<8x256xf32>
    %109 = arith.maximumf %107, %108 : vector<8x256xf32>
    %cst_55 = arith.constant 0xFF800000 : f32
    %110 = vector.broadcast %cst_55 : f32 to vector<4x18x18xf32>
    %c0_56 = arith.constant 0 : index
    %c0_57 = arith.constant 0 : index
    %c0_58 = arith.constant 0 : index
    %111 = vector.load %arg13[%c0_56, %c0_57, %c0_58] : memref<4x18x18xf32, #tpu.memory_space<vmem>>, vector<4x18x18xf32>
    tpu.vector_store %arg13[%c0_56, %c0_57, %c0_58], %110 {strides = array<i32>} : memref<4x18x18xf32, #tpu.memory_space<vmem>>, vector<4x18x18xf32>,
    %c0_59 = arith.constant 0 : index
    %c1_60 = arith.constant 1 : index
    %c1_61 = arith.constant 1 : index
    %112 = vector.load %arg13[%c0_59, %c1_60, %c1_61] : memref<4x18x18xf32, #tpu.memory_space<vmem>>, vector<4x16x16xf32>
    tpu.vector_store %arg13[%c0_59, %c1_60, %c1_61], %1 {strides = array<i32>} : memref<4x18x18xf32, #tpu.memory_space<vmem>>, vector<4x16x16xf32>,
    %c0_62 = arith.constant 0 : index
    %c0_63 = arith.constant 0 : index
    %c0_64 = arith.constant 0 : index
    %113 = vector.load %arg13[%c0_62, %c0_63, %c0_64] : memref<4x18x18xf32, #tpu.memory_space<vmem>>, vector<4x18x18xf32>
    %114 = vector.extract_strided_slice %113 {offsets = [0, 0, 0], sizes = [4, 16, 16], strides = [1, 1, 1]} : vector<4x18x18xf32> to vector<4x16x16xf32>
    %115 = vector.extract_strided_slice %113 {offsets = [0, 0, 1], sizes = [4, 16, 16], strides = [1, 1, 1]} : vector<4x18x18xf32> to vector<4x16x16xf32>
    %116 = arith.maximumf %114, %115 : vector<4x16x16xf32>
    %117 = vector.extract_strided_slice %113 {offsets = [0, 0, 2], sizes = [4, 16, 16], strides = [1, 1, 1]} : vector<4x18x18xf32> to vector<4x16x16xf32>
    %118 = arith.maximumf %116, %117 : vector<4x16x16xf32>
    %119 = vector.extract_strided_slice %113 {offsets = [0, 1, 0], sizes = [4, 16, 16], strides = [1, 1, 1]} : vector<4x18x18xf32> to vector<4x16x16xf32>
    %120 = arith.maximumf %118, %119 : vector<4x16x16xf32>
    %121 = vector.extract_strided_slice %113 {offsets = [0, 1, 1], sizes = [4, 16, 16], strides = [1, 1, 1]} : vector<4x18x18xf32> to vector<4x16x16xf32>
    %122 = arith.maximumf %120, %121 : vector<4x16x16xf32>
    %123 = vector.extract_strided_slice %113 {offsets = [0, 1, 2], sizes = [4, 16, 16], strides = [1, 1, 1]} : vector<4x18x18xf32> to vector<4x16x16xf32>
    %124 = arith.maximumf %122, %123 : vector<4x16x16xf32>
    %125 = vector.extract_strided_slice %113 {offsets = [0, 2, 0], sizes = [4, 16, 16], strides = [1, 1, 1]} : vector<4x18x18xf32> to vector<4x16x16xf32>
    %126 = arith.maximumf %124, %125 : vector<4x16x16xf32>
    %127 = vector.extract_strided_slice %113 {offsets = [0, 2, 1], sizes = [4, 16, 16], strides = [1, 1, 1]} : vector<4x18x18xf32> to vector<4x16x16xf32>
    %128 = arith.maximumf %126, %127 : vector<4x16x16xf32>
    %129 = vector.extract_strided_slice %113 {offsets = [0, 2, 2], sizes = [4, 16, 16], strides = [1, 1, 1]} : vector<4x18x18xf32> to vector<4x16x16xf32>
    %130 = arith.maximumf %128, %129 : vector<4x16x16xf32>
    %c0_65 = arith.constant 0 : index
    %c0_66 = arith.constant 0 : index
    %131 = vector.load %arg10[%c0_65, %c0_66] : memref<8x4xbf16, #tpu.memory_space<vmem>>, vector<8x4xbf16>
    %132 = vector.shape_cast %130 : vector<4x16x16xf32> to vector<4x256xf32>
    %133 = arith.truncf %132 : vector<4x256xf32> to vector<4x256xbf16>
    %cst_67 = arith.constant dense<0.000000e+00> : vector<8x256xf32>
    %134 = tpu.matmul %131, %133, %cst_67 {dimension_numbers = #tpu.dot_dimension_numbers<[1], [0], [0], [1], [0, 0, 1, 1], [], []>} : vector<8x4xbf16>, vector<4x256xbf16>, vector<8x256xf32> -> vector<8x256xf32>
    %c0_68 = arith.constant 0 : index
    %c0_69 = arith.constant 0 : index
    %135 = vector.load %arg11[%c0_68, %c0_69] : memref<8x1xf32, #tpu.memory_space<vmem>>, vector<8x1xf32>
    %136 = vector.broadcast %135 : vector<8x1xf32> to vector<8x256xf32>
    %137 = arith.addf %134, %136 : vector<8x256xf32>
    %cst_70 = arith.constant 0.000000e+00 : f32
    %138 = vector.broadcast %cst_70 : f32 to vector<8x256xf32>
    %139 = arith.maximumf %137, %138 : vector<8x256xf32>
    %c0_71 = arith.constant 0 : index
    %c0_72 = arith.constant 0 : index
    %c0_73 = arith.constant 0 : index
    %140 = vector.load %arg12[%c0_71, %c0_72, %c0_73] : memref<1x32x256xf32, #tpu.memory_space<vmem>>, vector<1x8x256xf32>
    %141 = vector.shape_cast %140 : vector<1x8x256xf32> to vector<8x256xf32>
    %142 = vector.shape_cast %11 : vector<8x256xf32> to vector<1x8x256xf32>
    tpu.vector_store %arg12[%c0_71, %c0_72, %c0_73], %142 {strides = array<i32>} : memref<1x32x256xf32, #tpu.memory_space<vmem>>, vector<1x8x256xf32>,
    %c0_74 = arith.constant 0 : index
    %c8 = arith.constant 8 : index
    %c0_75 = arith.constant 0 : index
    %143 = vector.load %arg12[%c0_74, %c8, %c0_75] : memref<1x32x256xf32, #tpu.memory_space<vmem>>, vector<1x8x256xf32>
    %144 = vector.shape_cast %143 : vector<1x8x256xf32> to vector<8x256xf32>
    %145 = vector.shape_cast %45 : vector<8x256xf32> to vector<1x8x256xf32>
    tpu.vector_store %arg12[%c0_74, %c8, %c0_75], %145 {strides = array<i32>} : memref<1x32x256xf32, #tpu.memory_space<vmem>>, vector<1x8x256xf32>,
    %c0_76 = arith.constant 0 : index
    %c16 = arith.constant 16 : index
    %c0_77 = arith.constant 0 : index
    %146 = vector.load %arg12[%c0_76, %c16, %c0_77] : memref<1x32x256xf32, #tpu.memory_space<vmem>>, vector<1x8x256xf32>
    %147 = vector.shape_cast %146 : vector<1x8x256xf32> to vector<8x256xf32>
    %148 = vector.shape_cast %109 : vector<8x256xf32> to vector<1x8x256xf32>
    tpu.vector_store %arg12[%c0_76, %c16, %c0_77], %148 {strides = array<i32>} : memref<1x32x256xf32, #tpu.memory_space<vmem>>, vector<1x8x256xf32>,
    %c0_78 = arith.constant 0 : index
    %c24 = arith.constant 24 : index
    %c0_79 = arith.constant 0 : index
    %149 = vector.load %arg12[%c0_78, %c24, %c0_79] : memref<1x32x256xf32, #tpu.memory_space<vmem>>, vector<1x8x256xf32>
    %150 = vector.shape_cast %149 : vector<1x8x256xf32> to vector<8x256xf32>
    %151 = vector.shape_cast %139 : vector<8x256xf32> to vector<1x8x256xf32>
    tpu.vector_store %arg12[%c0_78, %c24, %c0_79], %151 {strides = array<i32>} : memref<1x32x256xf32, #tpu.memory_space<vmem>>, vector<1x8x256xf32>,
    return
  }
  func.func @transform_0(%arg0: i32) -> (i32, i32, i32, i32) {
    %c0_i32 = arith.constant 0 : i32
    %c0_i32_0 = arith.constant 0 : i32
    %c0_i32_1 = arith.constant 0 : i32
    %c0_i32_2 = arith.constant 0 : i32
    return %arg0, %c0_i32, %c0_i32_0, %c0_i32_1 : i32, i32, i32, i32
  }
  func.func @transform_1(%arg0: i32) -> (i32, i32) {
    %c0_i32 = arith.constant 0 : i32
    %c0_i32_0 = arith.constant 0 : i32
    %c0_i32_1 = arith.constant 0 : i32
    return %c0_i32, %c0_i32_0 : i32, i32
  }
  func.func @transform_2(%arg0: i32) -> (i32, i32) {
    %c0_i32 = arith.constant 0 : i32
    %c0_i32_0 = arith.constant 0 : i32
    %c0_i32_1 = arith.constant 0 : i32
    return %c0_i32, %c0_i32_0 : i32, i32
  }
  func.func @transform_3(%arg0: i32) -> (i32, i32) {
    %c0_i32 = arith.constant 0 : i32
    %c0_i32_0 = arith.constant 0 : i32
    %c0_i32_1 = arith.constant 0 : i32
    return %c0_i32, %c0_i32_0 : i32, i32
  }
  func.func @transform_4(%arg0: i32) -> (i32, i32) {
    %c0_i32 = arith.constant 0 : i32
    %c0_i32_0 = arith.constant 0 : i32
    %c0_i32_1 = arith.constant 0 : i32
    return %c0_i32, %c0_i32_0 : i32, i32
  }
  func.func @transform_5(%arg0: i32) -> (i32, i32) {
    %c0_i32 = arith.constant 0 : i32
    %c0_i32_0 = arith.constant 0 : i32
    %c0_i32_1 = arith.constant 0 : i32
    return %c0_i32, %c0_i32_0 : i32, i32
  }
  func.func @transform_6(%arg0: i32) -> (i32, i32) {
    %c0_i32 = arith.constant 0 : i32
    %c0_i32_0 = arith.constant 0 : i32
    %c0_i32_1 = arith.constant 0 : i32
    return %c0_i32, %c0_i32_0 : i32, i32
  }
  func.func @transform_7(%arg0: i32) -> (i32, i32) {
    %c0_i32 = arith.constant 0 : i32
    %c0_i32_0 = arith.constant 0 : i32
    %c0_i32_1 = arith.constant 0 : i32
    return %c0_i32, %c0_i32_0 : i32, i32
  }
  func.func @transform_8(%arg0: i32) -> (i32, i32) {
    %c0_i32 = arith.constant 0 : i32
    %c0_i32_0 = arith.constant 0 : i32
    %c0_i32_1 = arith.constant 0 : i32
    return %c0_i32, %c0_i32_0 : i32, i32
  }
  func.func @transform_9(%arg0: i32) -> (i32, i32) {
    %c0_i32 = arith.constant 0 : i32
    %c0_i32_0 = arith.constant 0 : i32
    %c0_i32_1 = arith.constant 0 : i32
    return %c0_i32, %c0_i32_0 : i32, i32
  }
  func.func @transform_10(%arg0: i32) -> (i32, i32) {
    %c0_i32 = arith.constant 0 : i32
    %c0_i32_0 = arith.constant 0 : i32
    %c0_i32_1 = arith.constant 0 : i32
    return %c0_i32, %c0_i32_0 : i32, i32
  }
  func.func @transform_11(%arg0: i32) -> (i32, i32, i32) {
    %c0_i32 = arith.constant 0 : i32
    %c0_i32_0 = arith.constant 0 : i32
    %c0_i32_1 = arith.constant 0 : i32
    return %arg0, %c0_i32, %c0_i32_0 : i32, i32, i32
  }
}

</mosaic_0001>

<llo_original>
// kernel: inception_forward.1
$region0: #{inception_forward.1}
  #allocation0 [shape = 'u32[]', space=smem, size = 0x4, offset = 0x4, fixed_abs, tag = 'smem constant byte address 0x4 - core index']
  #allocation1 [shape = 'u32[144,128]{1,0:T(1,128)}', space=vmem, size = 0x12000, scoped, tag = 'internal scratch']
  #allocation2 [shape = 'f32[4,18,18]{2,1,0:T(8,128)}', space=vmem, size = 0xc000, scoped, tag = 'scratch operand']
  #allocation3 [shape = 'f32[4,18,18]{2,1,0:T(8,128)}', space=vmem, size = 0xc000, scoped, tag = 'scratch operand']
  #allocation4 [shape = 'f32[4,18,18]{2,1,0:T(8,128)}', space=vmem, size = 0xc000, scoped, tag = 'scratch operand']
  #allocation5 [shape = 'f32[8,18,18]{2,1,0:T(8,128)}', space=vmem, size = 0x18000, scoped, tag = 'scratch operand']
  %s0 = inlined_call_operand.vmem [shape: f32[2,4,16,16], index: 0, kind: input, shape index: {}]
  %s1 = inlined_call_operand.vmem [shape: bf16[16,4], index: 1, kind: input, shape index: {}]
  %s2 = inlined_call_operand.vmem [shape: f32[16,1], index: 2, kind: input, shape index: {}]
  %s3 = inlined_call_operand.vmem [shape: bf16[8,36], index: 3, kind: input, shape index: {}]
  %s4 = inlined_call_operand.vmem [shape: f32[8,1], index: 4, kind: input, shape index: {}]
  %s5 = inlined_call_operand.vmem [shape: bf16[8,36], index: 5, kind: input, shape index: {}]
  %s6 = inlined_call_operand.vmem [shape: f32[8,1], index: 6, kind: input, shape index: {}]
  %s7 = inlined_call_operand.vmem [shape: bf16[8,72], index: 7, kind: input, shape index: {}]
  %s8 = inlined_call_operand.vmem [shape: f32[8,1], index: 8, kind: input, shape index: {}]
  %s9 = inlined_call_operand.vmem [shape: bf16[8,4], index: 9, kind: input, shape index: {}]
  %s10 = inlined_call_operand.vmem [shape: f32[8,1], index: 10, kind: input, shape index: {}]
  %s11 = inlined_call_operand.vmem [shape: f32[2,32,256], index: 11, kind: output, shape index: {}]
  %s12 = sld [smem:[#allocation0]]
  $region77: #{inception_forward.1} parent=0
    _
  %s14 = ssub.s32 1, %s12
  %s15 = scalar_select 0, %s14, %s12
  loop: start=0, step=1, limit=4
  $region2: #{inception_forward.1} parent=0 // loop_pre_header
    _
  $region3: #{inception_forward.1} parent=0 // loop_header
    %s17 = sphi 0, %s21
    %p18 = scmp.ge.s32.totalorder %s17, 4
    %s27 = sphi 0, %s29
    %s30 = sphi 0, %s27
    %s31 = sphi 0, %s30
    %s47 = sphi 0, %s31
    %s51 = sphi 0, %s51
    %s53 = sphi 0, %s51
    %s54 = sphi 0, %s53
    %s68 = sphi 0, %s54
    %s72 = sphi 0, %s72
    %s74 = sphi 0, %s72
    %s75 = sphi 0, %s74
    %s89 = sphi 0, %s75
    %s93 = sphi 0, %s93
    %s95 = sphi 0, %s93
    %s96 = sphi 0, %s95
    %s110 = sphi 0, %s96
    %s114 = sphi 0, %s114
    %s116 = sphi 0, %s114
    %s117 = sphi 0, %s116
    %s131 = sphi 0, %s117
    %s135 = sphi 0, %s135
    %s137 = sphi 0, %s135
    %s138 = sphi 0, %s137
    %s152 = sphi 0, %s138
    %s156 = sphi 0, %s156
    %s158 = sphi 0, %s156
    %s159 = sphi 0, %s158
    %s173 = sphi 0, %s159
    %s177 = sphi 0, %s177
    %s179 = sphi 0, %s177
    %s180 = sphi 0, %s179
    %s194 = sphi 0, %s180
    %s198 = sphi 0, %s198
    %s200 = sphi 0, %s198
    %s201 = sphi 0, %s200
    %s215 = sphi 0, %s201
    %s219 = sphi 0, %s219
    %s221 = sphi 0, %s219
    %s222 = sphi 0, %s221
    %s236 = sphi 0, %s222
    %s240 = sphi 0, %s240
    %s242 = sphi 0, %s240
    %s243 = sphi 0, %s242
    %s257 = sphi 0, %s243
    %s263 = sphi 0, %s265
    %s266 = sphi 0, %s263
    %s267 = sphi 0, %s266
    %s283 = sphi 0, %s267
  $region4: #{inception_forward.1} parent=0 // loop_header_branch
    %20 = sbr.rel (%p18) target = $region8
  $region5: #{inception_forward.1} parent=0 // loop_body
    %s22 = ssub.s32 %s17, 1
    %s23 = ssub.s32 %s17, 2
    %s24 = sadd.s32 %s17, 1
    %s25 = ssub.s32 %s17, %s24
    %p26 = scmp.eq.s32.totalorder %s25, 0
    %s28 = sadd.s32 %s27, 1
    %s29 = scalar_select %p26, %s27, %s28
    %p32 = pneg %p26
    %p33 = scmp.eq.s32.totalorder %s17, 1
    %p34 = por %p32, %p33
    %p35 = scmp.ne.s32.totalorder %s27, %s30
    %p36 = scmp.eq.s32.totalorder %s17, 0
    %p37 = por %p35, %p36
    %p38 = scmp.ne.s32.totalorder %s27, %s30
    %p39 = scmp.eq.s32.totalorder %s22, 1
    %p40 = por %p38, %p39
    %p41 = scmp.ne.s32.totalorder %s30, %s31
    %p42 = scmp.eq.s32.totalorder %s22, 0
    %p43 = por %p41, %p42
    %p44 = scmp.ne.s32.totalorder %s30, %s31
    %p45 = scmp.eq.s32.totalorder %s23, 1
    %p46 = por %p44, %p45
    %p48 = scmp.ne.s32.totalorder %s31, %s47
    %p49 = scmp.eq.s32.totalorder %s23, 0
    %p50 = por %p48, %p49
    %s52 = sadd.s32 %s51, 1
    %p55 = scmp.eq.s32.totalorder %s17, 1
    %p56 = scmp.ne.s32.totalorder %s51, %s53
    %p57 = scmp.eq.s32.totalorder %s17, 0
    %p58 = por %p56, %p57
    %p59 = scmp.ne.s32.totalorder %s51, %s53
    %p60 = scmp.eq.s32.totalorder %s22, 1
    %p61 = por %p59, %p60
    %p62 = scmp.ne.s32.totalorder %s53, %s54
    %p63 = scmp.eq.s32.totalorder %s22, 0
    %p64 = por %p62, %p63
    %p65 = scmp.ne.s32.totalorder %s53, %s54
    %p66 = scmp.eq.s32.totalorder %s23, 1
    %p67 = por %p65, %p66
    %p69 = scmp.ne.s32.totalorder %s54, %s68
    %p70 = scmp.eq.s32.totalorder %s23, 0
    %p71 = por %p69, %p70
    %s73 = sadd.s32 %s72, 1
    %p76 = scmp.eq.s32.totalorder %s17, 1
    %p77 = scmp.ne.s32.totalorder %s72, %s74
    %p78 = scmp.eq.s32.totalorder %s17, 0
    %p79 = por %p77, %p78
    %p80 = scmp.ne.s32.totalorder %s72, %s74
    %p81 = scmp.eq.s32.totalorder %s22, 1
    %p82 = por %p80, %p81
    %p83 = scmp.ne.s32.totalorder %s74, %s75
    %p84 = scmp.eq.s32.totalorder %s22, 0
    %p85 = por %p83, %p84
    %p86 = scmp.ne.s32.totalorder %s74, %s75
    %p87 = scmp.eq.s32.totalorder %s23, 1
    %p88 = por %p86, %p87
    %p90 = scmp.ne.s32.totalorder %s75, %s89
    %p91 = scmp.eq.s32.totalorder %s23, 0
    %p92 = por %p90, %p91
    %s94 = sadd.s32 %s93, 1
    %p97 = scmp.eq.s32.totalorder %s17, 1
    %p98 = scmp.ne.s32.totalorder %s93, %s95
    %p99 = scmp.eq.s32.totalorder %s17, 0
    %p100 = por %p98, %p99
    %p101 = scmp.ne.s32.totalorder %s93, %s95
    %p102 = scmp.eq.s32.totalorder %s22, 1
    %p103 = por %p101, %p102
    %p104 = scmp.ne.s32.totalorder %s95, %s96
    %p105 = scmp.eq.s32.totalorder %s22, 0
    %p106 = por %p104, %p105
    %p107 = scmp.ne.s32.totalorder %s95, %s96
    %p108 = scmp.eq.s32.totalorder %s23, 1
    %p109 = por %p107, %p108
    %p111 = scmp.ne.s32.totalorder %s96, %s110
    %p112 = scmp.eq.s32.totalorder %s23, 0
    %p113 = por %p111, %p112
    %s115 = sadd.s32 %s114, 1
    %p118 = scmp.eq.s32.totalorder %s17, 1
    %p119 = scmp.ne.s32.totalorder %s114, %s116
    %p120 = scmp.eq.s32.totalorder %s17, 0
    %p121 = por %p119, %p120
    %p122 = scmp.ne.s32.totalorder %s114, %s116
    %p123 = scmp.eq.s32.totalorder %s22, 1
    %p124 = por %p122, %p123
    %p125 = scmp.ne.s32.totalorder %s116, %s117
    %p126 = scmp.eq.s32.totalorder %s22, 0
    %p127 = por %p125, %p126
    %p128 = scmp.ne.s32.totalorder %s116, %s117
    %p129 = scmp.eq.s32.totalorder %s23, 1
    %p130 = por %p128, %p129
    %p132 = scmp.ne.s32.totalorder %s117, %s131
    %p133 = scmp.eq.s32.totalorder %s23, 0
    %p134 = por %p132, %p133
    %s136 = sadd.s32 %s135, 1
    %p139 = scmp.eq.s32.totalorder %s17, 1
    %p140 = scmp.ne.s32.totalorder %s135, %s137
    %p141 = scmp.eq.s32.totalorder %s17, 0
    %p142 = por %p140, %p141
    %p143 = scmp.ne.s32.totalorder %s135, %s137
    %p144 = scmp.eq.s32.totalorder %s22, 1
    %p145 = por %p143, %p144
    %p146 = scmp.ne.s32.totalorder %s137, %s138
    %p147 = scmp.eq.s32.totalorder %s22, 0
    %p148 = por %p146, %p147
    %p149 = scmp.ne.s32.totalorder %s137, %s138
    %p150 = scmp.eq.s32.totalorder %s23, 1
    %p151 = por %p149, %p150
    %p153 = scmp.ne.s32.totalorder %s138, %s152
    %p154 = scmp.eq.s32.totalorder %s23, 0
    %p155 = por %p153, %p154
    %s157 = sadd.s32 %s156, 1
    %p160 = scmp.eq.s32.totalorder %s17, 1
    %p161 = scmp.ne.s32.totalorder %s156, %s158
    %p162 = scmp.eq.s32.totalorder %s17, 0
    %p163 = por %p161, %p162
    %p164 = scmp.ne.s32.totalorder %s156, %s158
    %p165 = scmp.eq.s32.totalorder %s22, 1
    %p166 = por %p164, %p165
    %p167 = scmp.ne.s32.totalorder %s158, %s159
    %p168 = scmp.eq.s32.totalorder %s22, 0
    %p169 = por %p167, %p168
    %p170 = scmp.ne.s32.totalorder %s158, %s159
    %p171 = scmp.eq.s32.totalorder %s23, 1
    %p172 = por %p170, %p171
    %p174 = scmp.ne.s32.totalorder %s159, %s173
    %p175 = scmp.eq.s32.totalorder %s23, 0
    %p176 = por %p174, %p175
    %s178 = sadd.s32 %s177, 1
    %p181 = scmp.eq.s32.totalorder %s17, 1
    %p182 = scmp.ne.s32.totalorder %s177, %s179
    %p183 = scmp.eq.s32.totalorder %s17, 0
    %p184 = por %p182, %p183
    %p185 = scmp.ne.s32.totalorder %s177, %s179
    %p186 = scmp.eq.s32.totalorder %s22, 1
    %p187 = por %p185, %p186
    %p188 = scmp.ne.s32.totalorder %s179, %s180
    %p189 = scmp.eq.s32.totalorder %s22, 0
    %p190 = por %p188, %p189
    %p191 = scmp.ne.s32.totalorder %s179, %s180
    %p192 = scmp.eq.s32.totalorder %s23, 1
    %p193 = por %p191, %p192
    %p195 = scmp.ne.s32.totalorder %s180, %s194
    %p196 = scmp.eq.s32.totalorder %s23, 0
    %p197 = por %p195, %p196
    %s199 = sadd.s32 %s198, 1
    %p202 = scmp.eq.s32.totalorder %s17, 1
    %p203 = scmp.ne.s32.totalorder %s198, %s200
    %p204 = scmp.eq.s32.totalorder %s17, 0
    %p205 = por %p203, %p204
    %p206 = scmp.ne.s32.totalorder %s198, %s200
    %p207 = scmp.eq.s32.totalorder %s22, 1
    %p208 = por %p206, %p207
    %p209 = scmp.ne.s32.totalorder %s200, %s201
    %p210 = scmp.eq.s32.totalorder %s22, 0
    %p211 = por %p209, %p210
    %p212 = scmp.ne.s32.totalorder %s200, %s201
    %p213 = scmp.eq.s32.totalorder %s23, 1
    %p214 = por %p212, %p213
    %p216 = scmp.ne.s32.totalorder %s201, %s215
    %p217 = scmp.eq.s32.totalorder %s23, 0
    %p218 = por %p216, %p217
    %s220 = sadd.s32 %s219, 1
    %p223 = scmp.eq.s32.totalorder %s17, 1
    %p224 = scmp.ne.s32.totalorder %s219, %s221
    %p225 = scmp.eq.s32.totalorder %s17, 0
    %p226 = por %p224, %p225
    %p227 = scmp.ne.s32.totalorder %s219, %s221
    %p228 = scmp.eq.s32.totalorder %s22, 1
    %p229 = por %p227, %p228
    %p230 = scmp.ne.s32.totalorder %s221, %s222
    %p231 = scmp.eq.s32.totalorder %s22, 0
    %p232 = por %p230, %p231
    %p233 = scmp.ne.s32.totalorder %s221, %s222
    %p234 = scmp.eq.s32.totalorder %s23, 1
    %p235 = por %p233, %p234
    %p237 = scmp.ne.s32.totalorder %s222, %s236
    %p238 = scmp.eq.s32.totalorder %s23, 0
    %p239 = por %p237, %p238
    %s241 = sadd.s32 %s240, 1
    %p244 = scmp.eq.s32.totalorder %s17, 1
    %p245 = scmp.ne.s32.totalorder %s240, %s242
    %p246 = scmp.eq.s32.totalorder %s17, 0
    %p247 = por %p245, %p246
    %p248 = scmp.ne.s32.totalorder %s240, %s242
    %p249 = scmp.eq.s32.totalorder %s22, 1
    %p250 = por %p248, %p249
    %p251 = scmp.ne.s32.totalorder %s242, %s243
    %p252 = scmp.eq.s32.totalorder %s22, 0
    %p253 = por %p251, %p252
    %p254 = scmp.ne.s32.totalorder %s242, %s243
    %p255 = scmp.eq.s32.totalorder %s23, 1
    %p256 = por %p254, %p255
    %p258 = scmp.ne.s32.totalorder %s243, %s257
    %p259 = scmp.eq.s32.totalorder %s23, 0
    %p260 = por %p258, %p259
    %s261 = ssub.s32 %s17, %s24
    %p262 = scmp.eq.s32.totalorder %s261, 0
    %s264 = sadd.s32 %s263, 1
    %s265 = scalar_select %p262, %s263, %s264
    %p268 = pneg %p262
    %p269 = scmp.eq.s32.totalorder %s17, 1
    %p270 = por %p268, %p269
    %p271 = scmp.ne.s32.totalorder %s263, %s266
    %p272 = scmp.eq.s32.totalorder %s17, 0
    %p273 = por %p271, %p272
    %p274 = scmp.ne.s32.totalorder %s263, %s266
    %p275 = scmp.eq.s32.totalorder %s22, 1
    %p276 = por %p274, %p275
    %p277 = scmp.ne.s32.totalorder %s266, %s267
    %p278 = scmp.eq.s32.totalorder %s22, 0
    %p279 = por %p277, %p278
    %p280 = scmp.ne.s32.totalorder %s266, %s267
    %p281 = scmp.eq.s32.totalorder %s23, 1
    %p282 = por %p280, %p281
    %p284 = scmp.ne.s32.totalorder %s267, %s283
    %p285 = scmp.eq.s32.totalorder %s23, 0
    %p286 = por %p284, %p285
    %p287 = scmp.le.s32.totalorder 1, %s17
    %p288 = scmp.lt.s32.totalorder %s17, 3
    %p289 = pnand %p287, %p288
    %p290 = pneg %p289
    // Predicated region
    $region9: #{inception_forward.1} parent=5 // pred_check
      _
    $region10: #{inception_forward.1} parent=5 // pred_check_branch
      %292 = sbr.rel (%p289) target = $region12
    $region11: #{inception_forward.1} parent=5 // pred_region
      %s293 = ssub.s32 %s17, 1
      // Predicated region
      $region13: #{inception_forward.1} parent=11 // pred_check
        %p294 = pneg %p64
      $region14: #{inception_forward.1} parent=11 // pred_check_branch
        %296 = sbr.rel (%p294) target = $region16
      $region15: #{inception_forward.1} parent=11 // pred_region
        _
      $region16: #{inception_forward.1} parent=11 // pred_fallthru
        _
      // Predicated region
      $region17: #{inception_forward.1} parent=11 // pred_check
        %p297 = pneg %p85
      $region18: #{inception_forward.1} parent=11 // pred_check_branch
        %299 = sbr.rel (%p297) target = $region20
      $region19: #{inception_forward.1} parent=11 // pred_region
        _
      $region20: #{inception_forward.1} parent=11 // pred_fallthru
        _
      // Predicated region
      $region21: #{inception_forward.1} parent=11 // pred_check
        %p300 = pneg %p106
      $region22: #{inception_forward.1} parent=11 // pred_check_branch
        %302 = sbr.rel (%p300) target = $region24
      $region23: #{inception_forward.1} parent=11 // pred_region
        _
      $region24: #{inception_forward.1} parent=11 // pred_fallthru
        _
      // Predicated region
      $region25: #{inception_forward.1} parent=11 // pred_check
        %p303 = pneg %p127
      $region26: #{inception_forward.1} parent=11 // pred_check_branch
        %305 = sbr.rel (%p303) target = $region28
      $region27: #{inception_forward.1} parent=11 // pred_region
        _
      $region28: #{inception_forward.1} parent=11 // pred_fallthru
        _
      // Predicated region
      $region29: #{inception_forward.1} parent=11 // pred_check
        %p306 = pneg %p148
      $region30: #{inception_forward.1} parent=11 // pred_check_branch
        %308 = sbr.rel (%p306) target = $region32
      $region31: #{inception_forward.1} parent=11 // pred_region
        _
      $region32: #{inception_forward.1} parent=11 // pred_fallthru
        _
      // Predicated region
      $region33: #{inception_forward.1} parent=11 // pred_check
        %p309 = pneg %p169
      $region34: #{inception_forward.1} parent=11 // pred_check_branch
        %311 = sbr.rel (%p309) target = $region36
      $region35: #{inception_forward.1} parent=11 // pred_region
        _
      $region36: #{inception_forward.1} parent=11 // pred_fallthru
        _
      // Predicated region
      $region37: #{inception_forward.1} parent=11 // pred_check
        %p312 = pneg %p190
      $region38: #{inception_forward.1} parent=11 // pred_check_branch
        %314 = sbr.rel (%p312) target = $region40
      $region39: #{inception_forward.1} parent=11 // pred_region
        _
      $region40: #{inception_forward.1} parent=11 // pred_fallthru
        _
      // Predicated region
      $region41: #{inception_forward.1} parent=11 // pred_check
        %p315 = pneg %p211
      $region42: #{inception_forward.1} parent=11 // pred_check_branch
        %317 = sbr.rel (%p315) target = $region44
      $region43: #{inception_forward.1} parent=11 // pred_region
        _
      $region44: #{inception_forward.1} parent=11 // pred_fallthru
        _
      // Predicated region
      $region45: #{inception_forward.1} parent=11 // pred_check
        %p318 = pneg %p232
      $region46: #{inception_forward.1} parent=11 // pred_check_branch
        %320 = sbr.rel (%p318) target = $region48
      $region47: #{inception_forward.1} parent=11 // pred_region
        _
      $region48: #{inception_forward.1} parent=11 // pred_fallthru
        _
      // Predicated region
      $region49: #{inception_forward.1} parent=11 // pred_check
        %p321 = pneg %p253
      $region50: #{inception_forward.1} parent=11 // pred_check_branch
        %323 = sbr.rel (%p321) target = $region52
      $region51: #{inception_forward.1} parent=11 // pred_region
        _
      $region52: #{inception_forward.1} parent=11 // pred_fallthru
        _
    $region12: #{inception_forward.1} parent=5 // pred_fallthru
      _
    %p324 = scmp.lt.s32.totalorder %s17, 2
    // Predicated region
    $region53: #{inception_forward.1} parent=5 // pred_check
      %p325 = pneg %p324
    $region54: #{inception_forward.1} parent=5 // pred_check_branch
      %327 = sbr.rel (%p325) target = $region56
    $region55: #{inception_forward.1} parent=5 // pred_region
      // Predicated region
      $region57: #{inception_forward.1} parent=55 // pred_check
        %p328 = pneg %p37
      $region58: #{inception_forward.1} parent=55 // pred_check_branch
        %330 = sbr.rel (%p328) target = $region60
      $region59: #{inception_forward.1} parent=55 // pred_region
        %p331 = scmp.lt.s32.totalorder %s17, 1
        %s332 = scalar_select %p331, %s17, 1
        %s333 = smul.addr %s332, 8
        %s334 = smul.addr %s333, 8
        %s335 = scalar_lea.vmem %s0, %s334
      $region60: #{inception_forward.1} parent=55 // pred_fallthru
        _
    $region56: #{inception_forward.1} parent=5 // pred_fallthru
      _
    %p336 = scmp.le.s32.totalorder 1, %s17
    %p337 = scmp.lt.s32.totalorder %s17, 3
    %p338 = pnand %p336, %p337
    %p339 = pneg %p338
    // Predicated region
    $region61: #{inception_forward.1} parent=5 // pred_check
      _
    $region62: #{inception_forward.1} parent=5 // pred_check_branch
      %341 = sbr.rel (%p338) target = $region64
    $region63: #{inception_forward.1} parent=5 // pred_region
      %s342 = ssub.s32 %s17, 1
      %p343 = scmp.lt.s32.totalorder %s22, 1
      %s344 = scalar_select %p343, %s22, 1
      %s345 = smul.addr %s344, 8
      %s346 = smul.addr %s345, 8
      %s347 = scalar_lea.vmem %s0, %s346
      %p348 = pneg %p43
      %p349 = pneg %p40
      %p350 = pneg %p64
      %p351 = pneg %p61
      %p352 = pneg %p85
      %p353 = pneg %p82
      %p354 = pneg %p106
      %p355 = pneg %p103
      %p356 = pneg %p127
      %p357 = pneg %p124
      %p358 = pneg %p148
      %p359 = pneg %p145
      %p360 = pneg %p169
      %p361 = pneg %p166
      %p362 = pneg %p190
      %p363 = pneg %p187
      %p364 = pneg %p211
      %p365 = pneg %p208
      %p366 = pneg %p232
      %p367 = pneg %p229
      %p368 = pneg %p253
      %p369 = pneg %p250
      %p370 = pneg %p279
      %p371 = pneg %p276
      %p372 = scmp.lt.s32.totalorder %s22, 1
      %s373 = scalar_select %p372, %s22, 1
      %s374 = smul.addr %s373, 8
      %s375 = smul.addr %s374, 8
      %s376 = scalar_lea.vmem %s11, %s375
      %p377 = scmp.lt.s32.totalorder %s22, 1
      %s378 = scalar_select %p377, %s22, 1
      %s379 = smul.addr %s378, 8
      %s380 = smul.addr %s379, 8
      %s381 = scalar_lea.vmem %s0, %s380
      %p382 = scmp.lt.s32.totalorder %s22, 1
      %s383 = scalar_select %p382, %s22, 1
      %s384 = smul.addr %s383, 8
      %s385 = smul.addr %s384, 8
      %s386 = scalar_lea.vmem %s11, %s385
      %v388 = vld [vmem:[%s381] sm:$0xff]
      %v389 = vld [vmem:[%s381 + $0x8] sm:$0xff]
      %v390 = vld [vmem:[%s381 + $0x10] sm:$0xff]
      %v391 = vld [vmem:[%s381 + $0x18] sm:$0xff]
      %v392 = vld [vmem:[%s381 + $0x20] sm:$0xff]
      %v393 = vld [vmem:[%s381 + $0x28] sm:$0xff]
      %v394 = vld [vmem:[%s381 + $0x30] sm:$0xff]
      %v395 = vld [vmem:[%s381 + $0x38] sm:$0xff]
      %v396 = vcombine.low %v388, %v392
      %v397 = vcombine.high %v388, %v392
      %v399 = vunpack.c.l.s4 1983009808
      %v400 = vunpack.c.0.s8 %v399
      %v401 = vlaneseq
      %v402 = vshrl.u32 %v401, 7
      %v403 = vsub.s32 %v400, %v402
      %v404 = vrot.slane %v396, %v403
      %v406 = vunpack.c.l.s4 1983009808
      %v407 = vunpack.c.0.s8 %v406
      %v408 = vlaneseq
      %v409 = vshrl.u32 %v408, 7
      %v410 = vsub.s32 %v407, %v409
      %v411 = vrot.slane %v397, %v410
      %v412 = vcombine.low %v390, %v394
      %v413 = vcombine.high %v390, %v394
      %v415 = vunpack.c.l.s4 1983009808
      %v416 = vunpack.c.0.s8 %v415
      %v417 = vlaneseq
      %v418 = vshrl.u32 %v417, 7
      %v419 = vsub.s32 %v416, %v418
      %v420 = vrot.slane %v412, %v419
      %v422 = vunpack.c.l.s4 1983009808
      %v423 = vunpack.c.0.s8 %v422
      %v424 = vlaneseq
      %v425 = vshrl.u32 %v424, 7
      %v426 = vsub.s32 %v423, %v425
      %v427 = vrot.slane %v413, %v426
      %v428 = vcombine.low %v404, %v420
      %v429 = vcombine.high %v404, %v420
      %v431 = vunpack.c.l.s4 1934713408
      %v432 = vunpack.c.0.s8 %v431
      %v433 = vlaneseq
      %v434 = vshrl.u32 %v433, 7
      %v435 = vsub.s32 %v432, %v434
      %v436 = vrot.slane %v428, %v435
      %v438 = vunpack.c.l.s4 1934713408
      %v439 = vunpack.c.0.s8 %v438
      %v440 = vlaneseq
      %v441 = vshrl.u32 %v440, 7
      %v442 = vsub.s32 %v439, %v441
      %v443 = vrot.slane %v429, %v442
      %v444 = vcombine.low %v411, %v427
      %v445 = vcombine.high %v411, %v427
      %v447 = vunpack.c.l.s4 1934713408
      %v448 = vunpack.c.0.s8 %v447
      %v449 = vlaneseq
      %v450 = vshrl.u32 %v449, 7
      %v451 = vsub.s32 %v448, %v450
      %v452 = vrot.slane %v444, %v451
      %v454 = vunpack.c.l.s4 1934713408
      %v455 = vunpack.c.0.s8 %v454
      %v456 = vlaneseq
      %v457 = vshrl.u32 %v456, 7
      %v458 = vsub.s32 %v455, %v457
      %v459 = vrot.slane %v445, %v458
      %v460 = vcombine.high %v436, 0.0
      %v461 = vcombine.high %v443, 0.0
      %v462 = vcombine.high %v452, 0.0
      %v463 = vcombine.high %v459, 0.0
      %v464 = vcombine.low %v389, %v393
      %v465 = vcombine.high %v389, %v393
      %v467 = vunpack.c.l.s4 1983009808
      %v468 = vunpack.c.0.s8 %v467
      %v469 = vlaneseq
      %v470 = vshrl.u32 %v469, 7
      %v471 = vsub.s32 %v468, %v470
      %v472 = vrot.slane %v464, %v471
      %v474 = vunpack.c.l.s4 1983009808
      %v475 = vunpack.c.0.s8 %v474
      %v476 = vlaneseq
      %v477 = vshrl.u32 %v476, 7
      %v478 = vsub.s32 %v475, %v477
      %v479 = vrot.slane %v465, %v478
      %v480 = vcombine.low %v391, %v395
      %v481 = vcombine.high %v391, %v395
      %v483 = vunpack.c.l.s4 1983009808
      %v484 = vunpack.c.0.s8 %v483
      %v485 = vlaneseq
      %v486 = vshrl.u32 %v485, 7
      %v487 = vsub.s32 %v484, %v486
      %v488 = vrot.slane %v480, %v487
      %v490 = vunpack.c.l.s4 1983009808
      %v491 = vunpack.c.0.s8 %v490
      %v492 = vlaneseq
      %v493 = vshrl.u32 %v492, 7
      %v494 = vsub.s32 %v491, %v493
      %v495 = vrot.slane %v481, %v494
      %v496 = vcombine.low %v472, %v488
      %v497 = vcombine.high %v472, %v488
      %v499 = vunpack.c.l.s4 1934713408
      %v500 = vunpack.c.0.s8 %v499
      %v501 = vlaneseq
      %v502 = vshrl.u32 %v501, 7
      %v503 = vsub.s32 %v500, %v502
      %v504 = vrot.slane %v496, %v503
      %v506 = vunpack.c.l.s4 1934713408
      %v507 = vunpack.c.0.s8 %v506
      %v508 = vlaneseq
      %v509 = vshrl.u32 %v508, 7
      %v510 = vsub.s32 %v507, %v509
      %v511 = vrot.slane %v497, %v510
      %v512 = vcombine.low %v479, %v495
      %v513 = vcombine.high %v479, %v495
      %v515 = vunpack.c.l.s4 1934713408
      %v516 = vunpack.c.0.s8 %v515
      %v517 = vlaneseq
      %v518 = vshrl.u32 %v517, 7
      %v519 = vsub.s32 %v516, %v518
      %v520 = vrot.slane %v512, %v519
      %v522 = vunpack.c.l.s4 1934713408
      %v523 = vunpack.c.0.s8 %v522
      %v524 = vlaneseq
      %v525 = vshrl.u32 %v524, 7
      %v526 = vsub.s32 %v523, %v525
      %v527 = vrot.slane %v513, %v526
      %v528 = vcombine.high %v504, 0.0
      %v529 = vcombine.high %v511, 0.0
      %v530 = vcombine.high %v520, 0.0
      %v531 = vcombine.high %v527, 0.0
      %533 = vrot.lane.b32.xlu0 %v460, 16
      %v534 = vpop.permute.xlu0 %533
      %537 = vrot.lane.b32.xlu0 %v443, 32
      %v538 = vpop.permute.xlu0 %537
      %541 = vrot.lane.b32.xlu0 %v461, 48
      %v542 = vpop.permute.xlu0 %541
      %545 = vrot.lane.b32.xlu0 %v452, 64
      %v546 = vpop.permute.xlu0 %545
      %549 = vrot.lane.b32.xlu0 %v462, 80
      %v550 = vpop.permute.xlu0 %549
      %553 = vrot.lane.b32.xlu0 %v459, 96
      %v554 = vpop.permute.xlu0 %553
      %557 = vrot.lane.b32.xlu0 %v463, 112
      %v558 = vpop.permute.xlu0 %557
      %561 = vrot.lane.b32.xlu0 %v528, 16
      %v562 = vpop.permute.xlu0 %561
      %565 = vrot.lane.b32.xlu0 %v511, 32
      %v566 = vpop.permute.xlu0 %565
      %569 = vrot.lane.b32.xlu0 %v529, 48
      %v570 = vpop.permute.xlu0 %569
      %573 = vrot.lane.b32.xlu0 %v520, 64
      %v574 = vpop.permute.xlu0 %573
      %577 = vrot.lane.b32.xlu0 %v530, 80
      %v578 = vpop.permute.xlu0 %577
      %581 = vrot.lane.b32.xlu0 %v527, 96
      %v582 = vpop.permute.xlu0 %581
      %585 = vrot.lane.b32.xlu0 %v531, 112
      %v586 = vpop.permute.xlu0 %585
      %vm588 = vcmask 130048
      %v589 = vsel %vm588, %v436, %v534
      %vm590 = vcmask 261120
      %v591 = vsel %vm590, %v589, %v538
      %vm592 = vcmask 392192
      %v593 = vsel %vm592, %v591, %v542
      %vm594 = vcmask 523264
      %v595 = vsel %vm594, %v593, %v546
      %vm596 = vcmask 654336
      %v597 = vsel %vm596, %v595, %v550
      %vm598 = vcmask 785408
      %v599 = vsel %vm598, %v597, %v554
      %vm600 = vcmask 916480
      %v601 = vsel %vm600, %v599, %v558
      %v602 = vsel %vm588, %v504, %v562
      %v603 = vsel %vm590, %v602, %v566
      %v604 = vsel %vm592, %v603, %v570
      %v605 = vsel %vm594, %v604, %v574
      %v606 = vsel %vm596, %v605, %v578
      %v607 = vsel %vm598, %v606, %v582
      %v608 = vsel %vm600, %v607, %v586
      %v609 = vld [vmem:[%s1] sm:$0xf]
      %v610 = vld [vmem:[%s1 + $0x4] sm:$0xf]
      %v611 = vpack.c.bf16 %v601, %v601
      %v612 = vpack.c.bf16 %v608, %v608
      %v613 = vld [vmem:[%s2] sm:$0xff]
      %v614 = vld [vmem:[%s2 + $0x8] sm:$0xff]
      %616 = vset.pattern.permute.xlu0 0
      %617 = vperm.xlu0 %616, %v613
      %v618 = vpop.permute.xlu0 %617
      %621 = vset.pattern.permute.xlu0 0
      %622 = vperm.xlu0 %621, %v614
      %v623 = vpop.permute.xlu0 %622
      %v627 = vunpack.c.l.b16 %v609
      %v628 = vunpack.c.l.b16 %v610
      %v629 = vpack.c.b16 %v628, %v627
      %vm630 = vcmask 31744
      %v632 = vsel %vm630, %v629, 0
      %vm634 = vcmask 1041408
      %v636 = vsel %vm634, %v611, 0
      %v639 = vsel %vm634, %v612, 0
      %641 = vmatprep.subr.bf16.mxu0 %v639
      %642 = vmatpush1.bf16.msra.mxu0 %v636
      %643 = vmatprep.subr.bf16.mxu0 0
      %644 = vmatpush1.bf16.msra.mxu0 0
      %645 = vmatprep.subr.bf16.mxu0 0
      %646 = vmatpush1.bf16.msra.mxu0 0
      %647 = vmatprep.subr.bf16.mxu0 0
      %648 = vmatpush1.bf16.msra.mxu0 0
      %649 = vmatprep.subr.bf16.mxu0 0
      %650 = vmatpush1.bf16.msra.mxu0 0
      %651 = vmatprep.subr.bf16.mxu0 0
      %652 = vmatpush1.bf16.msra.mxu0 0
      %653 = vmatprep.subr.bf16.mxu0 0
      %654 = vmatpush1.bf16.msra.mxu0 0
      %655 = vmatprep.subr.bf16.mxu0 0
      %656 = vmatpush1.bf16.msra.mxu0 0
      %657 = vmatprep.subr.bf16.mxu0 0
      %658 = vmatpush1.bf16.msra.mxu0 0
      %659 = vmatprep.subr.bf16.mxu0 0
      %660 = vmatpush1.bf16.msra.mxu0 0
      %661 = vmatprep.subr.bf16.mxu0 0
      %662 = vmatpush1.bf16.msra.mxu0 0
      %663 = vmatprep.subr.bf16.mxu0 0
      %664 = vmatpush1.bf16.msra.mxu0 0
      %665 = vmatprep.subr.bf16.mxu0 0
      %666 = vmatpush1.bf16.msra.mxu0 0
      %667 = vmatprep.subr.bf16.mxu0 0
      %668 = vmatpush1.bf16.msra.mxu0 0
      %669 = vmatprep.subr.bf16.mxu0 0
      %670 = vmatpush1.bf16.msra.mxu0 0
      %671 = vmatprep.subr.bf16.mxu0 0
      %672 = vmatpush1.bf16.msra.mxu0 0
      %673 = vmatprep.mubr.bf16.mxu0 0
      %674 = vmatmul.mubr.bf16.gmra.mrb[0].mxu0 %v632
      %v675 = vpop.f32.mrb[0].mxu0
      %v676 = vadd.f32 %v618, %v675
      %v677 = vpop.f32.mrb[0].mxu0
      %v678 = vadd.f32 %v618, %v677
      %v679 = vpop.f32.mrb[0].mxu0
      %v680 = vadd.f32 %v623, %v679
      %v681 = vpop.f32.mrb[0].mxu0
      %v682 = vadd.f32 %v623, %v681
      %683 = vdwg.mxu0
      %v684 = vmax.f32 %v676, 0.0
      %v685 = vmax.f32 %v678, 0.0
      %v686 = vmax.f32 %v680, 0.0
      %v687 = vmax.f32 %v682, 0.0
      %vm688 = vcmask 146432
      %689 = vst.msk [vmem:[#allocation3] sm:$0xff] %vm688, 0.0
      %690 = vst.msk [vmem:[#allocation3 + $0x8] sm:$0xff] %vm688, 0.0
      %vm691 = vcmask 140288
      %692 = vst.msk [vmem:[#allocation3 + $0x10] sm:$0x3] %vm691, 0.0
      %693 = vst.msk [vmem:[#allocation3 + $0x18] sm:$0xff] %vm688, 0.0
      %694 = vst.msk [vmem:[#allocation3 + $0x20] sm:$0xff] %vm688, 0.0
      %695 = vst.msk [vmem:[#allocation3 + $0x28] sm:$0x3] %vm691, 0.0
      %696 = vst.msk [vmem:[#allocation3 + $0x30] sm:$0xff] %vm688, 0.0
      %697 = vst.msk [vmem:[#allocation3 + $0x38] sm:$0xff] %vm688, 0.0
      %698 = vst.msk [vmem:[#allocation3 + $0x40] sm:$0x3] %vm691, 0.0
      %699 = vst.msk [vmem:[#allocation3 + $0x48] sm:$0xff] %vm688, 0.0
      %700 = vst.msk [vmem:[#allocation3 + $0x50] sm:$0xff] %vm688, 0.0
      %701 = vst.msk [vmem:[#allocation3 + $0x58] sm:$0x3] %vm691, 0.0
      %703 = vrot.lane.b32.xlu0 %v686, 112
      %v704 = vpop.permute.xlu0 %703
      %706 = vrot.lane.b32.xlu0 %v686, 96
      %v707 = vpop.permute.xlu0 %706
      %709 = vrot.lane.b32.xlu0 %v686, 80
      %v710 = vpop.permute.xlu0 %709
      %712 = vrot.lane.b32.xlu0 %v686, 64
      %v713 = vpop.permute.xlu0 %712
      %715 = vrot.lane.b32.xlu0 %v686, 48
      %v716 = vpop.permute.xlu0 %715
      %718 = vrot.lane.b32.xlu0 %v686, 32
      %v719 = vpop.permute.xlu0 %718
      %721 = vrot.lane.b32.xlu0 %v686, 16
      %v722 = vpop.permute.xlu0 %721
      %725 = vrot.lane.b32.xlu0 %v687, 112
      %v726 = vpop.permute.xlu0 %725
      %728 = vrot.lane.b32.xlu0 %v687, 96
      %v729 = vpop.permute.xlu0 %728
      %731 = vrot.lane.b32.xlu0 %v687, 80
      %v732 = vpop.permute.xlu0 %731
      %734 = vrot.lane.b32.xlu0 %v687, 64
      %v735 = vpop.permute.xlu0 %734
      %737 = vrot.lane.b32.xlu0 %v687, 48
      %v738 = vpop.permute.xlu0 %737
      %740 = vrot.lane.b32.xlu0 %v687, 32
      %v741 = vpop.permute.xlu0 %740
      %743 = vrot.lane.b32.xlu0 %v687, 16
      %v744 = vpop.permute.xlu0 %743
      %v746 = vcombine.low %v686, %v707
      %v748 = vunpack.c.l.s4 1983009808
      %v749 = vunpack.c.0.s8 %v748
      %v750 = vlaneseq
      %v751 = vshrl.u32 %v750, 7
      %v752 = vsub.s32 %v749, %v751
      %v753 = vrot.slane %v746, %v752
      %v754 = vcombine.low %v704, %v710
      %v756 = vunpack.c.l.s4 1983009808
      %v757 = vunpack.c.0.s8 %v756
      %v758 = vlaneseq
      %v759 = vshrl.u32 %v758, 7
      %v760 = vsub.s32 %v757, %v759
      %v761 = vrot.slane %v754, %v760
      %v762 = vcombine.low %v713, %v719
      %v764 = vunpack.c.l.s4 1983009808
      %v765 = vunpack.c.0.s8 %v764
      %v766 = vlaneseq
      %v767 = vshrl.u32 %v766, 7
      %v768 = vsub.s32 %v765, %v767
      %v769 = vrot.slane %v762, %v768
      %v770 = vcombine.low %v716, %v722
      %v772 = vunpack.c.l.s4 1983009808
      %v773 = vunpack.c.0.s8 %v772
      %v774 = vlaneseq
      %v775 = vshrl.u32 %v774, 7
      %v776 = vsub.s32 %v773, %v775
      %v777 = vrot.slane %v770, %v776
      %v778 = vcombine.low %v753, %v761
      %v779 = vcombine.high %v753, %v761
      %v781 = vunpack.c.l.s4 1934713408
      %v782 = vunpack.c.0.s8 %v781
      %v783 = vlaneseq
      %v784 = vshrl.u32 %v783, 7
      %v785 = vsub.s32 %v782, %v784
      %v786 = vrot.slane %v778, %v785
      %v788 = vunpack.c.l.s4 1934713408
      %v789 = vunpack.c.0.s8 %v788
      %v790 = vlaneseq
      %v791 = vshrl.u32 %v790, 7
      %v792 = vsub.s32 %v789, %v791
      %v793 = vrot.slane %v779, %v792
      %v794 = vcombine.low %v769, %v777
      %v795 = vcombine.high %v769, %v777
      %v797 = vunpack.c.l.s4 1934713408
      %v798 = vunpack.c.0.s8 %v797
      %v799 = vlaneseq
      %v800 = vshrl.u32 %v799, 7
      %v801 = vsub.s32 %v798, %v800
      %v802 = vrot.slane %v794, %v801
      %v804 = vunpack.c.l.s4 1934713408
      %v805 = vunpack.c.0.s8 %v804
      %v806 = vlaneseq
      %v807 = vshrl.u32 %v806, 7
      %v808 = vsub.s32 %v805, %v807
      %v809 = vrot.slane %v795, %v808
      %v810 = vcombine.low %v786, %v802
      %v811 = vcombine.high %v786, %v802
      %v812 = vcombine.low %v793, %v809
      %v813 = vcombine.high %v793, %v809
      %v814 = vcombine.low %v687, %v729
      %v816 = vunpack.c.l.s4 1983009808
      %v817 = vunpack.c.0.s8 %v816
      %v818 = vlaneseq
      %v819 = vshrl.u32 %v818, 7
      %v820 = vsub.s32 %v817, %v819
      %v821 = vrot.slane %v814, %v820
      %v822 = vcombine.low %v726, %v732
      %v824 = vunpack.c.l.s4 1983009808
      %v825 = vunpack.c.0.s8 %v824
      %v826 = vlaneseq
      %v827 = vshrl.u32 %v826, 7
      %v828 = vsub.s32 %v825, %v827
      %v829 = vrot.slane %v822, %v828
      %v830 = vcombine.low %v735, %v741
      %v832 = vunpack.c.l.s4 1983009808
      %v833 = vunpack.c.0.s8 %v832
      %v834 = vlaneseq
      %v835 = vshrl.u32 %v834, 7
      %v836 = vsub.s32 %v833, %v835
      %v837 = vrot.slane %v830, %v836
      %v838 = vcombine.low %v738, %v744
      %v840 = vunpack.c.l.s4 1983009808
      %v841 = vunpack.c.0.s8 %v840
      %v842 = vlaneseq
      %v843 = vshrl.u32 %v842, 7
      %v844 = vsub.s32 %v841, %v843
      %v845 = vrot.slane %v838, %v844
      %v846 = vcombine.low %v821, %v829
      %v847 = vcombine.high %v821, %v829
      %v849 = vunpack.c.l.s4 1934713408
      %v850 = vunpack.c.0.s8 %v849
      %v851 = vlaneseq
      %v852 = vshrl.u32 %v851, 7
      %v853 = vsub.s32 %v850, %v852
      %v854 = vrot.slane %v846, %v853
      %v856 = vunpack.c.l.s4 1934713408
      %v857 = vunpack.c.0.s8 %v856
      %v858 = vlaneseq
      %v859 = vshrl.u32 %v858, 7
      %v860 = vsub.s32 %v857, %v859
      %v861 = vrot.slane %v847, %v860
      %v862 = vcombine.low %v837, %v845
      %v863 = vcombine.high %v837, %v845
      %v865 = vunpack.c.l.s4 1934713408
      %v866 = vunpack.c.0.s8 %v865
      %v867 = vlaneseq
      %v868 = vshrl.u32 %v867, 7
      %v869 = vsub.s32 %v866, %v868
      %v870 = vrot.slane %v862, %v869
      %v872 = vunpack.c.l.s4 1934713408
      %v873 = vunpack.c.0.s8 %v872
      %v874 = vlaneseq
      %v875 = vshrl.u32 %v874, 7
      %v876 = vsub.s32 %v873, %v875
      %v877 = vrot.slane %v863, %v876
      %v878 = vcombine.low %v854, %v870
      %v879 = vcombine.high %v854, %v870
      %v880 = vcombine.low %v861, %v877
      %v881 = vcombine.high %v861, %v877
      %890 = vrot.lane.b32.xlu0 %v810, 1
      %v891 = vpop.permute.xlu0 %890
      %892 = vrot.lane.b32.xlu0 %v878, 1
      %v893 = vpop.permute.xlu0 %892
      %894 = vrot.lane.b32.xlu0 %v811, 1
      %v895 = vpop.permute.xlu0 %894
      %896 = vrot.lane.b32.xlu0 %v879, 1
      %v897 = vpop.permute.xlu0 %896
      %898 = vrot.lane.b32.xlu0 %v812, 1
      %v899 = vpop.permute.xlu0 %898
      %900 = vrot.lane.b32.xlu0 %v880, 1
      %v901 = vpop.permute.xlu0 %900
      %902 = vrot.lane.b32.xlu0 %v813, 1
      %v903 = vpop.permute.xlu0 %902
      %904 = vrot.lane.b32.xlu0 %v881, 1
      %v905 = vpop.permute.xlu0 %904
      %vm914 = vcmask 138248
      %915 = vst.msk [vmem:[#allocation3 + $0x1] sm:$0xff] %vm914, %v891
      %916 = vst.msk [vmem:[#allocation3 + $0x9] sm:$0xff] %vm914, %v893
      %917 = vst.msk [vmem:[#allocation3 + $0x19] sm:$0xff] %vm914, %v895
      %918 = vst.msk [vmem:[#allocation3 + $0x21] sm:$0xff] %vm914, %v897
      %919 = vst.msk [vmem:[#allocation3 + $0x31] sm:$0xff] %vm914, %v899
      %920 = vst.msk [vmem:[#allocation3 + $0x39] sm:$0xff] %vm914, %v901
      %921 = vst.msk [vmem:[#allocation3 + $0x49] sm:$0xff] %vm914, %v903
      %922 = vst.msk [vmem:[#allocation3 + $0x51] sm:$0xff] %vm914, %v905
      %v923 = vld [vmem:[#allocation3] sm:$0xff]
      %v924 = vld [vmem:[#allocation3 + $0x8] sm:$0xff]
      %v925 = vld [vmem:[#allocation3 + $0x10] sm:$0x3]
      %v926 = vld [vmem:[#allocation3 + $0x18] sm:$0xff]
      %v927 = vld [vmem:[#allocation3 + $0x20] sm:$0xff]
      %v928 = vld [vmem:[#allocation3 + $0x28] sm:$0x3]
      %v929 = vld [vmem:[#allocation3 + $0x30] sm:$0xff]
      %v930 = vld [vmem:[#allocation3 + $0x38] sm:$0xff]
      %v931 = vld [vmem:[#allocation3 + $0x40] sm:$0x3]
      %v932 = vld [vmem:[#allocation3 + $0x48] sm:$0xff]
      %v933 = vld [vmem:[#allocation3 + $0x50] sm:$0xff]
      %v934 = vld [vmem:[#allocation3 + $0x58] sm:$0x3]
      %v935 = vcombine.low %v923, %v929
      %v936 = vcombine.high %v923, %v929
      %v938 = vunpack.c.l.s4 1983009808
      %v939 = vunpack.c.0.s8 %v938
      %v940 = vlaneseq
      %v941 = vshrl.u32 %v940, 7
      %v942 = vsub.s32 %v939, %v941
      %v943 = vrot.slane %v935, %v942
      %v945 = vunpack.c.l.s4 1983009808
      %v946 = vunpack.c.0.s8 %v945
      %v947 = vlaneseq
      %v948 = vshrl.u32 %v947, 7
      %v949 = vsub.s32 %v946, %v948
      %v950 = vrot.slane %v936, %v949
      %v951 = vcombine.low %v926, %v932
      %v952 = vcombine.high %v926, %v932
      %v954 = vunpack.c.l.s4 1983009808
      %v955 = vunpack.c.0.s8 %v954
      %v956 = vlaneseq
      %v957 = vshrl.u32 %v956, 7
      %v958 = vsub.s32 %v955, %v957
      %v959 = vrot.slane %v951, %v958
      %v961 = vunpack.c.l.s4 1983009808
      %v962 = vunpack.c.0.s8 %v961
      %v963 = vlaneseq
      %v964 = vshrl.u32 %v963, 7
      %v965 = vsub.s32 %v962, %v964
      %v966 = vrot.slane %v952, %v965
      %v967 = vcombine.low %v943, %v959
      %v968 = vcombine.high %v943, %v959
      %v970 = vunpack.c.l.s4 1934713408
      %v971 = vunpack.c.0.s8 %v970
      %v972 = vlaneseq
      %v973 = vshrl.u32 %v972, 7
      %v974 = vsub.s32 %v971, %v973
      %v975 = vrot.slane %v967, %v974
      %v977 = vunpack.c.l.s4 1934713408
      %v978 = vunpack.c.0.s8 %v977
      %v979 = vlaneseq
      %v980 = vshrl.u32 %v979, 7
      %v981 = vsub.s32 %v978, %v980
      %v982 = vrot.slane %v968, %v981
      %v983 = vcombine.low %v950, %v966
      %v984 = vcombine.high %v950, %v966
      %v986 = vunpack.c.l.s4 1934713408
      %v987 = vunpack.c.0.s8 %v986
      %v988 = vlaneseq
      %v989 = vshrl.u32 %v988, 7
      %v990 = vsub.s32 %v987, %v989
      %v991 = vrot.slane %v983, %v990
      %v993 = vunpack.c.l.s4 1934713408
      %v994 = vunpack.c.0.s8 %v993
      %v995 = vlaneseq
      %v996 = vshrl.u32 %v995, 7
      %v997 = vsub.s32 %v994, %v996
      %v998 = vrot.slane %v984, %v997
      %v999 = vcombine.high %v975, 0.0
      %v1000 = vcombine.high %v982, 0.0
      %v1001 = vcombine.high %v991, 0.0
      %v1002 = vcombine.high %v998, 0.0
      %v1003 = vcombine.low %v924, %v930
      %v1004 = vcombine.high %v924, %v930
      %v1006 = vunpack.c.l.s4 1983009808
      %v1007 = vunpack.c.0.s8 %v1006
      %v1008 = vlaneseq
      %v1009 = vshrl.u32 %v1008, 7
      %v1010 = vsub.s32 %v1007, %v1009
      %v1011 = vrot.slane %v1003, %v1010
      %v1013 = vunpack.c.l.s4 1983009808
      %v1014 = vunpack.c.0.s8 %v1013
      %v1015 = vlaneseq
      %v1016 = vshrl.u32 %v1015, 7
      %v1017 = vsub.s32 %v1014, %v1016
      %v1018 = vrot.slane %v1004, %v1017
      %v1019 = vcombine.low %v927, %v933
      %v1020 = vcombine.high %v927, %v933
      %v1022 = vunpack.c.l.s4 1983009808
      %v1023 = vunpack.c.0.s8 %v1022
      %v1024 = vlaneseq
      %v1025 = vshrl.u32 %v1024, 7
      %v1026 = vsub.s32 %v1023, %v1025
      %v1027 = vrot.slane %v1019, %v1026
      %v1029 = vunpack.c.l.s4 1983009808
      %v1030 = vunpack.c.0.s8 %v1029
      %v1031 = vlaneseq
      %v1032 = vshrl.u32 %v1031, 7
      %v1033 = vsub.s32 %v1030, %v1032
      %v1034 = vrot.slane %v1020, %v1033
      %v1035 = vcombine.low %v1011, %v1027
      %v1036 = vcombine.high %v1011, %v1027
      %v1038 = vunpack.c.l.s4 1934713408
      %v1039 = vunpack.c.0.s8 %v1038
      %v1040 = vlaneseq
      %v1041 = vshrl.u32 %v1040, 7
      %v1042 = vsub.s32 %v1039, %v1041
      %v1043 = vrot.slane %v1035, %v1042
      %v1045 = vunpack.c.l.s4 1934713408
      %v1046 = vunpack.c.0.s8 %v1045
      %v1047 = vlaneseq
      %v1048 = vshrl.u32 %v1047, 7
      %v1049 = vsub.s32 %v1046, %v1048
      %v1050 = vrot.slane %v1036, %v1049
      %v1051 = vcombine.low %v1018, %v1034
      %v1052 = vcombine.high %v1018, %v1034
      %v1054 = vunpack.c.l.s4 1934713408
      %v1055 = vunpack.c.0.s8 %v1054
      %v1056 = vlaneseq
      %v1057 = vshrl.u32 %v1056, 7
      %v1058 = vsub.s32 %v1055, %v1057
      %v1059 = vrot.slane %v1051, %v1058
      %v1061 = vunpack.c.l.s4 1934713408
      %v1062 = vunpack.c.0.s8 %v1061
      %v1063 = vlaneseq
      %v1064 = vshrl.u32 %v1063, 7
      %v1065 = vsub.s32 %v1062, %v1064
      %v1066 = vrot.slane %v1052, %v1065
      %v1067 = vcombine.high %v1043, 0.0
      %v1068 = vcombine.high %v1050, 0.0
      %v1069 = vcombine.high %v1059, 0.0
      %v1070 = vcombine.high %v1066, 0.0
      %1072 = vrot.lane.b32.xlu0 %v999, 16
      %v1073 = vpop.permute.xlu0 %1072
      %1076 = vrot.lane.b32.xlu0 %v982, 32
      %v1077 = vpop.permute.xlu0 %1076
      %1080 = vrot.lane.b32.xlu0 %v1000, 48
      %v1081 = vpop.permute.xlu0 %1080
      %1084 = vrot.lane.b32.xlu0 %v991, 64
      %v1085 = vpop.permute.xlu0 %1084
      %1088 = vrot.lane.b32.xlu0 %v1001, 80
      %v1089 = vpop.permute.xlu0 %1088
      %1092 = vrot.lane.b32.xlu0 %v998, 96
      %v1093 = vpop.permute.xlu0 %1092
      %1096 = vrot.lane.b32.xlu0 %v1002, 112
      %v1097 = vpop.permute.xlu0 %1096
      %1100 = vrot.lane.b32.xlu0 %v1067, 16
      %v1101 = vpop.permute.xlu0 %1100
      %1104 = vrot.lane.b32.xlu0 %v1050, 32
      %v1105 = vpop.permute.xlu0 %1104
      %1108 = vrot.lane.b32.xlu0 %v1068, 48
      %v1109 = vpop.permute.xlu0 %1108
      %1112 = vrot.lane.b32.xlu0 %v1059, 64
      %v1113 = vpop.permute.xlu0 %1112
      %1116 = vrot.lane.b32.xlu0 %v1069, 80
      %v1117 = vpop.permute.xlu0 %1116
      %1120 = vrot.lane.b32.xlu0 %v1066, 96
      %v1121 = vpop.permute.xlu0 %1120
      %1124 = vrot.lane.b32.xlu0 %v1070, 112
      %v1125 = vpop.permute.xlu0 %1124
      %v1127 = vsel %vm588, %v975, %v1073
      %v1128 = vsel %vm590, %v1127, %v1077
      %v1129 = vsel %vm592, %v1128, %v1081
      %v1130 = vsel %vm594, %v1129, %v1085
      %v1131 = vsel %vm596, %v1130, %v1089
      %v1132 = vsel %vm598, %v1131, %v1093
      %v1133 = vsel %vm600, %v1132, %v1097
      %v1134 = vsel %vm588, %v1043, %v1101
      %v1135 = vsel %vm590, %v1134, %v1105
      %v1136 = vsel %vm592, %v1135, %v1109
      %v1137 = vsel %vm594, %v1136, %v1113
      %v1138 = vsel %vm596, %v1137, %v1117
      %v1139 = vsel %vm598, %v1138, %v1121
      %v1140 = vsel %vm600, %v1139, %v1125
      %1149 = vrot.lane.b32.xlu0 %v923, 127
      %v1150 = vpop.permute.xlu0 %1149
      %1151 = vrot.lane.b32.xlu0 %v924, 127
      %v1152 = vpop.permute.xlu0 %1151
      %1153 = vrot.lane.b32.xlu0 %v926, 127
      %v1154 = vpop.permute.xlu0 %1153
      %1155 = vrot.lane.b32.xlu0 %v927, 127
      %v1156 = vpop.permute.xlu0 %1155
      %1157 = vrot.lane.b32.xlu0 %v929, 127
      %v1158 = vpop.permute.xlu0 %1157
      %1159 = vrot.lane.b32.xlu0 %v930, 127
      %v1160 = vpop.permute.xlu0 %1159
      %1161 = vrot.lane.b32.xlu0 %v932, 127
      %v1162 = vpop.permute.xlu0 %1161
      %1163 = vrot.lane.b32.xlu0 %v933, 127
      %v1164 = vpop.permute.xlu0 %1163
      %v1173 = vcombine.low %v1150, %v1158
      %v1174 = vcombine.high %v1150, %v1158
      %v1176 = vunpack.c.l.s4 1983009808
      %v1177 = vunpack.c.0.s8 %v1176
      %v1178 = vlaneseq
      %v1179 = vshrl.u32 %v1178, 7
      %v1180 = vsub.s32 %v1177, %v1179
      %v1181 = vrot.slane %v1173, %v1180
      %v1183 = vunpack.c.l.s4 1983009808
      %v1184 = vunpack.c.0.s8 %v1183
      %v1185 = vlaneseq
      %v1186 = vshrl.u32 %v1185, 7
      %v1187 = vsub.s32 %v1184, %v1186
      %v1188 = vrot.slane %v1174, %v1187
      %v1189 = vcombine.low %v1154, %v1162
      %v1190 = vcombine.high %v1154, %v1162
      %v1192 = vunpack.c.l.s4 1983009808
      %v1193 = vunpack.c.0.s8 %v1192
      %v1194 = vlaneseq
      %v1195 = vshrl.u32 %v1194, 7
      %v1196 = vsub.s32 %v1193, %v1195
      %v1197 = vrot.slane %v1189, %v1196
      %v1199 = vunpack.c.l.s4 1983009808
      %v1200 = vunpack.c.0.s8 %v1199
      %v1201 = vlaneseq
      %v1202 = vshrl.u32 %v1201, 7
      %v1203 = vsub.s32 %v1200, %v1202
      %v1204 = vrot.slane %v1190, %v1203
      %v1205 = vcombine.low %v1181, %v1197
      %v1206 = vcombine.high %v1181, %v1197
      %v1208 = vunpack.c.l.s4 1934713408
      %v1209 = vunpack.c.0.s8 %v1208
      %v1210 = vlaneseq
      %v1211 = vshrl.u32 %v1210, 7
      %v1212 = vsub.s32 %v1209, %v1211
      %v1213 = vrot.slane %v1205, %v1212
      %v1215 = vunpack.c.l.s4 1934713408
      %v1216 = vunpack.c.0.s8 %v1215
      %v1217 = vlaneseq
      %v1218 = vshrl.u32 %v1217, 7
      %v1219 = vsub.s32 %v1216, %v1218
      %v1220 = vrot.slane %v1206, %v1219
      %v1221 = vcombine.low %v1188, %v1204
      %v1222 = vcombine.high %v1188, %v1204
      %v1224 = vunpack.c.l.s4 1934713408
      %v1225 = vunpack.c.0.s8 %v1224
      %v1226 = vlaneseq
      %v1227 = vshrl.u32 %v1226, 7
      %v1228 = vsub.s32 %v1225, %v1227
      %v1229 = vrot.slane %v1221, %v1228
      %v1231 = vunpack.c.l.s4 1934713408
      %v1232 = vunpack.c.0.s8 %v1231
      %v1233 = vlaneseq
      %v1234 = vshrl.u32 %v1233, 7
      %v1235 = vsub.s32 %v1232, %v1234
      %v1236 = vrot.slane %v1222, %v1235
      %v1237 = vcombine.high %v1213, 0.0
      %v1238 = vcombine.high %v1220, 0.0
      %v1239 = vcombine.high %v1229, 0.0
      %v1240 = vcombine.high %v1236, 0.0
      %v1241 = vcombine.low %v1152, %v1160
      %v1242 = vcombine.high %v1152, %v1160
      %v1244 = vunpack.c.l.s4 1983009808
      %v1245 = vunpack.c.0.s8 %v1244
      %v1246 = vlaneseq
      %v1247 = vshrl.u32 %v1246, 7
      %v1248 = vsub.s32 %v1245, %v1247
      %v1249 = vrot.slane %v1241, %v1248
      %v1251 = vunpack.c.l.s4 1983009808
      %v1252 = vunpack.c.0.s8 %v1251
      %v1253 = vlaneseq
      %v1254 = vshrl.u32 %v1253, 7
      %v1255 = vsub.s32 %v1252, %v1254
      %v1256 = vrot.slane %v1242, %v1255
      %v1257 = vcombine.low %v1156, %v1164
      %v1258 = vcombine.high %v1156, %v1164
      %v1260 = vunpack.c.l.s4 1983009808
      %v1261 = vunpack.c.0.s8 %v1260
      %v1262 = vlaneseq
      %v1263 = vshrl.u32 %v1262, 7
      %v1264 = vsub.s32 %v1261, %v1263
      %v1265 = vrot.slane %v1257, %v1264
      %v1267 = vunpack.c.l.s4 1983009808
      %v1268 = vunpack.c.0.s8 %v1267
      %v1269 = vlaneseq
      %v1270 = vshrl.u32 %v1269, 7
      %v1271 = vsub.s32 %v1268, %v1270
      %v1272 = vrot.slane %v1258, %v1271
      %v1273 = vcombine.low %v1249, %v1265
      %v1274 = vcombine.high %v1249, %v1265
      %v1276 = vunpack.c.l.s4 1934713408
      %v1277 = vunpack.c.0.s8 %v1276
      %v1278 = vlaneseq
      %v1279 = vshrl.u32 %v1278, 7
      %v1280 = vsub.s32 %v1277, %v1279
      %v1281 = vrot.slane %v1273, %v1280
      %v1283 = vunpack.c.l.s4 1934713408
      %v1284 = vunpack.c.0.s8 %v1283
      %v1285 = vlaneseq
      %v1286 = vshrl.u32 %v1285, 7
      %v1287 = vsub.s32 %v1284, %v1286
      %v1288 = vrot.slane %v1274, %v1287
      %v1289 = vcombine.low %v1256, %v1272
      %v1290 = vcombine.high %v1256, %v1272
      %v1292 = vunpack.c.l.s4 1934713408
      %v1293 = vunpack.c.0.s8 %v1292
      %v1294 = vlaneseq
      %v1295 = vshrl.u32 %v1294, 7
      %v1296 = vsub.s32 %v1293, %v1295
      %v1297 = vrot.slane %v1289, %v1296
      %v1299 = vunpack.c.l.s4 1934713408
      %v1300 = vunpack.c.0.s8 %v1299
      %v1301 = vlaneseq
      %v1302 = vshrl.u32 %v1301, 7
      %v1303 = vsub.s32 %v1300, %v1302
      %v1304 = vrot.slane %v1290, %v1303
      %v1305 = vcombine.high %v1281, 0.0
      %v1306 = vcombine.high %v1288, 0.0
      %v1307 = vcombine.high %v1297, 0.0
      %v1308 = vcombine.high %v1304, 0.0
      %1310 = vrot.lane.b32.xlu0 %v1237, 16
      %v1311 = vpop.permute.xlu0 %1310
      %1314 = vrot.lane.b32.xlu0 %v1220, 32
      %v1315 = vpop.permute.xlu0 %1314
      %1318 = vrot.lane.b32.xlu0 %v1238, 48
      %v1319 = vpop.permute.xlu0 %1318
      %1322 = vrot.lane.b32.xlu0 %v1229, 64
      %v1323 = vpop.permute.xlu0 %1322
      %1326 = vrot.lane.b32.xlu0 %v1239, 80
      %v1327 = vpop.permute.xlu0 %1326
      %1330 = vrot.lane.b32.xlu0 %v1236, 96
      %v1331 = vpop.permute.xlu0 %1330
      %1334 = vrot.lane.b32.xlu0 %v1240, 112
      %v1335 = vpop.permute.xlu0 %1334
      %1338 = vrot.lane.b32.xlu0 %v1305, 16
      %v1339 = vpop.permute.xlu0 %1338
      %1342 = vrot.lane.b32.xlu0 %v1288, 32
      %v1343 = vpop.permute.xlu0 %1342
      %1346 = vrot.lane.b32.xlu0 %v1306, 48
      %v1347 = vpop.permute.xlu0 %1346
      %1350 = vrot.lane.b32.xlu0 %v1297, 64
      %v1351 = vpop.permute.xlu0 %1350
      %1354 = vrot.lane.b32.xlu0 %v1307, 80
      %v1355 = vpop.permute.xlu0 %1354
      %1358 = vrot.lane.b32.xlu0 %v1304, 96
      %v1359 = vpop.permute.xlu0 %1358
      %1362 = vrot.lane.b32.xlu0 %v1308, 112
      %v1363 = vpop.permute.xlu0 %1362
      %v1365 = vsel %vm588, %v1213, %v1311
      %v1366 = vsel %vm590, %v1365, %v1315
      %v1367 = vsel %vm592, %v1366, %v1319
      %v1368 = vsel %vm594, %v1367, %v1323
      %v1369 = vsel %vm596, %v1368, %v1327
      %v1370 = vsel %vm598, %v1369, %v1331
      %v1371 = vsel %vm600, %v1370, %v1335
      %v1372 = vsel %vm588, %v1281, %v1339
      %v1373 = vsel %vm590, %v1372, %v1343
      %v1374 = vsel %vm592, %v1373, %v1347
      %v1375 = vsel %vm594, %v1374, %v1351
      %v1376 = vsel %vm596, %v1375, %v1355
      %v1377 = vsel %vm598, %v1376, %v1359
      %v1378 = vsel %vm600, %v1377, %v1363
      %1379 = vrot.lane.b32.xlu0 %v923, 126
      %v1380 = vpop.permute.xlu0 %1379
      %1381 = vrot.lane.b32.xlu0 %v924, 126
      %v1382 = vpop.permute.xlu0 %1381
      %1383 = vrot.lane.b32.xlu0 %v926, 126
      %v1384 = vpop.permute.xlu0 %1383
      %1385 = vrot.lane.b32.xlu0 %v927, 126
      %v1386 = vpop.permute.xlu0 %1385
      %1387 = vrot.lane.b32.xlu0 %v929, 126
      %v1388 = vpop.permute.xlu0 %1387
      %1389 = vrot.lane.b32.xlu0 %v930, 126
      %v1390 = vpop.permute.xlu0 %1389
      %1391 = vrot.lane.b32.xlu0 %v932, 126
      %v1392 = vpop.permute.xlu0 %1391
      %1393 = vrot.lane.b32.xlu0 %v933, 126
      %v1394 = vpop.permute.xlu0 %1393
      %v1403 = vcombine.low %v1380, %v1388
      %v1404 = vcombine.high %v1380, %v1388
      %v1406 = vunpack.c.l.s4 1983009808
      %v1407 = vunpack.c.0.s8 %v1406
      %v1408 = vlaneseq
      %v1409 = vshrl.u32 %v1408, 7
      %v1410 = vsub.s32 %v1407, %v1409
      %v1411 = vrot.slane %v1403, %v1410
      %v1413 = vunpack.c.l.s4 1983009808
      %v1414 = vunpack.c.0.s8 %v1413
      %v1415 = vlaneseq
      %v1416 = vshrl.u32 %v1415, 7
      %v1417 = vsub.s32 %v1414, %v1416
      %v1418 = vrot.slane %v1404, %v1417
      %v1419 = vcombine.low %v1384, %v1392
      %v1420 = vcombine.high %v1384, %v1392
      %v1422 = vunpack.c.l.s4 1983009808
      %v1423 = vunpack.c.0.s8 %v1422
      %v1424 = vlaneseq
      %v1425 = vshrl.u32 %v1424, 7
      %v1426 = vsub.s32 %v1423, %v1425
      %v1427 = vrot.slane %v1419, %v1426
      %v1429 = vunpack.c.l.s4 1983009808
      %v1430 = vunpack.c.0.s8 %v1429
      %v1431 = vlaneseq
      %v1432 = vshrl.u32 %v1431, 7
      %v1433 = vsub.s32 %v1430, %v1432
      %v1434 = vrot.slane %v1420, %v1433
      %v1435 = vcombine.low %v1411, %v1427
      %v1436 = vcombine.high %v1411, %v1427
      %v1438 = vunpack.c.l.s4 1934713408
      %v1439 = vunpack.c.0.s8 %v1438
      %v1440 = vlaneseq
      %v1441 = vshrl.u32 %v1440, 7
      %v1442 = vsub.s32 %v1439, %v1441
      %v1443 = vrot.slane %v1435, %v1442
      %v1445 = vunpack.c.l.s4 1934713408
      %v1446 = vunpack.c.0.s8 %v1445
      %v1447 = vlaneseq
      %v1448 = vshrl.u32 %v1447, 7
      %v1449 = vsub.s32 %v1446, %v1448
      %v1450 = vrot.slane %v1436, %v1449
      %v1451 = vcombine.low %v1418, %v1434
      %v1452 = vcombine.high %v1418, %v1434
      %v1454 = vunpack.c.l.s4 1934713408
      %v1455 = vunpack.c.0.s8 %v1454
      %v1456 = vlaneseq
      %v1457 = vshrl.u32 %v1456, 7
      %v1458 = vsub.s32 %v1455, %v1457
      %v1459 = vrot.slane %v1451, %v1458
      %v1461 = vunpack.c.l.s4 1934713408
      %v1462 = vunpack.c.0.s8 %v1461
      %v1463 = vlaneseq
      %v1464 = vshrl.u32 %v1463, 7
      %v1465 = vsub.s32 %v1462, %v1464
      %v1466 = vrot.slane %v1452, %v1465
      %v1467 = vcombine.high %v1443, 0.0
      %v1468 = vcombine.high %v1450, 0.0
      %v1469 = vcombine.high %v1459, 0.0
      %v1470 = vcombine.high %v1466, 0.0
      %v1471 = vcombine.low %v1382, %v1390
      %v1472 = vcombine.high %v1382, %v1390
      %v1474 = vunpack.c.l.s4 1983009808
      %v1475 = vunpack.c.0.s8 %v1474
      %v1476 = vlaneseq
      %v1477 = vshrl.u32 %v1476, 7
      %v1478 = vsub.s32 %v1475, %v1477
      %v1479 = vrot.slane %v1471, %v1478
      %v1481 = vunpack.c.l.s4 1983009808
      %v1482 = vunpack.c.0.s8 %v1481
      %v1483 = vlaneseq
      %v1484 = vshrl.u32 %v1483, 7
      %v1485 = vsub.s32 %v1482, %v1484
      %v1486 = vrot.slane %v1472, %v1485
      %v1487 = vcombine.low %v1386, %v1394
      %v1488 = vcombine.high %v1386, %v1394
      %v1490 = vunpack.c.l.s4 1983009808
      %v1491 = vunpack.c.0.s8 %v1490
      %v1492 = vlaneseq
      %v1493 = vshrl.u32 %v1492, 7
      %v1494 = vsub.s32 %v1491, %v1493
      %v1495 = vrot.slane %v1487, %v1494
      %v1497 = vunpack.c.l.s4 1983009808
      %v1498 = vunpack.c.0.s8 %v1497
      %v1499 = vlaneseq
      %v1500 = vshrl.u32 %v1499, 7
      %v1501 = vsub.s32 %v1498, %v1500
      %v1502 = vrot.slane %v1488, %v1501
      %v1503 = vcombine.low %v1479, %v1495
      %v1504 = vcombine.high %v1479, %v1495
      %v1506 = vunpack.c.l.s4 1934713408
      %v1507 = vunpack.c.0.s8 %v1506
      %v1508 = vlaneseq
      %v1509 = vshrl.u32 %v1508, 7
      %v1510 = vsub.s32 %v1507, %v1509
      %v1511 = vrot.slane %v1503, %v1510
      %v1513 = vunpack.c.l.s4 1934713408
      %v1514 = vunpack.c.0.s8 %v1513
      %v1515 = vlaneseq
      %v1516 = vshrl.u32 %v1515, 7
      %v1517 = vsub.s32 %v1514, %v1516
      %v1518 = vrot.slane %v1504, %v1517
      %v1519 = vcombine.low %v1486, %v1502
      %v1520 = vcombine.high %v1486, %v1502
      %v1522 = vunpack.c.l.s4 1934713408
      %v1523 = vunpack.c.0.s8 %v1522
      %v1524 = vlaneseq
      %v1525 = vshrl.u32 %v1524, 7
      %v1526 = vsub.s32 %v1523, %v1525
      %v1527 = vrot.slane %v1519, %v1526
      %v1529 = vunpack.c.l.s4 1934713408
      %v1530 = vunpack.c.0.s8 %v1529
      %v1531 = vlaneseq
      %v1532 = vshrl.u32 %v1531, 7
      %v1533 = vsub.s32 %v1530, %v1532
      %v1534 = vrot.slane %v1520, %v1533
      %v1535 = vcombine.high %v1511, 0.0
      %v1536 = vcombine.high %v1518, 0.0
      %v1537 = vcombine.high %v1527, 0.0
      %v1538 = vcombine.high %v1534, 0.0
      %1540 = vrot.lane.b32.xlu0 %v1467, 16
      %v1541 = vpop.permute.xlu0 %1540
      %1544 = vrot.lane.b32.xlu0 %v1450, 32
      %v1545 = vpop.permute.xlu0 %1544
      %1548 = vrot.lane.b32.xlu0 %v1468, 48
      %v1549 = vpop.permute.xlu0 %1548
      %1552 = vrot.lane.b32.xlu0 %v1459, 64
      %v1553 = vpop.permute.xlu0 %1552
      %1556 = vrot.lane.b32.xlu0 %v1469, 80
      %v1557 = vpop.permute.xlu0 %1556
      %1560 = vrot.lane.b32.xlu0 %v1466, 96
      %v1561 = vpop.permute.xlu0 %1560
      %1564 = vrot.lane.b32.xlu0 %v1470, 112
      %v1565 = vpop.permute.xlu0 %1564
      %1568 = vrot.lane.b32.xlu0 %v1535, 16
      %v1569 = vpop.permute.xlu0 %1568
      %1572 = vrot.lane.b32.xlu0 %v1518, 32
      %v1573 = vpop.permute.xlu0 %1572
      %1576 = vrot.lane.b32.xlu0 %v1536, 48
      %v1577 = vpop.permute.xlu0 %1576
      %1580 = vrot.lane.b32.xlu0 %v1527, 64
      %v1581 = vpop.permute.xlu0 %1580
      %1584 = vrot.lane.b32.xlu0 %v1537, 80
      %v1585 = vpop.permute.xlu0 %1584
      %1588 = vrot.lane.b32.xlu0 %v1534, 96
      %v1589 = vpop.permute.xlu0 %1588
      %1592 = vrot.lane.b32.xlu0 %v1538, 112
      %v1593 = vpop.permute.xlu0 %1592
      %v1595 = vsel %vm588, %v1443, %v1541
      %v1596 = vsel %vm590, %v1595, %v1545
      %v1597 = vsel %vm592, %v1596, %v1549
      %v1598 = vsel %vm594, %v1597, %v1553
      %v1599 = vsel %vm596, %v1598, %v1557
      %v1600 = vsel %vm598, %v1599, %v1561
      %v1601 = vsel %vm600, %v1600, %v1565
      %v1602 = vsel %vm588, %v1511, %v1569
      %v1603 = vsel %vm590, %v1602, %v1573
      %v1604 = vsel %vm592, %v1603, %v1577
      %v1605 = vsel %vm594, %v1604, %v1581
      %v1606 = vsel %vm596, %v1605, %v1585
      %v1607 = vsel %vm598, %v1606, %v1589
      %v1608 = vsel %vm600, %v1607, %v1593
      %vm1613 = vcmask 1046528
      %v1614 = vrot.slane %v923, 1
      %v1615 = vrot.slane %v924, 1
      %v1616 = vsel %vm1613, %v1614, %v1615
      %v1617 = vrot.slane %v925, 1
      %v1618 = vsel %vm1613, %v1615, %v1617
      %v1619 = vrot.slane %v926, 1
      %v1620 = vrot.slane %v927, 1
      %v1621 = vsel %vm1613, %v1619, %v1620
      %v1622 = vrot.slane %v928, 1
      %v1623 = vsel %vm1613, %v1620, %v1622
      %v1624 = vrot.slane %v929, 1
      %v1625 = vrot.slane %v930, 1
      %v1626 = vsel %vm1613, %v1624, %v1625
      %v1627 = vrot.slane %v931, 1
      %v1628 = vsel %vm1613, %v1625, %v1627
      %v1629 = vrot.slane %v932, 1
      %v1630 = vrot.slane %v933, 1
      %v1631 = vsel %vm1613, %v1629, %v1630
      %v1632 = vrot.slane %v934, 1
      %v1633 = vsel %vm1613, %v1630, %v1632
      %v1642 = vcombine.low %v1616, %v1626
      %v1643 = vcombine.high %v1616, %v1626
      %v1645 = vunpack.c.l.s4 1983009808
      %v1646 = vunpack.c.0.s8 %v1645
      %v1647 = vlaneseq
      %v1648 = vshrl.u32 %v1647, 7
      %v1649 = vsub.s32 %v1646, %v1648
      %v1650 = vrot.slane %v1642, %v1649
      %v1652 = vunpack.c.l.s4 1983009808
      %v1653 = vunpack.c.0.s8 %v1652
      %v1654 = vlaneseq
      %v1655 = vshrl.u32 %v1654, 7
      %v1656 = vsub.s32 %v1653, %v1655
      %v1657 = vrot.slane %v1643, %v1656
      %v1658 = vcombine.low %v1621, %v1631
      %v1659 = vcombine.high %v1621, %v1631
      %v1661 = vunpack.c.l.s4 1983009808
      %v1662 = vunpack.c.0.s8 %v1661
      %v1663 = vlaneseq
      %v1664 = vshrl.u32 %v1663, 7
      %v1665 = vsub.s32 %v1662, %v1664
      %v1666 = vrot.slane %v1658, %v1665
      %v1668 = vunpack.c.l.s4 1983009808
      %v1669 = vunpack.c.0.s8 %v1668
      %v1670 = vlaneseq
      %v1671 = vshrl.u32 %v1670, 7
      %v1672 = vsub.s32 %v1669, %v1671
      %v1673 = vrot.slane %v1659, %v1672
      %v1674 = vcombine.low %v1650, %v1666
      %v1675 = vcombine.high %v1650, %v1666
      %v1677 = vunpack.c.l.s4 1934713408
      %v1678 = vunpack.c.0.s8 %v1677
      %v1679 = vlaneseq
      %v1680 = vshrl.u32 %v1679, 7
      %v1681 = vsub.s32 %v1678, %v1680
      %v1682 = vrot.slane %v1674, %v1681
      %v1684 = vunpack.c.l.s4 1934713408
      %v1685 = vunpack.c.0.s8 %v1684
      %v1686 = vlaneseq
      %v1687 = vshrl.u32 %v1686, 7
      %v1688 = vsub.s32 %v1685, %v1687
      %v1689 = vrot.slane %v1675, %v1688
      %v1690 = vcombine.low %v1657, %v1673
      %v1691 = vcombine.high %v1657, %v1673
      %v1693 = vunpack.c.l.s4 1934713408
      %v1694 = vunpack.c.0.s8 %v1693
      %v1695 = vlaneseq
      %v1696 = vshrl.u32 %v1695, 7
      %v1697 = vsub.s32 %v1694, %v1696
      %v1698 = vrot.slane %v1690, %v1697
      %v1700 = vunpack.c.l.s4 1934713408
      %v1701 = vunpack.c.0.s8 %v1700
      %v1702 = vlaneseq
      %v1703 = vshrl.u32 %v1702, 7
      %v1704 = vsub.s32 %v1701, %v1703
      %v1705 = vrot.slane %v1691, %v1704
      %v1706 = vcombine.high %v1682, 0.0
      %v1707 = vcombine.high %v1689, 0.0
      %v1708 = vcombine.high %v1698, 0.0
      %v1709 = vcombine.high %v1705, 0.0
      %v1710 = vcombine.low %v1618, %v1628
      %v1711 = vcombine.high %v1618, %v1628
      %v1713 = vunpack.c.l.s4 1983009808
      %v1714 = vunpack.c.0.s8 %v1713
      %v1715 = vlaneseq
      %v1716 = vshrl.u32 %v1715, 7
      %v1717 = vsub.s32 %v1714, %v1716
      %v1718 = vrot.slane %v1710, %v1717
      %v1720 = vunpack.c.l.s4 1983009808
      %v1721 = vunpack.c.0.s8 %v1720
      %v1722 = vlaneseq
      %v1723 = vshrl.u32 %v1722, 7
      %v1724 = vsub.s32 %v1721, %v1723
      %v1725 = vrot.slane %v1711, %v1724
      %v1726 = vcombine.low %v1623, %v1633
      %v1727 = vcombine.high %v1623, %v1633
      %v1729 = vunpack.c.l.s4 1983009808
      %v1730 = vunpack.c.0.s8 %v1729
      %v1731 = vlaneseq
      %v1732 = vshrl.u32 %v1731, 7
      %v1733 = vsub.s32 %v1730, %v1732
      %v1734 = vrot.slane %v1726, %v1733
      %v1736 = vunpack.c.l.s4 1983009808
      %v1737 = vunpack.c.0.s8 %v1736
      %v1738 = vlaneseq
      %v1739 = vshrl.u32 %v1738, 7
      %v1740 = vsub.s32 %v1737, %v1739
      %v1741 = vrot.slane %v1727, %v1740
      %v1742 = vcombine.low %v1718, %v1734
      %v1743 = vcombine.high %v1718, %v1734
      %v1745 = vunpack.c.l.s4 1934713408
      %v1746 = vunpack.c.0.s8 %v1745
      %v1747 = vlaneseq
      %v1748 = vshrl.u32 %v1747, 7
      %v1749 = vsub.s32 %v1746, %v1748
      %v1750 = vrot.slane %v1742, %v1749
      %v1752 = vunpack.c.l.s4 1934713408
      %v1753 = vunpack.c.0.s8 %v1752
      %v1754 = vlaneseq
      %v1755 = vshrl.u32 %v1754, 7
      %v1756 = vsub.s32 %v1753, %v1755
      %v1757 = vrot.slane %v1743, %v1756
      %v1758 = vcombine.low %v1725, %v1741
      %v1759 = vcombine.high %v1725, %v1741
      %v1761 = vunpack.c.l.s4 1934713408
      %v1762 = vunpack.c.0.s8 %v1761
      %v1763 = vlaneseq
      %v1764 = vshrl.u32 %v1763, 7
      %v1765 = vsub.s32 %v1762, %v1764
      %v1766 = vrot.slane %v1758, %v1765
      %v1768 = vunpack.c.l.s4 1934713408
      %v1769 = vunpack.c.0.s8 %v1768
      %v1770 = vlaneseq
      %v1771 = vshrl.u32 %v1770, 7
      %v1772 = vsub.s32 %v1769, %v1771
      %v1773 = vrot.slane %v1759, %v1772
      %v1774 = vcombine.high %v1750, 0.0
      %v1775 = vcombine.high %v1757, 0.0
      %v1776 = vcombine.high %v1766, 0.0
      %v1777 = vcombine.high %v1773, 0.0
      %1779 = vrot.lane.b32.xlu0 %v1706, 16
      %v1780 = vpop.permute.xlu0 %1779
      %1783 = vrot.lane.b32.xlu0 %v1689, 32
      %v1784 = vpop.permute.xlu0 %1783
      %1787 = vrot.lane.b32.xlu0 %v1707, 48
      %v1788 = vpop.permute.xlu0 %1787
      %1791 = vrot.lane.b32.xlu0 %v1698, 64
      %v1792 = vpop.permute.xlu0 %1791
      %1795 = vrot.lane.b32.xlu0 %v1708, 80
      %v1796 = vpop.permute.xlu0 %1795
      %1799 = vrot.lane.b32.xlu0 %v1705, 96
      %v1800 = vpop.permute.xlu0 %1799
      %1803 = vrot.lane.b32.xlu0 %v1709, 112
      %v1804 = vpop.permute.xlu0 %1803
      %1807 = vrot.lane.b32.xlu0 %v1774, 16
      %v1808 = vpop.permute.xlu0 %1807
      %1811 = vrot.lane.b32.xlu0 %v1757, 32
      %v1812 = vpop.permute.xlu0 %1811
      %1815 = vrot.lane.b32.xlu0 %v1775, 48
      %v1816 = vpop.permute.xlu0 %1815
      %1819 = vrot.lane.b32.xlu0 %v1766, 64
      %v1820 = vpop.permute.xlu0 %1819
      %1823 = vrot.lane.b32.xlu0 %v1776, 80
      %v1824 = vpop.permute.xlu0 %1823
      %1827 = vrot.lane.b32.xlu0 %v1773, 96
      %v1828 = vpop.permute.xlu0 %1827
      %1831 = vrot.lane.b32.xlu0 %v1777, 112
      %v1832 = vpop.permute.xlu0 %1831
      %v1834 = vsel %vm588, %v1682, %v1780
      %v1835 = vsel %vm590, %v1834, %v1784
      %v1836 = vsel %vm592, %v1835, %v1788
      %v1837 = vsel %vm594, %v1836, %v1792
      %v1838 = vsel %vm596, %v1837, %v1796
      %v1839 = vsel %vm598, %v1838, %v1800
      %v1840 = vsel %vm600, %v1839, %v1804
      %v1841 = vsel %vm588, %v1750, %v1808
      %v1842 = vsel %vm590, %v1841, %v1812
      %v1843 = vsel %vm592, %v1842, %v1816
      %v1844 = vsel %vm594, %v1843, %v1820
      %v1845 = vsel %vm596, %v1844, %v1824
      %v1846 = vsel %vm598, %v1845, %v1828
      %v1847 = vsel %vm600, %v1846, %v1832
      %1848 = vrot.lane.b32.xlu0 %v1616, 127
      %v1849 = vpop.permute.xlu0 %1848
      %1850 = vrot.lane.b32.xlu0 %v1618, 127
      %v1851 = vpop.permute.xlu0 %1850
      %1852 = vrot.lane.b32.xlu0 %v1621, 127
      %v1853 = vpop.permute.xlu0 %1852
      %1854 = vrot.lane.b32.xlu0 %v1623, 127
      %v1855 = vpop.permute.xlu0 %1854
      %1856 = vrot.lane.b32.xlu0 %v1626, 127
      %v1857 = vpop.permute.xlu0 %1856
      %1858 = vrot.lane.b32.xlu0 %v1628, 127
      %v1859 = vpop.permute.xlu0 %1858
      %1860 = vrot.lane.b32.xlu0 %v1631, 127
      %v1861 = vpop.permute.xlu0 %1860
      %1862 = vrot.lane.b32.xlu0 %v1633, 127
      %v1863 = vpop.permute.xlu0 %1862
      %v1872 = vcombine.low %v1849, %v1857
      %v1873 = vcombine.high %v1849, %v1857
      %v1875 = vunpack.c.l.s4 1983009808
      %v1876 = vunpack.c.0.s8 %v1875
      %v1877 = vlaneseq
      %v1878 = vshrl.u32 %v1877, 7
      %v1879 = vsub.s32 %v1876, %v1878
      %v1880 = vrot.slane %v1872, %v1879
      %v1882 = vunpack.c.l.s4 1983009808
      %v1883 = vunpack.c.0.s8 %v1882
      %v1884 = vlaneseq
      %v1885 = vshrl.u32 %v1884, 7
      %v1886 = vsub.s32 %v1883, %v1885
      %v1887 = vrot.slane %v1873, %v1886
      %v1888 = vcombine.low %v1853, %v1861
      %v1889 = vcombine.high %v1853, %v1861
      %v1891 = vunpack.c.l.s4 1983009808
      %v1892 = vunpack.c.0.s8 %v1891
      %v1893 = vlaneseq
      %v1894 = vshrl.u32 %v1893, 7
      %v1895 = vsub.s32 %v1892, %v1894
      %v1896 = vrot.slane %v1888, %v1895
      %v1898 = vunpack.c.l.s4 1983009808
      %v1899 = vunpack.c.0.s8 %v1898
      %v1900 = vlaneseq
      %v1901 = vshrl.u32 %v1900, 7
      %v1902 = vsub.s32 %v1899, %v1901
      %v1903 = vrot.slane %v1889, %v1902
      %v1904 = vcombine.low %v1880, %v1896
      %v1905 = vcombine.high %v1880, %v1896
      %v1907 = vunpack.c.l.s4 1934713408
      %v1908 = vunpack.c.0.s8 %v1907
      %v1909 = vlaneseq
      %v1910 = vshrl.u32 %v1909, 7
      %v1911 = vsub.s32 %v1908, %v1910
      %v1912 = vrot.slane %v1904, %v1911
      %v1914 = vunpack.c.l.s4 1934713408
      %v1915 = vunpack.c.0.s8 %v1914
      %v1916 = vlaneseq
      %v1917 = vshrl.u32 %v1916, 7
      %v1918 = vsub.s32 %v1915, %v1917
      %v1919 = vrot.slane %v1905, %v1918
      %v1920 = vcombine.low %v1887, %v1903
      %v1921 = vcombine.high %v1887, %v1903
      %v1923 = vunpack.c.l.s4 1934713408
      %v1924 = vunpack.c.0.s8 %v1923
      %v1925 = vlaneseq
      %v1926 = vshrl.u32 %v1925, 7
      %v1927 = vsub.s32 %v1924, %v1926
      %v1928 = vrot.slane %v1920, %v1927
      %v1930 = vunpack.c.l.s4 1934713408
      %v1931 = vunpack.c.0.s8 %v1930
      %v1932 = vlaneseq
      %v1933 = vshrl.u32 %v1932, 7
      %v1934 = vsub.s32 %v1931, %v1933
      %v1935 = vrot.slane %v1921, %v1934
      %v1936 = vcombine.high %v1912, 0.0
      %v1937 = vcombine.high %v1919, 0.0
      %v1938 = vcombine.high %v1928, 0.0
      %v1939 = vcombine.high %v1935, 0.0
      %v1940 = vcombine.low %v1851, %v1859
      %v1941 = vcombine.high %v1851, %v1859
      %v1943 = vunpack.c.l.s4 1983009808
      %v1944 = vunpack.c.0.s8 %v1943
      %v1945 = vlaneseq
      %v1946 = vshrl.u32 %v1945, 7
      %v1947 = vsub.s32 %v1944, %v1946
      %v1948 = vrot.slane %v1940, %v1947
      %v1950 = vunpack.c.l.s4 1983009808
      %v1951 = vunpack.c.0.s8 %v1950
      %v1952 = vlaneseq
      %v1953 = vshrl.u32 %v1952, 7
      %v1954 = vsub.s32 %v1951, %v1953
      %v1955 = vrot.slane %v1941, %v1954
      %v1956 = vcombine.low %v1855, %v1863
      %v1957 = vcombine.high %v1855, %v1863
      %v1959 = vunpack.c.l.s4 1983009808
      %v1960 = vunpack.c.0.s8 %v1959
      %v1961 = vlaneseq
      %v1962 = vshrl.u32 %v1961, 7
      %v1963 = vsub.s32 %v1960, %v1962
      %v1964 = vrot.slane %v1956, %v1963
      %v1966 = vunpack.c.l.s4 1983009808
      %v1967 = vunpack.c.0.s8 %v1966
      %v1968 = vlaneseq
      %v1969 = vshrl.u32 %v1968, 7
      %v1970 = vsub.s32 %v1967, %v1969
      %v1971 = vrot.slane %v1957, %v1970
      %v1972 = vcombine.low %v1948, %v1964
      %v1973 = vcombine.high %v1948, %v1964
      %v1975 = vunpack.c.l.s4 1934713408
      %v1976 = vunpack.c.0.s8 %v1975
      %v1977 = vlaneseq
      %v1978 = vshrl.u32 %v1977, 7
      %v1979 = vsub.s32 %v1976, %v1978
      %v1980 = vrot.slane %v1972, %v1979
      %v1982 = vunpack.c.l.s4 1934713408
      %v1983 = vunpack.c.0.s8 %v1982
      %v1984 = vlaneseq
      %v1985 = vshrl.u32 %v1984, 7
      %v1986 = vsub.s32 %v1983, %v1985
      %v1987 = vrot.slane %v1973, %v1986
      %v1988 = vcombine.low %v1955, %v1971
      %v1989 = vcombine.high %v1955, %v1971
      %v1991 = vunpack.c.l.s4 1934713408
      %v1992 = vunpack.c.0.s8 %v1991
      %v1993 = vlaneseq
      %v1994 = vshrl.u32 %v1993, 7
      %v1995 = vsub.s32 %v1992, %v1994
      %v1996 = vrot.slane %v1988, %v1995
      %v1998 = vunpack.c.l.s4 1934713408
      %v1999 = vunpack.c.0.s8 %v1998
      %v2000 = vlaneseq
      %v2001 = vshrl.u32 %v2000, 7
      %v2002 = vsub.s32 %v1999, %v2001
      %v2003 = vrot.slane %v1989, %v2002
      %v2004 = vcombine.high %v1980, 0.0
      %v2005 = vcombine.high %v1987, 0.0
      %v2006 = vcombine.high %v1996, 0.0
      %v2007 = vcombine.high %v2003, 0.0
      %2009 = vrot.lane.b32.xlu0 %v1936, 16
      %v2010 = vpop.permute.xlu0 %2009
      %2013 = vrot.lane.b32.xlu0 %v1919, 32
      %v2014 = vpop.permute.xlu0 %2013
      %2017 = vrot.lane.b32.xlu0 %v1937, 48
      %v2018 = vpop.permute.xlu0 %2017
      %2021 = vrot.lane.b32.xlu0 %v1928, 64
      %v2022 = vpop.permute.xlu0 %2021
      %2025 = vrot.lane.b32.xlu0 %v1938, 80
      %v2026 = vpop.permute.xlu0 %2025
      %2029 = vrot.lane.b32.xlu0 %v1935, 96
      %v2030 = vpop.permute.xlu0 %2029
      %2033 = vrot.lane.b32.xlu0 %v1939, 112
      %v2034 = vpop.permute.xlu0 %2033
      %2037 = vrot.lane.b32.xlu0 %v2004, 16
      %v2038 = vpop.permute.xlu0 %2037
      %2041 = vrot.lane.b32.xlu0 %v1987, 32
      %v2042 = vpop.permute.xlu0 %2041
      %2045 = vrot.lane.b32.xlu0 %v2005, 48
      %v2046 = vpop.permute.xlu0 %2045
      %2049 = vrot.lane.b32.xlu0 %v1996, 64
      %v2050 = vpop.permute.xlu0 %2049
      %2053 = vrot.lane.b32.xlu0 %v2006, 80
      %v2054 = vpop.permute.xlu0 %2053
      %2057 = vrot.lane.b32.xlu0 %v2003, 96
      %v2058 = vpop.permute.xlu0 %2057
      %2061 = vrot.lane.b32.xlu0 %v2007, 112
      %v2062 = vpop.permute.xlu0 %2061
      %v2064 = vsel %vm588, %v1912, %v2010
      %v2065 = vsel %vm590, %v2064, %v2014
      %v2066 = vsel %vm592, %v2065, %v2018
      %v2067 = vsel %vm594, %v2066, %v2022
      %v2068 = vsel %vm596, %v2067, %v2026
      %v2069 = vsel %vm598, %v2068, %v2030
      %v2070 = vsel %vm600, %v2069, %v2034
      %v2071 = vsel %vm588, %v1980, %v2038
      %v2072 = vsel %vm590, %v2071, %v2042
      %v2073 = vsel %vm592, %v2072, %v2046
      %v2074 = vsel %vm594, %v2073, %v2050
      %v2075 = vsel %vm596, %v2074, %v2054
      %v2076 = vsel %vm598, %v2075, %v2058
      %v2077 = vsel %vm600, %v2076, %v2062
      %2078 = vrot.lane.b32.xlu0 %v1616, 126
      %v2079 = vpop.permute.xlu0 %2078
      %2080 = vrot.lane.b32.xlu0 %v1618, 126
      %v2081 = vpop.permute.xlu0 %2080
      %2082 = vrot.lane.b32.xlu0 %v1621, 126
      %v2083 = vpop.permute.xlu0 %2082
      %2084 = vrot.lane.b32.xlu0 %v1623, 126
      %v2085 = vpop.permute.xlu0 %2084
      %2086 = vrot.lane.b32.xlu0 %v1626, 126
      %v2087 = vpop.permute.xlu0 %2086
      %2088 = vrot.lane.b32.xlu0 %v1628, 126
      %v2089 = vpop.permute.xlu0 %2088
      %2090 = vrot.lane.b32.xlu0 %v1631, 126
      %v2091 = vpop.permute.xlu0 %2090
      %2092 = vrot.lane.b32.xlu0 %v1633, 126
      %v2093 = vpop.permute.xlu0 %2092
      %v2102 = vcombine.low %v2079, %v2087
      %v2103 = vcombine.high %v2079, %v2087
      %v2105 = vunpack.c.l.s4 1983009808
      %v2106 = vunpack.c.0.s8 %v2105
      %v2107 = vlaneseq
      %v2108 = vshrl.u32 %v2107, 7
      %v2109 = vsub.s32 %v2106, %v2108
      %v2110 = vrot.slane %v2102, %v2109
      %v2112 = vunpack.c.l.s4 1983009808
      %v2113 = vunpack.c.0.s8 %v2112
      %v2114 = vlaneseq
      %v2115 = vshrl.u32 %v2114, 7
      %v2116 = vsub.s32 %v2113, %v2115
      %v2117 = vrot.slane %v2103, %v2116
      %v2118 = vcombine.low %v2083, %v2091
      %v2119 = vcombine.high %v2083, %v2091
      %v2121 = vunpack.c.l.s4 1983009808
      %v2122 = vunpack.c.0.s8 %v2121
      %v2123 = vlaneseq
      %v2124 = vshrl.u32 %v2123, 7
      %v2125 = vsub.s32 %v2122, %v2124
      %v2126 = vrot.slane %v2118, %v2125
      %v2128 = vunpack.c.l.s4 1983009808
      %v2129 = vunpack.c.0.s8 %v2128
      %v2130 = vlaneseq
      %v2131 = vshrl.u32 %v2130, 7
      %v2132 = vsub.s32 %v2129, %v2131
      %v2133 = vrot.slane %v2119, %v2132
      %v2134 = vcombine.low %v2110, %v2126
      %v2135 = vcombine.high %v2110, %v2126
      %v2137 = vunpack.c.l.s4 1934713408
      %v2138 = vunpack.c.0.s8 %v2137
      %v2139 = vlaneseq
      %v2140 = vshrl.u32 %v2139, 7
      %v2141 = vsub.s32 %v2138, %v2140
      %v2142 = vrot.slane %v2134, %v2141
      %v2144 = vunpack.c.l.s4 1934713408
      %v2145 = vunpack.c.0.s8 %v2144
      %v2146 = vlaneseq
      %v2147 = vshrl.u32 %v2146, 7
      %v2148 = vsub.s32 %v2145, %v2147
      %v2149 = vrot.slane %v2135, %v2148
      %v2150 = vcombine.low %v2117, %v2133
      %v2151 = vcombine.high %v2117, %v2133
      %v2153 = vunpack.c.l.s4 1934713408
      %v2154 = vunpack.c.0.s8 %v2153
      %v2155 = vlaneseq
      %v2156 = vshrl.u32 %v2155, 7
      %v2157 = vsub.s32 %v2154, %v2156
      %v2158 = vrot.slane %v2150, %v2157
      %v2160 = vunpack.c.l.s4 1934713408
      %v2161 = vunpack.c.0.s8 %v2160
      %v2162 = vlaneseq
      %v2163 = vshrl.u32 %v2162, 7
      %v2164 = vsub.s32 %v2161, %v2163
      %v2165 = vrot.slane %v2151, %v2164
      %v2166 = vcombine.high %v2142, 0.0
      %v2167 = vcombine.high %v2149, 0.0
      %v2168 = vcombine.high %v2158, 0.0
      %v2169 = vcombine.high %v2165, 0.0
      %v2170 = vcombine.low %v2081, %v2089
      %v2171 = vcombine.high %v2081, %v2089
      %v2173 = vunpack.c.l.s4 1983009808
      %v2174 = vunpack.c.0.s8 %v2173
      %v2175 = vlaneseq
      %v2176 = vshrl.u32 %v2175, 7
      %v2177 = vsub.s32 %v2174, %v2176
      %v2178 = vrot.slane %v2170, %v2177
      %v2180 = vunpack.c.l.s4 1983009808
      %v2181 = vunpack.c.0.s8 %v2180
      %v2182 = vlaneseq
      %v2183 = vshrl.u32 %v2182, 7
      %v2184 = vsub.s32 %v2181, %v2183
      %v2185 = vrot.slane %v2171, %v2184
      %v2186 = vcombine.low %v2085, %v2093
      %v2187 = vcombine.high %v2085, %v2093
      %v2189 = vunpack.c.l.s4 1983009808
      %v2190 = vunpack.c.0.s8 %v2189
      %v2191 = vlaneseq
      %v2192 = vshrl.u32 %v2191, 7
      %v2193 = vsub.s32 %v2190, %v2192
      %v2194 = vrot.slane %v2186, %v2193
      %v2196 = vunpack.c.l.s4 1983009808
      %v2197 = vunpack.c.0.s8 %v2196
      %v2198 = vlaneseq
      %v2199 = vshrl.u32 %v2198, 7
      %v2200 = vsub.s32 %v2197, %v2199
      %v2201 = vrot.slane %v2187, %v2200
      %v2202 = vcombine.low %v2178, %v2194
      %v2203 = vcombine.high %v2178, %v2194
      %v2205 = vunpack.c.l.s4 1934713408
      %v2206 = vunpack.c.0.s8 %v2205
      %v2207 = vlaneseq
      %v2208 = vshrl.u32 %v2207, 7
      %v2209 = vsub.s32 %v2206, %v2208
      %v2210 = vrot.slane %v2202, %v2209
      %v2212 = vunpack.c.l.s4 1934713408
      %v2213 = vunpack.c.0.s8 %v2212
      %v2214 = vlaneseq
      %v2215 = vshrl.u32 %v2214, 7
      %v2216 = vsub.s32 %v2213, %v2215
      %v2217 = vrot.slane %v2203, %v2216
      %v2218 = vcombine.low %v2185, %v2201
      %v2219 = vcombine.high %v2185, %v2201
      %v2221 = vunpack.c.l.s4 1934713408
      %v2222 = vunpack.c.0.s8 %v2221
      %v2223 = vlaneseq
      %v2224 = vshrl.u32 %v2223, 7
      %v2225 = vsub.s32 %v2222, %v2224
      %v2226 = vrot.slane %v2218, %v2225
      %v2228 = vunpack.c.l.s4 1934713408
      %v2229 = vunpack.c.0.s8 %v2228
      %v2230 = vlaneseq
      %v2231 = vshrl.u32 %v2230, 7
      %v2232 = vsub.s32 %v2229, %v2231
      %v2233 = vrot.slane %v2219, %v2232
      %v2234 = vcombine.high %v2210, 0.0
      %v2235 = vcombine.high %v2217, 0.0
      %v2236 = vcombine.high %v2226, 0.0
      %v2237 = vcombine.high %v2233, 0.0
      %2239 = vrot.lane.b32.xlu0 %v2166, 16
      %v2240 = vpop.permute.xlu0 %2239
      %2243 = vrot.lane.b32.xlu0 %v2149, 32
      %v2244 = vpop.permute.xlu0 %2243
      %2247 = vrot.lane.b32.xlu0 %v2167, 48
      %v2248 = vpop.permute.xlu0 %2247
      %2251 = vrot.lane.b32.xlu0 %v2158, 64
      %v2252 = vpop.permute.xlu0 %2251
      %2255 = vrot.lane.b32.xlu0 %v2168, 80
      %v2256 = vpop.permute.xlu0 %2255
      %2259 = vrot.lane.b32.xlu0 %v2165, 96
      %v2260 = vpop.permute.xlu0 %2259
      %2263 = vrot.lane.b32.xlu0 %v2169, 112
      %v2264 = vpop.permute.xlu0 %2263
      %2267 = vrot.lane.b32.xlu0 %v2234, 16
      %v2268 = vpop.permute.xlu0 %2267
      %2271 = vrot.lane.b32.xlu0 %v2217, 32
      %v2272 = vpop.permute.xlu0 %2271
      %2275 = vrot.lane.b32.xlu0 %v2235, 48
      %v2276 = vpop.permute.xlu0 %2275
      %2279 = vrot.lane.b32.xlu0 %v2226, 64
      %v2280 = vpop.permute.xlu0 %2279
      %2283 = vrot.lane.b32.xlu0 %v2236, 80
      %v2284 = vpop.permute.xlu0 %2283
      %2287 = vrot.lane.b32.xlu0 %v2233, 96
      %v2288 = vpop.permute.xlu0 %2287
      %2291 = vrot.lane.b32.xlu0 %v2237, 112
      %v2292 = vpop.permute.xlu0 %2291
      %v2294 = vsel %vm588, %v2142, %v2240
      %v2295 = vsel %vm590, %v2294, %v2244
      %v2296 = vsel %vm592, %v2295, %v2248
      %v2297 = vsel %vm594, %v2296, %v2252
      %v2298 = vsel %vm596, %v2297, %v2256
      %v2299 = vsel %vm598, %v2298, %v2260
      %v2300 = vsel %vm600, %v2299, %v2264
      %v2301 = vsel %vm588, %v2210, %v2268
      %v2302 = vsel %vm590, %v2301, %v2272
      %v2303 = vsel %vm592, %v2302, %v2276
      %v2304 = vsel %vm594, %v2303, %v2280
      %v2305 = vsel %vm596, %v2304, %v2284
      %v2306 = vsel %vm598, %v2305, %v2288
      %v2307 = vsel %vm600, %v2306, %v2292
      %vm2308 = vcmask 1045504
      %v2309 = vrot.slane %v923, 2
      %v2310 = vrot.slane %v924, 2
      %v2311 = vsel %vm2308, %v2309, %v2310
      %v2312 = vrot.slane %v925, 2
      %v2313 = vsel %vm2308, %v2310, %v2312
      %v2314 = vrot.slane %v926, 2
      %v2315 = vrot.slane %v927, 2
      %v2316 = vsel %vm2308, %v2314, %v2315
      %v2317 = vrot.slane %v928, 2
      %v2318 = vsel %vm2308, %v2315, %v2317
      %v2319 = vrot.slane %v929, 2
      %v2320 = vrot.slane %v930, 2
      %v2321 = vsel %vm2308, %v2319, %v2320
      %v2322 = vrot.slane %v931, 2
      %v2323 = vsel %vm2308, %v2320, %v2322
      %v2324 = vrot.slane %v932, 2
      %v2325 = vrot.slane %v933, 2
      %v2326 = vsel %vm2308, %v2324, %v2325
      %v2327 = vrot.slane %v934, 2
      %v2328 = vsel %vm2308, %v2325, %v2327
      %v2337 = vcombine.low %v2311, %v2321
      %v2338 = vcombine.high %v2311, %v2321
      %v2340 = vunpack.c.l.s4 1983009808
      %v2341 = vunpack.c.0.s8 %v2340
      %v2342 = vlaneseq
      %v2343 = vshrl.u32 %v2342, 7
      %v2344 = vsub.s32 %v2341, %v2343
      %v2345 = vrot.slane %v2337, %v2344
      %v2347 = vunpack.c.l.s4 1983009808
      %v2348 = vunpack.c.0.s8 %v2347
      %v2349 = vlaneseq
      %v2350 = vshrl.u32 %v2349, 7
      %v2351 = vsub.s32 %v2348, %v2350
      %v2352 = vrot.slane %v2338, %v2351
      %v2353 = vcombine.low %v2316, %v2326
      %v2354 = vcombine.high %v2316, %v2326
      %v2356 = vunpack.c.l.s4 1983009808
      %v2357 = vunpack.c.0.s8 %v2356
      %v2358 = vlaneseq
      %v2359 = vshrl.u32 %v2358, 7
      %v2360 = vsub.s32 %v2357, %v2359
      %v2361 = vrot.slane %v2353, %v2360
      %v2363 = vunpack.c.l.s4 1983009808
      %v2364 = vunpack.c.0.s8 %v2363
      %v2365 = vlaneseq
      %v2366 = vshrl.u32 %v2365, 7
      %v2367 = vsub.s32 %v2364, %v2366
      %v2368 = vrot.slane %v2354, %v2367
      %v2369 = vcombine.low %v2345, %v2361
      %v2370 = vcombine.high %v2345, %v2361
      %v2372 = vunpack.c.l.s4 1934713408
      %v2373 = vunpack.c.0.s8 %v2372
      %v2374 = vlaneseq
      %v2375 = vshrl.u32 %v2374, 7
      %v2376 = vsub.s32 %v2373, %v2375
      %v2377 = vrot.slane %v2369, %v2376
      %v2379 = vunpack.c.l.s4 1934713408
      %v2380 = vunpack.c.0.s8 %v2379
      %v2381 = vlaneseq
      %v2382 = vshrl.u32 %v2381, 7
      %v2383 = vsub.s32 %v2380, %v2382
      %v2384 = vrot.slane %v2370, %v2383
      %v2385 = vcombine.low %v2352, %v2368
      %v2386 = vcombine.high %v2352, %v2368
      %v2388 = vunpack.c.l.s4 1934713408
      %v2389 = vunpack.c.0.s8 %v2388
      %v2390 = vlaneseq
      %v2391 = vshrl.u32 %v2390, 7
      %v2392 = vsub.s32 %v2389, %v2391
      %v2393 = vrot.slane %v2385, %v2392
      %v2395 = vunpack.c.l.s4 1934713408
      %v2396 = vunpack.c.0.s8 %v2395
      %v2397 = vlaneseq
      %v2398 = vshrl.u32 %v2397, 7
      %v2399 = vsub.s32 %v2396, %v2398
      %v2400 = vrot.slane %v2386, %v2399
      %v2401 = vcombine.high %v2377, 0.0
      %v2402 = vcombine.high %v2384, 0.0
      %v2403 = vcombine.high %v2393, 0.0
      %v2404 = vcombine.high %v2400, 0.0
      %v2405 = vcombine.low %v2313, %v2323
      %v2406 = vcombine.high %v2313, %v2323
      %v2408 = vunpack.c.l.s4 1983009808
      %v2409 = vunpack.c.0.s8 %v2408
      %v2410 = vlaneseq
      %v2411 = vshrl.u32 %v2410, 7
      %v2412 = vsub.s32 %v2409, %v2411
      %v2413 = vrot.slane %v2405, %v2412
      %v2415 = vunpack.c.l.s4 1983009808
      %v2416 = vunpack.c.0.s8 %v2415
      %v2417 = vlaneseq
      %v2418 = vshrl.u32 %v2417, 7
      %v2419 = vsub.s32 %v2416, %v2418
      %v2420 = vrot.slane %v2406, %v2419
      %v2421 = vcombine.low %v2318, %v2328
      %v2422 = vcombine.high %v2318, %v2328
      %v2424 = vunpack.c.l.s4 1983009808
      %v2425 = vunpack.c.0.s8 %v2424
      %v2426 = vlaneseq
      %v2427 = vshrl.u32 %v2426, 7
      %v2428 = vsub.s32 %v2425, %v2427
      %v2429 = vrot.slane %v2421, %v2428
      %v2431 = vunpack.c.l.s4 1983009808
      %v2432 = vunpack.c.0.s8 %v2431
      %v2433 = vlaneseq
      %v2434 = vshrl.u32 %v2433, 7
      %v2435 = vsub.s32 %v2432, %v2434
      %v2436 = vrot.slane %v2422, %v2435
      %v2437 = vcombine.low %v2413, %v2429
      %v2438 = vcombine.high %v2413, %v2429
      %v2440 = vunpack.c.l.s4 1934713408
      %v2441 = vunpack.c.0.s8 %v2440
      %v2442 = vlaneseq
      %v2443 = vshrl.u32 %v2442, 7
      %v2444 = vsub.s32 %v2441, %v2443
      %v2445 = vrot.slane %v2437, %v2444
      %v2447 = vunpack.c.l.s4 1934713408
      %v2448 = vunpack.c.0.s8 %v2447
      %v2449 = vlaneseq
      %v2450 = vshrl.u32 %v2449, 7
      %v2451 = vsub.s32 %v2448, %v2450
      %v2452 = vrot.slane %v2438, %v2451
      %v2453 = vcombine.low %v2420, %v2436
      %v2454 = vcombine.high %v2420, %v2436
      %v2456 = vunpack.c.l.s4 1934713408
      %v2457 = vunpack.c.0.s8 %v2456
      %v2458 = vlaneseq
      %v2459 = vshrl.u32 %v2458, 7
      %v2460 = vsub.s32 %v2457, %v2459
      %v2461 = vrot.slane %v2453, %v2460
      %v2463 = vunpack.c.l.s4 1934713408
      %v2464 = vunpack.c.0.s8 %v2463
      %v2465 = vlaneseq
      %v2466 = vshrl.u32 %v2465, 7
      %v2467 = vsub.s32 %v2464, %v2466
      %v2468 = vrot.slane %v2454, %v2467
      %v2469 = vcombine.high %v2445, 0.0
      %v2470 = vcombine.high %v2452, 0.0
      %v2471 = vcombine.high %v2461, 0.0
      %v2472 = vcombine.high %v2468, 0.0
      %2474 = vrot.lane.b32.xlu0 %v2401, 16
      %v2475 = vpop.permute.xlu0 %2474
      %2478 = vrot.lane.b32.xlu0 %v2384, 32
      %v2479 = vpop.permute.xlu0 %2478
      %2482 = vrot.lane.b32.xlu0 %v2402, 48
      %v2483 = vpop.permute.xlu0 %2482
      %2486 = vrot.lane.b32.xlu0 %v2393, 64
      %v2487 = vpop.permute.xlu0 %2486
      %2490 = vrot.lane.b32.xlu0 %v2403, 80
      %v2491 = vpop.permute.xlu0 %2490
      %2494 = vrot.lane.b32.xlu0 %v2400, 96
      %v2495 = vpop.permute.xlu0 %2494
      %2498 = vrot.lane.b32.xlu0 %v2404, 112
      %v2499 = vpop.permute.xlu0 %2498
      %2502 = vrot.lane.b32.xlu0 %v2469, 16
      %v2503 = vpop.permute.xlu0 %2502
      %2506 = vrot.lane.b32.xlu0 %v2452, 32
      %v2507 = vpop.permute.xlu0 %2506
      %2510 = vrot.lane.b32.xlu0 %v2470, 48
      %v2511 = vpop.permute.xlu0 %2510
      %2514 = vrot.lane.b32.xlu0 %v2461, 64
      %v2515 = vpop.permute.xlu0 %2514
      %2518 = vrot.lane.b32.xlu0 %v2471, 80
      %v2519 = vpop.permute.xlu0 %2518
      %2522 = vrot.lane.b32.xlu0 %v2468, 96
      %v2523 = vpop.permute.xlu0 %2522
      %2526 = vrot.lane.b32.xlu0 %v2472, 112
      %v2527 = vpop.permute.xlu0 %2526
      %v2529 = vsel %vm588, %v2377, %v2475
      %v2530 = vsel %vm590, %v2529, %v2479
      %v2531 = vsel %vm592, %v2530, %v2483
      %v2532 = vsel %vm594, %v2531, %v2487
      %v2533 = vsel %vm596, %v2532, %v2491
      %v2534 = vsel %vm598, %v2533, %v2495
      %v2535 = vsel %vm600, %v2534, %v2499
      %v2536 = vsel %vm588, %v2445, %v2503
      %v2537 = vsel %vm590, %v2536, %v2507
      %v2538 = vsel %vm592, %v2537, %v2511
      %v2539 = vsel %vm594, %v2538, %v2515
      %v2540 = vsel %vm596, %v2539, %v2519
      %v2541 = vsel %vm598, %v2540, %v2523
      %v2542 = vsel %vm600, %v2541, %v2527
      %2543 = vrot.lane.b32.xlu0 %v2311, 127
      %v2544 = vpop.permute.xlu0 %2543
      %2545 = vrot.lane.b32.xlu0 %v2313, 127
      %v2546 = vpop.permute.xlu0 %2545
      %2547 = vrot.lane.b32.xlu0 %v2316, 127
      %v2548 = vpop.permute.xlu0 %2547
      %2549 = vrot.lane.b32.xlu0 %v2318, 127
      %v2550 = vpop.permute.xlu0 %2549
      %2551 = vrot.lane.b32.xlu0 %v2321, 127
      %v2552 = vpop.permute.xlu0 %2551
      %2553 = vrot.lane.b32.xlu0 %v2323, 127
      %v2554 = vpop.permute.xlu0 %2553
      %2555 = vrot.lane.b32.xlu0 %v2326, 127
      %v2556 = vpop.permute.xlu0 %2555
      %2557 = vrot.lane.b32.xlu0 %v2328, 127
      %v2558 = vpop.permute.xlu0 %2557
      %v2567 = vcombine.low %v2544, %v2552
      %v2568 = vcombine.high %v2544, %v2552
      %v2570 = vunpack.c.l.s4 1983009808
      %v2571 = vunpack.c.0.s8 %v2570
      %v2572 = vlaneseq
      %v2573 = vshrl.u32 %v2572, 7
      %v2574 = vsub.s32 %v2571, %v2573
      %v2575 = vrot.slane %v2567, %v2574
      %v2577 = vunpack.c.l.s4 1983009808
      %v2578 = vunpack.c.0.s8 %v2577
      %v2579 = vlaneseq
      %v2580 = vshrl.u32 %v2579, 7
      %v2581 = vsub.s32 %v2578, %v2580
      %v2582 = vrot.slane %v2568, %v2581
      %v2583 = vcombine.low %v2548, %v2556
      %v2584 = vcombine.high %v2548, %v2556
      %v2586 = vunpack.c.l.s4 1983009808
      %v2587 = vunpack.c.0.s8 %v2586
      %v2588 = vlaneseq
      %v2589 = vshrl.u32 %v2588, 7
      %v2590 = vsub.s32 %v2587, %v2589
      %v2591 = vrot.slane %v2583, %v2590
      %v2593 = vunpack.c.l.s4 1983009808
      %v2594 = vunpack.c.0.s8 %v2593
      %v2595 = vlaneseq
      %v2596 = vshrl.u32 %v2595, 7
      %v2597 = vsub.s32 %v2594, %v2596
      %v2598 = vrot.slane %v2584, %v2597
      %v2599 = vcombine.low %v2575, %v2591
      %v2600 = vcombine.high %v2575, %v2591
      %v2602 = vunpack.c.l.s4 1934713408
      %v2603 = vunpack.c.0.s8 %v2602
      %v2604 = vlaneseq
      %v2605 = vshrl.u32 %v2604, 7
      %v2606 = vsub.s32 %v2603, %v2605
      %v2607 = vrot.slane %v2599, %v2606
      %v2609 = vunpack.c.l.s4 1934713408
      %v2610 = vunpack.c.0.s8 %v2609
      %v2611 = vlaneseq
      %v2612 = vshrl.u32 %v2611, 7
      %v2613 = vsub.s32 %v2610, %v2612
      %v2614 = vrot.slane %v2600, %v2613
      %v2615 = vcombine.low %v2582, %v2598
      %v2616 = vcombine.high %v2582, %v2598
      %v2618 = vunpack.c.l.s4 1934713408
      %v2619 = vunpack.c.0.s8 %v2618
      %v2620 = vlaneseq
      %v2621 = vshrl.u32 %v2620, 7
      %v2622 = vsub.s32 %v2619, %v2621
      %v2623 = vrot.slane %v2615, %v2622
      %v2625 = vunpack.c.l.s4 1934713408
      %v2626 = vunpack.c.0.s8 %v2625
      %v2627 = vlaneseq
      %v2628 = vshrl.u32 %v2627, 7
      %v2629 = vsub.s32 %v2626, %v2628
      %v2630 = vrot.slane %v2616, %v2629
      %v2631 = vcombine.high %v2607, 0.0
      %v2632 = vcombine.high %v2614, 0.0
      %v2633 = vcombine.high %v2623, 0.0
      %v2634 = vcombine.high %v2630, 0.0
      %v2635 = vcombine.low %v2546, %v2554
      %v2636 = vcombine.high %v2546, %v2554
      %v2638 = vunpack.c.l.s4 1983009808
      %v2639 = vunpack.c.0.s8 %v2638
      %v2640 = vlaneseq
      %v2641 = vshrl.u32 %v2640, 7
      %v2642 = vsub.s32 %v2639, %v2641
      %v2643 = vrot.slane %v2635, %v2642
      %v2645 = vunpack.c.l.s4 1983009808
      %v2646 = vunpack.c.0.s8 %v2645
      %v2647 = vlaneseq
      %v2648 = vshrl.u32 %v2647, 7
      %v2649 = vsub.s32 %v2646, %v2648
      %v2650 = vrot.slane %v2636, %v2649
      %v2651 = vcombine.low %v2550, %v2558
      %v2652 = vcombine.high %v2550, %v2558
      %v2654 = vunpack.c.l.s4 1983009808
      %v2655 = vunpack.c.0.s8 %v2654
      %v2656 = vlaneseq
      %v2657 = vshrl.u32 %v2656, 7
      %v2658 = vsub.s32 %v2655, %v2657
      %v2659 = vrot.slane %v2651, %v2658
      %v2661 = vunpack.c.l.s4 1983009808
      %v2662 = vunpack.c.0.s8 %v2661
      %v2663 = vlaneseq
      %v2664 = vshrl.u32 %v2663, 7
      %v2665 = vsub.s32 %v2662, %v2664
      %v2666 = vrot.slane %v2652, %v2665
      %v2667 = vcombine.low %v2643, %v2659
      %v2668 = vcombine.high %v2643, %v2659
      %v2670 = vunpack.c.l.s4 1934713408
      %v2671 = vunpack.c.0.s8 %v2670
      %v2672 = vlaneseq
      %v2673 = vshrl.u32 %v2672, 7
      %v2674 = vsub.s32 %v2671, %v2673
      %v2675 = vrot.slane %v2667, %v2674
      %v2677 = vunpack.c.l.s4 1934713408
      %v2678 = vunpack.c.0.s8 %v2677
      %v2679 = vlaneseq
      %v2680 = vshrl.u32 %v2679, 7
      %v2681 = vsub.s32 %v2678, %v2680
      %v2682 = vrot.slane %v2668, %v2681
      %v2683 = vcombine.low %v2650, %v2666
      %v2684 = vcombine.high %v2650, %v2666
      %v2686 = vunpack.c.l.s4 1934713408
      %v2687 = vunpack.c.0.s8 %v2686
      %v2688 = vlaneseq
      %v2689 = vshrl.u32 %v2688, 7
      %v2690 = vsub.s32 %v2687, %v2689
      %v2691 = vrot.slane %v2683, %v2690
      %v2693 = vunpack.c.l.s4 1934713408
      %v2694 = vunpack.c.0.s8 %v2693
      %v2695 = vlaneseq
      %v2696 = vshrl.u32 %v2695, 7
      %v2697 = vsub.s32 %v2694, %v2696
      %v2698 = vrot.slane %v2684, %v2697
      %v2699 = vcombine.high %v2675, 0.0
      %v2700 = vcombine.high %v2682, 0.0
      %v2701 = vcombine.high %v2691, 0.0
      %v2702 = vcombine.high %v2698, 0.0
      %2704 = vrot.lane.b32.xlu0 %v2631, 16
      %v2705 = vpop.permute.xlu0 %2704
      %2708 = vrot.lane.b32.xlu0 %v2614, 32
      %v2709 = vpop.permute.xlu0 %2708
      %2712 = vrot.lane.b32.xlu0 %v2632, 48
      %v2713 = vpop.permute.xlu0 %2712
      %2716 = vrot.lane.b32.xlu0 %v2623, 64
      %v2717 = vpop.permute.xlu0 %2716
      %2720 = vrot.lane.b32.xlu0 %v2633, 80
      %v2721 = vpop.permute.xlu0 %2720
      %2724 = vrot.lane.b32.xlu0 %v2630, 96
      %v2725 = vpop.permute.xlu0 %2724
      %2728 = vrot.lane.b32.xlu0 %v2634, 112
      %v2729 = vpop.permute.xlu0 %2728
      %2732 = vrot.lane.b32.xlu0 %v2699, 16
      %v2733 = vpop.permute.xlu0 %2732
      %2736 = vrot.lane.b32.xlu0 %v2682, 32
      %v2737 = vpop.permute.xlu0 %2736
      %2740 = vrot.lane.b32.xlu0 %v2700, 48
      %v2741 = vpop.permute.xlu0 %2740
      %2744 = vrot.lane.b32.xlu0 %v2691, 64
      %v2745 = vpop.permute.xlu0 %2744
      %2748 = vrot.lane.b32.xlu0 %v2701, 80
      %v2749 = vpop.permute.xlu0 %2748
      %2752 = vrot.lane.b32.xlu0 %v2698, 96
      %v2753 = vpop.permute.xlu0 %2752
      %2756 = vrot.lane.b32.xlu0 %v2702, 112
      %v2757 = vpop.permute.xlu0 %2756
      %v2759 = vsel %vm588, %v2607, %v2705
      %v2760 = vsel %vm590, %v2759, %v2709
      %v2761 = vsel %vm592, %v2760, %v2713
      %v2762 = vsel %vm594, %v2761, %v2717
      %v2763 = vsel %vm596, %v2762, %v2721
      %v2764 = vsel %vm598, %v2763, %v2725
      %v2765 = vsel %vm600, %v2764, %v2729
      %v2766 = vsel %vm588, %v2675, %v2733
      %v2767 = vsel %vm590, %v2766, %v2737
      %v2768 = vsel %vm592, %v2767, %v2741
      %v2769 = vsel %vm594, %v2768, %v2745
      %v2770 = vsel %vm596, %v2769, %v2749
      %v2771 = vsel %vm598, %v2770, %v2753
      %v2772 = vsel %vm600, %v2771, %v2757
      %2773 = vrot.lane.b32.xlu0 %v2311, 126
      %v2774 = vpop.permute.xlu0 %2773
      %2775 = vrot.lane.b32.xlu0 %v2313, 126
      %v2776 = vpop.permute.xlu0 %2775
      %2777 = vrot.lane.b32.xlu0 %v2316, 126
      %v2778 = vpop.permute.xlu0 %2777
      %2779 = vrot.lane.b32.xlu0 %v2318, 126
      %v2780 = vpop.permute.xlu0 %2779
      %2781 = vrot.lane.b32.xlu0 %v2321, 126
      %v2782 = vpop.permute.xlu0 %2781
      %2783 = vrot.lane.b32.xlu0 %v2323, 126
      %v2784 = vpop.permute.xlu0 %2783
      %2785 = vrot.lane.b32.xlu0 %v2326, 126
      %v2786 = vpop.permute.xlu0 %2785
      %2787 = vrot.lane.b32.xlu0 %v2328, 126
      %v2788 = vpop.permute.xlu0 %2787
      %v2797 = vcombine.low %v2774, %v2782
      %v2798 = vcombine.high %v2774, %v2782
      %v2800 = vunpack.c.l.s4 1983009808
      %v2801 = vunpack.c.0.s8 %v2800
      %v2802 = vlaneseq
      %v2803 = vshrl.u32 %v2802, 7
      %v2804 = vsub.s32 %v2801, %v2803
      %v2805 = vrot.slane %v2797, %v2804
      %v2807 = vunpack.c.l.s4 1983009808
      %v2808 = vunpack.c.0.s8 %v2807
      %v2809 = vlaneseq
      %v2810 = vshrl.u32 %v2809, 7
      %v2811 = vsub.s32 %v2808, %v2810
      %v2812 = vrot.slane %v2798, %v2811
      %v2813 = vcombine.low %v2778, %v2786
      %v2814 = vcombine.high %v2778, %v2786
      %v2816 = vunpack.c.l.s4 1983009808
      %v2817 = vunpack.c.0.s8 %v2816
      %v2818 = vlaneseq
      %v2819 = vshrl.u32 %v2818, 7
      %v2820 = vsub.s32 %v2817, %v2819
      %v2821 = vrot.slane %v2813, %v2820
      %v2823 = vunpack.c.l.s4 1983009808
      %v2824 = vunpack.c.0.s8 %v2823
      %v2825 = vlaneseq
      %v2826 = vshrl.u32 %v2825, 7
      %v2827 = vsub.s32 %v2824, %v2826
      %v2828 = vrot.slane %v2814, %v2827
      %v2829 = vcombine.low %v2805, %v2821
      %v2830 = vcombine.high %v2805, %v2821
      %v2832 = vunpack.c.l.s4 1934713408
      %v2833 = vunpack.c.0.s8 %v2832
      %v2834 = vlaneseq
      %v2835 = vshrl.u32 %v2834, 7
      %v2836 = vsub.s32 %v2833, %v2835
      %v2837 = vrot.slane %v2829, %v2836
      %v2839 = vunpack.c.l.s4 1934713408
      %v2840 = vunpack.c.0.s8 %v2839
      %v2841 = vlaneseq
      %v2842 = vshrl.u32 %v2841, 7
      %v2843 = vsub.s32 %v2840, %v2842
      %v2844 = vrot.slane %v2830, %v2843
      %v2845 = vcombine.low %v2812, %v2828
      %v2846 = vcombine.high %v2812, %v2828
      %v2848 = vunpack.c.l.s4 1934713408
      %v2849 = vunpack.c.0.s8 %v2848
      %v2850 = vlaneseq
      %v2851 = vshrl.u32 %v2850, 7
      %v2852 = vsub.s32 %v2849, %v2851
      %v2853 = vrot.slane %v2845, %v2852
      %v2855 = vunpack.c.l.s4 1934713408
      %v2856 = vunpack.c.0.s8 %v2855
      %v2857 = vlaneseq
      %v2858 = vshrl.u32 %v2857, 7
      %v2859 = vsub.s32 %v2856, %v2858
      %v2860 = vrot.slane %v2846, %v2859
      %v2861 = vcombine.high %v2837, 0.0
      %v2862 = vcombine.high %v2844, 0.0
      %v2863 = vcombine.high %v2853, 0.0
      %v2864 = vcombine.high %v2860, 0.0
      %v2865 = vcombine.low %v2776, %v2784
      %v2866 = vcombine.high %v2776, %v2784
      %v2868 = vunpack.c.l.s4 1983009808
      %v2869 = vunpack.c.0.s8 %v2868
      %v2870 = vlaneseq
      %v2871 = vshrl.u32 %v2870, 7
      %v2872 = vsub.s32 %v2869, %v2871
      %v2873 = vrot.slane %v2865, %v2872
      %v2875 = vunpack.c.l.s4 1983009808
      %v2876 = vunpack.c.0.s8 %v2875
      %v2877 = vlaneseq
      %v2878 = vshrl.u32 %v2877, 7
      %v2879 = vsub.s32 %v2876, %v2878
      %v2880 = vrot.slane %v2866, %v2879
      %v2881 = vcombine.low %v2780, %v2788
      %v2882 = vcombine.high %v2780, %v2788
      %v2884 = vunpack.c.l.s4 1983009808
      %v2885 = vunpack.c.0.s8 %v2884
      %v2886 = vlaneseq
      %v2887 = vshrl.u32 %v2886, 7
      %v2888 = vsub.s32 %v2885, %v2887
      %v2889 = vrot.slane %v2881, %v2888
      %v2891 = vunpack.c.l.s4 1983009808
      %v2892 = vunpack.c.0.s8 %v2891
      %v2893 = vlaneseq
      %v2894 = vshrl.u32 %v2893, 7
      %v2895 = vsub.s32 %v2892, %v2894
      %v2896 = vrot.slane %v2882, %v2895
      %v2897 = vcombine.low %v2873, %v2889
      %v2898 = vcombine.high %v2873, %v2889
      %v2900 = vunpack.c.l.s4 1934713408
      %v2901 = vunpack.c.0.s8 %v2900
      %v2902 = vlaneseq
      %v2903 = vshrl.u32 %v2902, 7
      %v2904 = vsub.s32 %v2901, %v2903
      %v2905 = vrot.slane %v2897, %v2904
      %v2907 = vunpack.c.l.s4 1934713408
      %v2908 = vunpack.c.0.s8 %v2907
      %v2909 = vlaneseq
      %v2910 = vshrl.u32 %v2909, 7
      %v2911 = vsub.s32 %v2908, %v2910
      %v2912 = vrot.slane %v2898, %v2911
      %v2913 = vcombine.low %v2880, %v2896
      %v2914 = vcombine.high %v2880, %v2896
      %v2916 = vunpack.c.l.s4 1934713408
      %v2917 = vunpack.c.0.s8 %v2916
      %v2918 = vlaneseq
      %v2919 = vshrl.u32 %v2918, 7
      %v2920 = vsub.s32 %v2917, %v2919
      %v2921 = vrot.slane %v2913, %v2920
      %v2923 = vunpack.c.l.s4 1934713408
      %v2924 = vunpack.c.0.s8 %v2923
      %v2925 = vlaneseq
      %v2926 = vshrl.u32 %v2925, 7
      %v2927 = vsub.s32 %v2924, %v2926
      %v2928 = vrot.slane %v2914, %v2927
      %v2929 = vcombine.high %v2905, 0.0
      %v2930 = vcombine.high %v2912, 0.0
      %v2931 = vcombine.high %v2921, 0.0
      %v2932 = vcombine.high %v2928, 0.0
      %2934 = vrot.lane.b32.xlu0 %v2861, 16
      %v2935 = vpop.permute.xlu0 %2934
      %2938 = vrot.lane.b32.xlu0 %v2844, 32
      %v2939 = vpop.permute.xlu0 %2938
      %2942 = vrot.lane.b32.xlu0 %v2862, 48
      %v2943 = vpop.permute.xlu0 %2942
      %2946 = vrot.lane.b32.xlu0 %v2853, 64
      %v2947 = vpop.permute.xlu0 %2946
      %2950 = vrot.lane.b32.xlu0 %v2863, 80
      %v2951 = vpop.permute.xlu0 %2950
      %2954 = vrot.lane.b32.xlu0 %v2860, 96
      %v2955 = vpop.permute.xlu0 %2954
      %2958 = vrot.lane.b32.xlu0 %v2864, 112
      %v2959 = vpop.permute.xlu0 %2958
      %2962 = vrot.lane.b32.xlu0 %v2929, 16
      %v2963 = vpop.permute.xlu0 %2962
      %2966 = vrot.lane.b32.xlu0 %v2912, 32
      %v2967 = vpop.permute.xlu0 %2966
      %2970 = vrot.lane.b32.xlu0 %v2930, 48
      %v2971 = vpop.permute.xlu0 %2970
      %2974 = vrot.lane.b32.xlu0 %v2921, 64
      %v2975 = vpop.permute.xlu0 %2974
      %2978 = vrot.lane.b32.xlu0 %v2931, 80
      %v2979 = vpop.permute.xlu0 %2978
      %2982 = vrot.lane.b32.xlu0 %v2928, 96
      %v2983 = vpop.permute.xlu0 %2982
      %2986 = vrot.lane.b32.xlu0 %v2932, 112
      %v2987 = vpop.permute.xlu0 %2986
      %v2989 = vsel %vm588, %v2837, %v2935
      %v2990 = vsel %vm590, %v2989, %v2939
      %v2991 = vsel %vm592, %v2990, %v2943
      %v2992 = vsel %vm594, %v2991, %v2947
      %v2993 = vsel %vm596, %v2992, %v2951
      %v2994 = vsel %vm598, %v2993, %v2955
      %v2995 = vsel %vm600, %v2994, %v2959
      %v2996 = vsel %vm588, %v2905, %v2963
      %v2997 = vsel %vm590, %v2996, %v2967
      %v2998 = vsel %vm592, %v2997, %v2971
      %v2999 = vsel %vm594, %v2998, %v2975
      %v3000 = vsel %vm596, %v2999, %v2979
      %v3001 = vsel %vm598, %v3000, %v2983
      %v3002 = vsel %vm600, %v3001, %v2987
      %v3005 = vrot.slane %v1371, 4
      %v3006 = vrot.slane %v1378, 4
      %v3011 = vrot.slane %v1840, 4
      %v3012 = vrot.slane %v1847, 4
      %v3017 = vrot.slane %v2300, 4
      %v3018 = vrot.slane %v2307, 4
      %v3023 = vrot.slane %v2765, 4
      %v3024 = vrot.slane %v2772, 4
      %vm3027 = vcmask 1043456
      %v3028 = vsel %vm3027, %v1133, %v3005
      %v3029 = vsel %vm3027, %v1140, %v3006
      %v3030 = vsel %vm3027, %v1601, %v3011
      %v3031 = vsel %vm3027, %v1608, %v3012
      %v3032 = vsel %vm3027, %v2070, %v3017
      %v3033 = vsel %vm3027, %v2077, %v3018
      %v3034 = vsel %vm3027, %v2535, %v3023
      %v3035 = vsel %vm3027, %v2542, %v3024
      %v3036 = vpack.c.bf16 %v3030, %v3028
      %v3037 = vpack.c.bf16 %v3031, %v3029
      %v3038 = vpack.c.bf16 %v3034, %v3032
      %v3039 = vpack.c.bf16 %v3035, %v3033
      %v3040 = vpack.c.bf16 %v2995, %v2995
      %v3041 = vpack.c.bf16 %v3002, %v3002
      %v3042 = vld [vmem:[%s3] sm:$0xf]
      %v3043 = vld [vmem:[%s4] sm:$0xff]
      %3045 = vset.pattern.permute.xlu0 0
      %3046 = vperm.xlu0 %3045, %v3043
      %v3047 = vpop.permute.xlu0 %3046
      %vm3049 = vcmask 293888
      %v3051 = vsel %vm3049, %v3042, 0
      %v3054 = vsel %vm634, %v3040, 0
      %v3057 = vsel %vm634, %v3041, 0
      %3059 = vmatprep.subr.bf16.mxu0 %v3037
      %3060 = vmatpush1.bf16.msra.mxu0 %v3036
      %3061 = vmatprep.subr.bf16.mxu0 %v3039
      %3062 = vmatpush1.bf16.msra.mxu0 %v3038
      %3063 = vmatprep.subr.bf16.mxu0 %v3057
      %3064 = vmatpush1.bf16.msra.mxu0 %v3054
      %3065 = vmatprep.subr.bf16.mxu0 0
      %3066 = vmatpush1.bf16.msra.mxu0 0
      %3067 = vmatprep.subr.bf16.mxu0 0
      %3068 = vmatpush1.bf16.msra.mxu0 0
      %3069 = vmatprep.subr.bf16.mxu0 0
      %3070 = vmatpush1.bf16.msra.mxu0 0
      %3071 = vmatprep.subr.bf16.mxu0 0
      %3072 = vmatpush1.bf16.msra.mxu0 0
      %3073 = vmatprep.subr.bf16.mxu0 0
      %3074 = vmatpush1.bf16.msra.mxu0 0
      %3075 = vmatprep.subr.bf16.mxu0 0
      %3076 = vmatpush1.bf16.msra.mxu0 0
      %3077 = vmatprep.subr.bf16.mxu0 0
      %3078 = vmatpush1.bf16.msra.mxu0 0
      %3079 = vmatprep.subr.bf16.mxu0 0
      %3080 = vmatpush1.bf16.msra.mxu0 0
      %3081 = vmatprep.subr.bf16.mxu0 0
      %3082 = vmatpush1.bf16.msra.mxu0 0
      %3083 = vmatprep.subr.bf16.mxu0 0
      %3084 = vmatpush1.bf16.msra.mxu0 0
      %3085 = vmatprep.subr.bf16.mxu0 0
      %3086 = vmatpush1.bf16.msra.mxu0 0
      %3087 = vmatprep.subr.bf16.mxu0 0
      %3088 = vmatpush1.bf16.msra.mxu0 0
      %3089 = vmatprep.subr.bf16.mxu0 0
      %3090 = vmatpush1.bf16.msra.mxu0 0
      %3091 = vmatprep.mubr.bf16.mxu0 0
      %3092 = vmatmul.mubr.bf16.gmra.mrb[0].mxu0 %v3051
      %v3093 = vpop.f32.mrb[0].mxu0
      %v3094 = vadd.f32 %v3047, %v3093
      %v3095 = vpop.f32.mrb[0].mxu0
      %v3096 = vadd.f32 %v3047, %v3095
      %v3097 = vpop.f32.mrb[0].mxu0
      %v3098 = vpop.f32.mrb[0].mxu0
      %3099 = vdwg.mxu0
      %v3100 = vmax.f32 %v3094, 0.0
      %v3101 = vmax.f32 %v3096, 0.0
      %3102 = vst.msk [vmem:[#allocation4] sm:$0xff] %vm688, 0.0
      %3103 = vst.msk [vmem:[#allocation4 + $0x8] sm:$0xff] %vm688, 0.0
      %3104 = vst.msk [vmem:[#allocation4 + $0x10] sm:$0x3] %vm691, 0.0
      %3105 = vst.msk [vmem:[#allocation4 + $0x18] sm:$0xff] %vm688, 0.0
      %3106 = vst.msk [vmem:[#allocation4 + $0x20] sm:$0xff] %vm688, 0.0
      %3107 = vst.msk [vmem:[#allocation4 + $0x28] sm:$0x3] %vm691, 0.0
      %3108 = vst.msk [vmem:[#allocation4 + $0x30] sm:$0xff] %vm688, 0.0
      %3109 = vst.msk [vmem:[#allocation4 + $0x38] sm:$0xff] %vm688, 0.0
      %3110 = vst.msk [vmem:[#allocation4 + $0x40] sm:$0x3] %vm691, 0.0
      %3111 = vst.msk [vmem:[#allocation4 + $0x48] sm:$0xff] %vm688, 0.0
      %3112 = vst.msk [vmem:[#allocation4 + $0x50] sm:$0xff] %vm688, 0.0
      %3113 = vst.msk [vmem:[#allocation4 + $0x58] sm:$0x3] %vm691, 0.0
      %v3114 = vrot.slane %v686, 4
      %v3115 = vrot.slane %v704, 4
      %v3116 = vrot.slane %v707, 4
      %v3117 = vrot.slane %v710, 4
      %v3118 = vrot.slane %v713, 4
      %v3119 = vrot.slane %v716, 4
      %v3120 = vrot.slane %v719, 4
      %v3121 = vrot.slane %v722, 4
      %v3122 = vrot.slane %v687, 4
      %v3123 = vrot.slane %v726, 4
      %v3124 = vrot.slane %v729, 4
      %v3125 = vrot.slane %v732, 4
      %v3126 = vrot.slane %v735, 4
      %v3127 = vrot.slane %v738, 4
      %v3128 = vrot.slane %v741, 4
      %v3129 = vrot.slane %v744, 4
      %v3146 = vcombine.low %v3114, %v3116
      %v3148 = vunpack.c.l.s4 1983009808
      %v3149 = vunpack.c.0.s8 %v3148
      %v3150 = vlaneseq
      %v3151 = vshrl.u32 %v3150, 7
      %v3152 = vsub.s32 %v3149, %v3151
      %v3153 = vrot.slane %v3146, %v3152
      %v3154 = vcombine.low %v3115, %v3117
      %v3156 = vunpack.c.l.s4 1983009808
      %v3157 = vunpack.c.0.s8 %v3156
      %v3158 = vlaneseq
      %v3159 = vshrl.u32 %v3158, 7
      %v3160 = vsub.s32 %v3157, %v3159
      %v3161 = vrot.slane %v3154, %v3160
      %v3162 = vcombine.low %v3118, %v3120
      %v3164 = vunpack.c.l.s4 1983009808
      %v3165 = vunpack.c.0.s8 %v3164
      %v3166 = vlaneseq
      %v3167 = vshrl.u32 %v3166, 7
      %v3168 = vsub.s32 %v3165, %v3167
      %v3169 = vrot.slane %v3162, %v3168
      %v3170 = vcombine.low %v3119, %v3121
      %v3172 = vunpack.c.l.s4 1983009808
      %v3173 = vunpack.c.0.s8 %v3172
      %v3174 = vlaneseq
      %v3175 = vshrl.u32 %v3174, 7
      %v3176 = vsub.s32 %v3173, %v3175
      %v3177 = vrot.slane %v3170, %v3176
      %v3178 = vcombine.low %v3153, %v3161
      %v3179 = vcombine.high %v3153, %v3161
      %v3181 = vunpack.c.l.s4 1934713408
      %v3182 = vunpack.c.0.s8 %v3181
      %v3183 = vlaneseq
      %v3184 = vshrl.u32 %v3183, 7
      %v3185 = vsub.s32 %v3182, %v3184
      %v3186 = vrot.slane %v3178, %v3185
      %v3188 = vunpack.c.l.s4 1934713408
      %v3189 = vunpack.c.0.s8 %v3188
      %v3190 = vlaneseq
      %v3191 = vshrl.u32 %v3190, 7
      %v3192 = vsub.s32 %v3189, %v3191
      %v3193 = vrot.slane %v3179, %v3192
      %v3194 = vcombine.low %v3169, %v3177
      %v3195 = vcombine.high %v3169, %v3177
      %v3197 = vunpack.c.l.s4 1934713408
      %v3198 = vunpack.c.0.s8 %v3197
      %v3199 = vlaneseq
      %v3200 = vshrl.u32 %v3199, 7
      %v3201 = vsub.s32 %v3198, %v3200
      %v3202 = vrot.slane %v3194, %v3201
      %v3204 = vunpack.c.l.s4 1934713408
      %v3205 = vunpack.c.0.s8 %v3204
      %v3206 = vlaneseq
      %v3207 = vshrl.u32 %v3206, 7
      %v3208 = vsub.s32 %v3205, %v3207
      %v3209 = vrot.slane %v3195, %v3208
      %v3210 = vcombine.low %v3186, %v3202
      %v3211 = vcombine.high %v3186, %v3202
      %v3212 = vcombine.low %v3193, %v3209
      %v3213 = vcombine.high %v3193, %v3209
      %v3214 = vcombine.low %v3122, %v3124
      %v3216 = vunpack.c.l.s4 1983009808
      %v3217 = vunpack.c.0.s8 %v3216
      %v3218 = vlaneseq
      %v3219 = vshrl.u32 %v3218, 7
      %v3220 = vsub.s32 %v3217, %v3219
      %v3221 = vrot.slane %v3214, %v3220
      %v3222 = vcombine.low %v3123, %v3125
      %v3224 = vunpack.c.l.s4 1983009808
      %v3225 = vunpack.c.0.s8 %v3224
      %v3226 = vlaneseq
      %v3227 = vshrl.u32 %v3226, 7
      %v3228 = vsub.s32 %v3225, %v3227
      %v3229 = vrot.slane %v3222, %v3228
      %v3230 = vcombine.low %v3126, %v3128
      %v3232 = vunpack.c.l.s4 1983009808
      %v3233 = vunpack.c.0.s8 %v3232
      %v3234 = vlaneseq
      %v3235 = vshrl.u32 %v3234, 7
      %v3236 = vsub.s32 %v3233, %v3235
      %v3237 = vrot.slane %v3230, %v3236
      %v3238 = vcombine.low %v3127, %v3129
      %v3240 = vunpack.c.l.s4 1983009808
      %v3241 = vunpack.c.0.s8 %v3240
      %v3242 = vlaneseq
      %v3243 = vshrl.u32 %v3242, 7
      %v3244 = vsub.s32 %v3241, %v3243
      %v3245 = vrot.slane %v3238, %v3244
      %v3246 = vcombine.low %v3221, %v3229
      %v3247 = vcombine.high %v3221, %v3229
      %v3249 = vunpack.c.l.s4 1934713408
      %v3250 = vunpack.c.0.s8 %v3249
      %v3251 = vlaneseq
      %v3252 = vshrl.u32 %v3251, 7
      %v3253 = vsub.s32 %v3250, %v3252
      %v3254 = vrot.slane %v3246, %v3253
      %v3256 = vunpack.c.l.s4 1934713408
      %v3257 = vunpack.c.0.s8 %v3256
      %v3258 = vlaneseq
      %v3259 = vshrl.u32 %v3258, 7
      %v3260 = vsub.s32 %v3257, %v3259
      %v3261 = vrot.slane %v3247, %v3260
      %v3262 = vcombine.low %v3237, %v3245
      %v3263 = vcombine.high %v3237, %v3245
      %v3265 = vunpack.c.l.s4 1934713408
      %v3266 = vunpack.c.0.s8 %v3265
      %v3267 = vlaneseq
      %v3268 = vshrl.u32 %v3267, 7
      %v3269 = vsub.s32 %v3266, %v3268
      %v3270 = vrot.slane %v3262, %v3269
      %v3272 = vunpack.c.l.s4 1934713408
      %v3273 = vunpack.c.0.s8 %v3272
      %v3274 = vlaneseq
      %v3275 = vshrl.u32 %v3274, 7
      %v3276 = vsub.s32 %v3273, %v3275
      %v3277 = vrot.slane %v3263, %v3276
      %v3278 = vcombine.low %v3254, %v3270
      %v3279 = vcombine.high %v3254, %v3270
      %v3280 = vcombine.low %v3261, %v3277
      %v3281 = vcombine.high %v3261, %v3277
      %3290 = vrot.lane.b32.xlu0 %v3210, 1
      %v3291 = vpop.permute.xlu0 %3290
      %3292 = vrot.lane.b32.xlu0 %v3278, 1
      %v3293 = vpop.permute.xlu0 %3292
      %3294 = vrot.lane.b32.xlu0 %v3211, 1
      %v3295 = vpop.permute.xlu0 %3294
      %3296 = vrot.lane.b32.xlu0 %v3279, 1
      %v3297 = vpop.permute.xlu0 %3296
      %3298 = vrot.lane.b32.xlu0 %v3212, 1
      %v3299 = vpop.permute.xlu0 %3298
      %3300 = vrot.lane.b32.xlu0 %v3280, 1
      %v3301 = vpop.permute.xlu0 %3300
      %3302 = vrot.lane.b32.xlu0 %v3213, 1
      %v3303 = vpop.permute.xlu0 %3302
      %3304 = vrot.lane.b32.xlu0 %v3281, 1
      %v3305 = vpop.permute.xlu0 %3304
      %3314 = vst.msk [vmem:[#allocation4 + $0x1] sm:$0xff] %vm914, %v3291
      %3315 = vst.msk [vmem:[#allocation4 + $0x9] sm:$0xff] %vm914, %v3293
      %3316 = vst.msk [vmem:[#allocation4 + $0x19] sm:$0xff] %vm914, %v3295
      %3317 = vst.msk [vmem:[#allocation4 + $0x21] sm:$0xff] %vm914, %v3297
      %3318 = vst.msk [vmem:[#allocation4 + $0x31] sm:$0xff] %vm914, %v3299
      %3319 = vst.msk [vmem:[#allocation4 + $0x39] sm:$0xff] %vm914, %v3301
      %3320 = vst.msk [vmem:[#allocation4 + $0x49] sm:$0xff] %vm914, %v3303
      %3321 = vst.msk [vmem:[#allocation4 + $0x51] sm:$0xff] %vm914, %v3305
      %v3322 = vld [vmem:[#allocation4] sm:$0xff]
      %v3323 = vld [vmem:[#allocation4 + $0x8] sm:$0xff]
      %v3324 = vld [vmem:[#allocation4 + $0x10] sm:$0x3]
      %v3325 = vld [vmem:[#allocation4 + $0x18] sm:$0xff]
      %v3326 = vld [vmem:[#allocation4 + $0x20] sm:$0xff]
      %v3327 = vld [vmem:[#allocation4 + $0x28] sm:$0x3]
      %v3328 = vld [vmem:[#allocation4 + $0x30] sm:$0xff]
      %v3329 = vld [vmem:[#allocation4 + $0x38] sm:$0xff]
      %v3330 = vld [vmem:[#allocation4 + $0x40] sm:$0x3]
      %v3331 = vld [vmem:[#allocation4 + $0x48] sm:$0xff]
      %v3332 = vld [vmem:[#allocation4 + $0x50] sm:$0xff]
      %v3333 = vld [vmem:[#allocation4 + $0x58] sm:$0x3]
      %v3334 = vcombine.low %v3322, %v3328
      %v3335 = vcombine.high %v3322, %v3328
      %v3337 = vunpack.c.l.s4 1983009808
      %v3338 = vunpack.c.0.s8 %v3337
      %v3339 = vlaneseq
      %v3340 = vshrl.u32 %v3339, 7
      %v3341 = vsub.s32 %v3338, %v3340
      %v3342 = vrot.slane %v3334, %v3341
      %v3344 = vunpack.c.l.s4 1983009808
      %v3345 = vunpack.c.0.s8 %v3344
      %v3346 = vlaneseq
      %v3347 = vshrl.u32 %v3346, 7
      %v3348 = vsub.s32 %v3345, %v3347
      %v3349 = vrot.slane %v3335, %v3348
      %v3350 = vcombine.low %v3325, %v3331
      %v3351 = vcombine.high %v3325, %v3331
      %v3353 = vunpack.c.l.s4 1983009808
      %v3354 = vunpack.c.0.s8 %v3353
      %v3355 = vlaneseq
      %v3356 = vshrl.u32 %v3355, 7
      %v3357 = vsub.s32 %v3354, %v3356
      %v3358 = vrot.slane %v3350, %v3357
      %v3360 = vunpack.c.l.s4 1983009808
      %v3361 = vunpack.c.0.s8 %v3360
      %v3362 = vlaneseq
      %v3363 = vshrl.u32 %v3362, 7
      %v3364 = vsub.s32 %v3361, %v3363
      %v3365 = vrot.slane %v3351, %v3364
      %v3366 = vcombine.low %v3342, %v3358
      %v3367 = vcombine.high %v3342, %v3358
      %v3369 = vunpack.c.l.s4 1934713408
      %v3370 = vunpack.c.0.s8 %v3369
      %v3371 = vlaneseq
      %v3372 = vshrl.u32 %v3371, 7
      %v3373 = vsub.s32 %v3370, %v3372
      %v3374 = vrot.slane %v3366, %v3373
      %v3376 = vunpack.c.l.s4 1934713408
      %v3377 = vunpack.c.0.s8 %v3376
      %v3378 = vlaneseq
      %v3379 = vshrl.u32 %v3378, 7
      %v3380 = vsub.s32 %v3377, %v3379
      %v3381 = vrot.slane %v3367, %v3380
      %v3382 = vcombine.low %v3349, %v3365
      %v3383 = vcombine.high %v3349, %v3365
      %v3385 = vunpack.c.l.s4 1934713408
      %v3386 = vunpack.c.0.s8 %v3385
      %v3387 = vlaneseq
      %v3388 = vshrl.u32 %v3387, 7
      %v3389 = vsub.s32 %v3386, %v3388
      %v3390 = vrot.slane %v3382, %v3389
      %v3392 = vunpack.c.l.s4 1934713408
      %v3393 = vunpack.c.0.s8 %v3392
      %v3394 = vlaneseq
      %v3395 = vshrl.u32 %v3394, 7
      %v3396 = vsub.s32 %v3393, %v3395
      %v3397 = vrot.slane %v3383, %v3396
      %v3398 = vcombine.high %v3374, 0.0
      %v3399 = vcombine.high %v3381, 0.0
      %v3400 = vcombine.high %v3390, 0.0
      %v3401 = vcombine.high %v3397, 0.0
      %v3402 = vcombine.low %v3323, %v3329
      %v3403 = vcombine.high %v3323, %v3329
      %v3405 = vunpack.c.l.s4 1983009808
      %v3406 = vunpack.c.0.s8 %v3405
      %v3407 = vlaneseq
      %v3408 = vshrl.u32 %v3407, 7
      %v3409 = vsub.s32 %v3406, %v3408
      %v3410 = vrot.slane %v3402, %v3409
      %v3412 = vunpack.c.l.s4 1983009808
      %v3413 = vunpack.c.0.s8 %v3412
      %v3414 = vlaneseq
      %v3415 = vshrl.u32 %v3414, 7
      %v3416 = vsub.s32 %v3413, %v3415
      %v3417 = vrot.slane %v3403, %v3416
      %v3418 = vcombine.low %v3326, %v3332
      %v3419 = vcombine.high %v3326, %v3332
      %v3421 = vunpack.c.l.s4 1983009808
      %v3422 = vunpack.c.0.s8 %v3421
      %v3423 = vlaneseq
      %v3424 = vshrl.u32 %v3423, 7
      %v3425 = vsub.s32 %v3422, %v3424
      %v3426 = vrot.slane %v3418, %v3425
      %v3428 = vunpack.c.l.s4 1983009808
      %v3429 = vunpack.c.0.s8 %v3428
      %v3430 = vlaneseq
      %v3431 = vshrl.u32 %v3430, 7
      %v3432 = vsub.s32 %v3429, %v3431
      %v3433 = vrot.slane %v3419, %v3432
      %v3434 = vcombine.low %v3410, %v3426
      %v3435 = vcombine.high %v3410, %v3426
      %v3437 = vunpack.c.l.s4 1934713408
      %v3438 = vunpack.c.0.s8 %v3437
      %v3439 = vlaneseq
      %v3440 = vshrl.u32 %v3439, 7
      %v3441 = vsub.s32 %v3438, %v3440
      %v3442 = vrot.slane %v3434, %v3441
      %v3444 = vunpack.c.l.s4 1934713408
      %v3445 = vunpack.c.0.s8 %v3444
      %v3446 = vlaneseq
      %v3447 = vshrl.u32 %v3446, 7
      %v3448 = vsub.s32 %v3445, %v3447
      %v3449 = vrot.slane %v3435, %v3448
      %v3450 = vcombine.low %v3417, %v3433
      %v3451 = vcombine.high %v3417, %v3433
      %v3453 = vunpack.c.l.s4 1934713408
      %v3454 = vunpack.c.0.s8 %v3453
      %v3455 = vlaneseq
      %v3456 = vshrl.u32 %v3455, 7
      %v3457 = vsub.s32 %v3454, %v3456
      %v3458 = vrot.slane %v3450, %v3457
      %v3460 = vunpack.c.l.s4 1934713408
      %v3461 = vunpack.c.0.s8 %v3460
      %v3462 = vlaneseq
      %v3463 = vshrl.u32 %v3462, 7
      %v3464 = vsub.s32 %v3461, %v3463
      %v3465 = vrot.slane %v3451, %v3464
      %v3466 = vcombine.high %v3442, 0.0
      %v3467 = vcombine.high %v3449, 0.0
      %v3468 = vcombine.high %v3458, 0.0
      %v3469 = vcombine.high %v3465, 0.0
      %3471 = vrot.lane.b32.xlu0 %v3398, 16
      %v3472 = vpop.permute.xlu0 %3471
      %3475 = vrot.lane.b32.xlu0 %v3381, 32
      %v3476 = vpop.permute.xlu0 %3475
      %3479 = vrot.lane.b32.xlu0 %v3399, 48
      %v3480 = vpop.permute.xlu0 %3479
      %3483 = vrot.lane.b32.xlu0 %v3390, 64
      %v3484 = vpop.permute.xlu0 %3483
      %3487 = vrot.lane.b32.xlu0 %v3400, 80
      %v3488 = vpop.permute.xlu0 %3487
      %3491 = vrot.lane.b32.xlu0 %v3397, 96
      %v3492 = vpop.permute.xlu0 %3491
      %3495 = vrot.lane.b32.xlu0 %v3401, 112
      %v3496 = vpop.permute.xlu0 %3495
      %3499 = vrot.lane.b32.xlu0 %v3466, 16
      %v3500 = vpop.permute.xlu0 %3499
      %3503 = vrot.lane.b32.xlu0 %v3449, 32
      %v3504 = vpop.permute.xlu0 %3503
      %3507 = vrot.lane.b32.xlu0 %v3467, 48
      %v3508 = vpop.permute.xlu0 %3507
      %3511 = vrot.lane.b32.xlu0 %v3458, 64
      %v3512 = vpop.permute.xlu0 %3511
      %3515 = vrot.lane.b32.xlu0 %v3468, 80
      %v3516 = vpop.permute.xlu0 %3515
      %3519 = vrot.lane.b32.xlu0 %v3465, 96
      %v3520 = vpop.permute.xlu0 %3519
      %3523 = vrot.lane.b32.xlu0 %v3469, 112
      %v3524 = vpop.permute.xlu0 %3523
      %v3526 = vsel %vm588, %v3374, %v3472
      %v3527 = vsel %vm590, %v3526, %v3476
      %v3528 = vsel %vm592, %v3527, %v3480
      %v3529 = vsel %vm594, %v3528, %v3484
      %v3530 = vsel %vm596, %v3529, %v3488
      %v3531 = vsel %vm598, %v3530, %v3492
      %v3532 = vsel %vm600, %v3531, %v3496
      %v3533 = vsel %vm588, %v3442, %v3500
      %v3534 = vsel %vm590, %v3533, %v3504
      %v3535 = vsel %vm592, %v3534, %v3508
      %v3536 = vsel %vm594, %v3535, %v3512
      %v3537 = vsel %vm596, %v3536, %v3516
      %v3538 = vsel %vm598, %v3537, %v3520
      %v3539 = vsel %vm600, %v3538, %v3524
      %3548 = vrot.lane.b32.xlu0 %v3322, 127
      %v3549 = vpop.permute.xlu0 %3548
      %3550 = vrot.lane.b32.xlu0 %v3323, 127
      %v3551 = vpop.permute.xlu0 %3550
      %3552 = vrot.lane.b32.xlu0 %v3325, 127
      %v3553 = vpop.permute.xlu0 %3552
      %3554 = vrot.lane.b32.xlu0 %v3326, 127
      %v3555 = vpop.permute.xlu0 %3554
      %3556 = vrot.lane.b32.xlu0 %v3328, 127
      %v3557 = vpop.permute.xlu0 %3556
      %3558 = vrot.lane.b32.xlu0 %v3329, 127
      %v3559 = vpop.permute.xlu0 %3558
      %3560 = vrot.lane.b32.xlu0 %v3331, 127
      %v3561 = vpop.permute.xlu0 %3560
      %3562 = vrot.lane.b32.xlu0 %v3332, 127
      %v3563 = vpop.permute.xlu0 %3562
      %v3572 = vcombine.low %v3549, %v3557
      %v3573 = vcombine.high %v3549, %v3557
      %v3575 = vunpack.c.l.s4 1983009808
      %v3576 = vunpack.c.0.s8 %v3575
      %v3577 = vlaneseq
      %v3578 = vshrl.u32 %v3577, 7
      %v3579 = vsub.s32 %v3576, %v3578
      %v3580 = vrot.slane %v3572, %v3579
      %v3582 = vunpack.c.l.s4 1983009808
      %v3583 = vunpack.c.0.s8 %v3582
      %v3584 = vlaneseq
      %v3585 = vshrl.u32 %v3584, 7
      %v3586 = vsub.s32 %v3583, %v3585
      %v3587 = vrot.slane %v3573, %v3586
      %v3588 = vcombine.low %v3553, %v3561
      %v3589 = vcombine.high %v3553, %v3561
      %v3591 = vunpack.c.l.s4 1983009808
      %v3592 = vunpack.c.0.s8 %v3591
      %v3593 = vlaneseq
      %v3594 = vshrl.u32 %v3593, 7
      %v3595 = vsub.s32 %v3592, %v3594
      %v3596 = vrot.slane %v3588, %v3595
      %v3598 = vunpack.c.l.s4 1983009808
      %v3599 = vunpack.c.0.s8 %v3598
      %v3600 = vlaneseq
      %v3601 = vshrl.u32 %v3600, 7
      %v3602 = vsub.s32 %v3599, %v3601
      %v3603 = vrot.slane %v3589, %v3602
      %v3604 = vcombine.low %v3580, %v3596
      %v3605 = vcombine.high %v3580, %v3596
      %v3607 = vunpack.c.l.s4 1934713408
      %v3608 = vunpack.c.0.s8 %v3607
      %v3609 = vlaneseq
      %v3610 = vshrl.u32 %v3609, 7
      %v3611 = vsub.s32 %v3608, %v3610
      %v3612 = vrot.slane %v3604, %v3611
      %v3614 = vunpack.c.l.s4 1934713408
      %v3615 = vunpack.c.0.s8 %v3614
      %v3616 = vlaneseq
      %v3617 = vshrl.u32 %v3616, 7
      %v3618 = vsub.s32 %v3615, %v3617
      %v3619 = vrot.slane %v3605, %v3618
      %v3620 = vcombine.low %v3587, %v3603
      %v3621 = vcombine.high %v3587, %v3603
      %v3623 = vunpack.c.l.s4 1934713408
      %v3624 = vunpack.c.0.s8 %v3623
      %v3625 = vlaneseq
      %v3626 = vshrl.u32 %v3625, 7
      %v3627 = vsub.s32 %v3624, %v3626
      %v3628 = vrot.slane %v3620, %v3627
      %v3630 = vunpack.c.l.s4 1934713408
      %v3631 = vunpack.c.0.s8 %v3630
      %v3632 = vlaneseq
      %v3633 = vshrl.u32 %v3632, 7
      %v3634 = vsub.s32 %v3631, %v3633
      %v3635 = vrot.slane %v3621, %v3634
      %v3636 = vcombine.high %v3612, 0.0
      %v3637 = vcombine.high %v3619, 0.0
      %v3638 = vcombine.high %v3628, 0.0
      %v3639 = vcombine.high %v3635, 0.0
      %v3640 = vcombine.low %v3551, %v3559
      %v3641 = vcombine.high %v3551, %v3559
      %v3643 = vunpack.c.l.s4 1983009808
      %v3644 = vunpack.c.0.s8 %v3643
      %v3645 = vlaneseq
      %v3646 = vshrl.u32 %v3645, 7
      %v3647 = vsub.s32 %v3644, %v3646
      %v3648 = vrot.slane %v3640, %v3647
      %v3650 = vunpack.c.l.s4 1983009808
      %v3651 = vunpack.c.0.s8 %v3650
      %v3652 = vlaneseq
      %v3653 = vshrl.u32 %v3652, 7
      %v3654 = vsub.s32 %v3651, %v3653
      %v3655 = vrot.slane %v3641, %v3654
      %v3656 = vcombine.low %v3555, %v3563
      %v3657 = vcombine.high %v3555, %v3563
      %v3659 = vunpack.c.l.s4 1983009808
      %v3660 = vunpack.c.0.s8 %v3659
      %v3661 = vlaneseq
      %v3662 = vshrl.u32 %v3661, 7
      %v3663 = vsub.s32 %v3660, %v3662
      %v3664 = vrot.slane %v3656, %v3663
      %v3666 = vunpack.c.l.s4 1983009808
      %v3667 = vunpack.c.0.s8 %v3666
      %v3668 = vlaneseq
      %v3669 = vshrl.u32 %v3668, 7
      %v3670 = vsub.s32 %v3667, %v3669
      %v3671 = vrot.slane %v3657, %v3670
      %v3672 = vcombine.low %v3648, %v3664
      %v3673 = vcombine.high %v3648, %v3664
      %v3675 = vunpack.c.l.s4 1934713408
      %v3676 = vunpack.c.0.s8 %v3675
      %v3677 = vlaneseq
      %v3678 = vshrl.u32 %v3677, 7
      %v3679 = vsub.s32 %v3676, %v3678
      %v3680 = vrot.slane %v3672, %v3679
      %v3682 = vunpack.c.l.s4 1934713408
      %v3683 = vunpack.c.0.s8 %v3682
      %v3684 = vlaneseq
      %v3685 = vshrl.u32 %v3684, 7
      %v3686 = vsub.s32 %v3683, %v3685
      %v3687 = vrot.slane %v3673, %v3686
      %v3688 = vcombine.low %v3655, %v3671
      %v3689 = vcombine.high %v3655, %v3671
      %v3691 = vunpack.c.l.s4 1934713408
      %v3692 = vunpack.c.0.s8 %v3691
      %v3693 = vlaneseq
      %v3694 = vshrl.u32 %v3693, 7
      %v3695 = vsub.s32 %v3692, %v3694
      %v3696 = vrot.slane %v3688, %v3695
      %v3698 = vunpack.c.l.s4 1934713408
      %v3699 = vunpack.c.0.s8 %v3698
      %v3700 = vlaneseq
      %v3701 = vshrl.u32 %v3700, 7
      %v3702 = vsub.s32 %v3699, %v3701
      %v3703 = vrot.slane %v3689, %v3702
      %v3704 = vcombine.high %v3680, 0.0
      %v3705 = vcombine.high %v3687, 0.0
      %v3706 = vcombine.high %v3696, 0.0
      %v3707 = vcombine.high %v3703, 0.0
      %3709 = vrot.lane.b32.xlu0 %v3636, 16
      %v3710 = vpop.permute.xlu0 %3709
      %3713 = vrot.lane.b32.xlu0 %v3619, 32
      %v3714 = vpop.permute.xlu0 %3713
      %3717 = vrot.lane.b32.xlu0 %v3637, 48
      %v3718 = vpop.permute.xlu0 %3717
      %3721 = vrot.lane.b32.xlu0 %v3628, 64
      %v3722 = vpop.permute.xlu0 %3721
      %3725 = vrot.lane.b32.xlu0 %v3638, 80
      %v3726 = vpop.permute.xlu0 %3725
      %3729 = vrot.lane.b32.xlu0 %v3635, 96
      %v3730 = vpop.permute.xlu0 %3729
      %3733 = vrot.lane.b32.xlu0 %v3639, 112
      %v3734 = vpop.permute.xlu0 %3733
      %3737 = vrot.lane.b32.xlu0 %v3704, 16
      %v3738 = vpop.permute.xlu0 %3737
      %3741 = vrot.lane.b32.xlu0 %v3687, 32
      %v3742 = vpop.permute.xlu0 %3741
      %3745 = vrot.lane.b32.xlu0 %v3705, 48
      %v3746 = vpop.permute.xlu0 %3745
      %3749 = vrot.lane.b32.xlu0 %v3696, 64
      %v3750 = vpop.permute.xlu0 %3749
      %3753 = vrot.lane.b32.xlu0 %v3706, 80
      %v3754 = vpop.permute.xlu0 %3753
      %3757 = vrot.lane.b32.xlu0 %v3703, 96
      %v3758 = vpop.permute.xlu0 %3757
      %3761 = vrot.lane.b32.xlu0 %v3707, 112
      %v3762 = vpop.permute.xlu0 %3761
      %v3764 = vsel %vm588, %v3612, %v3710
      %v3765 = vsel %vm590, %v3764, %v3714
      %v3766 = vsel %vm592, %v3765, %v3718
      %v3767 = vsel %vm594, %v3766, %v3722
      %v3768 = vsel %vm596, %v3767, %v3726
      %v3769 = vsel %vm598, %v3768, %v3730
      %v3770 = vsel %vm600, %v3769, %v3734
      %v3771 = vsel %vm588, %v3680, %v3738
      %v3772 = vsel %vm590, %v3771, %v3742
      %v3773 = vsel %vm592, %v3772, %v3746
      %v3774 = vsel %vm594, %v3773, %v3750
      %v3775 = vsel %vm596, %v3774, %v3754
      %v3776 = vsel %vm598, %v3775, %v3758
      %v3777 = vsel %vm600, %v3776, %v3762
      %3778 = vrot.lane.b32.xlu0 %v3322, 126
      %v3779 = vpop.permute.xlu0 %3778
      %3780 = vrot.lane.b32.xlu0 %v3323, 126
      %v3781 = vpop.permute.xlu0 %3780
      %3782 = vrot.lane.b32.xlu0 %v3325, 126
      %v3783 = vpop.permute.xlu0 %3782
      %3784 = vrot.lane.b32.xlu0 %v3326, 126
      %v3785 = vpop.permute.xlu0 %3784
      %3786 = vrot.lane.b32.xlu0 %v3328, 126
      %v3787 = vpop.permute.xlu0 %3786
      %3788 = vrot.lane.b32.xlu0 %v3329, 126
      %v3789 = vpop.permute.xlu0 %3788
      %3790 = vrot.lane.b32.xlu0 %v3331, 126
      %v3791 = vpop.permute.xlu0 %3790
      %3792 = vrot.lane.b32.xlu0 %v3332, 126
      %v3793 = vpop.permute.xlu0 %3792
      %v3802 = vcombine.low %v3779, %v3787
      %v3803 = vcombine.high %v3779, %v3787
      %v3805 = vunpack.c.l.s4 1983009808
      %v3806 = vunpack.c.0.s8 %v3805
      %v3807 = vlaneseq
      %v3808 = vshrl.u32 %v3807, 7
      %v3809 = vsub.s32 %v3806, %v3808
      %v3810 = vrot.slane %v3802, %v3809
      %v3812 = vunpack.c.l.s4 1983009808
      %v3813 = vunpack.c.0.s8 %v3812
      %v3814 = vlaneseq
      %v3815 = vshrl.u32 %v3814, 7
      %v3816 = vsub.s32 %v3813, %v3815
      %v3817 = vrot.slane %v3803, %v3816
      %v3818 = vcombine.low %v3783, %v3791
      %v3819 = vcombine.high %v3783, %v3791
      %v3821 = vunpack.c.l.s4 1983009808
      %v3822 = vunpack.c.0.s8 %v3821
      %v3823 = vlaneseq
      %v3824 = vshrl.u32 %v3823, 7
      %v3825 = vsub.s32 %v3822, %v3824
      %v3826 = vrot.slane %v3818, %v3825
      %v3828 = vunpack.c.l.s4 1983009808
      %v3829 = vunpack.c.0.s8 %v3828
      %v3830 = vlaneseq
      %v3831 = vshrl.u32 %v3830, 7
      %v3832 = vsub.s32 %v3829, %v3831
      %v3833 = vrot.slane %v3819, %v3832
      %v3834 = vcombine.low %v3810, %v3826
      %v3835 = vcombine.high %v3810, %v3826
      %v3837 = vunpack.c.l.s4 1934713408
      %v3838 = vunpack.c.0.s8 %v3837
      %v3839 = vlaneseq
      %v3840 = vshrl.u32 %v3839, 7
      %v3841 = vsub.s32 %v3838, %v3840
      %v3842 = vrot.slane %v3834, %v3841
      %v3844 = vunpack.c.l.s4 1934713408
      %v3845 = vunpack.c.0.s8 %v3844
      %v3846 = vlaneseq
      %v3847 = vshrl.u32 %v3846, 7
      %v3848 = vsub.s32 %v3845, %v3847
      %v3849 = vrot.slane %v3835, %v3848
      %v3850 = vcombine.low %v3817, %v3833
      %v3851 = vcombine.high %v3817, %v3833
      %v3853 = vunpack.c.l.s4 1934713408
      %v3854 = vunpack.c.0.s8 %v3853
      %v3855 = vlaneseq
      %v3856 = vshrl.u32 %v3855, 7
      %v3857 = vsub.s32 %v3854, %v3856
      %v3858 = vrot.slane %v3850, %v3857
      %v3860 = vunpack.c.l.s4 1934713408
      %v3861 = vunpack.c.0.s8 %v3860
      %v3862 = vlaneseq
      %v3863 = vshrl.u32 %v3862, 7
      %v3864 = vsub.s32 %v3861, %v3863
      %v3865 = vrot.slane %v3851, %v3864
      %v3866 = vcombine.high %v3842, 0.0
      %v3867 = vcombine.high %v3849, 0.0
      %v3868 = vcombine.high %v3858, 0.0
      %v3869 = vcombine.high %v3865, 0.0
      %v3870 = vcombine.low %v3781, %v3789
      %v3871 = vcombine.high %v3781, %v3789
      %v3873 = vunpack.c.l.s4 1983009808
      %v3874 = vunpack.c.0.s8 %v3873
      %v3875 = vlaneseq
      %v3876 = vshrl.u32 %v3875, 7
      %v3877 = vsub.s32 %v3874, %v3876
      %v3878 = vrot.slane %v3870, %v3877
      %v3880 = vunpack.c.l.s4 1983009808
      %v3881 = vunpack.c.0.s8 %v3880
      %v3882 = vlaneseq
      %v3883 = vshrl.u32 %v3882, 7
      %v3884 = vsub.s32 %v3881, %v3883
      %v3885 = vrot.slane %v3871, %v3884
      %v3886 = vcombine.low %v3785, %v3793
      %v3887 = vcombine.high %v3785, %v3793
      %v3889 = vunpack.c.l.s4 1983009808
      %v3890 = vunpack.c.0.s8 %v3889
      %v3891 = vlaneseq
      %v3892 = vshrl.u32 %v3891, 7
      %v3893 = vsub.s32 %v3890, %v3892
      %v3894 = vrot.slane %v3886, %v3893
      %v3896 = vunpack.c.l.s4 1983009808
      %v3897 = vunpack.c.0.s8 %v3896
      %v3898 = vlaneseq
      %v3899 = vshrl.u32 %v3898, 7
      %v3900 = vsub.s32 %v3897, %v3899
      %v3901 = vrot.slane %v3887, %v3900
      %v3902 = vcombine.low %v3878, %v3894
      %v3903 = vcombine.high %v3878, %v3894
      %v3905 = vunpack.c.l.s4 1934713408
      %v3906 = vunpack.c.0.s8 %v3905
      %v3907 = vlaneseq
      %v3908 = vshrl.u32 %v3907, 7
      %v3909 = vsub.s32 %v3906, %v3908
      %v3910 = vrot.slane %v3902, %v3909
      %v3912 = vunpack.c.l.s4 1934713408
      %v3913 = vunpack.c.0.s8 %v3912
      %v3914 = vlaneseq
      %v3915 = vshrl.u32 %v3914, 7
      %v3916 = vsub.s32 %v3913, %v3915
      %v3917 = vrot.slane %v3903, %v3916
      %v3918 = vcombine.low %v3885, %v3901
      %v3919 = vcombine.high %v3885, %v3901
      %v3921 = vunpack.c.l.s4 1934713408
      %v3922 = vunpack.c.0.s8 %v3921
      %v3923 = vlaneseq
      %v3924 = vshrl.u32 %v3923, 7
      %v3925 = vsub.s32 %v3922, %v3924
      %v3926 = vrot.slane %v3918, %v3925
      %v3928 = vunpack.c.l.s4 1934713408
      %v3929 = vunpack.c.0.s8 %v3928
      %v3930 = vlaneseq
      %v3931 = vshrl.u32 %v3930, 7
      %v3932 = vsub.s32 %v3929, %v3931
      %v3933 = vrot.slane %v3919, %v3932
      %v3934 = vcombine.high %v3910, 0.0
      %v3935 = vcombine.high %v3917, 0.0
      %v3936 = vcombine.high %v3926, 0.0
      %v3937 = vcombine.high %v3933, 0.0
      %3939 = vrot.lane.b32.xlu0 %v3866, 16
      %v3940 = vpop.permute.xlu0 %3939
      %3943 = vrot.lane.b32.xlu0 %v3849, 32
      %v3944 = vpop.permute.xlu0 %3943
      %3947 = vrot.lane.b32.xlu0 %v3867, 48
      %v3948 = vpop.permute.xlu0 %3947
      %3951 = vrot.lane.b32.xlu0 %v3858, 64
      %v3952 = vpop.permute.xlu0 %3951
      %3955 = vrot.lane.b32.xlu0 %v3868, 80
      %v3956 = vpop.permute.xlu0 %3955
      %3959 = vrot.lane.b32.xlu0 %v3865, 96
      %v3960 = vpop.permute.xlu0 %3959
      %3963 = vrot.lane.b32.xlu0 %v3869, 112
      %v3964 = vpop.permute.xlu0 %3963
      %3967 = vrot.lane.b32.xlu0 %v3934, 16
      %v3968 = vpop.permute.xlu0 %3967
      %3971 = vrot.lane.b32.xlu0 %v3917, 32
      %v3972 = vpop.permute.xlu0 %3971
      %3975 = vrot.lane.b32.xlu0 %v3935, 48
      %v3976 = vpop.permute.xlu0 %3975
      %3979 = vrot.lane.b32.xlu0 %v3926, 64
      %v3980 = vpop.permute.xlu0 %3979
      %3983 = vrot.lane.b32.xlu0 %v3936, 80
      %v3984 = vpop.permute.xlu0 %3983
      %3987 = vrot.lane.b32.xlu0 %v3933, 96
      %v3988 = vpop.permute.xlu0 %3987
      %3991 = vrot.lane.b32.xlu0 %v3937, 112
      %v3992 = vpop.permute.xlu0 %3991
      %v3994 = vsel %vm588, %v3842, %v3940
      %v3995 = vsel %vm590, %v3994, %v3944
      %v3996 = vsel %vm592, %v3995, %v3948
      %v3997 = vsel %vm594, %v3996, %v3952
      %v3998 = vsel %vm596, %v3997, %v3956
      %v3999 = vsel %vm598, %v3998, %v3960
      %v4000 = vsel %vm600, %v3999, %v3964
      %v4001 = vsel %vm588, %v3910, %v3968
      %v4002 = vsel %vm590, %v4001, %v3972
      %v4003 = vsel %vm592, %v4002, %v3976
      %v4004 = vsel %vm594, %v4003, %v3980
      %v4005 = vsel %vm596, %v4004, %v3984
      %v4006 = vsel %vm598, %v4005, %v3988
      %v4007 = vsel %vm600, %v4006, %v3992
      %v4012 = vrot.slane %v3322, 1
      %v4013 = vrot.slane %v3323, 1
      %v4014 = vsel %vm1613, %v4012, %v4013
      %v4015 = vrot.slane %v3324, 1
      %v4016 = vsel %vm1613, %v4013, %v4015
      %v4017 = vrot.slane %v3325, 1
      %v4018 = vrot.slane %v3326, 1
      %v4019 = vsel %vm1613, %v4017, %v4018
      %v4020 = vrot.slane %v3327, 1
      %v4021 = vsel %vm1613, %v4018, %v4020
      %v4022 = vrot.slane %v3328, 1
      %v4023 = vrot.slane %v3329, 1
      %v4024 = vsel %vm1613, %v4022, %v4023
      %v4025 = vrot.slane %v3330, 1
      %v4026 = vsel %vm1613, %v4023, %v4025
      %v4027 = vrot.slane %v3331, 1
      %v4028 = vrot.slane %v3332, 1
      %v4029 = vsel %vm1613, %v4027, %v4028
      %v4030 = vrot.slane %v3333, 1
      %v4031 = vsel %vm1613, %v4028, %v4030
      %v4040 = vcombine.low %v4014, %v4024
      %v4041 = vcombine.high %v4014, %v4024
      %v4043 = vunpack.c.l.s4 1983009808
      %v4044 = vunpack.c.0.s8 %v4043
      %v4045 = vlaneseq
      %v4046 = vshrl.u32 %v4045, 7
      %v4047 = vsub.s32 %v4044, %v4046
      %v4048 = vrot.slane %v4040, %v4047
      %v4050 = vunpack.c.l.s4 1983009808
      %v4051 = vunpack.c.0.s8 %v4050
      %v4052 = vlaneseq
      %v4053 = vshrl.u32 %v4052, 7
      %v4054 = vsub.s32 %v4051, %v4053
      %v4055 = vrot.slane %v4041, %v4054
      %v4056 = vcombine.low %v4019, %v4029
      %v4057 = vcombine.high %v4019, %v4029
      %v4059 = vunpack.c.l.s4 1983009808
      %v4060 = vunpack.c.0.s8 %v4059
      %v4061 = vlaneseq
      %v4062 = vshrl.u32 %v4061, 7
      %v4063 = vsub.s32 %v4060, %v4062
      %v4064 = vrot.slane %v4056, %v4063
      %v4066 = vunpack.c.l.s4 1983009808
      %v4067 = vunpack.c.0.s8 %v4066
      %v4068 = vlaneseq
      %v4069 = vshrl.u32 %v4068, 7
      %v4070 = vsub.s32 %v4067, %v4069
      %v4071 = vrot.slane %v4057, %v4070
      %v4072 = vcombine.low %v4048, %v4064
      %v4073 = vcombine.high %v4048, %v4064
      %v4075 = vunpack.c.l.s4 1934713408
      %v4076 = vunpack.c.0.s8 %v4075
      %v4077 = vlaneseq
      %v4078 = vshrl.u32 %v4077, 7
      %v4079 = vsub.s32 %v4076, %v4078
      %v4080 = vrot.slane %v4072, %v4079
      %v4082 = vunpack.c.l.s4 1934713408
      %v4083 = vunpack.c.0.s8 %v4082
      %v4084 = vlaneseq
      %v4085 = vshrl.u32 %v4084, 7
      %v4086 = vsub.s32 %v4083, %v4085
      %v4087 = vrot.slane %v4073, %v4086
      %v4088 = vcombine.low %v4055, %v4071
      %v4089 = vcombine.high %v4055, %v4071
      %v4091 = vunpack.c.l.s4 1934713408
      %v4092 = vunpack.c.0.s8 %v4091
      %v4093 = vlaneseq
      %v4094 = vshrl.u32 %v4093, 7
      %v4095 = vsub.s32 %v4092, %v4094
      %v4096 = vrot.slane %v4088, %v4095
      %v4098 = vunpack.c.l.s4 1934713408
      %v4099 = vunpack.c.0.s8 %v4098
      %v4100 = vlaneseq
      %v4101 = vshrl.u32 %v4100, 7
      %v4102 = vsub.s32 %v4099, %v4101
      %v4103 = vrot.slane %v4089, %v4102
      %v4104 = vcombine.high %v4080, 0.0
      %v4105 = vcombine.high %v4087, 0.0
      %v4106 = vcombine.high %v4096, 0.0
      %v4107 = vcombine.high %v4103, 0.0
      %v4108 = vcombine.low %v4016, %v4026
      %v4109 = vcombine.high %v4016, %v4026
      %v4111 = vunpack.c.l.s4 1983009808
      %v4112 = vunpack.c.0.s8 %v4111
      %v4113 = vlaneseq
      %v4114 = vshrl.u32 %v4113, 7
      %v4115 = vsub.s32 %v4112, %v4114
      %v4116 = vrot.slane %v4108, %v4115
      %v4118 = vunpack.c.l.s4 1983009808
      %v4119 = vunpack.c.0.s8 %v4118
      %v4120 = vlaneseq
      %v4121 = vshrl.u32 %v4120, 7
      %v4122 = vsub.s32 %v4119, %v4121
      %v4123 = vrot.slane %v4109, %v4122
      %v4124 = vcombine.low %v4021, %v4031
      %v4125 = vcombine.high %v4021, %v4031
      %v4127 = vunpack.c.l.s4 1983009808
      %v4128 = vunpack.c.0.s8 %v4127
      %v4129 = vlaneseq
      %v4130 = vshrl.u32 %v4129, 7
      %v4131 = vsub.s32 %v4128, %v4130
      %v4132 = vrot.slane %v4124, %v4131
      %v4134 = vunpack.c.l.s4 1983009808
      %v4135 = vunpack.c.0.s8 %v4134
      %v4136 = vlaneseq
      %v4137 = vshrl.u32 %v4136, 7
      %v4138 = vsub.s32 %v4135, %v4137
      %v4139 = vrot.slane %v4125, %v4138
      %v4140 = vcombine.low %v4116, %v4132
      %v4141 = vcombine.high %v4116, %v4132
      %v4143 = vunpack.c.l.s4 1934713408
      %v4144 = vunpack.c.0.s8 %v4143
      %v4145 = vlaneseq
      %v4146 = vshrl.u32 %v4145, 7
      %v4147 = vsub.s32 %v4144, %v4146
      %v4148 = vrot.slane %v4140, %v4147
      %v4150 = vunpack.c.l.s4 1934713408
      %v4151 = vunpack.c.0.s8 %v4150
      %v4152 = vlaneseq
      %v4153 = vshrl.u32 %v4152, 7
      %v4154 = vsub.s32 %v4151, %v4153
      %v4155 = vrot.slane %v4141, %v4154
      %v4156 = vcombine.low %v4123, %v4139
      %v4157 = vcombine.high %v4123, %v4139
      %v4159 = vunpack.c.l.s4 1934713408
      %v4160 = vunpack.c.0.s8 %v4159
      %v4161 = vlaneseq
      %v4162 = vshrl.u32 %v4161, 7
      %v4163 = vsub.s32 %v4160, %v4162
      %v4164 = vrot.slane %v4156, %v4163
      %v4166 = vunpack.c.l.s4 1934713408
      %v4167 = vunpack.c.0.s8 %v4166
      %v4168 = vlaneseq
      %v4169 = vshrl.u32 %v4168, 7
      %v4170 = vsub.s32 %v4167, %v4169
      %v4171 = vrot.slane %v4157, %v4170
      %v4172 = vcombine.high %v4148, 0.0
      %v4173 = vcombine.high %v4155, 0.0
      %v4174 = vcombine.high %v4164, 0.0
      %v4175 = vcombine.high %v4171, 0.0
      %4177 = vrot.lane.b32.xlu0 %v4104, 16
      %v4178 = vpop.permute.xlu0 %4177
      %4181 = vrot.lane.b32.xlu0 %v4087, 32
      %v4182 = vpop.permute.xlu0 %4181
      %4185 = vrot.lane.b32.xlu0 %v4105, 48
      %v4186 = vpop.permute.xlu0 %4185
      %4189 = vrot.lane.b32.xlu0 %v4096, 64
      %v4190 = vpop.permute.xlu0 %4189
      %4193 = vrot.lane.b32.xlu0 %v4106, 80
      %v4194 = vpop.permute.xlu0 %4193
      %4197 = vrot.lane.b32.xlu0 %v4103, 96
      %v4198 = vpop.permute.xlu0 %4197
      %4201 = vrot.lane.b32.xlu0 %v4107, 112
      %v4202 = vpop.permute.xlu0 %4201
      %4205 = vrot.lane.b32.xlu0 %v4172, 16
      %v4206 = vpop.permute.xlu0 %4205
      %4209 = vrot.lane.b32.xlu0 %v4155, 32
      %v4210 = vpop.permute.xlu0 %4209
      %4213 = vrot.lane.b32.xlu0 %v4173, 48
      %v4214 = vpop.permute.xlu0 %4213
      %4217 = vrot.lane.b32.xlu0 %v4164, 64
      %v4218 = vpop.permute.xlu0 %4217
      %4221 = vrot.lane.b32.xlu0 %v4174, 80
      %v4222 = vpop.permute.xlu0 %4221
      %4225 = vrot.lane.b32.xlu0 %v4171, 96
      %v4226 = vpop.permute.xlu0 %4225
      %4229 = vrot.lane.b32.xlu0 %v4175, 112
      %v4230 = vpop.permute.xlu0 %4229
      %v4232 = vsel %vm588, %v4080, %v4178
      %v4233 = vsel %vm590, %v4232, %v4182
      %v4234 = vsel %vm592, %v4233, %v4186
      %v4235 = vsel %vm594, %v4234, %v4190
      %v4236 = vsel %vm596, %v4235, %v4194
      %v4237 = vsel %vm598, %v4236, %v4198
      %v4238 = vsel %vm600, %v4237, %v4202
      %v4239 = vsel %vm588, %v4148, %v4206
      %v4240 = vsel %vm590, %v4239, %v4210
      %v4241 = vsel %vm592, %v4240, %v4214
      %v4242 = vsel %vm594, %v4241, %v4218
      %v4243 = vsel %vm596, %v4242, %v4222
      %v4244 = vsel %vm598, %v4243, %v4226
      %v4245 = vsel %vm600, %v4244, %v4230
      %4246 = vrot.lane.b32.xlu0 %v4014, 127
      %v4247 = vpop.permute.xlu0 %4246
      %4248 = vrot.lane.b32.xlu0 %v4016, 127
      %v4249 = vpop.permute.xlu0 %4248
      %4250 = vrot.lane.b32.xlu0 %v4019, 127
      %v4251 = vpop.permute.xlu0 %4250
      %4252 = vrot.lane.b32.xlu0 %v4021, 127
      %v4253 = vpop.permute.xlu0 %4252
      %4254 = vrot.lane.b32.xlu0 %v4024, 127
      %v4255 = vpop.permute.xlu0 %4254
      %4256 = vrot.lane.b32.xlu0 %v4026, 127
      %v4257 = vpop.permute.xlu0 %4256
      %4258 = vrot.lane.b32.xlu0 %v4029, 127
      %v4259 = vpop.permute.xlu0 %4258
      %4260 = vrot.lane.b32.xlu0 %v4031, 127
      %v4261 = vpop.permute.xlu0 %4260
      %v4270 = vcombine.low %v4247, %v4255
      %v4271 = vcombine.high %v4247, %v4255
      %v4273 = vunpack.c.l.s4 1983009808
      %v4274 = vunpack.c.0.s8 %v4273
      %v4275 = vlaneseq
      %v4276 = vshrl.u32 %v4275, 7
      %v4277 = vsub.s32 %v4274, %v4276
      %v4278 = vrot.slane %v4270, %v4277
      %v4280 = vunpack.c.l.s4 1983009808
      %v4281 = vunpack.c.0.s8 %v4280
      %v4282 = vlaneseq
      %v4283 = vshrl.u32 %v4282, 7
      %v4284 = vsub.s32 %v4281, %v4283
      %v4285 = vrot.slane %v4271, %v4284
      %v4286 = vcombine.low %v4251, %v4259
      %v4287 = vcombine.high %v4251, %v4259
      %v4289 = vunpack.c.l.s4 1983009808
      %v4290 = vunpack.c.0.s8 %v4289
      %v4291 = vlaneseq
      %v4292 = vshrl.u32 %v4291, 7
      %v4293 = vsub.s32 %v4290, %v4292
      %v4294 = vrot.slane %v4286, %v4293
      %v4296 = vunpack.c.l.s4 1983009808
      %v4297 = vunpack.c.0.s8 %v4296
      %v4298 = vlaneseq
      %v4299 = vshrl.u32 %v4298, 7
      %v4300 = vsub.s32 %v4297, %v4299
      %v4301 = vrot.slane %v4287, %v4300
      %v4302 = vcombine.low %v4278, %v4294
      %v4303 = vcombine.high %v4278, %v4294
      %v4305 = vunpack.c.l.s4 1934713408
      %v4306 = vunpack.c.0.s8 %v4305
      %v4307 = vlaneseq
      %v4308 = vshrl.u32 %v4307, 7
      %v4309 = vsub.s32 %v4306, %v4308
      %v4310 = vrot.slane %v4302, %v4309
      %v4312 = vunpack.c.l.s4 1934713408
      %v4313 = vunpack.c.0.s8 %v4312
      %v4314 = vlaneseq
      %v4315 = vshrl.u32 %v4314, 7
      %v4316 = vsub.s32 %v4313, %v4315
      %v4317 = vrot.slane %v4303, %v4316
      %v4318 = vcombine.low %v4285, %v4301
      %v4319 = vcombine.high %v4285, %v4301
      %v4321 = vunpack.c.l.s4 1934713408
      %v4322 = vunpack.c.0.s8 %v4321
      %v4323 = vlaneseq
      %v4324 = vshrl.u32 %v4323, 7
      %v4325 = vsub.s32 %v4322, %v4324
      %v4326 = vrot.slane %v4318, %v4325
      %v4328 = vunpack.c.l.s4 1934713408
      %v4329 = vunpack.c.0.s8 %v4328
      %v4330 = vlaneseq
      %v4331 = vshrl.u32 %v4330, 7
      %v4332 = vsub.s32 %v4329, %v4331
      %v4333 = vrot.slane %v4319, %v4332
      %v4334 = vcombine.high %v4310, 0.0
      %v4335 = vcombine.high %v4317, 0.0
      %v4336 = vcombine.high %v4326, 0.0
      %v4337 = vcombine.high %v4333, 0.0
      %v4338 = vcombine.low %v4249, %v4257
      %v4339 = vcombine.high %v4249, %v4257
      %v4341 = vunpack.c.l.s4 1983009808
      %v4342 = vunpack.c.0.s8 %v4341
      %v4343 = vlaneseq
      %v4344 = vshrl.u32 %v4343, 7
      %v4345 = vsub.s32 %v4342, %v4344
      %v4346 = vrot.slane %v4338, %v4345
      %v4348 = vunpack.c.l.s4 1983009808
      %v4349 = vunpack.c.0.s8 %v4348
      %v4350 = vlaneseq
      %v4351 = vshrl.u32 %v4350, 7
      %v4352 = vsub.s32 %v4349, %v4351
      %v4353 = vrot.slane %v4339, %v4352
      %v4354 = vcombine.low %v4253, %v4261
      %v4355 = vcombine.high %v4253, %v4261
      %v4357 = vunpack.c.l.s4 1983009808
      %v4358 = vunpack.c.0.s8 %v4357
      %v4359 = vlaneseq
      %v4360 = vshrl.u32 %v4359, 7
      %v4361 = vsub.s32 %v4358, %v4360
      %v4362 = vrot.slane %v4354, %v4361
      %v4364 = vunpack.c.l.s4 1983009808
      %v4365 = vunpack.c.0.s8 %v4364
      %v4366 = vlaneseq
      %v4367 = vshrl.u32 %v4366, 7
      %v4368 = vsub.s32 %v4365, %v4367
      %v4369 = vrot.slane %v4355, %v4368
      %v4370 = vcombine.low %v4346, %v4362
      %v4371 = vcombine.high %v4346, %v4362
      %v4373 = vunpack.c.l.s4 1934713408
      %v4374 = vunpack.c.0.s8 %v4373
      %v4375 = vlaneseq
      %v4376 = vshrl.u32 %v4375, 7
      %v4377 = vsub.s32 %v4374, %v4376
      %v4378 = vrot.slane %v4370, %v4377
      %v4380 = vunpack.c.l.s4 1934713408
      %v4381 = vunpack.c.0.s8 %v4380
      %v4382 = vlaneseq
      %v4383 = vshrl.u32 %v4382, 7
      %v4384 = vsub.s32 %v4381, %v4383
      %v4385 = vrot.slane %v4371, %v4384
      %v4386 = vcombine.low %v4353, %v4369
      %v4387 = vcombine.high %v4353, %v4369
      %v4389 = vunpack.c.l.s4 1934713408
      %v4390 = vunpack.c.0.s8 %v4389
      %v4391 = vlaneseq
      %v4392 = vshrl.u32 %v4391, 7
      %v4393 = vsub.s32 %v4390, %v4392
      %v4394 = vrot.slane %v4386, %v4393
      %v4396 = vunpack.c.l.s4 1934713408
      %v4397 = vunpack.c.0.s8 %v4396
      %v4398 = vlaneseq
      %v4399 = vshrl.u32 %v4398, 7
      %v4400 = vsub.s32 %v4397, %v4399
      %v4401 = vrot.slane %v4387, %v4400
      %v4402 = vcombine.high %v4378, 0.0
      %v4403 = vcombine.high %v4385, 0.0
      %v4404 = vcombine.high %v4394, 0.0
      %v4405 = vcombine.high %v4401, 0.0
      %4407 = vrot.lane.b32.xlu0 %v4334, 16
      %v4408 = vpop.permute.xlu0 %4407
      %4411 = vrot.lane.b32.xlu0 %v4317, 32
      %v4412 = vpop.permute.xlu0 %4411
      %4415 = vrot.lane.b32.xlu0 %v4335, 48
      %v4416 = vpop.permute.xlu0 %4415
      %4419 = vrot.lane.b32.xlu0 %v4326, 64
      %v4420 = vpop.permute.xlu0 %4419
      %4423 = vrot.lane.b32.xlu0 %v4336, 80
      %v4424 = vpop.permute.xlu0 %4423
      %4427 = vrot.lane.b32.xlu0 %v4333, 96
      %v4428 = vpop.permute.xlu0 %4427
      %4431 = vrot.lane.b32.xlu0 %v4337, 112
      %v4432 = vpop.permute.xlu0 %4431
      %4435 = vrot.lane.b32.xlu0 %v4402, 16
      %v4436 = vpop.permute.xlu0 %4435
      %4439 = vrot.lane.b32.xlu0 %v4385, 32
      %v4440 = vpop.permute.xlu0 %4439
      %4443 = vrot.lane.b32.xlu0 %v4403, 48
      %v4444 = vpop.permute.xlu0 %4443
      %4447 = vrot.lane.b32.xlu0 %v4394, 64
      %v4448 = vpop.permute.xlu0 %4447
      %4451 = vrot.lane.b32.xlu0 %v4404, 80
      %v4452 = vpop.permute.xlu0 %4451
      %4455 = vrot.lane.b32.xlu0 %v4401, 96
      %v4456 = vpop.permute.xlu0 %4455
      %4459 = vrot.lane.b32.xlu0 %v4405, 112
      %v4460 = vpop.permute.xlu0 %4459
      %v4462 = vsel %vm588, %v4310, %v4408
      %v4463 = vsel %vm590, %v4462, %v4412
      %v4464 = vsel %vm592, %v4463, %v4416
      %v4465 = vsel %vm594, %v4464, %v4420
      %v4466 = vsel %vm596, %v4465, %v4424
      %v4467 = vsel %vm598, %v4466, %v4428
      %v4468 = vsel %vm600, %v4467, %v4432
      %v4469 = vsel %vm588, %v4378, %v4436
      %v4470 = vsel %vm590, %v4469, %v4440
      %v4471 = vsel %vm592, %v4470, %v4444
      %v4472 = vsel %vm594, %v4471, %v4448
      %v4473 = vsel %vm596, %v4472, %v4452
      %v4474 = vsel %vm598, %v4473, %v4456
      %v4475 = vsel %vm600, %v4474, %v4460
      %4476 = vrot.lane.b32.xlu0 %v4014, 126
      %v4477 = vpop.permute.xlu0 %4476
      %4478 = vrot.lane.b32.xlu0 %v4016, 126
      %v4479 = vpop.permute.xlu0 %4478
      %4480 = vrot.lane.b32.xlu0 %v4019, 126
      %v4481 = vpop.permute.xlu0 %4480
      %4482 = vrot.lane.b32.xlu0 %v4021, 126
      %v4483 = vpop.permute.xlu0 %4482
      %4484 = vrot.lane.b32.xlu0 %v4024, 126
      %v4485 = vpop.permute.xlu0 %4484
      %4486 = vrot.lane.b32.xlu0 %v4026, 126
      %v4487 = vpop.permute.xlu0 %4486
      %4488 = vrot.lane.b32.xlu0 %v4029, 126
      %v4489 = vpop.permute.xlu0 %4488
      %4490 = vrot.lane.b32.xlu0 %v4031, 126
      %v4491 = vpop.permute.xlu0 %4490
      %v4500 = vcombine.low %v4477, %v4485
      %v4501 = vcombine.high %v4477, %v4485
      %v4503 = vunpack.c.l.s4 1983009808
      %v4504 = vunpack.c.0.s8 %v4503
      %v4505 = vlaneseq
      %v4506 = vshrl.u32 %v4505, 7
      %v4507 = vsub.s32 %v4504, %v4506
      %v4508 = vrot.slane %v4500, %v4507
      %v4510 = vunpack.c.l.s4 1983009808
      %v4511 = vunpack.c.0.s8 %v4510
      %v4512 = vlaneseq
      %v4513 = vshrl.u32 %v4512, 7
      %v4514 = vsub.s32 %v4511, %v4513
      %v4515 = vrot.slane %v4501, %v4514
      %v4516 = vcombine.low %v4481, %v4489
      %v4517 = vcombine.high %v4481, %v4489
      %v4519 = vunpack.c.l.s4 1983009808
      %v4520 = vunpack.c.0.s8 %v4519
      %v4521 = vlaneseq
      %v4522 = vshrl.u32 %v4521, 7
      %v4523 = vsub.s32 %v4520, %v4522
      %v4524 = vrot.slane %v4516, %v4523
      %v4526 = vunpack.c.l.s4 1983009808
      %v4527 = vunpack.c.0.s8 %v4526
      %v4528 = vlaneseq
      %v4529 = vshrl.u32 %v4528, 7
      %v4530 = vsub.s32 %v4527, %v4529
      %v4531 = vrot.slane %v4517, %v4530
      %v4532 = vcombine.low %v4508, %v4524
      %v4533 = vcombine.high %v4508, %v4524
      %v4535 = vunpack.c.l.s4 1934713408
      %v4536 = vunpack.c.0.s8 %v4535
      %v4537 = vlaneseq
      %v4538 = vshrl.u32 %v4537, 7
      %v4539 = vsub.s32 %v4536, %v4538
      %v4540 = vrot.slane %v4532, %v4539
      %v4542 = vunpack.c.l.s4 1934713408
      %v4543 = vunpack.c.0.s8 %v4542
      %v4544 = vlaneseq
      %v4545 = vshrl.u32 %v4544, 7
      %v4546 = vsub.s32 %v4543, %v4545
      %v4547 = vrot.slane %v4533, %v4546
      %v4548 = vcombine.low %v4515, %v4531
      %v4549 = vcombine.high %v4515, %v4531
      %v4551 = vunpack.c.l.s4 1934713408
      %v4552 = vunpack.c.0.s8 %v4551
      %v4553 = vlaneseq
      %v4554 = vshrl.u32 %v4553, 7
      %v4555 = vsub.s32 %v4552, %v4554
      %v4556 = vrot.slane %v4548, %v4555
      %v4558 = vunpack.c.l.s4 1934713408
      %v4559 = vunpack.c.0.s8 %v4558
      %v4560 = vlaneseq
      %v4561 = vshrl.u32 %v4560, 7
      %v4562 = vsub.s32 %v4559, %v4561
      %v4563 = vrot.slane %v4549, %v4562
      %v4564 = vcombine.high %v4540, 0.0
      %v4565 = vcombine.high %v4547, 0.0
      %v4566 = vcombine.high %v4556, 0.0
      %v4567 = vcombine.high %v4563, 0.0
      %v4568 = vcombine.low %v4479, %v4487
      %v4569 = vcombine.high %v4479, %v4487
      %v4571 = vunpack.c.l.s4 1983009808
      %v4572 = vunpack.c.0.s8 %v4571
      %v4573 = vlaneseq
      %v4574 = vshrl.u32 %v4573, 7
      %v4575 = vsub.s32 %v4572, %v4574
      %v4576 = vrot.slane %v4568, %v4575
      %v4578 = vunpack.c.l.s4 1983009808
      %v4579 = vunpack.c.0.s8 %v4578
      %v4580 = vlaneseq
      %v4581 = vshrl.u32 %v4580, 7
      %v4582 = vsub.s32 %v4579, %v4581
      %v4583 = vrot.slane %v4569, %v4582
      %v4584 = vcombine.low %v4483, %v4491
      %v4585 = vcombine.high %v4483, %v4491
      %v4587 = vunpack.c.l.s4 1983009808
      %v4588 = vunpack.c.0.s8 %v4587
      %v4589 = vlaneseq
      %v4590 = vshrl.u32 %v4589, 7
      %v4591 = vsub.s32 %v4588, %v4590
      %v4592 = vrot.slane %v4584, %v4591
      %v4594 = vunpack.c.l.s4 1983009808
      %v4595 = vunpack.c.0.s8 %v4594
      %v4596 = vlaneseq
      %v4597 = vshrl.u32 %v4596, 7
      %v4598 = vsub.s32 %v4595, %v4597
      %v4599 = vrot.slane %v4585, %v4598
      %v4600 = vcombine.low %v4576, %v4592
      %v4601 = vcombine.high %v4576, %v4592
      %v4603 = vunpack.c.l.s4 1934713408
      %v4604 = vunpack.c.0.s8 %v4603
      %v4605 = vlaneseq
      %v4606 = vshrl.u32 %v4605, 7
      %v4607 = vsub.s32 %v4604, %v4606
      %v4608 = vrot.slane %v4600, %v4607
      %v4610 = vunpack.c.l.s4 1934713408
      %v4611 = vunpack.c.0.s8 %v4610
      %v4612 = vlaneseq
      %v4613 = vshrl.u32 %v4612, 7
      %v4614 = vsub.s32 %v4611, %v4613
      %v4615 = vrot.slane %v4601, %v4614
      %v4616 = vcombine.low %v4583, %v4599
      %v4617 = vcombine.high %v4583, %v4599
      %v4619 = vunpack.c.l.s4 1934713408
      %v4620 = vunpack.c.0.s8 %v4619
      %v4621 = vlaneseq
      %v4622 = vshrl.u32 %v4621, 7
      %v4623 = vsub.s32 %v4620, %v4622
      %v4624 = vrot.slane %v4616, %v4623
      %v4626 = vunpack.c.l.s4 1934713408
      %v4627 = vunpack.c.0.s8 %v4626
      %v4628 = vlaneseq
      %v4629 = vshrl.u32 %v4628, 7
      %v4630 = vsub.s32 %v4627, %v4629
      %v4631 = vrot.slane %v4617, %v4630
      %v4632 = vcombine.high %v4608, 0.0
      %v4633 = vcombine.high %v4615, 0.0
      %v4634 = vcombine.high %v4624, 0.0
      %v4635 = vcombine.high %v4631, 0.0
      %4637 = vrot.lane.b32.xlu0 %v4564, 16
      %v4638 = vpop.permute.xlu0 %4637
      %4641 = vrot.lane.b32.xlu0 %v4547, 32
      %v4642 = vpop.permute.xlu0 %4641
      %4645 = vrot.lane.b32.xlu0 %v4565, 48
      %v4646 = vpop.permute.xlu0 %4645
      %4649 = vrot.lane.b32.xlu0 %v4556, 64
      %v4650 = vpop.permute.xlu0 %4649
      %4653 = vrot.lane.b32.xlu0 %v4566, 80
      %v4654 = vpop.permute.xlu0 %4653
      %4657 = vrot.lane.b32.xlu0 %v4563, 96
      %v4658 = vpop.permute.xlu0 %4657
      %4661 = vrot.lane.b32.xlu0 %v4567, 112
      %v4662 = vpop.permute.xlu0 %4661
      %4665 = vrot.lane.b32.xlu0 %v4632, 16
      %v4666 = vpop.permute.xlu0 %4665
      %4669 = vrot.lane.b32.xlu0 %v4615, 32
      %v4670 = vpop.permute.xlu0 %4669
      %4673 = vrot.lane.b32.xlu0 %v4633, 48
      %v4674 = vpop.permute.xlu0 %4673
      %4677 = vrot.lane.b32.xlu0 %v4624, 64
      %v4678 = vpop.permute.xlu0 %4677
      %4681 = vrot.lane.b32.xlu0 %v4634, 80
      %v4682 = vpop.permute.xlu0 %4681
      %4685 = vrot.lane.b32.xlu0 %v4631, 96
      %v4686 = vpop.permute.xlu0 %4685
      %4689 = vrot.lane.b32.xlu0 %v4635, 112
      %v4690 = vpop.permute.xlu0 %4689
      %v4692 = vsel %vm588, %v4540, %v4638
      %v4693 = vsel %vm590, %v4692, %v4642
      %v4694 = vsel %vm592, %v4693, %v4646
      %v4695 = vsel %vm594, %v4694, %v4650
      %v4696 = vsel %vm596, %v4695, %v4654
      %v4697 = vsel %vm598, %v4696, %v4658
      %v4698 = vsel %vm600, %v4697, %v4662
      %v4699 = vsel %vm588, %v4608, %v4666
      %v4700 = vsel %vm590, %v4699, %v4670
      %v4701 = vsel %vm592, %v4700, %v4674
      %v4702 = vsel %vm594, %v4701, %v4678
      %v4703 = vsel %vm596, %v4702, %v4682
      %v4704 = vsel %vm598, %v4703, %v4686
      %v4705 = vsel %vm600, %v4704, %v4690
      %v4706 = vrot.slane %v3322, 2
      %v4707 = vrot.slane %v3323, 2
      %v4708 = vsel %vm2308, %v4706, %v4707
      %v4709 = vrot.slane %v3324, 2
      %v4710 = vsel %vm2308, %v4707, %v4709
      %v4711 = vrot.slane %v3325, 2
      %v4712 = vrot.slane %v3326, 2
      %v4713 = vsel %vm2308, %v4711, %v4712
      %v4714 = vrot.slane %v3327, 2
      %v4715 = vsel %vm2308, %v4712, %v4714
      %v4716 = vrot.slane %v3328, 2
      %v4717 = vrot.slane %v3329, 2
      %v4718 = vsel %vm2308, %v4716, %v4717
      %v4719 = vrot.slane %v3330, 2
      %v4720 = vsel %vm2308, %v4717, %v4719
      %v4721 = vrot.slane %v3331, 2
      %v4722 = vrot.slane %v3332, 2
      %v4723 = vsel %vm2308, %v4721, %v4722
      %v4724 = vrot.slane %v3333, 2
      %v4725 = vsel %vm2308, %v4722, %v4724
      %v4734 = vcombine.low %v4708, %v4718
      %v4735 = vcombine.high %v4708, %v4718
      %v4737 = vunpack.c.l.s4 1983009808
      %v4738 = vunpack.c.0.s8 %v4737
      %v4739 = vlaneseq
      %v4740 = vshrl.u32 %v4739, 7
      %v4741 = vsub.s32 %v4738, %v4740
      %v4742 = vrot.slane %v4734, %v4741
      %v4744 = vunpack.c.l.s4 1983009808
      %v4745 = vunpack.c.0.s8 %v4744
      %v4746 = vlaneseq
      %v4747 = vshrl.u32 %v4746, 7
      %v4748 = vsub.s32 %v4745, %v4747
      %v4749 = vrot.slane %v4735, %v4748
      %v4750 = vcombine.low %v4713, %v4723
      %v4751 = vcombine.high %v4713, %v4723
      %v4753 = vunpack.c.l.s4 1983009808
      %v4754 = vunpack.c.0.s8 %v4753
      %v4755 = vlaneseq
      %v4756 = vshrl.u32 %v4755, 7
      %v4757 = vsub.s32 %v4754, %v4756
      %v4758 = vrot.slane %v4750, %v4757
      %v4760 = vunpack.c.l.s4 1983009808
      %v4761 = vunpack.c.0.s8 %v4760
      %v4762 = vlaneseq
      %v4763 = vshrl.u32 %v4762, 7
      %v4764 = vsub.s32 %v4761, %v4763
      %v4765 = vrot.slane %v4751, %v4764
      %v4766 = vcombine.low %v4742, %v4758
      %v4767 = vcombine.high %v4742, %v4758
      %v4769 = vunpack.c.l.s4 1934713408
      %v4770 = vunpack.c.0.s8 %v4769
      %v4771 = vlaneseq
      %v4772 = vshrl.u32 %v4771, 7
      %v4773 = vsub.s32 %v4770, %v4772
      %v4774 = vrot.slane %v4766, %v4773
      %v4776 = vunpack.c.l.s4 1934713408
      %v4777 = vunpack.c.0.s8 %v4776
      %v4778 = vlaneseq
      %v4779 = vshrl.u32 %v4778, 7
      %v4780 = vsub.s32 %v4777, %v4779
      %v4781 = vrot.slane %v4767, %v4780
      %v4782 = vcombine.low %v4749, %v4765
      %v4783 = vcombine.high %v4749, %v4765
      %v4785 = vunpack.c.l.s4 1934713408
      %v4786 = vunpack.c.0.s8 %v4785
      %v4787 = vlaneseq
      %v4788 = vshrl.u32 %v4787, 7
      %v4789 = vsub.s32 %v4786, %v4788
      %v4790 = vrot.slane %v4782, %v4789
      %v4792 = vunpack.c.l.s4 1934713408
      %v4793 = vunpack.c.0.s8 %v4792
      %v4794 = vlaneseq
      %v4795 = vshrl.u32 %v4794, 7
      %v4796 = vsub.s32 %v4793, %v4795
      %v4797 = vrot.slane %v4783, %v4796
      %v4798 = vcombine.high %v4774, 0.0
      %v4799 = vcombine.high %v4781, 0.0
      %v4800 = vcombine.high %v4790, 0.0
      %v4801 = vcombine.high %v4797, 0.0
      %v4802 = vcombine.low %v4710, %v4720
      %v4803 = vcombine.high %v4710, %v4720
      %v4805 = vunpack.c.l.s4 1983009808
      %v4806 = vunpack.c.0.s8 %v4805
      %v4807 = vlaneseq
      %v4808 = vshrl.u32 %v4807, 7
      %v4809 = vsub.s32 %v4806, %v4808
      %v4810 = vrot.slane %v4802, %v4809
      %v4812 = vunpack.c.l.s4 1983009808
      %v4813 = vunpack.c.0.s8 %v4812
      %v4814 = vlaneseq
      %v4815 = vshrl.u32 %v4814, 7
      %v4816 = vsub.s32 %v4813, %v4815
      %v4817 = vrot.slane %v4803, %v4816
      %v4818 = vcombine.low %v4715, %v4725
      %v4819 = vcombine.high %v4715, %v4725
      %v4821 = vunpack.c.l.s4 1983009808
      %v4822 = vunpack.c.0.s8 %v4821
      %v4823 = vlaneseq
      %v4824 = vshrl.u32 %v4823, 7
      %v4825 = vsub.s32 %v4822, %v4824
      %v4826 = vrot.slane %v4818, %v4825
      %v4828 = vunpack.c.l.s4 1983009808
      %v4829 = vunpack.c.0.s8 %v4828
      %v4830 = vlaneseq
      %v4831 = vshrl.u32 %v4830, 7
      %v4832 = vsub.s32 %v4829, %v4831
      %v4833 = vrot.slane %v4819, %v4832
      %v4834 = vcombine.low %v4810, %v4826
      %v4835 = vcombine.high %v4810, %v4826
      %v4837 = vunpack.c.l.s4 1934713408
      %v4838 = vunpack.c.0.s8 %v4837
      %v4839 = vlaneseq
      %v4840 = vshrl.u32 %v4839, 7
      %v4841 = vsub.s32 %v4838, %v4840
      %v4842 = vrot.slane %v4834, %v4841
      %v4844 = vunpack.c.l.s4 1934713408
      %v4845 = vunpack.c.0.s8 %v4844
      %v4846 = vlaneseq
      %v4847 = vshrl.u32 %v4846, 7
      %v4848 = vsub.s32 %v4845, %v4847
      %v4849 = vrot.slane %v4835, %v4848
      %v4850 = vcombine.low %v4817, %v4833
      %v4851 = vcombine.high %v4817, %v4833
      %v4853 = vunpack.c.l.s4 1934713408
      %v4854 = vunpack.c.0.s8 %v4853
      %v4855 = vlaneseq
      %v4856 = vshrl.u32 %v4855, 7
      %v4857 = vsub.s32 %v4854, %v4856
      %v4858 = vrot.slane %v4850, %v4857
      %v4860 = vunpack.c.l.s4 1934713408
      %v4861 = vunpack.c.0.s8 %v4860
      %v4862 = vlaneseq
      %v4863 = vshrl.u32 %v4862, 7
      %v4864 = vsub.s32 %v4861, %v4863
      %v4865 = vrot.slane %v4851, %v4864
      %v4866 = vcombine.high %v4842, 0.0
      %v4867 = vcombine.high %v4849, 0.0
      %v4868 = vcombine.high %v4858, 0.0
      %v4869 = vcombine.high %v4865, 0.0
      %4871 = vrot.lane.b32.xlu0 %v4798, 16
      %v4872 = vpop.permute.xlu0 %4871
      %4875 = vrot.lane.b32.xlu0 %v4781, 32
      %v4876 = vpop.permute.xlu0 %4875
      %4879 = vrot.lane.b32.xlu0 %v4799, 48
      %v4880 = vpop.permute.xlu0 %4879
      %4883 = vrot.lane.b32.xlu0 %v4790, 64
      %v4884 = vpop.permute.xlu0 %4883
      %4887 = vrot.lane.b32.xlu0 %v4800, 80
      %v4888 = vpop.permute.xlu0 %4887
      %4891 = vrot.lane.b32.xlu0 %v4797, 96
      %v4892 = vpop.permute.xlu0 %4891
      %4895 = vrot.lane.b32.xlu0 %v4801, 112
      %v4896 = vpop.permute.xlu0 %4895
      %4899 = vrot.lane.b32.xlu0 %v4866, 16
      %v4900 = vpop.permute.xlu0 %4899
      %4903 = vrot.lane.b32.xlu0 %v4849, 32
      %v4904 = vpop.permute.xlu0 %4903
      %4907 = vrot.lane.b32.xlu0 %v4867, 48
      %v4908 = vpop.permute.xlu0 %4907
      %4911 = vrot.lane.b32.xlu0 %v4858, 64
      %v4912 = vpop.permute.xlu0 %4911
      %4915 = vrot.lane.b32.xlu0 %v4868, 80
      %v4916 = vpop.permute.xlu0 %4915
      %4919 = vrot.lane.b32.xlu0 %v4865, 96
      %v4920 = vpop.permute.xlu0 %4919
      %4923 = vrot.lane.b32.xlu0 %v4869, 112
      %v4924 = vpop.permute.xlu0 %4923
      %v4926 = vsel %vm588, %v4774, %v4872
      %v4927 = vsel %vm590, %v4926, %v4876
      %v4928 = vsel %vm592, %v4927, %v4880
      %v4929 = vsel %vm594, %v4928, %v4884
      %v4930 = vsel %vm596, %v4929, %v4888
      %v4931 = vsel %vm598, %v4930, %v4892
      %v4932 = vsel %vm600, %v4931, %v4896
      %v4933 = vsel %vm588, %v4842, %v4900
      %v4934 = vsel %vm590, %v4933, %v4904
      %v4935 = vsel %vm592, %v4934, %v4908
      %v4936 = vsel %vm594, %v4935, %v4912
      %v4937 = vsel %vm596, %v4936, %v4916
      %v4938 = vsel %vm598, %v4937, %v4920
      %v4939 = vsel %vm600, %v4938, %v4924
      %4940 = vrot.lane.b32.xlu0 %v4708, 127
      %v4941 = vpop.permute.xlu0 %4940
      %4942 = vrot.lane.b32.xlu0 %v4710, 127
      %v4943 = vpop.permute.xlu0 %4942
      %4944 = vrot.lane.b32.xlu0 %v4713, 127
      %v4945 = vpop.permute.xlu0 %4944
      %4946 = vrot.lane.b32.xlu0 %v4715, 127
      %v4947 = vpop.permute.xlu0 %4946
      %4948 = vrot.lane.b32.xlu0 %v4718, 127
      %v4949 = vpop.permute.xlu0 %4948
      %4950 = vrot.lane.b32.xlu0 %v4720, 127
      %v4951 = vpop.permute.xlu0 %4950
      %4952 = vrot.lane.b32.xlu0 %v4723, 127
      %v4953 = vpop.permute.xlu0 %4952
      %4954 = vrot.lane.b32.xlu0 %v4725, 127
      %v4955 = vpop.permute.xlu0 %4954
      %v4964 = vcombine.low %v4941, %v4949
      %v4965 = vcombine.high %v4941, %v4949
      %v4967 = vunpack.c.l.s4 1983009808
      %v4968 = vunpack.c.0.s8 %v4967
      %v4969 = vlaneseq
      %v4970 = vshrl.u32 %v4969, 7
      %v4971 = vsub.s32 %v4968, %v4970
      %v4972 = vrot.slane %v4964, %v4971
      %v4974 = vunpack.c.l.s4 1983009808
      %v4975 = vunpack.c.0.s8 %v4974
      %v4976 = vlaneseq
      %v4977 = vshrl.u32 %v4976, 7
      %v4978 = vsub.s32 %v4975, %v4977
      %v4979 = vrot.slane %v4965, %v4978
      %v4980 = vcombine.low %v4945, %v4953
      %v4981 = vcombine.high %v4945, %v4953
      %v4983 = vunpack.c.l.s4 1983009808
      %v4984 = vunpack.c.0.s8 %v4983
      %v4985 = vlaneseq
      %v4986 = vshrl.u32 %v4985, 7
      %v4987 = vsub.s32 %v4984, %v4986
      %v4988 = vrot.slane %v4980, %v4987
      %v4990 = vunpack.c.l.s4 1983009808
      %v4991 = vunpack.c.0.s8 %v4990
      %v4992 = vlaneseq
      %v4993 = vshrl.u32 %v4992, 7
      %v4994 = vsub.s32 %v4991, %v4993
      %v4995 = vrot.slane %v4981, %v4994
      %v4996 = vcombine.low %v4972, %v4988
      %v4997 = vcombine.high %v4972, %v4988
      %v4999 = vunpack.c.l.s4 1934713408
      %v5000 = vunpack.c.0.s8 %v4999
      %v5001 = vlaneseq
      %v5002 = vshrl.u32 %v5001, 7
      %v5003 = vsub.s32 %v5000, %v5002
      %v5004 = vrot.slane %v4996, %v5003
      %v5006 = vunpack.c.l.s4 1934713408
      %v5007 = vunpack.c.0.s8 %v5006
      %v5008 = vlaneseq
      %v5009 = vshrl.u32 %v5008, 7
      %v5010 = vsub.s32 %v5007, %v5009
      %v5011 = vrot.slane %v4997, %v5010
      %v5012 = vcombine.low %v4979, %v4995
      %v5013 = vcombine.high %v4979, %v4995
      %v5015 = vunpack.c.l.s4 1934713408
      %v5016 = vunpack.c.0.s8 %v5015
      %v5017 = vlaneseq
      %v5018 = vshrl.u32 %v5017, 7
      %v5019 = vsub.s32 %v5016, %v5018
      %v5020 = vrot.slane %v5012, %v5019
      %v5022 = vunpack.c.l.s4 1934713408
      %v5023 = vunpack.c.0.s8 %v5022
      %v5024 = vlaneseq
      %v5025 = vshrl.u32 %v5024, 7
      %v5026 = vsub.s32 %v5023, %v5025
      %v5027 = vrot.slane %v5013, %v5026
      %v5028 = vcombine.high %v5004, 0.0
      %v5029 = vcombine.high %v5011, 0.0
      %v5030 = vcombine.high %v5020, 0.0
      %v5031 = vcombine.high %v5027, 0.0
      %v5032 = vcombine.low %v4943, %v4951
      %v5033 = vcombine.high %v4943, %v4951
      %v5035 = vunpack.c.l.s4 1983009808
      %v5036 = vunpack.c.0.s8 %v5035
      %v5037 = vlaneseq
      %v5038 = vshrl.u32 %v5037, 7
      %v5039 = vsub.s32 %v5036, %v5038
      %v5040 = vrot.slane %v5032, %v5039
      %v5042 = vunpack.c.l.s4 1983009808
      %v5043 = vunpack.c.0.s8 %v5042
      %v5044 = vlaneseq
      %v5045 = vshrl.u32 %v5044, 7
      %v5046 = vsub.s32 %v5043, %v5045
      %v5047 = vrot.slane %v5033, %v5046
      %v5048 = vcombine.low %v4947, %v4955
      %v5049 = vcombine.high %v4947, %v4955
      %v5051 = vunpack.c.l.s4 1983009808
      %v5052 = vunpack.c.0.s8 %v5051
      %v5053 = vlaneseq
      %v5054 = vshrl.u32 %v5053, 7
      %v5055 = vsub.s32 %v5052, %v5054
      %v5056 = vrot.slane %v5048, %v5055
      %v5058 = vunpack.c.l.s4 1983009808
      %v5059 = vunpack.c.0.s8 %v5058
      %v5060 = vlaneseq
      %v5061 = vshrl.u32 %v5060, 7
      %v5062 = vsub.s32 %v5059, %v5061
      %v5063 = vrot.slane %v5049, %v5062
      %v5064 = vcombine.low %v5040, %v5056
      %v5065 = vcombine.high %v5040, %v5056
      %v5067 = vunpack.c.l.s4 1934713408
      %v5068 = vunpack.c.0.s8 %v5067
      %v5069 = vlaneseq
      %v5070 = vshrl.u32 %v5069, 7
      %v5071 = vsub.s32 %v5068, %v5070
      %v5072 = vrot.slane %v5064, %v5071
      %v5074 = vunpack.c.l.s4 1934713408
      %v5075 = vunpack.c.0.s8 %v5074
      %v5076 = vlaneseq
      %v5077 = vshrl.u32 %v5076, 7
      %v5078 = vsub.s32 %v5075, %v5077
      %v5079 = vrot.slane %v5065, %v5078
      %v5080 = vcombine.low %v5047, %v5063
      %v5081 = vcombine.high %v5047, %v5063
      %v5083 = vunpack.c.l.s4 1934713408
      %v5084 = vunpack.c.0.s8 %v5083
      %v5085 = vlaneseq
      %v5086 = vshrl.u32 %v5085, 7
      %v5087 = vsub.s32 %v5084, %v5086
      %v5088 = vrot.slane %v5080, %v5087
      %v5090 = vunpack.c.l.s4 1934713408
      %v5091 = vunpack.c.0.s8 %v5090
      %v5092 = vlaneseq
      %v5093 = vshrl.u32 %v5092, 7
      %v5094 = vsub.s32 %v5091, %v5093
      %v5095 = vrot.slane %v5081, %v5094
      %v5096 = vcombine.high %v5072, 0.0
      %v5097 = vcombine.high %v5079, 0.0
      %v5098 = vcombine.high %v5088, 0.0
      %v5099 = vcombine.high %v5095, 0.0
      %5101 = vrot.lane.b32.xlu0 %v5028, 16
      %v5102 = vpop.permute.xlu0 %5101
      %5105 = vrot.lane.b32.xlu0 %v5011, 32
      %v5106 = vpop.permute.xlu0 %5105
      %5109 = vrot.lane.b32.xlu0 %v5029, 48
      %v5110 = vpop.permute.xlu0 %5109
      %5113 = vrot.lane.b32.xlu0 %v5020, 64
      %v5114 = vpop.permute.xlu0 %5113
      %5117 = vrot.lane.b32.xlu0 %v5030, 80
      %v5118 = vpop.permute.xlu0 %5117
      %5121 = vrot.lane.b32.xlu0 %v5027, 96
      %v5122 = vpop.permute.xlu0 %5121
      %5125 = vrot.lane.b32.xlu0 %v5031, 112
      %v5126 = vpop.permute.xlu0 %5125
      %5129 = vrot.lane.b32.xlu0 %v5096, 16
      %v5130 = vpop.permute.xlu0 %5129
      %5133 = vrot.lane.b32.xlu0 %v5079, 32
      %v5134 = vpop.permute.xlu0 %5133
      %5137 = vrot.lane.b32.xlu0 %v5097, 48
      %v5138 = vpop.permute.xlu0 %5137
      %5141 = vrot.lane.b32.xlu0 %v5088, 64
      %v5142 = vpop.permute.xlu0 %5141
      %5145 = vrot.lane.b32.xlu0 %v5098, 80
      %v5146 = vpop.permute.xlu0 %5145
      %5149 = vrot.lane.b32.xlu0 %v5095, 96
      %v5150 = vpop.permute.xlu0 %5149
      %5153 = vrot.lane.b32.xlu0 %v5099, 112
      %v5154 = vpop.permute.xlu0 %5153
      %v5156 = vsel %vm588, %v5004, %v5102
      %v5157 = vsel %vm590, %v5156, %v5106
      %v5158 = vsel %vm592, %v5157, %v5110
      %v5159 = vsel %vm594, %v5158, %v5114
      %v5160 = vsel %vm596, %v5159, %v5118
      %v5161 = vsel %vm598, %v5160, %v5122
      %v5162 = vsel %vm600, %v5161, %v5126
      %v5163 = vsel %vm588, %v5072, %v5130
      %v5164 = vsel %vm590, %v5163, %v5134
      %v5165 = vsel %vm592, %v5164, %v5138
      %v5166 = vsel %vm594, %v5165, %v5142
      %v5167 = vsel %vm596, %v5166, %v5146
      %v5168 = vsel %vm598, %v5167, %v5150
      %v5169 = vsel %vm600, %v5168, %v5154
      %5170 = vrot.lane.b32.xlu0 %v4708, 126
      %v5171 = vpop.permute.xlu0 %5170
      %5172 = vrot.lane.b32.xlu0 %v4710, 126
      %v5173 = vpop.permute.xlu0 %5172
      %5174 = vrot.lane.b32.xlu0 %v4713, 126
      %v5175 = vpop.permute.xlu0 %5174
      %5176 = vrot.lane.b32.xlu0 %v4715, 126
      %v5177 = vpop.permute.xlu0 %5176
      %5178 = vrot.lane.b32.xlu0 %v4718, 126
      %v5179 = vpop.permute.xlu0 %5178
      %5180 = vrot.lane.b32.xlu0 %v4720, 126
      %v5181 = vpop.permute.xlu0 %5180
      %5182 = vrot.lane.b32.xlu0 %v4723, 126
      %v5183 = vpop.permute.xlu0 %5182
      %5184 = vrot.lane.b32.xlu0 %v4725, 126
      %v5185 = vpop.permute.xlu0 %5184
      %v5194 = vcombine.low %v5171, %v5179
      %v5195 = vcombine.high %v5171, %v5179
      %v5197 = vunpack.c.l.s4 1983009808
      %v5198 = vunpack.c.0.s8 %v5197
      %v5199 = vlaneseq
      %v5200 = vshrl.u32 %v5199, 7
      %v5201 = vsub.s32 %v5198, %v5200
      %v5202 = vrot.slane %v5194, %v5201
      %v5204 = vunpack.c.l.s4 1983009808
      %v5205 = vunpack.c.0.s8 %v5204
      %v5206 = vlaneseq
      %v5207 = vshrl.u32 %v5206, 7
      %v5208 = vsub.s32 %v5205, %v5207
      %v5209 = vrot.slane %v5195, %v5208
      %v5210 = vcombine.low %v5175, %v5183
      %v5211 = vcombine.high %v5175, %v5183
      %v5213 = vunpack.c.l.s4 1983009808
      %v5214 = vunpack.c.0.s8 %v5213
      %v5215 = vlaneseq
      %v5216 = vshrl.u32 %v5215, 7
      %v5217 = vsub.s32 %v5214, %v5216
      %v5218 = vrot.slane %v5210, %v5217
      %v5220 = vunpack.c.l.s4 1983009808
      %v5221 = vunpack.c.0.s8 %v5220
      %v5222 = vlaneseq
      %v5223 = vshrl.u32 %v5222, 7
      %v5224 = vsub.s32 %v5221, %v5223
      %v5225 = vrot.slane %v5211, %v5224
      %v5226 = vcombine.low %v5202, %v5218
      %v5227 = vcombine.high %v5202, %v5218
      %v5229 = vunpack.c.l.s4 1934713408
      %v5230 = vunpack.c.0.s8 %v5229
      %v5231 = vlaneseq
      %v5232 = vshrl.u32 %v5231, 7
      %v5233 = vsub.s32 %v5230, %v5232
      %v5234 = vrot.slane %v5226, %v5233
      %v5236 = vunpack.c.l.s4 1934713408
      %v5237 = vunpack.c.0.s8 %v5236
      %v5238 = vlaneseq
      %v5239 = vshrl.u32 %v5238, 7
      %v5240 = vsub.s32 %v5237, %v5239
      %v5241 = vrot.slane %v5227, %v5240
      %v5242 = vcombine.low %v5209, %v5225
      %v5243 = vcombine.high %v5209, %v5225
      %v5245 = vunpack.c.l.s4 1934713408
      %v5246 = vunpack.c.0.s8 %v5245
      %v5247 = vlaneseq
      %v5248 = vshrl.u32 %v5247, 7
      %v5249 = vsub.s32 %v5246, %v5248
      %v5250 = vrot.slane %v5242, %v5249
      %v5252 = vunpack.c.l.s4 1934713408
      %v5253 = vunpack.c.0.s8 %v5252
      %v5254 = vlaneseq
      %v5255 = vshrl.u32 %v5254, 7
      %v5256 = vsub.s32 %v5253, %v5255
      %v5257 = vrot.slane %v5243, %v5256
      %v5258 = vcombine.high %v5234, 0.0
      %v5259 = vcombine.high %v5241, 0.0
      %v5260 = vcombine.high %v5250, 0.0
      %v5261 = vcombine.high %v5257, 0.0
      %v5262 = vcombine.low %v5173, %v5181
      %v5263 = vcombine.high %v5173, %v5181
      %v5265 = vunpack.c.l.s4 1983009808
      %v5266 = vunpack.c.0.s8 %v5265
      %v5267 = vlaneseq
      %v5268 = vshrl.u32 %v5267, 7
      %v5269 = vsub.s32 %v5266, %v5268
      %v5270 = vrot.slane %v5262, %v5269
      %v5272 = vunpack.c.l.s4 1983009808
      %v5273 = vunpack.c.0.s8 %v5272
      %v5274 = vlaneseq
      %v5275 = vshrl.u32 %v5274, 7
      %v5276 = vsub.s32 %v5273, %v5275
      %v5277 = vrot.slane %v5263, %v5276
      %v5278 = vcombine.low %v5177, %v5185
      %v5279 = vcombine.high %v5177, %v5185
      %v5281 = vunpack.c.l.s4 1983009808
      %v5282 = vunpack.c.0.s8 %v5281
      %v5283 = vlaneseq
      %v5284 = vshrl.u32 %v5283, 7
      %v5285 = vsub.s32 %v5282, %v5284
      %v5286 = vrot.slane %v5278, %v5285
      %v5288 = vunpack.c.l.s4 1983009808
      %v5289 = vunpack.c.0.s8 %v5288
      %v5290 = vlaneseq
      %v5291 = vshrl.u32 %v5290, 7
      %v5292 = vsub.s32 %v5289, %v5291
      %v5293 = vrot.slane %v5279, %v5292
      %v5294 = vcombine.low %v5270, %v5286
      %v5295 = vcombine.high %v5270, %v5286
      %v5297 = vunpack.c.l.s4 1934713408
      %v5298 = vunpack.c.0.s8 %v5297
      %v5299 = vlaneseq
      %v5300 = vshrl.u32 %v5299, 7
      %v5301 = vsub.s32 %v5298, %v5300
      %v5302 = vrot.slane %v5294, %v5301
      %v5304 = vunpack.c.l.s4 1934713408
      %v5305 = vunpack.c.0.s8 %v5304
      %v5306 = vlaneseq
      %v5307 = vshrl.u32 %v5306, 7
      %v5308 = vsub.s32 %v5305, %v5307
      %v5309 = vrot.slane %v5295, %v5308
      %v5310 = vcombine.low %v5277, %v5293
      %v5311 = vcombine.high %v5277, %v5293
      %v5313 = vunpack.c.l.s4 1934713408
      %v5314 = vunpack.c.0.s8 %v5313
      %v5315 = vlaneseq
      %v5316 = vshrl.u32 %v5315, 7
      %v5317 = vsub.s32 %v5314, %v5316
      %v5318 = vrot.slane %v5310, %v5317
      %v5320 = vunpack.c.l.s4 1934713408
      %v5321 = vunpack.c.0.s8 %v5320
      %v5322 = vlaneseq
      %v5323 = vshrl.u32 %v5322, 7
      %v5324 = vsub.s32 %v5321, %v5323
      %v5325 = vrot.slane %v5311, %v5324
      %v5326 = vcombine.high %v5302, 0.0
      %v5327 = vcombine.high %v5309, 0.0
      %v5328 = vcombine.high %v5318, 0.0
      %v5329 = vcombine.high %v5325, 0.0
      %5331 = vrot.lane.b32.xlu0 %v5258, 16
      %v5332 = vpop.permute.xlu0 %5331
      %5335 = vrot.lane.b32.xlu0 %v5241, 32
      %v5336 = vpop.permute.xlu0 %5335
      %5339 = vrot.lane.b32.xlu0 %v5259, 48
      %v5340 = vpop.permute.xlu0 %5339
      %5343 = vrot.lane.b32.xlu0 %v5250, 64
      %v5344 = vpop.permute.xlu0 %5343
      %5347 = vrot.lane.b32.xlu0 %v5260, 80
      %v5348 = vpop.permute.xlu0 %5347
      %5351 = vrot.lane.b32.xlu0 %v5257, 96
      %v5352 = vpop.permute.xlu0 %5351
      %5355 = vrot.lane.b32.xlu0 %v5261, 112
      %v5356 = vpop.permute.xlu0 %5355
      %5359 = vrot.lane.b32.xlu0 %v5326, 16
      %v5360 = vpop.permute.xlu0 %5359
      %5363 = vrot.lane.b32.xlu0 %v5309, 32
      %v5364 = vpop.permute.xlu0 %5363
      %5367 = vrot.lane.b32.xlu0 %v5327, 48
      %v5368 = vpop.permute.xlu0 %5367
      %5371 = vrot.lane.b32.xlu0 %v5318, 64
      %v5372 = vpop.permute.xlu0 %5371
      %5375 = vrot.lane.b32.xlu0 %v5328, 80
      %v5376 = vpop.permute.xlu0 %5375
      %5379 = vrot.lane.b32.xlu0 %v5325, 96
      %v5380 = vpop.permute.xlu0 %5379
      %5383 = vrot.lane.b32.xlu0 %v5329, 112
      %v5384 = vpop.permute.xlu0 %5383
      %v5386 = vsel %vm588, %v5234, %v5332
      %v5387 = vsel %vm590, %v5386, %v5336
      %v5388 = vsel %vm592, %v5387, %v5340
      %v5389 = vsel %vm594, %v5388, %v5344
      %v5390 = vsel %vm596, %v5389, %v5348
      %v5391 = vsel %vm598, %v5390, %v5352
      %v5392 = vsel %vm600, %v5391, %v5356
      %v5393 = vsel %vm588, %v5302, %v5360
      %v5394 = vsel %vm590, %v5393, %v5364
      %v5395 = vsel %vm592, %v5394, %v5368
      %v5396 = vsel %vm594, %v5395, %v5372
      %v5397 = vsel %vm596, %v5396, %v5376
      %v5398 = vsel %vm598, %v5397, %v5380
      %v5399 = vsel %vm600, %v5398, %v5384
      %v5402 = vrot.slane %v3770, 4
      %v5403 = vrot.slane %v3777, 4
      %v5408 = vrot.slane %v4238, 4
      %v5409 = vrot.slane %v4245, 4
      %v5414 = vrot.slane %v4698, 4
      %v5415 = vrot.slane %v4705, 4
      %v5420 = vrot.slane %v5162, 4
      %v5421 = vrot.slane %v5169, 4
      %v5424 = vsel %vm3027, %v3532, %v5402
      %v5425 = vsel %vm3027, %v3539, %v5403
      %v5426 = vsel %vm3027, %v4000, %v5408
      %v5427 = vsel %vm3027, %v4007, %v5409
      %v5428 = vsel %vm3027, %v4468, %v5414
      %v5429 = vsel %vm3027, %v4475, %v5415
      %v5430 = vsel %vm3027, %v4932, %v5420
      %v5431 = vsel %vm3027, %v4939, %v5421
      %v5432 = vpack.c.bf16 %v5426, %v5424
      %v5433 = vpack.c.bf16 %v5427, %v5425
      %v5434 = vpack.c.bf16 %v5430, %v5428
      %v5435 = vpack.c.bf16 %v5431, %v5429
      %v5436 = vpack.c.bf16 %v5392, %v5392
      %v5437 = vpack.c.bf16 %v5399, %v5399
      %v5438 = vld [vmem:[%s5] sm:$0xf]
      %v5439 = vld [vmem:[%s6] sm:$0xff]
      %5441 = vset.pattern.permute.xlu0 0
      %5442 = vperm.xlu0 %5441, %v5439
      %v5443 = vpop.permute.xlu0 %5442
      %v5446 = vsel %vm3049, %v5438, 0
      %v5449 = vsel %vm634, %v5436, 0
      %v5452 = vsel %vm634, %v5437, 0
      %5454 = vmatprep.subr.bf16.mxu0 %v5433
      %5455 = vmatpush1.bf16.msra.mxu0 %v5432
      %5456 = vmatprep.subr.bf16.mxu0 %v5435
      %5457 = vmatpush1.bf16.msra.mxu0 %v5434
      %5458 = vmatprep.subr.bf16.mxu0 %v5452
      %5459 = vmatpush1.bf16.msra.mxu0 %v5449
      %5460 = vmatprep.subr.bf16.mxu0 0
      %5461 = vmatpush1.bf16.msra.mxu0 0
      %5462 = vmatprep.subr.bf16.mxu0 0
      %5463 = vmatpush1.bf16.msra.mxu0 0
      %5464 = vmatprep.subr.bf16.mxu0 0
      %5465 = vmatpush1.bf16.msra.mxu0 0
      %5466 = vmatprep.subr.bf16.mxu0 0
      %5467 = vmatpush1.bf16.msra.mxu0 0
      %5468 = vmatprep.subr.bf16.mxu0 0
      %5469 = vmatpush1.bf16.msra.mxu0 0
      %5470 = vmatprep.subr.bf16.mxu0 0
      %5471 = vmatpush1.bf16.msra.mxu0 0
      %5472 = vmatprep.subr.bf16.mxu0 0
      %5473 = vmatpush1.bf16.msra.mxu0 0
      %5474 = vmatprep.subr.bf16.mxu0 0
      %5475 = vmatpush1.bf16.msra.mxu0 0
      %5476 = vmatprep.subr.bf16.mxu0 0
      %5477 = vmatpush1.bf16.msra.mxu0 0
      %5478 = vmatprep.subr.bf16.mxu0 0
      %5479 = vmatpush1.bf16.msra.mxu0 0
      %5480 = vmatprep.subr.bf16.mxu0 0
      %5481 = vmatpush1.bf16.msra.mxu0 0
      %5482 = vmatprep.subr.bf16.mxu0 0
      %5483 = vmatpush1.bf16.msra.mxu0 0
      %5484 = vmatprep.subr.bf16.mxu0 0
      %5485 = vmatpush1.bf16.msra.mxu0 0
      %5486 = vmatprep.mubr.bf16.mxu0 0
      %5487 = vmatmul.mubr.bf16.gmra.mrb[0].mxu0 %v5446
      %v5488 = vpop.f32.mrb[0].mxu0
      %v5489 = vadd.f32 %v5443, %v5488
      %v5490 = vpop.f32.mrb[0].mxu0
      %v5491 = vadd.f32 %v5443, %v5490
      %v5492 = vpop.f32.mrb[0].mxu0
      %v5493 = vpop.f32.mrb[0].mxu0
      %5494 = vdwg.mxu0
      %v5495 = vmax.f32 %v5489, 0.0
      %v5496 = vmax.f32 %v5491, 0.0
      %5497 = vst.msk [vmem:[#allocation5] sm:$0xff] %vm688, 0.0
      %5498 = vst.msk [vmem:[#allocation5 + $0x8] sm:$0xff] %vm688, 0.0
      %5499 = vst.msk [vmem:[#allocation5 + $0x10] sm:$0x3] %vm691, 0.0
      %5500 = vst.msk [vmem:[#allocation5 + $0x18] sm:$0xff] %vm688, 0.0
      %5501 = vst.msk [vmem:[#allocation5 + $0x20] sm:$0xff] %vm688, 0.0
      %5502 = vst.msk [vmem:[#allocation5 + $0x28] sm:$0x3] %vm691, 0.0
      %5503 = vst.msk [vmem:[#allocation5 + $0x30] sm:$0xff] %vm688, 0.0
      %5504 = vst.msk [vmem:[#allocation5 + $0x38] sm:$0xff] %vm688, 0.0
      %5505 = vst.msk [vmem:[#allocation5 + $0x40] sm:$0x3] %vm691, 0.0
      %5506 = vst.msk [vmem:[#allocation5 + $0x48] sm:$0xff] %vm688, 0.0
      %5507 = vst.msk [vmem:[#allocation5 + $0x50] sm:$0xff] %vm688, 0.0
      %5508 = vst.msk [vmem:[#allocation5 + $0x58] sm:$0x3] %vm691, 0.0
      %5509 = vst.msk [vmem:[#allocation5 + $0x60] sm:$0xff] %vm688, 0.0
      %5510 = vst.msk [vmem:[#allocation5 + $0x68] sm:$0xff] %vm688, 0.0
      %5511 = vst.msk [vmem:[#allocation5 + $0x70] sm:$0x3] %vm691, 0.0
      %5512 = vst.msk [vmem:[#allocation5 + $0x78] sm:$0xff] %vm688, 0.0
      %5513 = vst.msk [vmem:[#allocation5 + $0x80] sm:$0xff] %vm688, 0.0
      %5514 = vst.msk [vmem:[#allocation5 + $0x88] sm:$0x3] %vm691, 0.0
      %5515 = vst.msk [vmem:[#allocation5 + $0x90] sm:$0xff] %vm688, 0.0
      %5516 = vst.msk [vmem:[#allocation5 + $0x98] sm:$0xff] %vm688, 0.0
      %5517 = vst.msk [vmem:[#allocation5 + $0xa0] sm:$0x3] %vm691, 0.0
      %5518 = vst.msk [vmem:[#allocation5 + $0xa8] sm:$0xff] %vm688, 0.0
      %5519 = vst.msk [vmem:[#allocation5 + $0xb0] sm:$0xff] %vm688, 0.0
      %5520 = vst.msk [vmem:[#allocation5 + $0xb8] sm:$0x3] %vm691, 0.0
      %5522 = vrot.lane.b32.xlu0 %v5495, 112
      %v5523 = vpop.permute.xlu0 %5522
      %5525 = vrot.lane.b32.xlu0 %v5495, 96
      %v5526 = vpop.permute.xlu0 %5525
      %5528 = vrot.lane.b32.xlu0 %v5495, 80
      %v5529 = vpop.permute.xlu0 %5528
      %5531 = vrot.lane.b32.xlu0 %v5495, 64
      %v5532 = vpop.permute.xlu0 %5531
      %5534 = vrot.lane.b32.xlu0 %v5495, 48
      %v5535 = vpop.permute.xlu0 %5534
      %5537 = vrot.lane.b32.xlu0 %v5495, 32
      %v5538 = vpop.permute.xlu0 %5537
      %5540 = vrot.lane.b32.xlu0 %v5495, 16
      %v5541 = vpop.permute.xlu0 %5540
      %5544 = vrot.lane.b32.xlu0 %v5496, 112
      %v5545 = vpop.permute.xlu0 %5544
      %5547 = vrot.lane.b32.xlu0 %v5496, 96
      %v5548 = vpop.permute.xlu0 %5547
      %5550 = vrot.lane.b32.xlu0 %v5496, 80
      %v5551 = vpop.permute.xlu0 %5550
      %5553 = vrot.lane.b32.xlu0 %v5496, 64
      %v5554 = vpop.permute.xlu0 %5553
      %5556 = vrot.lane.b32.xlu0 %v5496, 48
      %v5557 = vpop.permute.xlu0 %5556
      %5559 = vrot.lane.b32.xlu0 %v5496, 32
      %v5560 = vpop.permute.xlu0 %5559
      %5562 = vrot.lane.b32.xlu0 %v5496, 16
      %v5563 = vpop.permute.xlu0 %5562
      %v5565 = vcombine.low %v5495, %v5526
      %v5566 = vcombine.high %v5495, %v5526
      %v5568 = vunpack.c.l.s4 1983009808
      %v5569 = vunpack.c.0.s8 %v5568
      %v5570 = vlaneseq
      %v5571 = vshrl.u32 %v5570, 7
      %v5572 = vsub.s32 %v5569, %v5571
      %v5573 = vrot.slane %v5565, %v5572
      %v5575 = vunpack.c.l.s4 1983009808
      %v5576 = vunpack.c.0.s8 %v5575
      %v5577 = vlaneseq
      %v5578 = vshrl.u32 %v5577, 7
      %v5579 = vsub.s32 %v5576, %v5578
      %v5580 = vrot.slane %v5566, %v5579
      %v5581 = vcombine.low %v5523, %v5529
      %v5582 = vcombine.high %v5523, %v5529
      %v5584 = vunpack.c.l.s4 1983009808
      %v5585 = vunpack.c.0.s8 %v5584
      %v5586 = vlaneseq
      %v5587 = vshrl.u32 %v5586, 7
      %v5588 = vsub.s32 %v5585, %v5587
      %v5589 = vrot.slane %v5581, %v5588
      %v5591 = vunpack.c.l.s4 1983009808
      %v5592 = vunpack.c.0.s8 %v5591
      %v5593 = vlaneseq
      %v5594 = vshrl.u32 %v5593, 7
      %v5595 = vsub.s32 %v5592, %v5594
      %v5596 = vrot.slane %v5582, %v5595
      %v5597 = vcombine.low %v5532, %v5538
      %v5598 = vcombine.high %v5532, %v5538
      %v5600 = vunpack.c.l.s4 1983009808
      %v5601 = vunpack.c.0.s8 %v5600
      %v5602 = vlaneseq
      %v5603 = vshrl.u32 %v5602, 7
      %v5604 = vsub.s32 %v5601, %v5603
      %v5605 = vrot.slane %v5597, %v5604
      %v5607 = vunpack.c.l.s4 1983009808
      %v5608 = vunpack.c.0.s8 %v5607
      %v5609 = vlaneseq
      %v5610 = vshrl.u32 %v5609, 7
      %v5611 = vsub.s32 %v5608, %v5610
      %v5612 = vrot.slane %v5598, %v5611
      %v5613 = vcombine.low %v5535, %v5541
      %v5614 = vcombine.high %v5535, %v5541
      %v5616 = vunpack.c.l.s4 1983009808
      %v5617 = vunpack.c.0.s8 %v5616
      %v5618 = vlaneseq
      %v5619 = vshrl.u32 %v5618, 7
      %v5620 = vsub.s32 %v5617, %v5619
      %v5621 = vrot.slane %v5613, %v5620
      %v5623 = vunpack.c.l.s4 1983009808
      %v5624 = vunpack.c.0.s8 %v5623
      %v5625 = vlaneseq
      %v5626 = vshrl.u32 %v5625, 7
      %v5627 = vsub.s32 %v5624, %v5626
      %v5628 = vrot.slane %v5614, %v5627
      %v5629 = vcombine.low %v5573, %v5589
      %v5630 = vcombine.high %v5573, %v5589
      %v5632 = vunpack.c.l.s4 1934713408
      %v5633 = vunpack.c.0.s8 %v5632
      %v5634 = vlaneseq
      %v5635 = vshrl.u32 %v5634, 7
      %v5636 = vsub.s32 %v5633, %v5635
      %v5637 = vrot.slane %v5629, %v5636
      %v5639 = vunpack.c.l.s4 1934713408
      %v5640 = vunpack.c.0.s8 %v5639
      %v5641 = vlaneseq
      %v5642 = vshrl.u32 %v5641, 7
      %v5643 = vsub.s32 %v5640, %v5642
      %v5644 = vrot.slane %v5630, %v5643
      %v5645 = vcombine.low %v5580, %v5596
      %v5646 = vcombine.high %v5580, %v5596
      %v5648 = vunpack.c.l.s4 1934713408
      %v5649 = vunpack.c.0.s8 %v5648
      %v5650 = vlaneseq
      %v5651 = vshrl.u32 %v5650, 7
      %v5652 = vsub.s32 %v5649, %v5651
      %v5653 = vrot.slane %v5645, %v5652
      %v5655 = vunpack.c.l.s4 1934713408
      %v5656 = vunpack.c.0.s8 %v5655
      %v5657 = vlaneseq
      %v5658 = vshrl.u32 %v5657, 7
      %v5659 = vsub.s32 %v5656, %v5658
      %v5660 = vrot.slane %v5646, %v5659
      %v5661 = vcombine.low %v5605, %v5621
      %v5662 = vcombine.high %v5605, %v5621
      %v5664 = vunpack.c.l.s4 1934713408
      %v5665 = vunpack.c.0.s8 %v5664
      %v5666 = vlaneseq
      %v5667 = vshrl.u32 %v5666, 7
      %v5668 = vsub.s32 %v5665, %v5667
      %v5669 = vrot.slane %v5661, %v5668
      %v5671 = vunpack.c.l.s4 1934713408
      %v5672 = vunpack.c.0.s8 %v5671
      %v5673 = vlaneseq
      %v5674 = vshrl.u32 %v5673, 7
      %v5675 = vsub.s32 %v5672, %v5674
      %v5676 = vrot.slane %v5662, %v5675
      %v5677 = vcombine.low %v5612, %v5628
      %v5678 = vcombine.high %v5612, %v5628
      %v5680 = vunpack.c.l.s4 1934713408
      %v5681 = vunpack.c.0.s8 %v5680
      %v5682 = vlaneseq
      %v5683 = vshrl.u32 %v5682, 7
      %v5684 = vsub.s32 %v5681, %v5683
      %v5685 = vrot.slane %v5677, %v5684
      %v5687 = vunpack.c.l.s4 1934713408
      %v5688 = vunpack.c.0.s8 %v5687
      %v5689 = vlaneseq
      %v5690 = vshrl.u32 %v5689, 7
      %v5691 = vsub.s32 %v5688, %v5690
      %v5692 = vrot.slane %v5678, %v5691
      %v5693 = vcombine.low %v5637, %v5669
      %v5694 = vcombine.high %v5637, %v5669
      %v5695 = vcombine.low %v5644, %v5676
      %v5696 = vcombine.high %v5644, %v5676
      %v5697 = vcombine.low %v5653, %v5685
      %v5698 = vcombine.high %v5653, %v5685
      %v5699 = vcombine.low %v5660, %v5692
      %v5700 = vcombine.high %v5660, %v5692
      %v5701 = vcombine.low %v5496, %v5548
      %v5702 = vcombine.high %v5496, %v5548
      %v5704 = vunpack.c.l.s4 1983009808
      %v5705 = vunpack.c.0.s8 %v5704
      %v5706 = vlaneseq
      %v5707 = vshrl.u32 %v5706, 7
      %v5708 = vsub.s32 %v5705, %v5707
      %v5709 = vrot.slane %v5701, %v5708
      %v5711 = vunpack.c.l.s4 1983009808
      %v5712 = vunpack.c.0.s8 %v5711
      %v5713 = vlaneseq
      %v5714 = vshrl.u32 %v5713, 7
      %v5715 = vsub.s32 %v5712, %v5714
      %v5716 = vrot.slane %v5702, %v5715
      %v5717 = vcombine.low %v5545, %v5551
      %v5718 = vcombine.high %v5545, %v5551
      %v5720 = vunpack.c.l.s4 1983009808
      %v5721 = vunpack.c.0.s8 %v5720
      %v5722 = vlaneseq
      %v5723 = vshrl.u32 %v5722, 7
      %v5724 = vsub.s32 %v5721, %v5723
      %v5725 = vrot.slane %v5717, %v5724
      %v5727 = vunpack.c.l.s4 1983009808
      %v5728 = vunpack.c.0.s8 %v5727
      %v5729 = vlaneseq
      %v5730 = vshrl.u32 %v5729, 7
      %v5731 = vsub.s32 %v5728, %v5730
      %v5732 = vrot.slane %v5718, %v5731
      %v5733 = vcombine.low %v5554, %v5560
      %v5734 = vcombine.high %v5554, %v5560
      %v5736 = vunpack.c.l.s4 1983009808
      %v5737 = vunpack.c.0.s8 %v5736
      %v5738 = vlaneseq
      %v5739 = vshrl.u32 %v5738, 7
      %v5740 = vsub.s32 %v5737, %v5739
      %v5741 = vrot.slane %v5733, %v5740
      %v5743 = vunpack.c.l.s4 1983009808
      %v5744 = vunpack.c.0.s8 %v5743
      %v5745 = vlaneseq
      %v5746 = vshrl.u32 %v5745, 7
      %v5747 = vsub.s32 %v5744, %v5746
      %v5748 = vrot.slane %v5734, %v5747
      %v5749 = vcombine.low %v5557, %v5563
      %v5750 = vcombine.high %v5557, %v5563
      %v5752 = vunpack.c.l.s4 1983009808
      %v5753 = vunpack.c.0.s8 %v5752
      %v5754 = vlaneseq
      %v5755 = vshrl.u32 %v5754, 7
      %v5756 = vsub.s32 %v5753, %v5755
      %v5757 = vrot.slane %v5749, %v5756
      %v5759 = vunpack.c.l.s4 1983009808
      %v5760 = vunpack.c.0.s8 %v5759
      %v5761 = vlaneseq
      %v5762 = vshrl.u32 %v5761, 7
      %v5763 = vsub.s32 %v5760, %v5762
      %v5764 = vrot.slane %v5750, %v5763
      %v5765 = vcombine.low %v5709, %v5725
      %v5766 = vcombine.high %v5709, %v5725
      %v5768 = vunpack.c.l.s4 1934713408
      %v5769 = vunpack.c.0.s8 %v5768
      %v5770 = vlaneseq
      %v5771 = vshrl.u32 %v5770, 7
      %v5772 = vsub.s32 %v5769, %v5771
      %v5773 = vrot.slane %v5765, %v5772
      %v5775 = vunpack.c.l.s4 1934713408
      %v5776 = vunpack.c.0.s8 %v5775
      %v5777 = vlaneseq
      %v5778 = vshrl.u32 %v5777, 7
      %v5779 = vsub.s32 %v5776, %v5778
      %v5780 = vrot.slane %v5766, %v5779
      %v5781 = vcombine.low %v5716, %v5732
      %v5782 = vcombine.high %v5716, %v5732
      %v5784 = vunpack.c.l.s4 1934713408
      %v5785 = vunpack.c.0.s8 %v5784
      %v5786 = vlaneseq
      %v5787 = vshrl.u32 %v5786, 7
      %v5788 = vsub.s32 %v5785, %v5787
      %v5789 = vrot.slane %v5781, %v5788
      %v5791 = vunpack.c.l.s4 1934713408
      %v5792 = vunpack.c.0.s8 %v5791
      %v5793 = vlaneseq
      %v5794 = vshrl.u32 %v5793, 7
      %v5795 = vsub.s32 %v5792, %v5794
      %v5796 = vrot.slane %v5782, %v5795
      %v5797 = vcombine.low %v5741, %v5757
      %v5798 = vcombine.high %v5741, %v5757
      %v5800 = vunpack.c.l.s4 1934713408
      %v5801 = vunpack.c.0.s8 %v5800
      %v5802 = vlaneseq
      %v5803 = vshrl.u32 %v5802, 7
      %v5804 = vsub.s32 %v5801, %v5803
      %v5805 = vrot.slane %v5797, %v5804
      %v5807 = vunpack.c.l.s4 1934713408
      %v5808 = vunpack.c.0.s8 %v5807
      %v5809 = vlaneseq
      %v5810 = vshrl.u32 %v5809, 7
      %v5811 = vsub.s32 %v5808, %v5810
      %v5812 = vrot.slane %v5798, %v5811
      %v5813 = vcombine.low %v5748, %v5764
      %v5814 = vcombine.high %v5748, %v5764
      %v5816 = vunpack.c.l.s4 1934713408
      %v5817 = vunpack.c.0.s8 %v5816
      %v5818 = vlaneseq
      %v5819 = vshrl.u32 %v5818, 7
      %v5820 = vsub.s32 %v5817, %v5819
      %v5821 = vrot.slane %v5813, %v5820
      %v5823 = vunpack.c.l.s4 1934713408
      %v5824 = vunpack.c.0.s8 %v5823
      %v5825 = vlaneseq
      %v5826 = vshrl.u32 %v5825, 7
      %v5827 = vsub.s32 %v5824, %v5826
      %v5828 = vrot.slane %v5814, %v5827
      %v5829 = vcombine.low %v5773, %v5805
      %v5830 = vcombine.high %v5773, %v5805
      %v5831 = vcombine.low %v5780, %v5812
      %v5832 = vcombine.high %v5780, %v5812
      %v5833 = vcombine.low %v5789, %v5821
      %v5834 = vcombine.high %v5789, %v5821
      %v5835 = vcombine.low %v5796, %v5828
      %v5836 = vcombine.high %v5796, %v5828
      %5853 = vrot.lane.b32.xlu0 %v5693, 1
      %v5854 = vpop.permute.xlu0 %5853
      %5855 = vrot.lane.b32.xlu0 %v5829, 1
      %v5856 = vpop.permute.xlu0 %5855
      %5857 = vrot.lane.b32.xlu0 %v5694, 1
      %v5858 = vpop.permute.xlu0 %5857
      %5859 = vrot.lane.b32.xlu0 %v5830, 1
      %v5860 = vpop.permute.xlu0 %5859
      %5861 = vrot.lane.b32.xlu0 %v5695, 1
      %v5862 = vpop.permute.xlu0 %5861
      %5863 = vrot.lane.b32.xlu0 %v5831, 1
      %v5864 = vpop.permute.xlu0 %5863
      %5865 = vrot.lane.b32.xlu0 %v5696, 1
      %v5866 = vpop.permute.xlu0 %5865
      %5867 = vrot.lane.b32.xlu0 %v5832, 1
      %v5868 = vpop.permute.xlu0 %5867
      %5869 = vrot.lane.b32.xlu0 %v5697, 1
      %v5870 = vpop.permute.xlu0 %5869
      %5871 = vrot.lane.b32.xlu0 %v5833, 1
      %v5872 = vpop.permute.xlu0 %5871
      %5873 = vrot.lane.b32.xlu0 %v5698, 1
      %v5874 = vpop.permute.xlu0 %5873
      %5875 = vrot.lane.b32.xlu0 %v5834, 1
      %v5876 = vpop.permute.xlu0 %5875
      %5877 = vrot.lane.b32.xlu0 %v5699, 1
      %v5878 = vpop.permute.xlu0 %5877
      %5879 = vrot.lane.b32.xlu0 %v5835, 1
      %v5880 = vpop.permute.xlu0 %5879
      %5881 = vrot.lane.b32.xlu0 %v5700, 1
      %v5882 = vpop.permute.xlu0 %5881
      %5883 = vrot.lane.b32.xlu0 %v5836, 1
      %v5884 = vpop.permute.xlu0 %5883
      %5901 = vst.msk [vmem:[#allocation5 + $0x1] sm:$0xff] %vm914, %v5854
      %5902 = vst.msk [vmem:[#allocation5 + $0x9] sm:$0xff] %vm914, %v5856
      %5903 = vst.msk [vmem:[#allocation5 + $0x19] sm:$0xff] %vm914, %v5858
      %5904 = vst.msk [vmem:[#allocation5 + $0x21] sm:$0xff] %vm914, %v5860
      %5905 = vst.msk [vmem:[#allocation5 + $0x31] sm:$0xff] %vm914, %v5862
      %5906 = vst.msk [vmem:[#allocation5 + $0x39] sm:$0xff] %vm914, %v5864
      %5907 = vst.msk [vmem:[#allocation5 + $0x49] sm:$0xff] %vm914, %v5866
      %5908 = vst.msk [vmem:[#allocation5 + $0x51] sm:$0xff] %vm914, %v5868
      %5909 = vst.msk [vmem:[#allocation5 + $0x61] sm:$0xff] %vm914, %v5870
      %5910 = vst.msk [vmem:[#allocation5 + $0x69] sm:$0xff] %vm914, %v5872
      %5911 = vst.msk [vmem:[#allocation5 + $0x79] sm:$0xff] %vm914, %v5874
      %5912 = vst.msk [vmem:[#allocation5 + $0x81] sm:$0xff] %vm914, %v5876
      %5913 = vst.msk [vmem:[#allocation5 + $0x91] sm:$0xff] %vm914, %v5878
      %5914 = vst.msk [vmem:[#allocation5 + $0x99] sm:$0xff] %vm914, %v5880
      %5915 = vst.msk [vmem:[#allocation5 + $0xa9] sm:$0xff] %vm914, %v5882
      %5916 = vst.msk [vmem:[#allocation5 + $0xb1] sm:$0xff] %vm914, %v5884
      %v5917 = vld [vmem:[#allocation5] sm:$0xff]
      %v5918 = vld [vmem:[#allocation5 + $0x8] sm:$0xff]
      %v5919 = vld [vmem:[#allocation5 + $0x10] sm:$0x3]
      %v5920 = vld [vmem:[#allocation5 + $0x18] sm:$0xff]
      %v5921 = vld [vmem:[#allocation5 + $0x20] sm:$0xff]
      %v5922 = vld [vmem:[#allocation5 + $0x28] sm:$0x3]
      %v5923 = vld [vmem:[#allocation5 + $0x30] sm:$0xff]
      %v5924 = vld [vmem:[#allocation5 + $0x38] sm:$0xff]
      %v5925 = vld [vmem:[#allocation5 + $0x40] sm:$0x3]
      %v5926 = vld [vmem:[#allocation5 + $0x48] sm:$0xff]
      %v5927 = vld [vmem:[#allocation5 + $0x50] sm:$0xff]
      %v5928 = vld [vmem:[#allocation5 + $0x58] sm:$0x3]
      %v5929 = vld [vmem:[#allocation5 + $0x60] sm:$0xff]
      %v5930 = vld [vmem:[#allocation5 + $0x68] sm:$0xff]
      %v5931 = vld [vmem:[#allocation5 + $0x70] sm:$0x3]
      %v5932 = vld [vmem:[#allocation5 + $0x78] sm:$0xff]
      %v5933 = vld [vmem:[#allocation5 + $0x80] sm:$0xff]
      %v5934 = vld [vmem:[#allocation5 + $0x88] sm:$0x3]
      %v5935 = vld [vmem:[#allocation5 + $0x90] sm:$0xff]
      %v5936 = vld [vmem:[#allocation5 + $0x98] sm:$0xff]
      %v5937 = vld [vmem:[#allocation5 + $0xa0] sm:$0x3]
      %v5938 = vld [vmem:[#allocation5 + $0xa8] sm:$0xff]
      %v5939 = vld [vmem:[#allocation5 + $0xb0] sm:$0xff]
      %v5940 = vld [vmem:[#allocation5 + $0xb8] sm:$0x3]
      %v5941 = vcombine.low %v5917, %v5923
      %v5942 = vcombine.high %v5917, %v5923
      %v5944 = vunpack.c.l.s4 1983009808
      %v5945 = vunpack.c.0.s8 %v5944
      %v5946 = vlaneseq
      %v5947 = vshrl.u32 %v5946, 7
      %v5948 = vsub.s32 %v5945, %v5947
      %v5949 = vrot.slane %v5941, %v5948
      %v5951 = vunpack.c.l.s4 1983009808
      %v5952 = vunpack.c.0.s8 %v5951
      %v5953 = vlaneseq
      %v5954 = vshrl.u32 %v5953, 7
      %v5955 = vsub.s32 %v5952, %v5954
      %v5956 = vrot.slane %v5942, %v5955
      %v5957 = vcombine.low %v5920, %v5926
      %v5958 = vcombine.high %v5920, %v5926
      %v5960 = vunpack.c.l.s4 1983009808
      %v5961 = vunpack.c.0.s8 %v5960
      %v5962 = vlaneseq
      %v5963 = vshrl.u32 %v5962, 7
      %v5964 = vsub.s32 %v5961, %v5963
      %v5965 = vrot.slane %v5957, %v5964
      %v5967 = vunpack.c.l.s4 1983009808
      %v5968 = vunpack.c.0.s8 %v5967
      %v5969 = vlaneseq
      %v5970 = vshrl.u32 %v5969, 7
      %v5971 = vsub.s32 %v5968, %v5970
      %v5972 = vrot.slane %v5958, %v5971
      %v5973 = vcombine.low %v5929, %v5935
      %v5974 = vcombine.high %v5929, %v5935
      %v5976 = vunpack.c.l.s4 1983009808
      %v5977 = vunpack.c.0.s8 %v5976
      %v5978 = vlaneseq
      %v5979 = vshrl.u32 %v5978, 7
      %v5980 = vsub.s32 %v5977, %v5979
      %v5981 = vrot.slane %v5973, %v5980
      %v5983 = vunpack.c.l.s4 1983009808
      %v5984 = vunpack.c.0.s8 %v5983
      %v5985 = vlaneseq
      %v5986 = vshrl.u32 %v5985, 7
      %v5987 = vsub.s32 %v5984, %v5986
      %v5988 = vrot.slane %v5974, %v5987
      %v5989 = vcombine.low %v5932, %v5938
      %v5990 = vcombine.high %v5932, %v5938
      %v5992 = vunpack.c.l.s4 1983009808
      %v5993 = vunpack.c.0.s8 %v5992
      %v5994 = vlaneseq
      %v5995 = vshrl.u32 %v5994, 7
      %v5996 = vsub.s32 %v5993, %v5995
      %v5997 = vrot.slane %v5989, %v5996
      %v5999 = vunpack.c.l.s4 1983009808
      %v6000 = vunpack.c.0.s8 %v5999
      %v6001 = vlaneseq
      %v6002 = vshrl.u32 %v6001, 7
      %v6003 = vsub.s32 %v6000, %v6002
      %v6004 = vrot.slane %v5990, %v6003
      %v6005 = vcombine.low %v5949, %v5965
      %v6006 = vcombine.high %v5949, %v5965
      %v6008 = vunpack.c.l.s4 1934713408
      %v6009 = vunpack.c.0.s8 %v6008
      %v6010 = vlaneseq
      %v6011 = vshrl.u32 %v6010, 7
      %v6012 = vsub.s32 %v6009, %v6011
      %v6013 = vrot.slane %v6005, %v6012
      %v6015 = vunpack.c.l.s4 1934713408
      %v6016 = vunpack.c.0.s8 %v6015
      %v6017 = vlaneseq
      %v6018 = vshrl.u32 %v6017, 7
      %v6019 = vsub.s32 %v6016, %v6018
      %v6020 = vrot.slane %v6006, %v6019
      %v6021 = vcombine.low %v5956, %v5972
      %v6022 = vcombine.high %v5956, %v5972
      %v6024 = vunpack.c.l.s4 1934713408
      %v6025 = vunpack.c.0.s8 %v6024
      %v6026 = vlaneseq
      %v6027 = vshrl.u32 %v6026, 7
      %v6028 = vsub.s32 %v6025, %v6027
      %v6029 = vrot.slane %v6021, %v6028
      %v6031 = vunpack.c.l.s4 1934713408
      %v6032 = vunpack.c.0.s8 %v6031
      %v6033 = vlaneseq
      %v6034 = vshrl.u32 %v6033, 7
      %v6035 = vsub.s32 %v6032, %v6034
      %v6036 = vrot.slane %v6022, %v6035
      %v6037 = vcombine.low %v5981, %v5997
      %v6038 = vcombine.high %v5981, %v5997
      %v6040 = vunpack.c.l.s4 1934713408
      %v6041 = vunpack.c.0.s8 %v6040
      %v6042 = vlaneseq
      %v6043 = vshrl.u32 %v6042, 7
      %v6044 = vsub.s32 %v6041, %v6043
      %v6045 = vrot.slane %v6037, %v6044
      %v6047 = vunpack.c.l.s4 1934713408
      %v6048 = vunpack.c.0.s8 %v6047
      %v6049 = vlaneseq
      %v6050 = vshrl.u32 %v6049, 7
      %v6051 = vsub.s32 %v6048, %v6050
      %v6052 = vrot.slane %v6038, %v6051
      %v6053 = vcombine.low %v5988, %v6004
      %v6054 = vcombine.high %v5988, %v6004
      %v6056 = vunpack.c.l.s4 1934713408
      %v6057 = vunpack.c.0.s8 %v6056
      %v6058 = vlaneseq
      %v6059 = vshrl.u32 %v6058, 7
      %v6060 = vsub.s32 %v6057, %v6059
      %v6061 = vrot.slane %v6053, %v6060
      %v6063 = vunpack.c.l.s4 1934713408
      %v6064 = vunpack.c.0.s8 %v6063
      %v6065 = vlaneseq
      %v6066 = vshrl.u32 %v6065, 7
      %v6067 = vsub.s32 %v6064, %v6066
      %v6068 = vrot.slane %v6054, %v6067
      %v6069 = vcombine.low %v6013, %v6045
      %v6070 = vcombine.high %v6013, %v6045
      %v6071 = vcombine.low %v6020, %v6052
      %v6072 = vcombine.high %v6020, %v6052
      %v6073 = vcombine.low %v6029, %v6061
      %v6074 = vcombine.high %v6029, %v6061
      %v6075 = vcombine.low %v6036, %v6068
      %v6076 = vcombine.high %v6036, %v6068
      %v6077 = vcombine.low %v5918, %v5924
      %v6078 = vcombine.high %v5918, %v5924
      %v6080 = vunpack.c.l.s4 1983009808
      %v6081 = vunpack.c.0.s8 %v6080
      %v6082 = vlaneseq
      %v6083 = vshrl.u32 %v6082, 7
      %v6084 = vsub.s32 %v6081, %v6083
      %v6085 = vrot.slane %v6077, %v6084
      %v6087 = vunpack.c.l.s4 1983009808
      %v6088 = vunpack.c.0.s8 %v6087
      %v6089 = vlaneseq
      %v6090 = vshrl.u32 %v6089, 7
      %v6091 = vsub.s32 %v6088, %v6090
      %v6092 = vrot.slane %v6078, %v6091
      %v6093 = vcombine.low %v5921, %v5927
      %v6094 = vcombine.high %v5921, %v5927
      %v6096 = vunpack.c.l.s4 1983009808
      %v6097 = vunpack.c.0.s8 %v6096
      %v6098 = vlaneseq
      %v6099 = vshrl.u32 %v6098, 7
      %v6100 = vsub.s32 %v6097, %v6099
      %v6101 = vrot.slane %v6093, %v6100
      %v6103 = vunpack.c.l.s4 1983009808
      %v6104 = vunpack.c.0.s8 %v6103
      %v6105 = vlaneseq
      %v6106 = vshrl.u32 %v6105, 7
      %v6107 = vsub.s32 %v6104, %v6106
      %v6108 = vrot.slane %v6094, %v6107
      %v6109 = vcombine.low %v5930, %v5936
      %v6110 = vcombine.high %v5930, %v5936
      %v6112 = vunpack.c.l.s4 1983009808
      %v6113 = vunpack.c.0.s8 %v6112
      %v6114 = vlaneseq
      %v6115 = vshrl.u32 %v6114, 7
      %v6116 = vsub.s32 %v6113, %v6115
      %v6117 = vrot.slane %v6109, %v6116
      %v6119 = vunpack.c.l.s4 1983009808
      %v6120 = vunpack.c.0.s8 %v6119
      %v6121 = vlaneseq
      %v6122 = vshrl.u32 %v6121, 7
      %v6123 = vsub.s32 %v6120, %v6122
      %v6124 = vrot.slane %v6110, %v6123
      %v6125 = vcombine.low %v5933, %v5939
      %v6126 = vcombine.high %v5933, %v5939
      %v6128 = vunpack.c.l.s4 1983009808
      %v6129 = vunpack.c.0.s8 %v6128
      %v6130 = vlaneseq
      %v6131 = vshrl.u32 %v6130, 7
      %v6132 = vsub.s32 %v6129, %v6131
      %v6133 = vrot.slane %v6125, %v6132
      %v6135 = vunpack.c.l.s4 1983009808
      %v6136 = vunpack.c.0.s8 %v6135
      %v6137 = vlaneseq
      %v6138 = vshrl.u32 %v6137, 7
      %v6139 = vsub.s32 %v6136, %v6138
      %v6140 = vrot.slane %v6126, %v6139
      %v6141 = vcombine.low %v6085, %v6101
      %v6142 = vcombine.high %v6085, %v6101
      %v6144 = vunpack.c.l.s4 1934713408
      %v6145 = vunpack.c.0.s8 %v6144
      %v6146 = vlaneseq
      %v6147 = vshrl.u32 %v6146, 7
      %v6148 = vsub.s32 %v6145, %v6147
      %v6149 = vrot.slane %v6141, %v6148
      %v6151 = vunpack.c.l.s4 1934713408
      %v6152 = vunpack.c.0.s8 %v6151
      %v6153 = vlaneseq
      %v6154 = vshrl.u32 %v6153, 7
      %v6155 = vsub.s32 %v6152, %v6154
      %v6156 = vrot.slane %v6142, %v6155
      %v6157 = vcombine.low %v6092, %v6108
      %v6158 = vcombine.high %v6092, %v6108
      %v6160 = vunpack.c.l.s4 1934713408
      %v6161 = vunpack.c.0.s8 %v6160
      %v6162 = vlaneseq
      %v6163 = vshrl.u32 %v6162, 7
      %v6164 = vsub.s32 %v6161, %v6163
      %v6165 = vrot.slane %v6157, %v6164
      %v6167 = vunpack.c.l.s4 1934713408
      %v6168 = vunpack.c.0.s8 %v6167
      %v6169 = vlaneseq
      %v6170 = vshrl.u32 %v6169, 7
      %v6171 = vsub.s32 %v6168, %v6170
      %v6172 = vrot.slane %v6158, %v6171
      %v6173 = vcombine.low %v6117, %v6133
      %v6174 = vcombine.high %v6117, %v6133
      %v6176 = vunpack.c.l.s4 1934713408
      %v6177 = vunpack.c.0.s8 %v6176
      %v6178 = vlaneseq
      %v6179 = vshrl.u32 %v6178, 7
      %v6180 = vsub.s32 %v6177, %v6179
      %v6181 = vrot.slane %v6173, %v6180
      %v6183 = vunpack.c.l.s4 1934713408
      %v6184 = vunpack.c.0.s8 %v6183
      %v6185 = vlaneseq
      %v6186 = vshrl.u32 %v6185, 7
      %v6187 = vsub.s32 %v6184, %v6186
      %v6188 = vrot.slane %v6174, %v6187
      %v6189 = vcombine.low %v6124, %v6140
      %v6190 = vcombine.high %v6124, %v6140
      %v6192 = vunpack.c.l.s4 1934713408
      %v6193 = vunpack.c.0.s8 %v6192
      %v6194 = vlaneseq
      %v6195 = vshrl.u32 %v6194, 7
      %v6196 = vsub.s32 %v6193, %v6195
      %v6197 = vrot.slane %v6189, %v6196
      %v6199 = vunpack.c.l.s4 1934713408
      %v6200 = vunpack.c.0.s8 %v6199
      %v6201 = vlaneseq
      %v6202 = vshrl.u32 %v6201, 7
      %v6203 = vsub.s32 %v6200, %v6202
      %v6204 = vrot.slane %v6190, %v6203
      %v6205 = vcombine.low %v6149, %v6181
      %v6206 = vcombine.high %v6149, %v6181
      %v6207 = vcombine.low %v6156, %v6188
      %v6208 = vcombine.high %v6156, %v6188
      %v6209 = vcombine.low %v6165, %v6197
      %v6210 = vcombine.high %v6165, %v6197
      %v6211 = vcombine.low %v6172, %v6204
      %v6212 = vcombine.high %v6172, %v6204
      %6214 = vrot.lane.b32.xlu0 %v6070, 16
      %v6215 = vpop.permute.xlu0 %6214
      %6218 = vrot.lane.b32.xlu0 %v6071, 32
      %v6219 = vpop.permute.xlu0 %6218
      %6222 = vrot.lane.b32.xlu0 %v6072, 48
      %v6223 = vpop.permute.xlu0 %6222
      %6226 = vrot.lane.b32.xlu0 %v6073, 64
      %v6227 = vpop.permute.xlu0 %6226
      %6230 = vrot.lane.b32.xlu0 %v6074, 80
      %v6231 = vpop.permute.xlu0 %6230
      %6234 = vrot.lane.b32.xlu0 %v6075, 96
      %v6235 = vpop.permute.xlu0 %6234
      %6238 = vrot.lane.b32.xlu0 %v6076, 112
      %v6239 = vpop.permute.xlu0 %6238
      %6242 = vrot.lane.b32.xlu0 %v6206, 16
      %v6243 = vpop.permute.xlu0 %6242
      %6246 = vrot.lane.b32.xlu0 %v6207, 32
      %v6247 = vpop.permute.xlu0 %6246
      %6250 = vrot.lane.b32.xlu0 %v6208, 48
      %v6251 = vpop.permute.xlu0 %6250
      %6254 = vrot.lane.b32.xlu0 %v6209, 64
      %v6255 = vpop.permute.xlu0 %6254
      %6258 = vrot.lane.b32.xlu0 %v6210, 80
      %v6259 = vpop.permute.xlu0 %6258
      %6262 = vrot.lane.b32.xlu0 %v6211, 96
      %v6263 = vpop.permute.xlu0 %6262
      %6266 = vrot.lane.b32.xlu0 %v6212, 112
      %v6267 = vpop.permute.xlu0 %6266
      %v6269 = vsel %vm588, %v6069, %v6215
      %v6270 = vsel %vm590, %v6269, %v6219
      %v6271 = vsel %vm592, %v6270, %v6223
      %v6272 = vsel %vm594, %v6271, %v6227
      %v6273 = vsel %vm596, %v6272, %v6231
      %v6274 = vsel %vm598, %v6273, %v6235
      %v6275 = vsel %vm600, %v6274, %v6239
      %v6276 = vsel %vm588, %v6205, %v6243
      %v6277 = vsel %vm590, %v6276, %v6247
      %v6278 = vsel %vm592, %v6277, %v6251
      %v6279 = vsel %vm594, %v6278, %v6255
      %v6280 = vsel %vm596, %v6279, %v6259
      %v6281 = vsel %vm598, %v6280, %v6263
      %v6282 = vsel %vm600, %v6281, %v6267
      %6299 = vrot.lane.b32.xlu0 %v5917, 127
      %v6300 = vpop.permute.xlu0 %6299
      %6301 = vrot.lane.b32.xlu0 %v5918, 127
      %v6302 = vpop.permute.xlu0 %6301
      %6303 = vrot.lane.b32.xlu0 %v5920, 127
      %v6304 = vpop.permute.xlu0 %6303
      %6305 = vrot.lane.b32.xlu0 %v5921, 127
      %v6306 = vpop.permute.xlu0 %6305
      %6307 = vrot.lane.b32.xlu0 %v5923, 127
      %v6308 = vpop.permute.xlu0 %6307
      %6309 = vrot.lane.b32.xlu0 %v5924, 127
      %v6310 = vpop.permute.xlu0 %6309
      %6311 = vrot.lane.b32.xlu0 %v5926, 127
      %v6312 = vpop.permute.xlu0 %6311
      %6313 = vrot.lane.b32.xlu0 %v5927, 127
      %v6314 = vpop.permute.xlu0 %6313
      %6315 = vrot.lane.b32.xlu0 %v5929, 127
      %v6316 = vpop.permute.xlu0 %6315
      %6317 = vrot.lane.b32.xlu0 %v5930, 127
      %v6318 = vpop.permute.xlu0 %6317
      %6319 = vrot.lane.b32.xlu0 %v5932, 127
      %v6320 = vpop.permute.xlu0 %6319
      %6321 = vrot.lane.b32.xlu0 %v5933, 127
      %v6322 = vpop.permute.xlu0 %6321
      %6323 = vrot.lane.b32.xlu0 %v5935, 127
      %v6324 = vpop.permute.xlu0 %6323
      %6325 = vrot.lane.b32.xlu0 %v5936, 127
      %v6326 = vpop.permute.xlu0 %6325
      %6327 = vrot.lane.b32.xlu0 %v5938, 127
      %v6328 = vpop.permute.xlu0 %6327
      %6329 = vrot.lane.b32.xlu0 %v5939, 127
      %v6330 = vpop.permute.xlu0 %6329
      %v6347 = vcombine.low %v6300, %v6308
      %v6348 = vcombine.high %v6300, %v6308
      %v6350 = vunpack.c.l.s4 1983009808
      %v6351 = vunpack.c.0.s8 %v6350
      %v6352 = vlaneseq
      %v6353 = vshrl.u32 %v6352, 7
      %v6354 = vsub.s32 %v6351, %v6353
      %v6355 = vrot.slane %v6347, %v6354
      %v6357 = vunpack.c.l.s4 1983009808
      %v6358 = vunpack.c.0.s8 %v6357
      %v6359 = vlaneseq
      %v6360 = vshrl.u32 %v6359, 7
      %v6361 = vsub.s32 %v6358, %v6360
      %v6362 = vrot.slane %v6348, %v6361
      %v6363 = vcombine.low %v6304, %v6312
      %v6364 = vcombine.high %v6304, %v6312
      %v6366 = vunpack.c.l.s4 1983009808
      %v6367 = vunpack.c.0.s8 %v6366
      %v6368 = vlaneseq
      %v6369 = vshrl.u32 %v6368, 7
      %v6370 = vsub.s32 %v6367, %v6369
      %v6371 = vrot.slane %v6363, %v6370
      %v6373 = vunpack.c.l.s4 1983009808
      %v6374 = vunpack.c.0.s8 %v6373
      %v6375 = vlaneseq
      %v6376 = vshrl.u32 %v6375, 7
      %v6377 = vsub.s32 %v6374, %v6376
      %v6378 = vrot.slane %v6364, %v6377
      %v6379 = vcombine.low %v6316, %v6324
      %v6380 = vcombine.high %v6316, %v6324
      %v6382 = vunpack.c.l.s4 1983009808
      %v6383 = vunpack.c.0.s8 %v6382
      %v6384 = vlaneseq
      %v6385 = vshrl.u32 %v6384, 7
      %v6386 = vsub.s32 %v6383, %v6385
      %v6387 = vrot.slane %v6379, %v6386
      %v6389 = vunpack.c.l.s4 1983009808
      %v6390 = vunpack.c.0.s8 %v6389
      %v6391 = vlaneseq
      %v6392 = vshrl.u32 %v6391, 7
      %v6393 = vsub.s32 %v6390, %v6392
      %v6394 = vrot.slane %v6380, %v6393
      %v6395 = vcombine.low %v6320, %v6328
      %v6396 = vcombine.high %v6320, %v6328
      %v6398 = vunpack.c.l.s4 1983009808
      %v6399 = vunpack.c.0.s8 %v6398
      %v6400 = vlaneseq
      %v6401 = vshrl.u32 %v6400, 7
      %v6402 = vsub.s32 %v6399, %v6401
      %v6403 = vrot.slane %v6395, %v6402
      %v6405 = vunpack.c.l.s4 1983009808
      %v6406 = vunpack.c.0.s8 %v6405
      %v6407 = vlaneseq
      %v6408 = vshrl.u32 %v6407, 7
      %v6409 = vsub.s32 %v6406, %v6408
      %v6410 = vrot.slane %v6396, %v6409
      %v6411 = vcombine.low %v6355, %v6371
      %v6412 = vcombine.high %v6355, %v6371
      %v6414 = vunpack.c.l.s4 1934713408
      %v6415 = vunpack.c.0.s8 %v6414
      %v6416 = vlaneseq
      %v6417 = vshrl.u32 %v6416, 7
      %v6418 = vsub.s32 %v6415, %v6417
      %v6419 = vrot.slane %v6411, %v6418
      %v6421 = vunpack.c.l.s4 1934713408
      %v6422 = vunpack.c.0.s8 %v6421
      %v6423 = vlaneseq
      %v6424 = vshrl.u32 %v6423, 7
      %v6425 = vsub.s32 %v6422, %v6424
      %v6426 = vrot.slane %v6412, %v6425
      %v6427 = vcombine.low %v6362, %v6378
      %v6428 = vcombine.high %v6362, %v6378
      %v6430 = vunpack.c.l.s4 1934713408
      %v6431 = vunpack.c.0.s8 %v6430
      %v6432 = vlaneseq
      %v6433 = vshrl.u32 %v6432, 7
      %v6434 = vsub.s32 %v6431, %v6433
      %v6435 = vrot.slane %v6427, %v6434
      %v6437 = vunpack.c.l.s4 1934713408
      %v6438 = vunpack.c.0.s8 %v6437
      %v6439 = vlaneseq
      %v6440 = vshrl.u32 %v6439, 7
      %v6441 = vsub.s32 %v6438, %v6440
      %v6442 = vrot.slane %v6428, %v6441
      %v6443 = vcombine.low %v6387, %v6403
      %v6444 = vcombine.high %v6387, %v6403
      %v6446 = vunpack.c.l.s4 1934713408
      %v6447 = vunpack.c.0.s8 %v6446
      %v6448 = vlaneseq
      %v6449 = vshrl.u32 %v6448, 7
      %v6450 = vsub.s32 %v6447, %v6449
      %v6451 = vrot.slane %v6443, %v6450
      %v6453 = vunpack.c.l.s4 1934713408
      %v6454 = vunpack.c.0.s8 %v6453
      %v6455 = vlaneseq
      %v6456 = vshrl.u32 %v6455, 7
      %v6457 = vsub.s32 %v6454, %v6456
      %v6458 = vrot.slane %v6444, %v6457
      %v6459 = vcombine.low %v6394, %v6410
      %v6460 = vcombine.high %v6394, %v6410
      %v6462 = vunpack.c.l.s4 1934713408
      %v6463 = vunpack.c.0.s8 %v6462
      %v6464 = vlaneseq
      %v6465 = vshrl.u32 %v6464, 7
      %v6466 = vsub.s32 %v6463, %v6465
      %v6467 = vrot.slane %v6459, %v6466
      %v6469 = vunpack.c.l.s4 1934713408
      %v6470 = vunpack.c.0.s8 %v6469
      %v6471 = vlaneseq
      %v6472 = vshrl.u32 %v6471, 7
      %v6473 = vsub.s32 %v6470, %v6472
      %v6474 = vrot.slane %v6460, %v6473
      %v6475 = vcombine.low %v6419, %v6451
      %v6476 = vcombine.high %v6419, %v6451
      %v6477 = vcombine.low %v6426, %v6458
      %v6478 = vcombine.high %v6426, %v6458
      %v6479 = vcombine.low %v6435, %v6467
      %v6480 = vcombine.high %v6435, %v6467
      %v6481 = vcombine.low %v6442, %v6474
      %v6482 = vcombine.high %v6442, %v6474
      %v6483 = vcombine.low %v6302, %v6310
      %v6484 = vcombine.high %v6302, %v6310
      %v6486 = vunpack.c.l.s4 1983009808
      %v6487 = vunpack.c.0.s8 %v6486
      %v6488 = vlaneseq
      %v6489 = vshrl.u32 %v6488, 7
      %v6490 = vsub.s32 %v6487, %v6489
      %v6491 = vrot.slane %v6483, %v6490
      %v6493 = vunpack.c.l.s4 1983009808
      %v6494 = vunpack.c.0.s8 %v6493
      %v6495 = vlaneseq
      %v6496 = vshrl.u32 %v6495, 7
      %v6497 = vsub.s32 %v6494, %v6496
      %v6498 = vrot.slane %v6484, %v6497
      %v6499 = vcombine.low %v6306, %v6314
      %v6500 = vcombine.high %v6306, %v6314
      %v6502 = vunpack.c.l.s4 1983009808
      %v6503 = vunpack.c.0.s8 %v6502
      %v6504 = vlaneseq
      %v6505 = vshrl.u32 %v6504, 7
      %v6506 = vsub.s32 %v6503, %v6505
      %v6507 = vrot.slane %v6499, %v6506
      %v6509 = vunpack.c.l.s4 1983009808
      %v6510 = vunpack.c.0.s8 %v6509
      %v6511 = vlaneseq
      %v6512 = vshrl.u32 %v6511, 7
      %v6513 = vsub.s32 %v6510, %v6512
      %v6514 = vrot.slane %v6500, %v6513
      %v6515 = vcombine.low %v6318, %v6326
      %v6516 = vcombine.high %v6318, %v6326
      %v6518 = vunpack.c.l.s4 1983009808
      %v6519 = vunpack.c.0.s8 %v6518
      %v6520 = vlaneseq
      %v6521 = vshrl.u32 %v6520, 7
      %v6522 = vsub.s32 %v6519, %v6521
      %v6523 = vrot.slane %v6515, %v6522
      %v6525 = vunpack.c.l.s4 1983009808
      %v6526 = vunpack.c.0.s8 %v6525
      %v6527 = vlaneseq
      %v6528 = vshrl.u32 %v6527, 7
      %v6529 = vsub.s32 %v6526, %v6528
      %v6530 = vrot.slane %v6516, %v6529
      %v6531 = vcombine.low %v6322, %v6330
      %v6532 = vcombine.high %v6322, %v6330
      %v6534 = vunpack.c.l.s4 1983009808
      %v6535 = vunpack.c.0.s8 %v6534
      %v6536 = vlaneseq
      %v6537 = vshrl.u32 %v6536, 7
      %v6538 = vsub.s32 %v6535, %v6537
      %v6539 = vrot.slane %v6531, %v6538
      %v6541 = vunpack.c.l.s4 1983009808
      %v6542 = vunpack.c.0.s8 %v6541
      %v6543 = vlaneseq
      %v6544 = vshrl.u32 %v6543, 7
      %v6545 = vsub.s32 %v6542, %v6544
      %v6546 = vrot.slane %v6532, %v6545
      %v6547 = vcombine.low %v6491, %v6507
      %v6548 = vcombine.high %v6491, %v6507
      %v6550 = vunpack.c.l.s4 1934713408
      %v6551 = vunpack.c.0.s8 %v6550
      %v6552 = vlaneseq
      %v6553 = vshrl.u32 %v6552, 7
      %v6554 = vsub.s32 %v6551, %v6553
      %v6555 = vrot.slane %v6547, %v6554
      %v6557 = vunpack.c.l.s4 1934713408
      %v6558 = vunpack.c.0.s8 %v6557
      %v6559 = vlaneseq
      %v6560 = vshrl.u32 %v6559, 7
      %v6561 = vsub.s32 %v6558, %v6560
      %v6562 = vrot.slane %v6548, %v6561
      %v6563 = vcombine.low %v6498, %v6514
      %v6564 = vcombine.high %v6498, %v6514
      %v6566 = vunpack.c.l.s4 1934713408
      %v6567 = vunpack.c.0.s8 %v6566
      %v6568 = vlaneseq
      %v6569 = vshrl.u32 %v6568, 7
      %v6570 = vsub.s32 %v6567, %v6569
      %v6571 = vrot.slane %v6563, %v6570
      %v6573 = vunpack.c.l.s4 1934713408
      %v6574 = vunpack.c.0.s8 %v6573
      %v6575 = vlaneseq
      %v6576 = vshrl.u32 %v6575, 7
      %v6577 = vsub.s32 %v6574, %v6576
      %v6578 = vrot.slane %v6564, %v6577
      %v6579 = vcombine.low %v6523, %v6539
      %v6580 = vcombine.high %v6523, %v6539
      %v6582 = vunpack.c.l.s4 1934713408
      %v6583 = vunpack.c.0.s8 %v6582
      %v6584 = vlaneseq
      %v6585 = vshrl.u32 %v6584, 7
      %v6586 = vsub.s32 %v6583, %v6585
      %v6587 = vrot.slane %v6579, %v6586
      %v6589 = vunpack.c.l.s4 1934713408
      %v6590 = vunpack.c.0.s8 %v6589
      %v6591 = vlaneseq
      %v6592 = vshrl.u32 %v6591, 7
      %v6593 = vsub.s32 %v6590, %v6592
      %v6594 = vrot.slane %v6580, %v6593
      %v6595 = vcombine.low %v6530, %v6546
      %v6596 = vcombine.high %v6530, %v6546
      %v6598 = vunpack.c.l.s4 1934713408
      %v6599 = vunpack.c.0.s8 %v6598
      %v6600 = vlaneseq
      %v6601 = vshrl.u32 %v6600, 7
      %v6602 = vsub.s32 %v6599, %v6601
      %v6603 = vrot.slane %v6595, %v6602
      %v6605 = vunpack.c.l.s4 1934713408
      %v6606 = vunpack.c.0.s8 %v6605
      %v6607 = vlaneseq
      %v6608 = vshrl.u32 %v6607, 7
      %v6609 = vsub.s32 %v6606, %v6608
      %v6610 = vrot.slane %v6596, %v6609
      %v6611 = vcombine.low %v6555, %v6587
      %v6612 = vcombine.high %v6555, %v6587
      %v6613 = vcombine.low %v6562, %v6594
      %v6614 = vcombine.high %v6562, %v6594
      %v6615 = vcombine.low %v6571, %v6603
      %v6616 = vcombine.high %v6571, %v6603
      %v6617 = vcombine.low %v6578, %v6610
      %v6618 = vcombine.high %v6578, %v6610
      %6620 = vrot.lane.b32.xlu0 %v6476, 16
      %v6621 = vpop.permute.xlu0 %6620
      %6624 = vrot.lane.b32.xlu0 %v6477, 32
      %v6625 = vpop.permute.xlu0 %6624
      %6628 = vrot.lane.b32.xlu0 %v6478, 48
      %v6629 = vpop.permute.xlu0 %6628
      %6632 = vrot.lane.b32.xlu0 %v6479, 64
      %v6633 = vpop.permute.xlu0 %6632
      %6636 = vrot.lane.b32.xlu0 %v6480, 80
      %v6637 = vpop.permute.xlu0 %6636
      %6640 = vrot.lane.b32.xlu0 %v6481, 96
      %v6641 = vpop.permute.xlu0 %6640
      %6644 = vrot.lane.b32.xlu0 %v6482, 112
      %v6645 = vpop.permute.xlu0 %6644
      %6648 = vrot.lane.b32.xlu0 %v6612, 16
      %v6649 = vpop.permute.xlu0 %6648
      %6652 = vrot.lane.b32.xlu0 %v6613, 32
      %v6653 = vpop.permute.xlu0 %6652
      %6656 = vrot.lane.b32.xlu0 %v6614, 48
      %v6657 = vpop.permute.xlu0 %6656
      %6660 = vrot.lane.b32.xlu0 %v6615, 64
      %v6661 = vpop.permute.xlu0 %6660
      %6664 = vrot.lane.b32.xlu0 %v6616, 80
      %v6665 = vpop.permute.xlu0 %6664
      %6668 = vrot.lane.b32.xlu0 %v6617, 96
      %v6669 = vpop.permute.xlu0 %6668
      %6672 = vrot.lane.b32.xlu0 %v6618, 112
      %v6673 = vpop.permute.xlu0 %6672
      %v6675 = vsel %vm588, %v6475, %v6621
      %v6676 = vsel %vm590, %v6675, %v6625
      %v6677 = vsel %vm592, %v6676, %v6629
      %v6678 = vsel %vm594, %v6677, %v6633
      %v6679 = vsel %vm596, %v6678, %v6637
      %v6680 = vsel %vm598, %v6679, %v6641
      %v6681 = vsel %vm600, %v6680, %v6645
      %v6682 = vsel %vm588, %v6611, %v6649
      %v6683 = vsel %vm590, %v6682, %v6653
      %v6684 = vsel %vm592, %v6683, %v6657
      %v6685 = vsel %vm594, %v6684, %v6661
      %v6686 = vsel %vm596, %v6685, %v6665
      %v6687 = vsel %vm598, %v6686, %v6669
      %v6688 = vsel %vm600, %v6687, %v6673
      %6689 = vrot.lane.b32.xlu0 %v5917, 126
      %v6690 = vpop.permute.xlu0 %6689
      %6691 = vrot.lane.b32.xlu0 %v5918, 126
      %v6692 = vpop.permute.xlu0 %6691
      %6693 = vrot.lane.b32.xlu0 %v5920, 126
      %v6694 = vpop.permute.xlu0 %6693
      %6695 = vrot.lane.b32.xlu0 %v5921, 126
      %v6696 = vpop.permute.xlu0 %6695
      %6697 = vrot.lane.b32.xlu0 %v5923, 126
      %v6698 = vpop.permute.xlu0 %6697
      %6699 = vrot.lane.b32.xlu0 %v5924, 126
      %v6700 = vpop.permute.xlu0 %6699
      %6701 = vrot.lane.b32.xlu0 %v5926, 126
      %v6702 = vpop.permute.xlu0 %6701
      %6703 = vrot.lane.b32.xlu0 %v5927, 126
      %v6704 = vpop.permute.xlu0 %6703
      %6705 = vrot.lane.b32.xlu0 %v5929, 126
      %v6706 = vpop.permute.xlu0 %6705
      %6707 = vrot.lane.b32.xlu0 %v5930, 126
      %v6708 = vpop.permute.xlu0 %6707
      %6709 = vrot.lane.b32.xlu0 %v5932, 126
      %v6710 = vpop.permute.xlu0 %6709
      %6711 = vrot.lane.b32.xlu0 %v5933, 126
      %v6712 = vpop.permute.xlu0 %6711
      %6713 = vrot.lane.b32.xlu0 %v5935, 126
      %v6714 = vpop.permute.xlu0 %6713
      %6715 = vrot.lane.b32.xlu0 %v5936, 126
      %v6716 = vpop.permute.xlu0 %6715
      %6717 = vrot.lane.b32.xlu0 %v5938, 126
      %v6718 = vpop.permute.xlu0 %6717
      %6719 = vrot.lane.b32.xlu0 %v5939, 126
      %v6720 = vpop.permute.xlu0 %6719
      %v6737 = vcombine.low %v6690, %v6698
      %v6738 = vcombine.high %v6690, %v6698
      %v6740 = vunpack.c.l.s4 1983009808
      %v6741 = vunpack.c.0.s8 %v6740
      %v6742 = vlaneseq
      %v6743 = vshrl.u32 %v6742, 7
      %v6744 = vsub.s32 %v6741, %v6743
      %v6745 = vrot.slane %v6737, %v6744
      %v6747 = vunpack.c.l.s4 1983009808
      %v6748 = vunpack.c.0.s8 %v6747
      %v6749 = vlaneseq
      %v6750 = vshrl.u32 %v6749, 7
      %v6751 = vsub.s32 %v6748, %v6750
      %v6752 = vrot.slane %v6738, %v6751
      %v6753 = vcombine.low %v6694, %v6702
      %v6754 = vcombine.high %v6694, %v6702
      %v6756 = vunpack.c.l.s4 1983009808
      %v6757 = vunpack.c.0.s8 %v6756
      %v6758 = vlaneseq
      %v6759 = vshrl.u32 %v6758, 7
      %v6760 = vsub.s32 %v6757, %v6759
      %v6761 = vrot.slane %v6753, %v6760
      %v6763 = vunpack.c.l.s4 1983009808
      %v6764 = vunpack.c.0.s8 %v6763
      %v6765 = vlaneseq
      %v6766 = vshrl.u32 %v6765, 7
      %v6767 = vsub.s32 %v6764, %v6766
      %v6768 = vrot.slane %v6754, %v6767
      %v6769 = vcombine.low %v6706, %v6714
      %v6770 = vcombine.high %v6706, %v6714
      %v6772 = vunpack.c.l.s4 1983009808
      %v6773 = vunpack.c.0.s8 %v6772
      %v6774 = vlaneseq
      %v6775 = vshrl.u32 %v6774, 7
      %v6776 = vsub.s32 %v6773, %v6775
      %v6777 = vrot.slane %v6769, %v6776
      %v6779 = vunpack.c.l.s4 1983009808
      %v6780 = vunpack.c.0.s8 %v6779
      %v6781 = vlaneseq
      %v6782 = vshrl.u32 %v6781, 7
      %v6783 = vsub.s32 %v6780, %v6782
      %v6784 = vrot.slane %v6770, %v6783
      %v6785 = vcombine.low %v6710, %v6718
      %v6786 = vcombine.high %v6710, %v6718
      %v6788 = vunpack.c.l.s4 1983009808
      %v6789 = vunpack.c.0.s8 %v6788
      %v6790 = vlaneseq
      %v6791 = vshrl.u32 %v6790, 7
      %v6792 = vsub.s32 %v6789, %v6791
      %v6793 = vrot.slane %v6785, %v6792
      %v6795 = vunpack.c.l.s4 1983009808
      %v6796 = vunpack.c.0.s8 %v6795
      %v6797 = vlaneseq
      %v6798 = vshrl.u32 %v6797, 7
      %v6799 = vsub.s32 %v6796, %v6798
      %v6800 = vrot.slane %v6786, %v6799
      %v6801 = vcombine.low %v6745, %v6761
      %v6802 = vcombine.high %v6745, %v6761
      %v6804 = vunpack.c.l.s4 1934713408
      %v6805 = vunpack.c.0.s8 %v6804
      %v6806 = vlaneseq
      %v6807 = vshrl.u32 %v6806, 7
      %v6808 = vsub.s32 %v6805, %v6807
      %v6809 = vrot.slane %v6801, %v6808
      %v6811 = vunpack.c.l.s4 1934713408
      %v6812 = vunpack.c.0.s8 %v6811
      %v6813 = vlaneseq
      %v6814 = vshrl.u32 %v6813, 7
      %v6815 = vsub.s32 %v6812, %v6814
      %v6816 = vrot.slane %v6802, %v6815
      %v6817 = vcombine.low %v6752, %v6768
      %v6818 = vcombine.high %v6752, %v6768
      %v6820 = vunpack.c.l.s4 1934713408
      %v6821 = vunpack.c.0.s8 %v6820
      %v6822 = vlaneseq
      %v6823 = vshrl.u32 %v6822, 7
      %v6824 = vsub.s32 %v6821, %v6823
      %v6825 = vrot.slane %v6817, %v6824
      %v6827 = vunpack.c.l.s4 1934713408
      %v6828 = vunpack.c.0.s8 %v6827
      %v6829 = vlaneseq
      %v6830 = vshrl.u32 %v6829, 7
      %v6831 = vsub.s32 %v6828, %v6830
      %v6832 = vrot.slane %v6818, %v6831
      %v6833 = vcombine.low %v6777, %v6793
      %v6834 = vcombine.high %v6777, %v6793
      %v6836 = vunpack.c.l.s4 1934713408
      %v6837 = vunpack.c.0.s8 %v6836
      %v6838 = vlaneseq
      %v6839 = vshrl.u32 %v6838, 7
      %v6840 = vsub.s32 %v6837, %v6839
      %v6841 = vrot.slane %v6833, %v6840
      %v6843 = vunpack.c.l.s4 1934713408
      %v6844 = vunpack.c.0.s8 %v6843
      %v6845 = vlaneseq
      %v6846 = vshrl.u32 %v6845, 7
      %v6847 = vsub.s32 %v6844, %v6846
      %v6848 = vrot.slane %v6834, %v6847
      %v6849 = vcombine.low %v6784, %v6800
      %v6850 = vcombine.high %v6784, %v6800
      %v6852 = vunpack.c.l.s4 1934713408
      %v6853 = vunpack.c.0.s8 %v6852
      %v6854 = vlaneseq
      %v6855 = vshrl.u32 %v6854, 7
      %v6856 = vsub.s32 %v6853, %v6855
      %v6857 = vrot.slane %v6849, %v6856
      %v6859 = vunpack.c.l.s4 1934713408
      %v6860 = vunpack.c.0.s8 %v6859
      %v6861 = vlaneseq
      %v6862 = vshrl.u32 %v6861, 7
      %v6863 = vsub.s32 %v6860, %v6862
      %v6864 = vrot.slane %v6850, %v6863
      %v6865 = vcombine.low %v6809, %v6841
      %v6866 = vcombine.high %v6809, %v6841
      %v6867 = vcombine.low %v6816, %v6848
      %v6868 = vcombine.high %v6816, %v6848
      %v6869 = vcombine.low %v6825, %v6857
      %v6870 = vcombine.high %v6825, %v6857
      %v6871 = vcombine.low %v6832, %v6864
      %v6872 = vcombine.high %v6832, %v6864
      %v6873 = vcombine.low %v6692, %v6700
      %v6874 = vcombine.high %v6692, %v6700
      %v6876 = vunpack.c.l.s4 1983009808
      %v6877 = vunpack.c.0.s8 %v6876
      %v6878 = vlaneseq
      %v6879 = vshrl.u32 %v6878, 7
      %v6880 = vsub.s32 %v6877, %v6879
      %v6881 = vrot.slane %v6873, %v6880
      %v6883 = vunpack.c.l.s4 1983009808
      %v6884 = vunpack.c.0.s8 %v6883
      %v6885 = vlaneseq
      %v6886 = vshrl.u32 %v6885, 7
      %v6887 = vsub.s32 %v6884, %v6886
      %v6888 = vrot.slane %v6874, %v6887
      %v6889 = vcombine.low %v6696, %v6704
      %v6890 = vcombine.high %v6696, %v6704
      %v6892 = vunpack.c.l.s4 1983009808
      %v6893 = vunpack.c.0.s8 %v6892
      %v6894 = vlaneseq
      %v6895 = vshrl.u32 %v6894, 7
      %v6896 = vsub.s32 %v6893, %v6895
      %v6897 = vrot.slane %v6889, %v6896
      %v6899 = vunpack.c.l.s4 1983009808
      %v6900 = vunpack.c.0.s8 %v6899
      %v6901 = vlaneseq
      %v6902 = vshrl.u32 %v6901, 7
      %v6903 = vsub.s32 %v6900, %v6902
      %v6904 = vrot.slane %v6890, %v6903
      %v6905 = vcombine.low %v6708, %v6716
      %v6906 = vcombine.high %v6708, %v6716
      %v6908 = vunpack.c.l.s4 1983009808
      %v6909 = vunpack.c.0.s8 %v6908
      %v6910 = vlaneseq
      %v6911 = vshrl.u32 %v6910, 7
      %v6912 = vsub.s32 %v6909, %v6911
      %v6913 = vrot.slane %v6905, %v6912
      %v6915 = vunpack.c.l.s4 1983009808
      %v6916 = vunpack.c.0.s8 %v6915
      %v6917 = vlaneseq
      %v6918 = vshrl.u32 %v6917, 7
      %v6919 = vsub.s32 %v6916, %v6918
      %v6920 = vrot.slane %v6906, %v6919
      %v6921 = vcombine.low %v6712, %v6720
      %v6922 = vcombine.high %v6712, %v6720
      %v6924 = vunpack.c.l.s4 1983009808
      %v6925 = vunpack.c.0.s8 %v6924
      %v6926 = vlaneseq
      %v6927 = vshrl.u32 %v6926, 7
      %v6928 = vsub.s32 %v6925, %v6927
      %v6929 = vrot.slane %v6921, %v6928
      %v6931 = vunpack.c.l.s4 1983009808
      %v6932 = vunpack.c.0.s8 %v6931
      %v6933 = vlaneseq
      %v6934 = vshrl.u32 %v6933, 7
      %v6935 = vsub.s32 %v6932, %v6934
      %v6936 = vrot.slane %v6922, %v6935
      %v6937 = vcombine.low %v6881, %v6897
      %v6938 = vcombine.high %v6881, %v6897
      %v6940 = vunpack.c.l.s4 1934713408
      %v6941 = vunpack.c.0.s8 %v6940
      %v6942 = vlaneseq
      %v6943 = vshrl.u32 %v6942, 7
      %v6944 = vsub.s32 %v6941, %v6943
      %v6945 = vrot.slane %v6937, %v6944
      %v6947 = vunpack.c.l.s4 1934713408
      %v6948 = vunpack.c.0.s8 %v6947
      %v6949 = vlaneseq
      %v6950 = vshrl.u32 %v6949, 7
      %v6951 = vsub.s32 %v6948, %v6950
      %v6952 = vrot.slane %v6938, %v6951
      %v6953 = vcombine.low %v6888, %v6904
      %v6954 = vcombine.high %v6888, %v6904
      %v6956 = vunpack.c.l.s4 1934713408
      %v6957 = vunpack.c.0.s8 %v6956
      %v6958 = vlaneseq
      %v6959 = vshrl.u32 %v6958, 7
      %v6960 = vsub.s32 %v6957, %v6959
      %v6961 = vrot.slane %v6953, %v6960
      %v6963 = vunpack.c.l.s4 1934713408
      %v6964 = vunpack.c.0.s8 %v6963
      %v6965 = vlaneseq
      %v6966 = vshrl.u32 %v6965, 7
      %v6967 = vsub.s32 %v6964, %v6966
      %v6968 = vrot.slane %v6954, %v6967
      %v6969 = vcombine.low %v6913, %v6929
      %v6970 = vcombine.high %v6913, %v6929
      %v6972 = vunpack.c.l.s4 1934713408
      %v6973 = vunpack.c.0.s8 %v6972
      %v6974 = vlaneseq
      %v6975 = vshrl.u32 %v6974, 7
      %v6976 = vsub.s32 %v6973, %v6975
      %v6977 = vrot.slane %v6969, %v6976
      %v6979 = vunpack.c.l.s4 1934713408
      %v6980 = vunpack.c.0.s8 %v6979
      %v6981 = vlaneseq
      %v6982 = vshrl.u32 %v6981, 7
      %v6983 = vsub.s32 %v6980, %v6982
      %v6984 = vrot.slane %v6970, %v6983
      %v6985 = vcombine.low %v6920, %v6936
      %v6986 = vcombine.high %v6920, %v6936
      %v6988 = vunpack.c.l.s4 1934713408
      %v6989 = vunpack.c.0.s8 %v6988
      %v6990 = vlaneseq
      %v6991 = vshrl.u32 %v6990, 7
      %v6992 = vsub.s32 %v6989, %v6991
      %v6993 = vrot.slane %v6985, %v6992
      %v6995 = vunpack.c.l.s4 1934713408
      %v6996 = vunpack.c.0.s8 %v6995
      %v6997 = vlaneseq
      %v6998 = vshrl.u32 %v6997, 7
      %v6999 = vsub.s32 %v6996, %v6998
      %v7000 = vrot.slane %v6986, %v6999
      %v7001 = vcombine.low %v6945, %v6977
      %v7002 = vcombine.high %v6945, %v6977
      %v7003 = vcombine.low %v6952, %v6984
      %v7004 = vcombine.high %v6952, %v6984
      %v7005 = vcombine.low %v6961, %v6993
      %v7006 = vcombine.high %v6961, %v6993
      %v7007 = vcombine.low %v6968, %v7000
      %v7008 = vcombine.high %v6968, %v7000
      %7010 = vrot.lane.b32.xlu0 %v6866, 16
      %v7011 = vpop.permute.xlu0 %7010
      %7014 = vrot.lane.b32.xlu0 %v6867, 32
      %v7015 = vpop.permute.xlu0 %7014
      %7018 = vrot.lane.b32.xlu0 %v6868, 48
      %v7019 = vpop.permute.xlu0 %7018
      %7022 = vrot.lane.b32.xlu0 %v6869, 64
      %v7023 = vpop.permute.xlu0 %7022
      %7026 = vrot.lane.b32.xlu0 %v6870, 80
      %v7027 = vpop.permute.xlu0 %7026
      %7030 = vrot.lane.b32.xlu0 %v6871, 96
      %v7031 = vpop.permute.xlu0 %7030
      %7034 = vrot.lane.b32.xlu0 %v6872, 112
      %v7035 = vpop.permute.xlu0 %7034
      %7038 = vrot.lane.b32.xlu0 %v7002, 16
      %v7039 = vpop.permute.xlu0 %7038
      %7042 = vrot.lane.b32.xlu0 %v7003, 32
      %v7043 = vpop.permute.xlu0 %7042
      %7046 = vrot.lane.b32.xlu0 %v7004, 48
      %v7047 = vpop.permute.xlu0 %7046
      %7050 = vrot.lane.b32.xlu0 %v7005, 64
      %v7051 = vpop.permute.xlu0 %7050
      %7054 = vrot.lane.b32.xlu0 %v7006, 80
      %v7055 = vpop.permute.xlu0 %7054
      %7058 = vrot.lane.b32.xlu0 %v7007, 96
      %v7059 = vpop.permute.xlu0 %7058
      %7062 = vrot.lane.b32.xlu0 %v7008, 112
      %v7063 = vpop.permute.xlu0 %7062
      %v7065 = vsel %vm588, %v6865, %v7011
      %v7066 = vsel %vm590, %v7065, %v7015
      %v7067 = vsel %vm592, %v7066, %v7019
      %v7068 = vsel %vm594, %v7067, %v7023
      %v7069 = vsel %vm596, %v7068, %v7027
      %v7070 = vsel %vm598, %v7069, %v7031
      %v7071 = vsel %vm600, %v7070, %v7035
      %v7072 = vsel %vm588, %v7001, %v7039
      %v7073 = vsel %vm590, %v7072, %v7043
      %v7074 = vsel %vm592, %v7073, %v7047
      %v7075 = vsel %vm594, %v7074, %v7051
      %v7076 = vsel %vm596, %v7075, %v7055
      %v7077 = vsel %vm598, %v7076, %v7059
      %v7078 = vsel %vm600, %v7077, %v7063
      %v7087 = vrot.slane %v5917, 1
      %v7088 = vrot.slane %v5918, 1
      %v7089 = vsel %vm1613, %v7087, %v7088
      %v7090 = vrot.slane %v5919, 1
      %v7091 = vsel %vm1613, %v7088, %v7090
      %v7092 = vrot.slane %v5920, 1
      %v7093 = vrot.slane %v5921, 1
      %v7094 = vsel %vm1613, %v7092, %v7093
      %v7095 = vrot.slane %v5922, 1
      %v7096 = vsel %vm1613, %v7093, %v7095
      %v7097 = vrot.slane %v5923, 1
      %v7098 = vrot.slane %v5924, 1
      %v7099 = vsel %vm1613, %v7097, %v7098
      %v7100 = vrot.slane %v5925, 1
      %v7101 = vsel %vm1613, %v7098, %v7100
      %v7102 = vrot.slane %v5926, 1
      %v7103 = vrot.slane %v5927, 1
      %v7104 = vsel %vm1613, %v7102, %v7103
      %v7105 = vrot.slane %v5928, 1
      %v7106 = vsel %vm1613, %v7103, %v7105
      %v7107 = vrot.slane %v5929, 1
      %v7108 = vrot.slane %v5930, 1
      %v7109 = vsel %vm1613, %v7107, %v7108
      %v7110 = vrot.slane %v5931, 1
      %v7111 = vsel %vm1613, %v7108, %v7110
      %v7112 = vrot.slane %v5932, 1
      %v7113 = vrot.slane %v5933, 1
      %v7114 = vsel %vm1613, %v7112, %v7113
      %v7115 = vrot.slane %v5934, 1
      %v7116 = vsel %vm1613, %v7113, %v7115
      %v7117 = vrot.slane %v5935, 1
      %v7118 = vrot.slane %v5936, 1
      %v7119 = vsel %vm1613, %v7117, %v7118
      %v7120 = vrot.slane %v5937, 1
      %v7121 = vsel %vm1613, %v7118, %v7120
      %v7122 = vrot.slane %v5938, 1
      %v7123 = vrot.slane %v5939, 1
      %v7124 = vsel %vm1613, %v7122, %v7123
      %v7125 = vrot.slane %v5940, 1
      %v7126 = vsel %vm1613, %v7123, %v7125
      %v7143 = vcombine.low %v7089, %v7099
      %v7144 = vcombine.high %v7089, %v7099
      %v7146 = vunpack.c.l.s4 1983009808
      %v7147 = vunpack.c.0.s8 %v7146
      %v7148 = vlaneseq
      %v7149 = vshrl.u32 %v7148, 7
      %v7150 = vsub.s32 %v7147, %v7149
      %v7151 = vrot.slane %v7143, %v7150
      %v7153 = vunpack.c.l.s4 1983009808
      %v7154 = vunpack.c.0.s8 %v7153
      %v7155 = vlaneseq
      %v7156 = vshrl.u32 %v7155, 7
      %v7157 = vsub.s32 %v7154, %v7156
      %v7158 = vrot.slane %v7144, %v7157
      %v7159 = vcombine.low %v7094, %v7104
      %v7160 = vcombine.high %v7094, %v7104
      %v7162 = vunpack.c.l.s4 1983009808
      %v7163 = vunpack.c.0.s8 %v7162
      %v7164 = vlaneseq
      %v7165 = vshrl.u32 %v7164, 7
      %v7166 = vsub.s32 %v7163, %v7165
      %v7167 = vrot.slane %v7159, %v7166
      %v7169 = vunpack.c.l.s4 1983009808
      %v7170 = vunpack.c.0.s8 %v7169
      %v7171 = vlaneseq
      %v7172 = vshrl.u32 %v7171, 7
      %v7173 = vsub.s32 %v7170, %v7172
      %v7174 = vrot.slane %v7160, %v7173
      %v7175 = vcombine.low %v7109, %v7119
      %v7176 = vcombine.high %v7109, %v7119
      %v7178 = vunpack.c.l.s4 1983009808
      %v7179 = vunpack.c.0.s8 %v7178
      %v7180 = vlaneseq
      %v7181 = vshrl.u32 %v7180, 7
      %v7182 = vsub.s32 %v7179, %v7181
      %v7183 = vrot.slane %v7175, %v7182
      %v7185 = vunpack.c.l.s4 1983009808
      %v7186 = vunpack.c.0.s8 %v7185
      %v7187 = vlaneseq
      %v7188 = vshrl.u32 %v7187, 7
      %v7189 = vsub.s32 %v7186, %v7188
      %v7190 = vrot.slane %v7176, %v7189
      %v7191 = vcombine.low %v7114, %v7124
      %v7192 = vcombine.high %v7114, %v7124
      %v7194 = vunpack.c.l.s4 1983009808
      %v7195 = vunpack.c.0.s8 %v7194
      %v7196 = vlaneseq
      %v7197 = vshrl.u32 %v7196, 7
      %v7198 = vsub.s32 %v7195, %v7197
      %v7199 = vrot.slane %v7191, %v7198
      %v7201 = vunpack.c.l.s4 1983009808
      %v7202 = vunpack.c.0.s8 %v7201
      %v7203 = vlaneseq
      %v7204 = vshrl.u32 %v7203, 7
      %v7205 = vsub.s32 %v7202, %v7204
      %v7206 = vrot.slane %v7192, %v7205
      %v7207 = vcombine.low %v7151, %v7167
      %v7208 = vcombine.high %v7151, %v7167
      %v7210 = vunpack.c.l.s4 1934713408
      %v7211 = vunpack.c.0.s8 %v7210
      %v7212 = vlaneseq
      %v7213 = vshrl.u32 %v7212, 7
      %v7214 = vsub.s32 %v7211, %v7213
      %v7215 = vrot.slane %v7207, %v7214
      %v7217 = vunpack.c.l.s4 1934713408
      %v7218 = vunpack.c.0.s8 %v7217
      %v7219 = vlaneseq
      %v7220 = vshrl.u32 %v7219, 7
      %v7221 = vsub.s32 %v7218, %v7220
      %v7222 = vrot.slane %v7208, %v7221
      %v7223 = vcombine.low %v7158, %v7174
      %v7224 = vcombine.high %v7158, %v7174
      %v7226 = vunpack.c.l.s4 1934713408
      %v7227 = vunpack.c.0.s8 %v7226
      %v7228 = vlaneseq
      %v7229 = vshrl.u32 %v7228, 7
      %v7230 = vsub.s32 %v7227, %v7229
      %v7231 = vrot.slane %v7223, %v7230
      %v7233 = vunpack.c.l.s4 1934713408
      %v7234 = vunpack.c.0.s8 %v7233
      %v7235 = vlaneseq
      %v7236 = vshrl.u32 %v7235, 7
      %v7237 = vsub.s32 %v7234, %v7236
      %v7238 = vrot.slane %v7224, %v7237
      %v7239 = vcombine.low %v7183, %v7199
      %v7240 = vcombine.high %v7183, %v7199
      %v7242 = vunpack.c.l.s4 1934713408
      %v7243 = vunpack.c.0.s8 %v7242
      %v7244 = vlaneseq
      %v7245 = vshrl.u32 %v7244, 7
      %v7246 = vsub.s32 %v7243, %v7245
      %v7247 = vrot.slane %v7239, %v7246
      %v7249 = vunpack.c.l.s4 1934713408
      %v7250 = vunpack.c.0.s8 %v7249
      %v7251 = vlaneseq
      %v7252 = vshrl.u32 %v7251, 7
      %v7253 = vsub.s32 %v7250, %v7252
      %v7254 = vrot.slane %v7240, %v7253
      %v7255 = vcombine.low %v7190, %v7206
      %v7256 = vcombine.high %v7190, %v7206
      %v7258 = vunpack.c.l.s4 1934713408
      %v7259 = vunpack.c.0.s8 %v7258
      %v7260 = vlaneseq
      %v7261 = vshrl.u32 %v7260, 7
      %v7262 = vsub.s32 %v7259, %v7261
      %v7263 = vrot.slane %v7255, %v7262
      %v7265 = vunpack.c.l.s4 1934713408
      %v7266 = vunpack.c.0.s8 %v7265
      %v7267 = vlaneseq
      %v7268 = vshrl.u32 %v7267, 7
      %v7269 = vsub.s32 %v7266, %v7268
      %v7270 = vrot.slane %v7256, %v7269
      %v7271 = vcombine.low %v7215, %v7247
      %v7272 = vcombine.high %v7215, %v7247
      %v7273 = vcombine.low %v7222, %v7254
      %v7274 = vcombine.high %v7222, %v7254
      %v7275 = vcombine.low %v7231, %v7263
      %v7276 = vcombine.high %v7231, %v7263
      %v7277 = vcombine.low %v7238, %v7270
      %v7278 = vcombine.high %v7238, %v7270
      %v7279 = vcombine.low %v7091, %v7101
      %v7280 = vcombine.high %v7091, %v7101
      %v7282 = vunpack.c.l.s4 1983009808
      %v7283 = vunpack.c.0.s8 %v7282
      %v7284 = vlaneseq
      %v7285 = vshrl.u32 %v7284, 7
      %v7286 = vsub.s32 %v7283, %v7285
      %v7287 = vrot.slane %v7279, %v7286
      %v7289 = vunpack.c.l.s4 1983009808
      %v7290 = vunpack.c.0.s8 %v7289
      %v7291 = vlaneseq
      %v7292 = vshrl.u32 %v7291, 7
      %v7293 = vsub.s32 %v7290, %v7292
      %v7294 = vrot.slane %v7280, %v7293
      %v7295 = vcombine.low %v7096, %v7106
      %v7296 = vcombine.high %v7096, %v7106
      %v7298 = vunpack.c.l.s4 1983009808
      %v7299 = vunpack.c.0.s8 %v7298
      %v7300 = vlaneseq
      %v7301 = vshrl.u32 %v7300, 7
      %v7302 = vsub.s32 %v7299, %v7301
      %v7303 = vrot.slane %v7295, %v7302
      %v7305 = vunpack.c.l.s4 1983009808
      %v7306 = vunpack.c.0.s8 %v7305
      %v7307 = vlaneseq
      %v7308 = vshrl.u32 %v7307, 7
      %v7309 = vsub.s32 %v7306, %v7308
      %v7310 = vrot.slane %v7296, %v7309
      %v7311 = vcombine.low %v7111, %v7121
      %v7312 = vcombine.high %v7111, %v7121
      %v7314 = vunpack.c.l.s4 1983009808
      %v7315 = vunpack.c.0.s8 %v7314
      %v7316 = vlaneseq
      %v7317 = vshrl.u32 %v7316, 7
      %v7318 = vsub.s32 %v7315, %v7317
      %v7319 = vrot.slane %v7311, %v7318
      %v7321 = vunpack.c.l.s4 1983009808
      %v7322 = vunpack.c.0.s8 %v7321
      %v7323 = vlaneseq
      %v7324 = vshrl.u32 %v7323, 7
      %v7325 = vsub.s32 %v7322, %v7324
      %v7326 = vrot.slane %v7312, %v7325
      %v7327 = vcombine.low %v7116, %v7126
      %v7328 = vcombine.high %v7116, %v7126
      %v7330 = vunpack.c.l.s4 1983009808
      %v7331 = vunpack.c.0.s8 %v7330
      %v7332 = vlaneseq
      %v7333 = vshrl.u32 %v7332, 7
      %v7334 = vsub.s32 %v7331, %v7333
      %v7335 = vrot.slane %v7327, %v7334
      %v7337 = vunpack.c.l.s4 1983009808
      %v7338 = vunpack.c.0.s8 %v7337
      %v7339 = vlaneseq
      %v7340 = vshrl.u32 %v7339, 7
      %v7341 = vsub.s32 %v7338, %v7340
      %v7342 = vrot.slane %v7328, %v7341
      %v7343 = vcombine.low %v7287, %v7303
      %v7344 = vcombine.high %v7287, %v7303
      %v7346 = vunpack.c.l.s4 1934713408
      %v7347 = vunpack.c.0.s8 %v7346
      %v7348 = vlaneseq
      %v7349 = vshrl.u32 %v7348, 7
      %v7350 = vsub.s32 %v7347, %v7349
      %v7351 = vrot.slane %v7343, %v7350
      %v7353 = vunpack.c.l.s4 1934713408
      %v7354 = vunpack.c.0.s8 %v7353
      %v7355 = vlaneseq
      %v7356 = vshrl.u32 %v7355, 7
      %v7357 = vsub.s32 %v7354, %v7356
      %v7358 = vrot.slane %v7344, %v7357
      %v7359 = vcombine.low %v7294, %v7310
      %v7360 = vcombine.high %v7294, %v7310
      %v7362 = vunpack.c.l.s4 1934713408
      %v7363 = vunpack.c.0.s8 %v7362
      %v7364 = vlaneseq
      %v7365 = vshrl.u32 %v7364, 7
      %v7366 = vsub.s32 %v7363, %v7365
      %v7367 = vrot.slane %v7359, %v7366
      %v7369 = vunpack.c.l.s4 1934713408
      %v7370 = vunpack.c.0.s8 %v7369
      %v7371 = vlaneseq
      %v7372 = vshrl.u32 %v7371, 7
      %v7373 = vsub.s32 %v7370, %v7372
      %v7374 = vrot.slane %v7360, %v7373
      %v7375 = vcombine.low %v7319, %v7335
      %v7376 = vcombine.high %v7319, %v7335
      %v7378 = vunpack.c.l.s4 1934713408
      %v7379 = vunpack.c.0.s8 %v7378
      %v7380 = vlaneseq
      %v7381 = vshrl.u32 %v7380, 7
      %v7382 = vsub.s32 %v7379, %v7381
      %v7383 = vrot.slane %v7375, %v7382
      %v7385 = vunpack.c.l.s4 1934713408
      %v7386 = vunpack.c.0.s8 %v7385
      %v7387 = vlaneseq
      %v7388 = vshrl.u32 %v7387, 7
      %v7389 = vsub.s32 %v7386, %v7388
      %v7390 = vrot.slane %v7376, %v7389
      %v7391 = vcombine.low %v7326, %v7342
      %v7392 = vcombine.high %v7326, %v7342
      %v7394 = vunpack.c.l.s4 1934713408
      %v7395 = vunpack.c.0.s8 %v7394
      %v7396 = vlaneseq
      %v7397 = vshrl.u32 %v7396, 7
      %v7398 = vsub.s32 %v7395, %v7397
      %v7399 = vrot.slane %v7391, %v7398
      %v7401 = vunpack.c.l.s4 1934713408
      %v7402 = vunpack.c.0.s8 %v7401
      %v7403 = vlaneseq
      %v7404 = vshrl.u32 %v7403, 7
      %v7405 = vsub.s32 %v7402, %v7404
      %v7406 = vrot.slane %v7392, %v7405
      %v7407 = vcombine.low %v7351, %v7383
      %v7408 = vcombine.high %v7351, %v7383
      %v7409 = vcombine.low %v7358, %v7390
      %v7410 = vcombine.high %v7358, %v7390
      %v7411 = vcombine.low %v7367, %v7399
      %v7412 = vcombine.high %v7367, %v7399
      %v7413 = vcombine.low %v7374, %v7406
      %v7414 = vcombine.high %v7374, %v7406
      %7416 = vrot.lane.b32.xlu0 %v7272, 16
      %v7417 = vpop.permute.xlu0 %7416
      %7420 = vrot.lane.b32.xlu0 %v7273, 32
      %v7421 = vpop.permute.xlu0 %7420
      %7424 = vrot.lane.b32.xlu0 %v7274, 48
      %v7425 = vpop.permute.xlu0 %7424
      %7428 = vrot.lane.b32.xlu0 %v7275, 64
      %v7429 = vpop.permute.xlu0 %7428
      %7432 = vrot.lane.b32.xlu0 %v7276, 80
      %v7433 = vpop.permute.xlu0 %7432
      %7436 = vrot.lane.b32.xlu0 %v7277, 96
      %v7437 = vpop.permute.xlu0 %7436
      %7440 = vrot.lane.b32.xlu0 %v7278, 112
      %v7441 = vpop.permute.xlu0 %7440
      %7444 = vrot.lane.b32.xlu0 %v7408, 16
      %v7445 = vpop.permute.xlu0 %7444
      %7448 = vrot.lane.b32.xlu0 %v7409, 32
      %v7449 = vpop.permute.xlu0 %7448
      %7452 = vrot.lane.b32.xlu0 %v7410, 48
      %v7453 = vpop.permute.xlu0 %7452
      %7456 = vrot.lane.b32.xlu0 %v7411, 64
      %v7457 = vpop.permute.xlu0 %7456
      %7460 = vrot.lane.b32.xlu0 %v7412, 80
      %v7461 = vpop.permute.xlu0 %7460
      %7464 = vrot.lane.b32.xlu0 %v7413, 96
      %v7465 = vpop.permute.xlu0 %7464
      %7468 = vrot.lane.b32.xlu0 %v7414, 112
      %v7469 = vpop.permute.xlu0 %7468
      %v7471 = vsel %vm588, %v7271, %v7417
      %v7472 = vsel %vm590, %v7471, %v7421
      %v7473 = vsel %vm592, %v7472, %v7425
      %v7474 = vsel %vm594, %v7473, %v7429
      %v7475 = vsel %vm596, %v7474, %v7433
      %v7476 = vsel %vm598, %v7475, %v7437
      %v7477 = vsel %vm600, %v7476, %v7441
      %v7478 = vsel %vm588, %v7407, %v7445
      %v7479 = vsel %vm590, %v7478, %v7449
      %v7480 = vsel %vm592, %v7479, %v7453
      %v7481 = vsel %vm594, %v7480, %v7457
      %v7482 = vsel %vm596, %v7481, %v7461
      %v7483 = vsel %vm598, %v7482, %v7465
      %v7484 = vsel %vm600, %v7483, %v7469
      %7485 = vrot.lane.b32.xlu0 %v7089, 127
      %v7486 = vpop.permute.xlu0 %7485
      %7487 = vrot.lane.b32.xlu0 %v7091, 127
      %v7488 = vpop.permute.xlu0 %7487
      %7489 = vrot.lane.b32.xlu0 %v7094, 127
      %v7490 = vpop.permute.xlu0 %7489
      %7491 = vrot.lane.b32.xlu0 %v7096, 127
      %v7492 = vpop.permute.xlu0 %7491
      %7493 = vrot.lane.b32.xlu0 %v7099, 127
      %v7494 = vpop.permute.xlu0 %7493
      %7495 = vrot.lane.b32.xlu0 %v7101, 127
      %v7496 = vpop.permute.xlu0 %7495
      %7497 = vrot.lane.b32.xlu0 %v7104, 127
      %v7498 = vpop.permute.xlu0 %7497
      %7499 = vrot.lane.b32.xlu0 %v7106, 127
      %v7500 = vpop.permute.xlu0 %7499
      %7501 = vrot.lane.b32.xlu0 %v7109, 127
      %v7502 = vpop.permute.xlu0 %7501
      %7503 = vrot.lane.b32.xlu0 %v7111, 127
      %v7504 = vpop.permute.xlu0 %7503
      %7505 = vrot.lane.b32.xlu0 %v7114, 127
      %v7506 = vpop.permute.xlu0 %7505
      %7507 = vrot.lane.b32.xlu0 %v7116, 127
      %v7508 = vpop.permute.xlu0 %7507
      %7509 = vrot.lane.b32.xlu0 %v7119, 127
      %v7510 = vpop.permute.xlu0 %7509
      %7511 = vrot.lane.b32.xlu0 %v7121, 127
      %v7512 = vpop.permute.xlu0 %7511
      %7513 = vrot.lane.b32.xlu0 %v7124, 127
      %v7514 = vpop.permute.xlu0 %7513
      %7515 = vrot.lane.b32.xlu0 %v7126, 127
      %v7516 = vpop.permute.xlu0 %7515
      %v7533 = vcombine.low %v7486, %v7494
      %v7534 = vcombine.high %v7486, %v7494
      %v7536 = vunpack.c.l.s4 1983009808
      %v7537 = vunpack.c.0.s8 %v7536
      %v7538 = vlaneseq
      %v7539 = vshrl.u32 %v7538, 7
      %v7540 = vsub.s32 %v7537, %v7539
      %v7541 = vrot.slane %v7533, %v7540
      %v7543 = vunpack.c.l.s4 1983009808
      %v7544 = vunpack.c.0.s8 %v7543
      %v7545 = vlaneseq
      %v7546 = vshrl.u32 %v7545, 7
      %v7547 = vsub.s32 %v7544, %v7546
      %v7548 = vrot.slane %v7534, %v7547
      %v7549 = vcombine.low %v7490, %v7498
      %v7550 = vcombine.high %v7490, %v7498
      %v7552 = vunpack.c.l.s4 1983009808
      %v7553 = vunpack.c.0.s8 %v7552
      %v7554 = vlaneseq
      %v7555 = vshrl.u32 %v7554, 7
      %v7556 = vsub.s32 %v7553, %v7555
      %v7557 = vrot.slane %v7549, %v7556
      %v7559 = vunpack.c.l.s4 1983009808
      %v7560 = vunpack.c.0.s8 %v7559
      %v7561 = vlaneseq
      %v7562 = vshrl.u32 %v7561, 7
      %v7563 = vsub.s32 %v7560, %v7562
      %v7564 = vrot.slane %v7550, %v7563
      %v7565 = vcombine.low %v7502, %v7510
      %v7566 = vcombine.high %v7502, %v7510
      %v7568 = vunpack.c.l.s4 1983009808
      %v7569 = vunpack.c.0.s8 %v7568
      %v7570 = vlaneseq
      %v7571 = vshrl.u32 %v7570, 7
      %v7572 = vsub.s32 %v7569, %v7571
      %v7573 = vrot.slane %v7565, %v7572
      %v7575 = vunpack.c.l.s4 1983009808
      %v7576 = vunpack.c.0.s8 %v7575
      %v7577 = vlaneseq
      %v7578 = vshrl.u32 %v7577, 7
      %v7579 = vsub.s32 %v7576, %v7578
      %v7580 = vrot.slane %v7566, %v7579
      %v7581 = vcombine.low %v7506, %v7514
      %v7582 = vcombine.high %v7506, %v7514
      %v7584 = vunpack.c.l.s4 1983009808
      %v7585 = vunpack.c.0.s8 %v7584
      %v7586 = vlaneseq
      %v7587 = vshrl.u32 %v7586, 7
      %v7588 = vsub.s32 %v7585, %v7587
      %v7589 = vrot.slane %v7581, %v7588
      %v7591 = vunpack.c.l.s4 1983009808
      %v7592 = vunpack.c.0.s8 %v7591
      %v7593 = vlaneseq
      %v7594 = vshrl.u32 %v7593, 7
      %v7595 = vsub.s32 %v7592, %v7594
      %v7596 = vrot.slane %v7582, %v7595
      %v7597 = vcombine.low %v7541, %v7557
      %v7598 = vcombine.high %v7541, %v7557
      %v7600 = vunpack.c.l.s4 1934713408
      %v7601 = vunpack.c.0.s8 %v7600
      %v7602 = vlaneseq
      %v7603 = vshrl.u32 %v7602, 7
      %v7604 = vsub.s32 %v7601, %v7603
      %v7605 = vrot.slane %v7597, %v7604
      %v7607 = vunpack.c.l.s4 1934713408
      %v7608 = vunpack.c.0.s8 %v7607
      %v7609 = vlaneseq
      %v7610 = vshrl.u32 %v7609, 7
      %v7611 = vsub.s32 %v7608, %v7610
      %v7612 = vrot.slane %v7598, %v7611
      %v7613 = vcombine.low %v7548, %v7564
      %v7614 = vcombine.high %v7548, %v7564
      %v7616 = vunpack.c.l.s4 1934713408
      %v7617 = vunpack.c.0.s8 %v7616
      %v7618 = vlaneseq
      %v7619 = vshrl.u32 %v7618, 7
      %v7620 = vsub.s32 %v7617, %v7619
      %v7621 = vrot.slane %v7613, %v7620
      %v7623 = vunpack.c.l.s4 1934713408
      %v7624 = vunpack.c.0.s8 %v7623
      %v7625 = vlaneseq
      %v7626 = vshrl.u32 %v7625, 7
      %v7627 = vsub.s32 %v7624, %v7626
      %v7628 = vrot.slane %v7614, %v7627
      %v7629 = vcombine.low %v7573, %v7589
      %v7630 = vcombine.high %v7573, %v7589
      %v7632 = vunpack.c.l.s4 1934713408
      %v7633 = vunpack.c.0.s8 %v7632
      %v7634 = vlaneseq
      %v7635 = vshrl.u32 %v7634, 7
      %v7636 = vsub.s32 %v7633, %v7635
      %v7637 = vrot.slane %v7629, %v7636
      %v7639 = vunpack.c.l.s4 1934713408
      %v7640 = vunpack.c.0.s8 %v7639
      %v7641 = vlaneseq
      %v7642 = vshrl.u32 %v7641, 7
      %v7643 = vsub.s32 %v7640, %v7642
      %v7644 = vrot.slane %v7630, %v7643
      %v7645 = vcombine.low %v7580, %v7596
      %v7646 = vcombine.high %v7580, %v7596
      %v7648 = vunpack.c.l.s4 1934713408
      %v7649 = vunpack.c.0.s8 %v7648
      %v7650 = vlaneseq
      %v7651 = vshrl.u32 %v7650, 7
      %v7652 = vsub.s32 %v7649, %v7651
      %v7653 = vrot.slane %v7645, %v7652
      %v7655 = vunpack.c.l.s4 1934713408
      %v7656 = vunpack.c.0.s8 %v7655
      %v7657 = vlaneseq
      %v7658 = vshrl.u32 %v7657, 7
      %v7659 = vsub.s32 %v7656, %v7658
      %v7660 = vrot.slane %v7646, %v7659
      %v7661 = vcombine.low %v7605, %v7637
      %v7662 = vcombine.high %v7605, %v7637
      %v7663 = vcombine.low %v7612, %v7644
      %v7664 = vcombine.high %v7612, %v7644
      %v7665 = vcombine.low %v7621, %v7653
      %v7666 = vcombine.high %v7621, %v7653
      %v7667 = vcombine.low %v7628, %v7660
      %v7668 = vcombine.high %v7628, %v7660
      %v7669 = vcombine.low %v7488, %v7496
      %v7670 = vcombine.high %v7488, %v7496
      %v7672 = vunpack.c.l.s4 1983009808
      %v7673 = vunpack.c.0.s8 %v7672
      %v7674 = vlaneseq
      %v7675 = vshrl.u32 %v7674, 7
      %v7676 = vsub.s32 %v7673, %v7675
      %v7677 = vrot.slane %v7669, %v7676
      %v7679 = vunpack.c.l.s4 1983009808
      %v7680 = vunpack.c.0.s8 %v7679
      %v7681 = vlaneseq
      %v7682 = vshrl.u32 %v7681, 7
      %v7683 = vsub.s32 %v7680, %v7682
      %v7684 = vrot.slane %v7670, %v7683
      %v7685 = vcombine.low %v7492, %v7500
      %v7686 = vcombine.high %v7492, %v7500
      %v7688 = vunpack.c.l.s4 1983009808
      %v7689 = vunpack.c.0.s8 %v7688
      %v7690 = vlaneseq
      %v7691 = vshrl.u32 %v7690, 7
      %v7692 = vsub.s32 %v7689, %v7691
      %v7693 = vrot.slane %v7685, %v7692
      %v7695 = vunpack.c.l.s4 1983009808
      %v7696 = vunpack.c.0.s8 %v7695
      %v7697 = vlaneseq
      %v7698 = vshrl.u32 %v7697, 7
      %v7699 = vsub.s32 %v7696, %v7698
      %v7700 = vrot.slane %v7686, %v7699
      %v7701 = vcombine.low %v7504, %v7512
      %v7702 = vcombine.high %v7504, %v7512
      %v7704 = vunpack.c.l.s4 1983009808
      %v7705 = vunpack.c.0.s8 %v7704
      %v7706 = vlaneseq
      %v7707 = vshrl.u32 %v7706, 7
      %v7708 = vsub.s32 %v7705, %v7707
      %v7709 = vrot.slane %v7701, %v7708
      %v7711 = vunpack.c.l.s4 1983009808
      %v7712 = vunpack.c.0.s8 %v7711
      %v7713 = vlaneseq
      %v7714 = vshrl.u32 %v7713, 7
      %v7715 = vsub.s32 %v7712, %v7714
      %v7716 = vrot.slane %v7702, %v7715
      %v7717 = vcombine.low %v7508, %v7516
      %v7718 = vcombine.high %v7508, %v7516
      %v7720 = vunpack.c.l.s4 1983009808
      %v7721 = vunpack.c.0.s8 %v7720
      %v7722 = vlaneseq
      %v7723 = vshrl.u32 %v7722, 7
      %v7724 = vsub.s32 %v7721, %v7723
      %v7725 = vrot.slane %v7717, %v7724
      %v7727 = vunpack.c.l.s4 1983009808
      %v7728 = vunpack.c.0.s8 %v7727
      %v7729 = vlaneseq
      %v7730 = vshrl.u32 %v7729, 7
      %v7731 = vsub.s32 %v7728, %v7730
      %v7732 = vrot.slane %v7718, %v7731
      %v7733 = vcombine.low %v7677, %v7693
      %v7734 = vcombine.high %v7677, %v7693
      %v7736 = vunpack.c.l.s4 1934713408
      %v7737 = vunpack.c.0.s8 %v7736
      %v7738 = vlaneseq
      %v7739 = vshrl.u32 %v7738, 7
      %v7740 = vsub.s32 %v7737, %v7739
      %v7741 = vrot.slane %v7733, %v7740
      %v7743 = vunpack.c.l.s4 1934713408
      %v7744 = vunpack.c.0.s8 %v7743
      %v7745 = vlaneseq
      %v7746 = vshrl.u32 %v7745, 7
      %v7747 = vsub.s32 %v7744, %v7746
      %v7748 = vrot.slane %v7734, %v7747
      %v7749 = vcombine.low %v7684, %v7700
      %v7750 = vcombine.high %v7684, %v7700
      %v7752 = vunpack.c.l.s4 1934713408
      %v7753 = vunpack.c.0.s8 %v7752
      %v7754 = vlaneseq
      %v7755 = vshrl.u32 %v7754, 7
      %v7756 = vsub.s32 %v7753, %v7755
      %v7757 = vrot.slane %v7749, %v7756
      %v7759 = vunpack.c.l.s4 1934713408
      %v7760 = vunpack.c.0.s8 %v7759
      %v7761 = vlaneseq
      %v7762 = vshrl.u32 %v7761, 7
      %v7763 = vsub.s32 %v7760, %v7762
      %v7764 = vrot.slane %v7750, %v7763
      %v7765 = vcombine.low %v7709, %v7725
      %v7766 = vcombine.high %v7709, %v7725
      %v7768 = vunpack.c.l.s4 1934713408
      %v7769 = vunpack.c.0.s8 %v7768
      %v7770 = vlaneseq
      %v7771 = vshrl.u32 %v7770, 7
      %v7772 = vsub.s32 %v7769, %v7771
      %v7773 = vrot.slane %v7765, %v7772
      %v7775 = vunpack.c.l.s4 1934713408
      %v7776 = vunpack.c.0.s8 %v7775
      %v7777 = vlaneseq
      %v7778 = vshrl.u32 %v7777, 7
      %v7779 = vsub.s32 %v7776, %v7778
      %v7780 = vrot.slane %v7766, %v7779
      %v7781 = vcombine.low %v7716, %v7732
      %v7782 = vcombine.high %v7716, %v7732
      %v7784 = vunpack.c.l.s4 1934713408
      %v7785 = vunpack.c.0.s8 %v7784
      %v7786 = vlaneseq
      %v7787 = vshrl.u32 %v7786, 7
      %v7788 = vsub.s32 %v7785, %v7787
      %v7789 = vrot.slane %v7781, %v7788
      %v7791 = vunpack.c.l.s4 1934713408
      %v7792 = vunpack.c.0.s8 %v7791
      %v7793 = vlaneseq
      %v7794 = vshrl.u32 %v7793, 7
      %v7795 = vsub.s32 %v7792, %v7794
      %v7796 = vrot.slane %v7782, %v7795
      %v7797 = vcombine.low %v7741, %v7773
      %v7798 = vcombine.high %v7741, %v7773
      %v7799 = vcombine.low %v7748, %v7780
      %v7800 = vcombine.high %v7748, %v7780
      %v7801 = vcombine.low %v7757, %v7789
      %v7802 = vcombine.high %v7757, %v7789
      %v7803 = vcombine.low %v7764, %v7796
      %v7804 = vcombine.high %v7764, %v7796
      %7806 = vrot.lane.b32.xlu0 %v7662, 16
      %v7807 = vpop.permute.xlu0 %7806
      %7810 = vrot.lane.b32.xlu0 %v7663, 32
      %v7811 = vpop.permute.xlu0 %7810
      %7814 = vrot.lane.b32.xlu0 %v7664, 48
      %v7815 = vpop.permute.xlu0 %7814
      %7818 = vrot.lane.b32.xlu0 %v7665, 64
      %v7819 = vpop.permute.xlu0 %7818
      %7822 = vrot.lane.b32.xlu0 %v7666, 80
      %v7823 = vpop.permute.xlu0 %7822
      %7826 = vrot.lane.b32.xlu0 %v7667, 96
      %v7827 = vpop.permute.xlu0 %7826
      %7830 = vrot.lane.b32.xlu0 %v7668, 112
      %v7831 = vpop.permute.xlu0 %7830
      %7834 = vrot.lane.b32.xlu0 %v7798, 16
      %v7835 = vpop.permute.xlu0 %7834
      %7838 = vrot.lane.b32.xlu0 %v7799, 32
      %v7839 = vpop.permute.xlu0 %7838
      %7842 = vrot.lane.b32.xlu0 %v7800, 48
      %v7843 = vpop.permute.xlu0 %7842
      %7846 = vrot.lane.b32.xlu0 %v7801, 64
      %v7847 = vpop.permute.xlu0 %7846
      %7850 = vrot.lane.b32.xlu0 %v7802, 80
      %v7851 = vpop.permute.xlu0 %7850
      %7854 = vrot.lane.b32.xlu0 %v7803, 96
      %v7855 = vpop.permute.xlu0 %7854
      %7858 = vrot.lane.b32.xlu0 %v7804, 112
      %v7859 = vpop.permute.xlu0 %7858
      %v7861 = vsel %vm588, %v7661, %v7807
      %v7862 = vsel %vm590, %v7861, %v7811
      %v7863 = vsel %vm592, %v7862, %v7815
      %v7864 = vsel %vm594, %v7863, %v7819
      %v7865 = vsel %vm596, %v7864, %v7823
      %v7866 = vsel %vm598, %v7865, %v7827
      %v7867 = vsel %vm600, %v7866, %v7831
      %v7868 = vsel %vm588, %v7797, %v7835
      %v7869 = vsel %vm590, %v7868, %v7839
      %v7870 = vsel %vm592, %v7869, %v7843
      %v7871 = vsel %vm594, %v7870, %v7847
      %v7872 = vsel %vm596, %v7871, %v7851
      %v7873 = vsel %vm598, %v7872, %v7855
      %v7874 = vsel %vm600, %v7873, %v7859
      %7875 = vrot.lane.b32.xlu0 %v7089, 126
      %v7876 = vpop.permute.xlu0 %7875
      %7877 = vrot.lane.b32.xlu0 %v7091, 126
      %v7878 = vpop.permute.xlu0 %7877
      %7879 = vrot.lane.b32.xlu0 %v7094, 126
      %v7880 = vpop.permute.xlu0 %7879
      %7881 = vrot.lane.b32.xlu0 %v7096, 126
      %v7882 = vpop.permute.xlu0 %7881
      %7883 = vrot.lane.b32.xlu0 %v7099, 126
      %v7884 = vpop.permute.xlu0 %7883
      %7885 = vrot.lane.b32.xlu0 %v7101, 126
      %v7886 = vpop.permute.xlu0 %7885
      %7887 = vrot.lane.b32.xlu0 %v7104, 126
      %v7888 = vpop.permute.xlu0 %7887
      %7889 = vrot.lane.b32.xlu0 %v7106, 126
      %v7890 = vpop.permute.xlu0 %7889
      %7891 = vrot.lane.b32.xlu0 %v7109, 126
      %v7892 = vpop.permute.xlu0 %7891
      %7893 = vrot.lane.b32.xlu0 %v7111, 126
      %v7894 = vpop.permute.xlu0 %7893
      %7895 = vrot.lane.b32.xlu0 %v7114, 126
      %v7896 = vpop.permute.xlu0 %7895
      %7897 = vrot.lane.b32.xlu0 %v7116, 126
      %v7898 = vpop.permute.xlu0 %7897
      %7899 = vrot.lane.b32.xlu0 %v7119, 126
      %v7900 = vpop.permute.xlu0 %7899
      %7901 = vrot.lane.b32.xlu0 %v7121, 126
      %v7902 = vpop.permute.xlu0 %7901
      %7903 = vrot.lane.b32.xlu0 %v7124, 126
      %v7904 = vpop.permute.xlu0 %7903
      %7905 = vrot.lane.b32.xlu0 %v7126, 126
      %v7906 = vpop.permute.xlu0 %7905
      %v7923 = vcombine.low %v7876, %v7884
      %v7924 = vcombine.high %v7876, %v7884
      %v7926 = vunpack.c.l.s4 1983009808
      %v7927 = vunpack.c.0.s8 %v7926
      %v7928 = vlaneseq
      %v7929 = vshrl.u32 %v7928, 7
      %v7930 = vsub.s32 %v7927, %v7929
      %v7931 = vrot.slane %v7923, %v7930
      %v7933 = vunpack.c.l.s4 1983009808
      %v7934 = vunpack.c.0.s8 %v7933
      %v7935 = vlaneseq
      %v7936 = vshrl.u32 %v7935, 7
      %v7937 = vsub.s32 %v7934, %v7936
      %v7938 = vrot.slane %v7924, %v7937
      %v7939 = vcombine.low %v7880, %v7888
      %v7940 = vcombine.high %v7880, %v7888
      %v7942 = vunpack.c.l.s4 1983009808
      %v7943 = vunpack.c.0.s8 %v7942
      %v7944 = vlaneseq
      %v7945 = vshrl.u32 %v7944, 7
      %v7946 = vsub.s32 %v7943, %v7945
      %v7947 = vrot.slane %v7939, %v7946
      %v7949 = vunpack.c.l.s4 1983009808
      %v7950 = vunpack.c.0.s8 %v7949
      %v7951 = vlaneseq
      %v7952 = vshrl.u32 %v7951, 7
      %v7953 = vsub.s32 %v7950, %v7952
      %v7954 = vrot.slane %v7940, %v7953
      %v7955 = vcombine.low %v7892, %v7900
      %v7956 = vcombine.high %v7892, %v7900
      %v7958 = vunpack.c.l.s4 1983009808
      %v7959 = vunpack.c.0.s8 %v7958
      %v7960 = vlaneseq
      %v7961 = vshrl.u32 %v7960, 7
      %v7962 = vsub.s32 %v7959, %v7961
      %v7963 = vrot.slane %v7955, %v7962
      %v7965 = vunpack.c.l.s4 1983009808
      %v7966 = vunpack.c.0.s8 %v7965
      %v7967 = vlaneseq
      %v7968 = vshrl.u32 %v7967, 7
      %v7969 = vsub.s32 %v7966, %v7968
      %v7970 = vrot.slane %v7956, %v7969
      %v7971 = vcombine.low %v7896, %v7904
      %v7972 = vcombine.high %v7896, %v7904
      %v7974 = vunpack.c.l.s4 1983009808
      %v7975 = vunpack.c.0.s8 %v7974
      %v7976 = vlaneseq
      %v7977 = vshrl.u32 %v7976, 7
      %v7978 = vsub.s32 %v7975, %v7977
      %v7979 = vrot.slane %v7971, %v7978
      %v7981 = vunpack.c.l.s4 1983009808
      %v7982 = vunpack.c.0.s8 %v7981
      %v7983 = vlaneseq
      %v7984 = vshrl.u32 %v7983, 7
      %v7985 = vsub.s32 %v7982, %v7984
      %v7986 = vrot.slane %v7972, %v7985
      %v7987 = vcombine.low %v7931, %v7947
      %v7988 = vcombine.high %v7931, %v7947
      %v7990 = vunpack.c.l.s4 1934713408
      %v7991 = vunpack.c.0.s8 %v7990
      %v7992 = vlaneseq
      %v7993 = vshrl.u32 %v7992, 7
      %v7994 = vsub.s32 %v7991, %v7993
      %v7995 = vrot.slane %v7987, %v7994
      %v7997 = vunpack.c.l.s4 1934713408
      %v7998 = vunpack.c.0.s8 %v7997
      %v7999 = vlaneseq
      %v8000 = vshrl.u32 %v7999, 7
      %v8001 = vsub.s32 %v7998, %v8000
      %v8002 = vrot.slane %v7988, %v8001
      %v8003 = vcombine.low %v7938, %v7954
      %v8004 = vcombine.high %v7938, %v7954
      %v8006 = vunpack.c.l.s4 1934713408
      %v8007 = vunpack.c.0.s8 %v8006
      %v8008 = vlaneseq
      %v8009 = vshrl.u32 %v8008, 7
      %v8010 = vsub.s32 %v8007, %v8009
      %v8011 = vrot.slane %v8003, %v8010
      %v8013 = vunpack.c.l.s4 1934713408
      %v8014 = vunpack.c.0.s8 %v8013
      %v8015 = vlaneseq
      %v8016 = vshrl.u32 %v8015, 7
      %v8017 = vsub.s32 %v8014, %v8016
      %v8018 = vrot.slane %v8004, %v8017
      %v8019 = vcombine.low %v7963, %v7979
      %v8020 = vcombine.high %v7963, %v7979
      %v8022 = vunpack.c.l.s4 1934713408
      %v8023 = vunpack.c.0.s8 %v8022
      %v8024 = vlaneseq
      %v8025 = vshrl.u32 %v8024, 7
      %v8026 = vsub.s32 %v8023, %v8025
      %v8027 = vrot.slane %v8019, %v8026
      %v8029 = vunpack.c.l.s4 1934713408
      %v8030 = vunpack.c.0.s8 %v8029
      %v8031 = vlaneseq
      %v8032 = vshrl.u32 %v8031, 7
      %v8033 = vsub.s32 %v8030, %v8032
      %v8034 = vrot.slane %v8020, %v8033
      %v8035 = vcombine.low %v7970, %v7986
      %v8036 = vcombine.high %v7970, %v7986
      %v8038 = vunpack.c.l.s4 1934713408
      %v8039 = vunpack.c.0.s8 %v8038
      %v8040 = vlaneseq
      %v8041 = vshrl.u32 %v8040, 7
      %v8042 = vsub.s32 %v8039, %v8041
      %v8043 = vrot.slane %v8035, %v8042
      %v8045 = vunpack.c.l.s4 1934713408
      %v8046 = vunpack.c.0.s8 %v8045
      %v8047 = vlaneseq
      %v8048 = vshrl.u32 %v8047, 7
      %v8049 = vsub.s32 %v8046, %v8048
      %v8050 = vrot.slane %v8036, %v8049
      %v8051 = vcombine.low %v7995, %v8027
      %v8052 = vcombine.high %v7995, %v8027
      %v8053 = vcombine.low %v8002, %v8034
      %v8054 = vcombine.high %v8002, %v8034
      %v8055 = vcombine.low %v8011, %v8043
      %v8056 = vcombine.high %v8011, %v8043
      %v8057 = vcombine.low %v8018, %v8050
      %v8058 = vcombine.high %v8018, %v8050
      %v8059 = vcombine.low %v7878, %v7886
      %v8060 = vcombine.high %v7878, %v7886
      %v8062 = vunpack.c.l.s4 1983009808
      %v8063 = vunpack.c.0.s8 %v8062
      %v8064 = vlaneseq
      %v8065 = vshrl.u32 %v8064, 7
      %v8066 = vsub.s32 %v8063, %v8065
      %v8067 = vrot.slane %v8059, %v8066
      %v8069 = vunpack.c.l.s4 1983009808
      %v8070 = vunpack.c.0.s8 %v8069
      %v8071 = vlaneseq
      %v8072 = vshrl.u32 %v8071, 7
      %v8073 = vsub.s32 %v8070, %v8072
      %v8074 = vrot.slane %v8060, %v8073
      %v8075 = vcombine.low %v7882, %v7890
      %v8076 = vcombine.high %v7882, %v7890
      %v8078 = vunpack.c.l.s4 1983009808
      %v8079 = vunpack.c.0.s8 %v8078
      %v8080 = vlaneseq
      %v8081 = vshrl.u32 %v8080, 7
      %v8082 = vsub.s32 %v8079, %v8081
      %v8083 = vrot.slane %v8075, %v8082
      %v8085 = vunpack.c.l.s4 1983009808
      %v8086 = vunpack.c.0.s8 %v8085
      %v8087 = vlaneseq
      %v8088 = vshrl.u32 %v8087, 7
      %v8089 = vsub.s32 %v8086, %v8088
      %v8090 = vrot.slane %v8076, %v8089
      %v8091 = vcombine.low %v7894, %v7902
      %v8092 = vcombine.high %v7894, %v7902
      %v8094 = vunpack.c.l.s4 1983009808
      %v8095 = vunpack.c.0.s8 %v8094
      %v8096 = vlaneseq
      %v8097 = vshrl.u32 %v8096, 7
      %v8098 = vsub.s32 %v8095, %v8097
      %v8099 = vrot.slane %v8091, %v8098
      %v8101 = vunpack.c.l.s4 1983009808
      %v8102 = vunpack.c.0.s8 %v8101
      %v8103 = vlaneseq
      %v8104 = vshrl.u32 %v8103, 7
      %v8105 = vsub.s32 %v8102, %v8104
      %v8106 = vrot.slane %v8092, %v8105
      %v8107 = vcombine.low %v7898, %v7906
      %v8108 = vcombine.high %v7898, %v7906
      %v8110 = vunpack.c.l.s4 1983009808
      %v8111 = vunpack.c.0.s8 %v8110
      %v8112 = vlaneseq
      %v8113 = vshrl.u32 %v8112, 7
      %v8114 = vsub.s32 %v8111, %v8113
      %v8115 = vrot.slane %v8107, %v8114
      %v8117 = vunpack.c.l.s4 1983009808
      %v8118 = vunpack.c.0.s8 %v8117
      %v8119 = vlaneseq
      %v8120 = vshrl.u32 %v8119, 7
      %v8121 = vsub.s32 %v8118, %v8120
      %v8122 = vrot.slane %v8108, %v8121
      %v8123 = vcombine.low %v8067, %v8083
      %v8124 = vcombine.high %v8067, %v8083
      %v8126 = vunpack.c.l.s4 1934713408
      %v8127 = vunpack.c.0.s8 %v8126
      %v8128 = vlaneseq
      %v8129 = vshrl.u32 %v8128, 7
      %v8130 = vsub.s32 %v8127, %v8129
      %v8131 = vrot.slane %v8123, %v8130
      %v8133 = vunpack.c.l.s4 1934713408
      %v8134 = vunpack.c.0.s8 %v8133
      %v8135 = vlaneseq
      %v8136 = vshrl.u32 %v8135, 7
      %v8137 = vsub.s32 %v8134, %v8136
      %v8138 = vrot.slane %v8124, %v8137
      %v8139 = vcombine.low %v8074, %v8090
      %v8140 = vcombine.high %v8074, %v8090
      %v8142 = vunpack.c.l.s4 1934713408
      %v8143 = vunpack.c.0.s8 %v8142
      %v8144 = vlaneseq
      %v8145 = vshrl.u32 %v8144, 7
      %v8146 = vsub.s32 %v8143, %v8145
      %v8147 = vrot.slane %v8139, %v8146
      %v8149 = vunpack.c.l.s4 1934713408
      %v8150 = vunpack.c.0.s8 %v8149
      %v8151 = vlaneseq
      %v8152 = vshrl.u32 %v8151, 7
      %v8153 = vsub.s32 %v8150, %v8152
      %v8154 = vrot.slane %v8140, %v8153
      %v8155 = vcombine.low %v8099, %v8115
      %v8156 = vcombine.high %v8099, %v8115
      %v8158 = vunpack.c.l.s4 1934713408
      %v8159 = vunpack.c.0.s8 %v8158
      %v8160 = vlaneseq
      %v8161 = vshrl.u32 %v8160, 7
      %v8162 = vsub.s32 %v8159, %v8161
      %v8163 = vrot.slane %v8155, %v8162
      %v8165 = vunpack.c.l.s4 1934713408
      %v8166 = vunpack.c.0.s8 %v8165
      %v8167 = vlaneseq
      %v8168 = vshrl.u32 %v8167, 7
      %v8169 = vsub.s32 %v8166, %v8168
      %v8170 = vrot.slane %v8156, %v8169
      %v8171 = vcombine.low %v8106, %v8122
      %v8172 = vcombine.high %v8106, %v8122
      %v8174 = vunpack.c.l.s4 1934713408
      %v8175 = vunpack.c.0.s8 %v8174
      %v8176 = vlaneseq
      %v8177 = vshrl.u32 %v8176, 7
      %v8178 = vsub.s32 %v8175, %v8177
      %v8179 = vrot.slane %v8171, %v8178
      %v8181 = vunpack.c.l.s4 1934713408
      %v8182 = vunpack.c.0.s8 %v8181
      %v8183 = vlaneseq
      %v8184 = vshrl.u32 %v8183, 7
      %v8185 = vsub.s32 %v8182, %v8184
      %v8186 = vrot.slane %v8172, %v8185
      %v8187 = vcombine.low %v8131, %v8163
      %v8188 = vcombine.high %v8131, %v8163
      %v8189 = vcombine.low %v8138, %v8170
      %v8190 = vcombine.high %v8138, %v8170
      %v8191 = vcombine.low %v8147, %v8179
      %v8192 = vcombine.high %v8147, %v8179
      %v8193 = vcombine.low %v8154, %v8186
      %v8194 = vcombine.high %v8154, %v8186
      %8196 = vrot.lane.b32.xlu0 %v8052, 16
      %v8197 = vpop.permute.xlu0 %8196
      %8200 = vrot.lane.b32.xlu0 %v8053, 32
      %v8201 = vpop.permute.xlu0 %8200
      %8204 = vrot.lane.b32.xlu0 %v8054, 48
      %v8205 = vpop.permute.xlu0 %8204
      %8208 = vrot.lane.b32.xlu0 %v8055, 64
      %v8209 = vpop.permute.xlu0 %8208
      %8212 = vrot.lane.b32.xlu0 %v8056, 80
      %v8213 = vpop.permute.xlu0 %8212
      %8216 = vrot.lane.b32.xlu0 %v8057, 96
      %v8217 = vpop.permute.xlu0 %8216
      %8220 = vrot.lane.b32.xlu0 %v8058, 112
      %v8221 = vpop.permute.xlu0 %8220
      %8224 = vrot.lane.b32.xlu0 %v8188, 16
      %v8225 = vpop.permute.xlu0 %8224
      %8228 = vrot.lane.b32.xlu0 %v8189, 32
      %v8229 = vpop.permute.xlu0 %8228
      %8232 = vrot.lane.b32.xlu0 %v8190, 48
      %v8233 = vpop.permute.xlu0 %8232
      %8236 = vrot.lane.b32.xlu0 %v8191, 64
      %v8237 = vpop.permute.xlu0 %8236
      %8240 = vrot.lane.b32.xlu0 %v8192, 80
      %v8241 = vpop.permute.xlu0 %8240
      %8244 = vrot.lane.b32.xlu0 %v8193, 96
      %v8245 = vpop.permute.xlu0 %8244
      %8248 = vrot.lane.b32.xlu0 %v8194, 112
      %v8249 = vpop.permute.xlu0 %8248
      %v8251 = vsel %vm588, %v8051, %v8197
      %v8252 = vsel %vm590, %v8251, %v8201
      %v8253 = vsel %vm592, %v8252, %v8205
      %v8254 = vsel %vm594, %v8253, %v8209
      %v8255 = vsel %vm596, %v8254, %v8213
      %v8256 = vsel %vm598, %v8255, %v8217
      %v8257 = vsel %vm600, %v8256, %v8221
      %v8258 = vsel %vm588, %v8187, %v8225
      %v8259 = vsel %vm590, %v8258, %v8229
      %v8260 = vsel %vm592, %v8259, %v8233
      %v8261 = vsel %vm594, %v8260, %v8237
      %v8262 = vsel %vm596, %v8261, %v8241
      %v8263 = vsel %vm598, %v8262, %v8245
      %v8264 = vsel %vm600, %v8263, %v8249
      %v8265 = vrot.slane %v5917, 2
      %v8266 = vrot.slane %v5918, 2
      %v8267 = vsel %vm2308, %v8265, %v8266
      %v8268 = vrot.slane %v5919, 2
      %v8269 = vsel %vm2308, %v8266, %v8268
      %v8270 = vrot.slane %v5920, 2
      %v8271 = vrot.slane %v5921, 2
      %v8272 = vsel %vm2308, %v8270, %v8271
      %v8273 = vrot.slane %v5922, 2
      %v8274 = vsel %vm2308, %v8271, %v8273
      %v8275 = vrot.slane %v5923, 2
      %v8276 = vrot.slane %v5924, 2
      %v8277 = vsel %vm2308, %v8275, %v8276
      %v8278 = vrot.slane %v5925, 2
      %v8279 = vsel %vm2308, %v8276, %v8278
      %v8280 = vrot.slane %v5926, 2
      %v8281 = vrot.slane %v5927, 2
      %v8282 = vsel %vm2308, %v8280, %v8281
      %v8283 = vrot.slane %v5928, 2
      %v8284 = vsel %vm2308, %v8281, %v8283
      %v8285 = vrot.slane %v5929, 2
      %v8286 = vrot.slane %v5930, 2
      %v8287 = vsel %vm2308, %v8285, %v8286
      %v8288 = vrot.slane %v5931, 2
      %v8289 = vsel %vm2308, %v8286, %v8288
      %v8290 = vrot.slane %v5932, 2
      %v8291 = vrot.slane %v5933, 2
      %v8292 = vsel %vm2308, %v8290, %v8291
      %v8293 = vrot.slane %v5934, 2
      %v8294 = vsel %vm2308, %v8291, %v8293
      %v8295 = vrot.slane %v5935, 2
      %v8296 = vrot.slane %v5936, 2
      %v8297 = vsel %vm2308, %v8295, %v8296
      %v8298 = vrot.slane %v5937, 2
      %v8299 = vsel %vm2308, %v8296, %v8298
      %v8300 = vrot.slane %v5938, 2
      %v8301 = vrot.slane %v5939, 2
      %v8302 = vsel %vm2308, %v8300, %v8301
      %v8303 = vrot.slane %v5940, 2
      %v8304 = vsel %vm2308, %v8301, %v8303
      %v8321 = vcombine.low %v8267, %v8277
      %v8322 = vcombine.high %v8267, %v8277
      %v8324 = vunpack.c.l.s4 1983009808
      %v8325 = vunpack.c.0.s8 %v8324
      %v8326 = vlaneseq
      %v8327 = vshrl.u32 %v8326, 7
      %v8328 = vsub.s32 %v8325, %v8327
      %v8329 = vrot.slane %v8321, %v8328
      %v8331 = vunpack.c.l.s4 1983009808
      %v8332 = vunpack.c.0.s8 %v8331
      %v8333 = vlaneseq
      %v8334 = vshrl.u32 %v8333, 7
      %v8335 = vsub.s32 %v8332, %v8334
      %v8336 = vrot.slane %v8322, %v8335
      %v8337 = vcombine.low %v8272, %v8282
      %v8338 = vcombine.high %v8272, %v8282
      %v8340 = vunpack.c.l.s4 1983009808
      %v8341 = vunpack.c.0.s8 %v8340
      %v8342 = vlaneseq
      %v8343 = vshrl.u32 %v8342, 7
      %v8344 = vsub.s32 %v8341, %v8343
      %v8345 = vrot.slane %v8337, %v8344
      %v8347 = vunpack.c.l.s4 1983009808
      %v8348 = vunpack.c.0.s8 %v8347
      %v8349 = vlaneseq
      %v8350 = vshrl.u32 %v8349, 7
      %v8351 = vsub.s32 %v8348, %v8350
      %v8352 = vrot.slane %v8338, %v8351
      %v8353 = vcombine.low %v8287, %v8297
      %v8354 = vcombine.high %v8287, %v8297
      %v8356 = vunpack.c.l.s4 1983009808
      %v8357 = vunpack.c.0.s8 %v8356
      %v8358 = vlaneseq
      %v8359 = vshrl.u32 %v8358, 7
      %v8360 = vsub.s32 %v8357, %v8359
      %v8361 = vrot.slane %v8353, %v8360
      %v8363 = vunpack.c.l.s4 1983009808
      %v8364 = vunpack.c.0.s8 %v8363
      %v8365 = vlaneseq
      %v8366 = vshrl.u32 %v8365, 7
      %v8367 = vsub.s32 %v8364, %v8366
      %v8368 = vrot.slane %v8354, %v8367
      %v8369 = vcombine.low %v8292, %v8302
      %v8370 = vcombine.high %v8292, %v8302
      %v8372 = vunpack.c.l.s4 1983009808
      %v8373 = vunpack.c.0.s8 %v8372
      %v8374 = vlaneseq
      %v8375 = vshrl.u32 %v8374, 7
      %v8376 = vsub.s32 %v8373, %v8375
      %v8377 = vrot.slane %v8369, %v8376
      %v8379 = vunpack.c.l.s4 1983009808
      %v8380 = vunpack.c.0.s8 %v8379
      %v8381 = vlaneseq
      %v8382 = vshrl.u32 %v8381, 7
      %v8383 = vsub.s32 %v8380, %v8382
      %v8384 = vrot.slane %v8370, %v8383
      %v8385 = vcombine.low %v8329, %v8345
      %v8386 = vcombine.high %v8329, %v8345
      %v8388 = vunpack.c.l.s4 1934713408
      %v8389 = vunpack.c.0.s8 %v8388
      %v8390 = vlaneseq
      %v8391 = vshrl.u32 %v8390, 7
      %v8392 = vsub.s32 %v8389, %v8391
      %v8393 = vrot.slane %v8385, %v8392
      %v8395 = vunpack.c.l.s4 1934713408
      %v8396 = vunpack.c.0.s8 %v8395
      %v8397 = vlaneseq
      %v8398 = vshrl.u32 %v8397, 7
      %v8399 = vsub.s32 %v8396, %v8398
      %v8400 = vrot.slane %v8386, %v8399
      %v8401 = vcombine.low %v8336, %v8352
      %v8402 = vcombine.high %v8336, %v8352
      %v8404 = vunpack.c.l.s4 1934713408
      %v8405 = vunpack.c.0.s8 %v8404
      %v8406 = vlaneseq
      %v8407 = vshrl.u32 %v8406, 7
      %v8408 = vsub.s32 %v8405, %v8407
      %v8409 = vrot.slane %v8401, %v8408
      %v8411 = vunpack.c.l.s4 1934713408
      %v8412 = vunpack.c.0.s8 %v8411
      %v8413 = vlaneseq
      %v8414 = vshrl.u32 %v8413, 7
      %v8415 = vsub.s32 %v8412, %v8414
      %v8416 = vrot.slane %v8402, %v8415
      %v8417 = vcombine.low %v8361, %v8377
      %v8418 = vcombine.high %v8361, %v8377
      %v8420 = vunpack.c.l.s4 1934713408
      %v8421 = vunpack.c.0.s8 %v8420
      %v8422 = vlaneseq
      %v8423 = vshrl.u32 %v8422, 7
      %v8424 = vsub.s32 %v8421, %v8423
      %v8425 = vrot.slane %v8417, %v8424
      %v8427 = vunpack.c.l.s4 1934713408
      %v8428 = vunpack.c.0.s8 %v8427
      %v8429 = vlaneseq
      %v8430 = vshrl.u32 %v8429, 7
      %v8431 = vsub.s32 %v8428, %v8430
      %v8432 = vrot.slane %v8418, %v8431
      %v8433 = vcombine.low %v8368, %v8384
      %v8434 = vcombine.high %v8368, %v8384
      %v8436 = vunpack.c.l.s4 1934713408
      %v8437 = vunpack.c.0.s8 %v8436
      %v8438 = vlaneseq
      %v8439 = vshrl.u32 %v8438, 7
      %v8440 = vsub.s32 %v8437, %v8439
      %v8441 = vrot.slane %v8433, %v8440
      %v8443 = vunpack.c.l.s4 1934713408
      %v8444 = vunpack.c.0.s8 %v8443
      %v8445 = vlaneseq
      %v8446 = vshrl.u32 %v8445, 7
      %v8447 = vsub.s32 %v8444, %v8446
      %v8448 = vrot.slane %v8434, %v8447
      %v8449 = vcombine.low %v8393, %v8425
      %v8450 = vcombine.high %v8393, %v8425
      %v8451 = vcombine.low %v8400, %v8432
      %v8452 = vcombine.high %v8400, %v8432
      %v8453 = vcombine.low %v8409, %v8441
      %v8454 = vcombine.high %v8409, %v8441
      %v8455 = vcombine.low %v8416, %v8448
      %v8456 = vcombine.high %v8416, %v8448
      %v8457 = vcombine.low %v8269, %v8279
      %v8458 = vcombine.high %v8269, %v8279
      %v8460 = vunpack.c.l.s4 1983009808
      %v8461 = vunpack.c.0.s8 %v8460
      %v8462 = vlaneseq
      %v8463 = vshrl.u32 %v8462, 7
      %v8464 = vsub.s32 %v8461, %v8463
      %v8465 = vrot.slane %v8457, %v8464
      %v8467 = vunpack.c.l.s4 1983009808
      %v8468 = vunpack.c.0.s8 %v8467
      %v8469 = vlaneseq
      %v8470 = vshrl.u32 %v8469, 7
      %v8471 = vsub.s32 %v8468, %v8470
      %v8472 = vrot.slane %v8458, %v8471
      %v8473 = vcombine.low %v8274, %v8284
      %v8474 = vcombine.high %v8274, %v8284
      %v8476 = vunpack.c.l.s4 1983009808
      %v8477 = vunpack.c.0.s8 %v8476
      %v8478 = vlaneseq
      %v8479 = vshrl.u32 %v8478, 7
      %v8480 = vsub.s32 %v8477, %v8479
      %v8481 = vrot.slane %v8473, %v8480
      %v8483 = vunpack.c.l.s4 1983009808
      %v8484 = vunpack.c.0.s8 %v8483
      %v8485 = vlaneseq
      %v8486 = vshrl.u32 %v8485, 7
      %v8487 = vsub.s32 %v8484, %v8486
      %v8488 = vrot.slane %v8474, %v8487
      %v8489 = vcombine.low %v8289, %v8299
      %v8490 = vcombine.high %v8289, %v8299
      %v8492 = vunpack.c.l.s4 1983009808
      %v8493 = vunpack.c.0.s8 %v8492
      %v8494 = vlaneseq
      %v8495 = vshrl.u32 %v8494, 7
      %v8496 = vsub.s32 %v8493, %v8495
      %v8497 = vrot.slane %v8489, %v8496
      %v8499 = vunpack.c.l.s4 1983009808
      %v8500 = vunpack.c.0.s8 %v8499
      %v8501 = vlaneseq
      %v8502 = vshrl.u32 %v8501, 7
      %v8503 = vsub.s32 %v8500, %v8502
      %v8504 = vrot.slane %v8490, %v8503
      %v8505 = vcombine.low %v8294, %v8304
      %v8506 = vcombine.high %v8294, %v8304
      %v8508 = vunpack.c.l.s4 1983009808
      %v8509 = vunpack.c.0.s8 %v8508
      %v8510 = vlaneseq
      %v8511 = vshrl.u32 %v8510, 7
      %v8512 = vsub.s32 %v8509, %v8511
      %v8513 = vrot.slane %v8505, %v8512
      %v8515 = vunpack.c.l.s4 1983009808
      %v8516 = vunpack.c.0.s8 %v8515
      %v8517 = vlaneseq
      %v8518 = vshrl.u32 %v8517, 7
      %v8519 = vsub.s32 %v8516, %v8518
      %v8520 = vrot.slane %v8506, %v8519
      %v8521 = vcombine.low %v8465, %v8481
      %v8522 = vcombine.high %v8465, %v8481
      %v8524 = vunpack.c.l.s4 1934713408
      %v8525 = vunpack.c.0.s8 %v8524
      %v8526 = vlaneseq
      %v8527 = vshrl.u32 %v8526, 7
      %v8528 = vsub.s32 %v8525, %v8527
      %v8529 = vrot.slane %v8521, %v8528
      %v8531 = vunpack.c.l.s4 1934713408
      %v8532 = vunpack.c.0.s8 %v8531
      %v8533 = vlaneseq
      %v8534 = vshrl.u32 %v8533, 7
      %v8535 = vsub.s32 %v8532, %v8534
      %v8536 = vrot.slane %v8522, %v8535
      %v8537 = vcombine.low %v8472, %v8488
      %v8538 = vcombine.high %v8472, %v8488
      %v8540 = vunpack.c.l.s4 1934713408
      %v8541 = vunpack.c.0.s8 %v8540
      %v8542 = vlaneseq
      %v8543 = vshrl.u32 %v8542, 7
      %v8544 = vsub.s32 %v8541, %v8543
      %v8545 = vrot.slane %v8537, %v8544
      %v8547 = vunpack.c.l.s4 1934713408
      %v8548 = vunpack.c.0.s8 %v8547
      %v8549 = vlaneseq
      %v8550 = vshrl.u32 %v8549, 7
      %v8551 = vsub.s32 %v8548, %v8550
      %v8552 = vrot.slane %v8538, %v8551
      %v8553 = vcombine.low %v8497, %v8513
      %v8554 = vcombine.high %v8497, %v8513
      %v8556 = vunpack.c.l.s4 1934713408
      %v8557 = vunpack.c.0.s8 %v8556
      %v8558 = vlaneseq
      %v8559 = vshrl.u32 %v8558, 7
      %v8560 = vsub.s32 %v8557, %v8559
      %v8561 = vrot.slane %v8553, %v8560
      %v8563 = vunpack.c.l.s4 1934713408
      %v8564 = vunpack.c.0.s8 %v8563
      %v8565 = vlaneseq
      %v8566 = vshrl.u32 %v8565, 7
      %v8567 = vsub.s32 %v8564, %v8566
      %v8568 = vrot.slane %v8554, %v8567
      %v8569 = vcombine.low %v8504, %v8520
      %v8570 = vcombine.high %v8504, %v8520
      %v8572 = vunpack.c.l.s4 1934713408
      %v8573 = vunpack.c.0.s8 %v8572
      %v8574 = vlaneseq
      %v8575 = vshrl.u32 %v8574, 7
      %v8576 = vsub.s32 %v8573, %v8575
      %v8577 = vrot.slane %v8569, %v8576
      %v8579 = vunpack.c.l.s4 1934713408
      %v8580 = vunpack.c.0.s8 %v8579
      %v8581 = vlaneseq
      %v8582 = vshrl.u32 %v8581, 7
      %v8583 = vsub.s32 %v8580, %v8582
      %v8584 = vrot.slane %v8570, %v8583
      %v8585 = vcombine.low %v8529, %v8561
      %v8586 = vcombine.high %v8529, %v8561
      %v8587 = vcombine.low %v8536, %v8568
      %v8588 = vcombine.high %v8536, %v8568
      %v8589 = vcombine.low %v8545, %v8577
      %v8590 = vcombine.high %v8545, %v8577
      %v8591 = vcombine.low %v8552, %v8584
      %v8592 = vcombine.high %v8552, %v8584
      %8594 = vrot.lane.b32.xlu0 %v8450, 16
      %v8595 = vpop.permute.xlu0 %8594
      %8598 = vrot.lane.b32.xlu0 %v8451, 32
      %v8599 = vpop.permute.xlu0 %8598
      %8602 = vrot.lane.b32.xlu0 %v8452, 48
      %v8603 = vpop.permute.xlu0 %8602
      %8606 = vrot.lane.b32.xlu0 %v8453, 64
      %v8607 = vpop.permute.xlu0 %8606
      %8610 = vrot.lane.b32.xlu0 %v8454, 80
      %v8611 = vpop.permute.xlu0 %8610
      %8614 = vrot.lane.b32.xlu0 %v8455, 96
      %v8615 = vpop.permute.xlu0 %8614
      %8618 = vrot.lane.b32.xlu0 %v8456, 112
      %v8619 = vpop.permute.xlu0 %8618
      %8622 = vrot.lane.b32.xlu0 %v8586, 16
      %v8623 = vpop.permute.xlu0 %8622
      %8626 = vrot.lane.b32.xlu0 %v8587, 32
      %v8627 = vpop.permute.xlu0 %8626
      %8630 = vrot.lane.b32.xlu0 %v8588, 48
      %v8631 = vpop.permute.xlu0 %8630
      %8634 = vrot.lane.b32.xlu0 %v8589, 64
      %v8635 = vpop.permute.xlu0 %8634
      %8638 = vrot.lane.b32.xlu0 %v8590, 80
      %v8639 = vpop.permute.xlu0 %8638
      %8642 = vrot.lane.b32.xlu0 %v8591, 96
      %v8643 = vpop.permute.xlu0 %8642
      %8646 = vrot.lane.b32.xlu0 %v8592, 112
      %v8647 = vpop.permute.xlu0 %8646
      %v8649 = vsel %vm588, %v8449, %v8595
      %v8650 = vsel %vm590, %v8649, %v8599
      %v8651 = vsel %vm592, %v8650, %v8603
      %v8652 = vsel %vm594, %v8651, %v8607
      %v8653 = vsel %vm596, %v8652, %v8611
      %v8654 = vsel %vm598, %v8653, %v8615
      %v8655 = vsel %vm600, %v8654, %v8619
      %v8656 = vsel %vm588, %v8585, %v8623
      %v8657 = vsel %vm590, %v8656, %v8627
      %v8658 = vsel %vm592, %v8657, %v8631
      %v8659 = vsel %vm594, %v8658, %v8635
      %v8660 = vsel %vm596, %v8659, %v8639
      %v8661 = vsel %vm598, %v8660, %v8643
      %v8662 = vsel %vm600, %v8661, %v8647
      %8663 = vrot.lane.b32.xlu0 %v8267, 127
      %v8664 = vpop.permute.xlu0 %8663
      %8665 = vrot.lane.b32.xlu0 %v8269, 127
      %v8666 = vpop.permute.xlu0 %8665
      %8667 = vrot.lane.b32.xlu0 %v8272, 127
      %v8668 = vpop.permute.xlu0 %8667
      %8669 = vrot.lane.b32.xlu0 %v8274, 127
      %v8670 = vpop.permute.xlu0 %8669
      %8671 = vrot.lane.b32.xlu0 %v8277, 127
      %v8672 = vpop.permute.xlu0 %8671
      %8673 = vrot.lane.b32.xlu0 %v8279, 127
      %v8674 = vpop.permute.xlu0 %8673
      %8675 = vrot.lane.b32.xlu0 %v8282, 127
      %v8676 = vpop.permute.xlu0 %8675
      %8677 = vrot.lane.b32.xlu0 %v8284, 127
      %v8678 = vpop.permute.xlu0 %8677
      %8679 = vrot.lane.b32.xlu0 %v8287, 127
      %v8680 = vpop.permute.xlu0 %8679
      %8681 = vrot.lane.b32.xlu0 %v8289, 127
      %v8682 = vpop.permute.xlu0 %8681
      %8683 = vrot.lane.b32.xlu0 %v8292, 127
      %v8684 = vpop.permute.xlu0 %8683
      %8685 = vrot.lane.b32.xlu0 %v8294, 127
      %v8686 = vpop.permute.xlu0 %8685
      %8687 = vrot.lane.b32.xlu0 %v8297, 127
      %v8688 = vpop.permute.xlu0 %8687
      %8689 = vrot.lane.b32.xlu0 %v8299, 127
      %v8690 = vpop.permute.xlu0 %8689
      %8691 = vrot.lane.b32.xlu0 %v8302, 127
      %v8692 = vpop.permute.xlu0 %8691
      %8693 = vrot.lane.b32.xlu0 %v8304, 127
      %v8694 = vpop.permute.xlu0 %8693
      %v8711 = vcombine.low %v8664, %v8672
      %v8712 = vcombine.high %v8664, %v8672
      %v8714 = vunpack.c.l.s4 1983009808
      %v8715 = vunpack.c.0.s8 %v8714
      %v8716 = vlaneseq
      %v8717 = vshrl.u32 %v8716, 7
      %v8718 = vsub.s32 %v8715, %v8717
      %v8719 = vrot.slane %v8711, %v8718
      %v8721 = vunpack.c.l.s4 1983009808
      %v8722 = vunpack.c.0.s8 %v8721
      %v8723 = vlaneseq
      %v8724 = vshrl.u32 %v8723, 7
      %v8725 = vsub.s32 %v8722, %v8724
      %v8726 = vrot.slane %v8712, %v8725
      %v8727 = vcombine.low %v8668, %v8676
      %v8728 = vcombine.high %v8668, %v8676
      %v8730 = vunpack.c.l.s4 1983009808
      %v8731 = vunpack.c.0.s8 %v8730
      %v8732 = vlaneseq
      %v8733 = vshrl.u32 %v8732, 7
      %v8734 = vsub.s32 %v8731, %v8733
      %v8735 = vrot.slane %v8727, %v8734
      %v8737 = vunpack.c.l.s4 1983009808
      %v8738 = vunpack.c.0.s8 %v8737
      %v8739 = vlaneseq
      %v8740 = vshrl.u32 %v8739, 7
      %v8741 = vsub.s32 %v8738, %v8740
      %v8742 = vrot.slane %v8728, %v8741
      %v8743 = vcombine.low %v8680, %v8688
      %v8744 = vcombine.high %v8680, %v8688
      %v8746 = vunpack.c.l.s4 1983009808
      %v8747 = vunpack.c.0.s8 %v8746
      %v8748 = vlaneseq
      %v8749 = vshrl.u32 %v8748, 7
      %v8750 = vsub.s32 %v8747, %v8749
      %v8751 = vrot.slane %v8743, %v8750
      %v8753 = vunpack.c.l.s4 1983009808
      %v8754 = vunpack.c.0.s8 %v8753
      %v8755 = vlaneseq
      %v8756 = vshrl.u32 %v8755, 7
      %v8757 = vsub.s32 %v8754, %v8756
      %v8758 = vrot.slane %v8744, %v8757
      %v8759 = vcombine.low %v8684, %v8692
      %v8760 = vcombine.high %v8684, %v8692
      %v8762 = vunpack.c.l.s4 1983009808
      %v8763 = vunpack.c.0.s8 %v8762
      %v8764 = vlaneseq
      %v8765 = vshrl.u32 %v8764, 7
      %v8766 = vsub.s32 %v8763, %v8765
      %v8767 = vrot.slane %v8759, %v8766
      %v8769 = vunpack.c.l.s4 1983009808
      %v8770 = vunpack.c.0.s8 %v8769
      %v8771 = vlaneseq
      %v8772 = vshrl.u32 %v8771, 7
      %v8773 = vsub.s32 %v8770, %v8772
      %v8774 = vrot.slane %v8760, %v8773
      %v8775 = vcombine.low %v8719, %v8735
      %v8776 = vcombine.high %v8719, %v8735
      %v8778 = vunpack.c.l.s4 1934713408
      %v8779 = vunpack.c.0.s8 %v8778
      %v8780 = vlaneseq
      %v8781 = vshrl.u32 %v8780, 7
      %v8782 = vsub.s32 %v8779, %v8781
      %v8783 = vrot.slane %v8775, %v8782
      %v8785 = vunpack.c.l.s4 1934713408
      %v8786 = vunpack.c.0.s8 %v8785
      %v8787 = vlaneseq
      %v8788 = vshrl.u32 %v8787, 7
      %v8789 = vsub.s32 %v8786, %v8788
      %v8790 = vrot.slane %v8776, %v8789
      %v8791 = vcombine.low %v8726, %v8742
      %v8792 = vcombine.high %v8726, %v8742
      %v8794 = vunpack.c.l.s4 1934713408
      %v8795 = vunpack.c.0.s8 %v8794
      %v8796 = vlaneseq
      %v8797 = vshrl.u32 %v8796, 7
      %v8798 = vsub.s32 %v8795, %v8797
      %v8799 = vrot.slane %v8791, %v8798
      %v8801 = vunpack.c.l.s4 1934713408
      %v8802 = vunpack.c.0.s8 %v8801
      %v8803 = vlaneseq
      %v8804 = vshrl.u32 %v8803, 7
      %v8805 = vsub.s32 %v8802, %v8804
      %v8806 = vrot.slane %v8792, %v8805
      %v8807 = vcombine.low %v8751, %v8767
      %v8808 = vcombine.high %v8751, %v8767
      %v8810 = vunpack.c.l.s4 1934713408
      %v8811 = vunpack.c.0.s8 %v8810
      %v8812 = vlaneseq
      %v8813 = vshrl.u32 %v8812, 7
      %v8814 = vsub.s32 %v8811, %v8813
      %v8815 = vrot.slane %v8807, %v8814
      %v8817 = vunpack.c.l.s4 1934713408
      %v8818 = vunpack.c.0.s8 %v8817
      %v8819 = vlaneseq
      %v8820 = vshrl.u32 %v8819, 7
      %v8821 = vsub.s32 %v8818, %v8820
      %v8822 = vrot.slane %v8808, %v8821
      %v8823 = vcombine.low %v8758, %v8774
      %v8824 = vcombine.high %v8758, %v8774
      %v8826 = vunpack.c.l.s4 1934713408
      %v8827 = vunpack.c.0.s8 %v8826
      %v8828 = vlaneseq
      %v8829 = vshrl.u32 %v8828, 7
      %v8830 = vsub.s32 %v8827, %v8829
      %v8831 = vrot.slane %v8823, %v8830
      %v8833 = vunpack.c.l.s4 1934713408
      %v8834 = vunpack.c.0.s8 %v8833
      %v8835 = vlaneseq
      %v8836 = vshrl.u32 %v8835, 7
      %v8837 = vsub.s32 %v8834, %v8836
      %v8838 = vrot.slane %v8824, %v8837
      %v8839 = vcombine.low %v8783, %v8815
      %v8840 = vcombine.high %v8783, %v8815
      %v8841 = vcombine.low %v8790, %v8822
      %v8842 = vcombine.high %v8790, %v8822
      %v8843 = vcombine.low %v8799, %v8831
      %v8844 = vcombine.high %v8799, %v8831
      %v8845 = vcombine.low %v8806, %v8838
      %v8846 = vcombine.high %v8806, %v8838
      %v8847 = vcombine.low %v8666, %v8674
      %v8848 = vcombine.high %v8666, %v8674
      %v8850 = vunpack.c.l.s4 1983009808
      %v8851 = vunpack.c.0.s8 %v8850
      %v8852 = vlaneseq
      %v8853 = vshrl.u32 %v8852, 7
      %v8854 = vsub.s32 %v8851, %v8853
      %v8855 = vrot.slane %v8847, %v8854
      %v8857 = vunpack.c.l.s4 1983009808
      %v8858 = vunpack.c.0.s8 %v8857
      %v8859 = vlaneseq
      %v8860 = vshrl.u32 %v8859, 7
      %v8861 = vsub.s32 %v8858, %v8860
      %v8862 = vrot.slane %v8848, %v8861
      %v8863 = vcombine.low %v8670, %v8678
      %v8864 = vcombine.high %v8670, %v8678
      %v8866 = vunpack.c.l.s4 1983009808
      %v8867 = vunpack.c.0.s8 %v8866
      %v8868 = vlaneseq
      %v8869 = vshrl.u32 %v8868, 7
      %v8870 = vsub.s32 %v8867, %v8869
      %v8871 = vrot.slane %v8863, %v8870
      %v8873 = vunpack.c.l.s4 1983009808
      %v8874 = vunpack.c.0.s8 %v8873
      %v8875 = vlaneseq
      %v8876 = vshrl.u32 %v8875, 7
      %v8877 = vsub.s32 %v8874, %v8876
      %v8878 = vrot.slane %v8864, %v8877
      %v8879 = vcombine.low %v8682, %v8690
      %v8880 = vcombine.high %v8682, %v8690
      %v8882 = vunpack.c.l.s4 1983009808
      %v8883 = vunpack.c.0.s8 %v8882
      %v8884 = vlaneseq
      %v8885 = vshrl.u32 %v8884, 7
      %v8886 = vsub.s32 %v8883, %v8885
      %v8887 = vrot.slane %v8879, %v8886
      %v8889 = vunpack.c.l.s4 1983009808
      %v8890 = vunpack.c.0.s8 %v8889
      %v8891 = vlaneseq
      %v8892 = vshrl.u32 %v8891, 7
      %v8893 = vsub.s32 %v8890, %v8892
      %v8894 = vrot.slane %v8880, %v8893
      %v8895 = vcombine.low %v8686, %v8694
      %v8896 = vcombine.high %v8686, %v8694
      %v8898 = vunpack.c.l.s4 1983009808
      %v8899 = vunpack.c.0.s8 %v8898
      %v8900 = vlaneseq
      %v8901 = vshrl.u32 %v8900, 7
      %v8902 = vsub.s32 %v8899, %v8901
      %v8903 = vrot.slane %v8895, %v8902
      %v8905 = vunpack.c.l.s4 1983009808
      %v8906 = vunpack.c.0.s8 %v8905
      %v8907 = vlaneseq
      %v8908 = vshrl.u32 %v8907, 7
      %v8909 = vsub.s32 %v8906, %v8908
      %v8910 = vrot.slane %v8896, %v8909
      %v8911 = vcombine.low %v8855, %v8871
      %v8912 = vcombine.high %v8855, %v8871
      %v8914 = vunpack.c.l.s4 1934713408
      %v8915 = vunpack.c.0.s8 %v8914
      %v8916 = vlaneseq
      %v8917 = vshrl.u32 %v8916, 7
      %v8918 = vsub.s32 %v8915, %v8917
      %v8919 = vrot.slane %v8911, %v8918
      %v8921 = vunpack.c.l.s4 1934713408
      %v8922 = vunpack.c.0.s8 %v8921
      %v8923 = vlaneseq
      %v8924 = vshrl.u32 %v8923, 7
      %v8925 = vsub.s32 %v8922, %v8924
      %v8926 = vrot.slane %v8912, %v8925
      %v8927 = vcombine.low %v8862, %v8878
      %v8928 = vcombine.high %v8862, %v8878
      %v8930 = vunpack.c.l.s4 1934713408
      %v8931 = vunpack.c.0.s8 %v8930
      %v8932 = vlaneseq
      %v8933 = vshrl.u32 %v8932, 7
      %v8934 = vsub.s32 %v8931, %v8933
      %v8935 = vrot.slane %v8927, %v8934
      %v8937 = vunpack.c.l.s4 1934713408
      %v8938 = vunpack.c.0.s8 %v8937
      %v8939 = vlaneseq
      %v8940 = vshrl.u32 %v8939, 7
      %v8941 = vsub.s32 %v8938, %v8940
      %v8942 = vrot.slane %v8928, %v8941
      %v8943 = vcombine.low %v8887, %v8903
      %v8944 = vcombine.high %v8887, %v8903
      %v8946 = vunpack.c.l.s4 1934713408
      %v8947 = vunpack.c.0.s8 %v8946
      %v8948 = vlaneseq
      %v8949 = vshrl.u32 %v8948, 7
      %v8950 = vsub.s32 %v8947, %v8949
      %v8951 = vrot.slane %v8943, %v8950
      %v8953 = vunpack.c.l.s4 1934713408
      %v8954 = vunpack.c.0.s8 %v8953
      %v8955 = vlaneseq
      %v8956 = vshrl.u32 %v8955, 7
      %v8957 = vsub.s32 %v8954, %v8956
      %v8958 = vrot.slane %v8944, %v8957
      %v8959 = vcombine.low %v8894, %v8910
      %v8960 = vcombine.high %v8894, %v8910
      %v8962 = vunpack.c.l.s4 1934713408
      %v8963 = vunpack.c.0.s8 %v8962
      %v8964 = vlaneseq
      %v8965 = vshrl.u32 %v8964, 7
      %v8966 = vsub.s32 %v8963, %v8965
      %v8967 = vrot.slane %v8959, %v8966
      %v8969 = vunpack.c.l.s4 1934713408
      %v8970 = vunpack.c.0.s8 %v8969
      %v8971 = vlaneseq
      %v8972 = vshrl.u32 %v8971, 7
      %v8973 = vsub.s32 %v8970, %v8972
      %v8974 = vrot.slane %v8960, %v8973
      %v8975 = vcombine.low %v8919, %v8951
      %v8976 = vcombine.high %v8919, %v8951
      %v8977 = vcombine.low %v8926, %v8958
      %v8978 = vcombine.high %v8926, %v8958
      %v8979 = vcombine.low %v8935, %v8967
      %v8980 = vcombine.high %v8935, %v8967
      %v8981 = vcombine.low %v8942, %v8974
      %v8982 = vcombine.high %v8942, %v8974
      %8984 = vrot.lane.b32.xlu0 %v8840, 16
      %v8985 = vpop.permute.xlu0 %8984
      %8988 = vrot.lane.b32.xlu0 %v8841, 32
      %v8989 = vpop.permute.xlu0 %8988
      %8992 = vrot.lane.b32.xlu0 %v8842, 48
      %v8993 = vpop.permute.xlu0 %8992
      %8996 = vrot.lane.b32.xlu0 %v8843, 64
      %v8997 = vpop.permute.xlu0 %8996
      %9000 = vrot.lane.b32.xlu0 %v8844, 80
      %v9001 = vpop.permute.xlu0 %9000
      %9004 = vrot.lane.b32.xlu0 %v8845, 96
      %v9005 = vpop.permute.xlu0 %9004
      %9008 = vrot.lane.b32.xlu0 %v8846, 112
      %v9009 = vpop.permute.xlu0 %9008
      %9012 = vrot.lane.b32.xlu0 %v8976, 16
      %v9013 = vpop.permute.xlu0 %9012
      %9016 = vrot.lane.b32.xlu0 %v8977, 32
      %v9017 = vpop.permute.xlu0 %9016
      %9020 = vrot.lane.b32.xlu0 %v8978, 48
      %v9021 = vpop.permute.xlu0 %9020
      %9024 = vrot.lane.b32.xlu0 %v8979, 64
      %v9025 = vpop.permute.xlu0 %9024
      %9028 = vrot.lane.b32.xlu0 %v8980, 80
      %v9029 = vpop.permute.xlu0 %9028
      %9032 = vrot.lane.b32.xlu0 %v8981, 96
      %v9033 = vpop.permute.xlu0 %9032
      %9036 = vrot.lane.b32.xlu0 %v8982, 112
      %v9037 = vpop.permute.xlu0 %9036
      %v9039 = vsel %vm588, %v8839, %v8985
      %v9040 = vsel %vm590, %v9039, %v8989
      %v9041 = vsel %vm592, %v9040, %v8993
      %v9042 = vsel %vm594, %v9041, %v8997
      %v9043 = vsel %vm596, %v9042, %v9001
      %v9044 = vsel %vm598, %v9043, %v9005
      %v9045 = vsel %vm600, %v9044, %v9009
      %v9046 = vsel %vm588, %v8975, %v9013
      %v9047 = vsel %vm590, %v9046, %v9017
      %v9048 = vsel %vm592, %v9047, %v9021
      %v9049 = vsel %vm594, %v9048, %v9025
      %v9050 = vsel %vm596, %v9049, %v9029
      %v9051 = vsel %vm598, %v9050, %v9033
      %v9052 = vsel %vm600, %v9051, %v9037
      %9053 = vrot.lane.b32.xlu0 %v8267, 126
      %v9054 = vpop.permute.xlu0 %9053
      %9055 = vrot.lane.b32.xlu0 %v8269, 126
      %v9056 = vpop.permute.xlu0 %9055
      %9057 = vrot.lane.b32.xlu0 %v8272, 126
      %v9058 = vpop.permute.xlu0 %9057
      %9059 = vrot.lane.b32.xlu0 %v8274, 126
      %v9060 = vpop.permute.xlu0 %9059
      %9061 = vrot.lane.b32.xlu0 %v8277, 126
      %v9062 = vpop.permute.xlu0 %9061
      %9063 = vrot.lane.b32.xlu0 %v8279, 126
      %v9064 = vpop.permute.xlu0 %9063
      %9065 = vrot.lane.b32.xlu0 %v8282, 126
      %v9066 = vpop.permute.xlu0 %9065
      %9067 = vrot.lane.b32.xlu0 %v8284, 126
      %v9068 = vpop.permute.xlu0 %9067
      %9069 = vrot.lane.b32.xlu0 %v8287, 126
      %v9070 = vpop.permute.xlu0 %9069
      %9071 = vrot.lane.b32.xlu0 %v8289, 126
      %v9072 = vpop.permute.xlu0 %9071
      %9073 = vrot.lane.b32.xlu0 %v8292, 126
      %v9074 = vpop.permute.xlu0 %9073
      %9075 = vrot.lane.b32.xlu0 %v8294, 126
      %v9076 = vpop.permute.xlu0 %9075
      %9077 = vrot.lane.b32.xlu0 %v8297, 126
      %v9078 = vpop.permute.xlu0 %9077
      %9079 = vrot.lane.b32.xlu0 %v8299, 126
      %v9080 = vpop.permute.xlu0 %9079
      %9081 = vrot.lane.b32.xlu0 %v8302, 126
      %v9082 = vpop.permute.xlu0 %9081
      %9083 = vrot.lane.b32.xlu0 %v8304, 126
      %v9084 = vpop.permute.xlu0 %9083
      %v9101 = vcombine.low %v9054, %v9062
      %v9102 = vcombine.high %v9054, %v9062
      %v9104 = vunpack.c.l.s4 1983009808
      %v9105 = vunpack.c.0.s8 %v9104
      %v9106 = vlaneseq
      %v9107 = vshrl.u32 %v9106, 7
      %v9108 = vsub.s32 %v9105, %v9107
      %v9109 = vrot.slane %v9101, %v9108
      %v9111 = vunpack.c.l.s4 1983009808
      %v9112 = vunpack.c.0.s8 %v9111
      %v9113 = vlaneseq
      %v9114 = vshrl.u32 %v9113, 7
      %v9115 = vsub.s32 %v9112, %v9114
      %v9116 = vrot.slane %v9102, %v9115
      %v9117 = vcombine.low %v9058, %v9066
      %v9118 = vcombine.high %v9058, %v9066
      %v9120 = vunpack.c.l.s4 1983009808
      %v9121 = vunpack.c.0.s8 %v9120
      %v9122 = vlaneseq
      %v9123 = vshrl.u32 %v9122, 7
      %v9124 = vsub.s32 %v9121, %v9123
      %v9125 = vrot.slane %v9117, %v9124
      %v9127 = vunpack.c.l.s4 1983009808
      %v9128 = vunpack.c.0.s8 %v9127
      %v9129 = vlaneseq
      %v9130 = vshrl.u32 %v9129, 7
      %v9131 = vsub.s32 %v9128, %v9130
      %v9132 = vrot.slane %v9118, %v9131
      %v9133 = vcombine.low %v9070, %v9078
      %v9134 = vcombine.high %v9070, %v9078
      %v9136 = vunpack.c.l.s4 1983009808
      %v9137 = vunpack.c.0.s8 %v9136
      %v9138 = vlaneseq
      %v9139 = vshrl.u32 %v9138, 7
      %v9140 = vsub.s32 %v9137, %v9139
      %v9141 = vrot.slane %v9133, %v9140
      %v9143 = vunpack.c.l.s4 1983009808
      %v9144 = vunpack.c.0.s8 %v9143
      %v9145 = vlaneseq
      %v9146 = vshrl.u32 %v9145, 7
      %v9147 = vsub.s32 %v9144, %v9146
      %v9148 = vrot.slane %v9134, %v9147
      %v9149 = vcombine.low %v9074, %v9082
      %v9150 = vcombine.high %v9074, %v9082
      %v9152 = vunpack.c.l.s4 1983009808
      %v9153 = vunpack.c.0.s8 %v9152
      %v9154 = vlaneseq
      %v9155 = vshrl.u32 %v9154, 7
      %v9156 = vsub.s32 %v9153, %v9155
      %v9157 = vrot.slane %v9149, %v9156
      %v9159 = vunpack.c.l.s4 1983009808
      %v9160 = vunpack.c.0.s8 %v9159
      %v9161 = vlaneseq
      %v9162 = vshrl.u32 %v9161, 7
      %v9163 = vsub.s32 %v9160, %v9162
      %v9164 = vrot.slane %v9150, %v9163
      %v9165 = vcombine.low %v9109, %v9125
      %v9166 = vcombine.high %v9109, %v9125
      %v9168 = vunpack.c.l.s4 1934713408
      %v9169 = vunpack.c.0.s8 %v9168
      %v9170 = vlaneseq
      %v9171 = vshrl.u32 %v9170, 7
      %v9172 = vsub.s32 %v9169, %v9171
      %v9173 = vrot.slane %v9165, %v9172
      %v9175 = vunpack.c.l.s4 1934713408
      %v9176 = vunpack.c.0.s8 %v9175
      %v9177 = vlaneseq
      %v9178 = vshrl.u32 %v9177, 7
      %v9179 = vsub.s32 %v9176, %v9178
      %v9180 = vrot.slane %v9166, %v9179
      %v9181 = vcombine.low %v9116, %v9132
      %v9182 = vcombine.high %v9116, %v9132
      %v9184 = vunpack.c.l.s4 1934713408
      %v9185 = vunpack.c.0.s8 %v9184
      %v9186 = vlaneseq
      %v9187 = vshrl.u32 %v9186, 7
      %v9188 = vsub.s32 %v9185, %v9187
      %v9189 = vrot.slane %v9181, %v9188
      %v9191 = vunpack.c.l.s4 1934713408
      %v9192 = vunpack.c.0.s8 %v9191
      %v9193 = vlaneseq
      %v9194 = vshrl.u32 %v9193, 7
      %v9195 = vsub.s32 %v9192, %v9194
      %v9196 = vrot.slane %v9182, %v9195
      %v9197 = vcombine.low %v9141, %v9157
      %v9198 = vcombine.high %v9141, %v9157
      %v9200 = vunpack.c.l.s4 1934713408
      %v9201 = vunpack.c.0.s8 %v9200
      %v9202 = vlaneseq
      %v9203 = vshrl.u32 %v9202, 7
      %v9204 = vsub.s32 %v9201, %v9203
      %v9205 = vrot.slane %v9197, %v9204
      %v9207 = vunpack.c.l.s4 1934713408
      %v9208 = vunpack.c.0.s8 %v9207
      %v9209 = vlaneseq
      %v9210 = vshrl.u32 %v9209, 7
      %v9211 = vsub.s32 %v9208, %v9210
      %v9212 = vrot.slane %v9198, %v9211
      %v9213 = vcombine.low %v9148, %v9164
      %v9214 = vcombine.high %v9148, %v9164
      %v9216 = vunpack.c.l.s4 1934713408
      %v9217 = vunpack.c.0.s8 %v9216
      %v9218 = vlaneseq
      %v9219 = vshrl.u32 %v9218, 7
      %v9220 = vsub.s32 %v9217, %v9219
      %v9221 = vrot.slane %v9213, %v9220
      %v9223 = vunpack.c.l.s4 1934713408
      %v9224 = vunpack.c.0.s8 %v9223
      %v9225 = vlaneseq
      %v9226 = vshrl.u32 %v9225, 7
      %v9227 = vsub.s32 %v9224, %v9226
      %v9228 = vrot.slane %v9214, %v9227
      %v9229 = vcombine.low %v9173, %v9205
      %v9230 = vcombine.high %v9173, %v9205
      %v9231 = vcombine.low %v9180, %v9212
      %v9232 = vcombine.high %v9180, %v9212
      %v9233 = vcombine.low %v9189, %v9221
      %v9234 = vcombine.high %v9189, %v9221
      %v9235 = vcombine.low %v9196, %v9228
      %v9236 = vcombine.high %v9196, %v9228
      %v9237 = vcombine.low %v9056, %v9064
      %v9238 = vcombine.high %v9056, %v9064
      %v9240 = vunpack.c.l.s4 1983009808
      %v9241 = vunpack.c.0.s8 %v9240
      %v9242 = vlaneseq
      %v9243 = vshrl.u32 %v9242, 7
      %v9244 = vsub.s32 %v9241, %v9243
      %v9245 = vrot.slane %v9237, %v9244
      %v9247 = vunpack.c.l.s4 1983009808
      %v9248 = vunpack.c.0.s8 %v9247
      %v9249 = vlaneseq
      %v9250 = vshrl.u32 %v9249, 7
      %v9251 = vsub.s32 %v9248, %v9250
      %v9252 = vrot.slane %v9238, %v9251
      %v9253 = vcombine.low %v9060, %v9068
      %v9254 = vcombine.high %v9060, %v9068
      %v9256 = vunpack.c.l.s4 1983009808
      %v9257 = vunpack.c.0.s8 %v9256
      %v9258 = vlaneseq
      %v9259 = vshrl.u32 %v9258, 7
      %v9260 = vsub.s32 %v9257, %v9259
      %v9261 = vrot.slane %v9253, %v9260
      %v9263 = vunpack.c.l.s4 1983009808
      %v9264 = vunpack.c.0.s8 %v9263
      %v9265 = vlaneseq
      %v9266 = vshrl.u32 %v9265, 7
      %v9267 = vsub.s32 %v9264, %v9266
      %v9268 = vrot.slane %v9254, %v9267
      %v9269 = vcombine.low %v9072, %v9080
      %v9270 = vcombine.high %v9072, %v9080
      %v9272 = vunpack.c.l.s4 1983009808
      %v9273 = vunpack.c.0.s8 %v9272
      %v9274 = vlaneseq
      %v9275 = vshrl.u32 %v9274, 7
      %v9276 = vsub.s32 %v9273, %v9275
      %v9277 = vrot.slane %v9269, %v9276
      %v9279 = vunpack.c.l.s4 1983009808
      %v9280 = vunpack.c.0.s8 %v9279
      %v9281 = vlaneseq
      %v9282 = vshrl.u32 %v9281, 7
      %v9283 = vsub.s32 %v9280, %v9282
      %v9284 = vrot.slane %v9270, %v9283
      %v9285 = vcombine.low %v9076, %v9084
      %v9286 = vcombine.high %v9076, %v9084
      %v9288 = vunpack.c.l.s4 1983009808
      %v9289 = vunpack.c.0.s8 %v9288
      %v9290 = vlaneseq
      %v9291 = vshrl.u32 %v9290, 7
      %v9292 = vsub.s32 %v9289, %v9291
      %v9293 = vrot.slane %v9285, %v9292
      %v9295 = vunpack.c.l.s4 1983009808
      %v9296 = vunpack.c.0.s8 %v9295
      %v9297 = vlaneseq
      %v9298 = vshrl.u32 %v9297, 7
      %v9299 = vsub.s32 %v9296, %v9298
      %v9300 = vrot.slane %v9286, %v9299
      %v9301 = vcombine.low %v9245, %v9261
      %v9302 = vcombine.high %v9245, %v9261
      %v9304 = vunpack.c.l.s4 1934713408
      %v9305 = vunpack.c.0.s8 %v9304
      %v9306 = vlaneseq
      %v9307 = vshrl.u32 %v9306, 7
      %v9308 = vsub.s32 %v9305, %v9307
      %v9309 = vrot.slane %v9301, %v9308
      %v9311 = vunpack.c.l.s4 1934713408
      %v9312 = vunpack.c.0.s8 %v9311
      %v9313 = vlaneseq
      %v9314 = vshrl.u32 %v9313, 7
      %v9315 = vsub.s32 %v9312, %v9314
      %v9316 = vrot.slane %v9302, %v9315
      %v9317 = vcombine.low %v9252, %v9268
      %v9318 = vcombine.high %v9252, %v9268
      %v9320 = vunpack.c.l.s4 1934713408
      %v9321 = vunpack.c.0.s8 %v9320
      %v9322 = vlaneseq
      %v9323 = vshrl.u32 %v9322, 7
      %v9324 = vsub.s32 %v9321, %v9323
      %v9325 = vrot.slane %v9317, %v9324
      %v9327 = vunpack.c.l.s4 1934713408
      %v9328 = vunpack.c.0.s8 %v9327
      %v9329 = vlaneseq
      %v9330 = vshrl.u32 %v9329, 7
      %v9331 = vsub.s32 %v9328, %v9330
      %v9332 = vrot.slane %v9318, %v9331
      %v9333 = vcombine.low %v9277, %v9293
      %v9334 = vcombine.high %v9277, %v9293
      %v9336 = vunpack.c.l.s4 1934713408
      %v9337 = vunpack.c.0.s8 %v9336
      %v9338 = vlaneseq
      %v9339 = vshrl.u32 %v9338, 7
      %v9340 = vsub.s32 %v9337, %v9339
      %v9341 = vrot.slane %v9333, %v9340
      %v9343 = vunpack.c.l.s4 1934713408
      %v9344 = vunpack.c.0.s8 %v9343
      %v9345 = vlaneseq
      %v9346 = vshrl.u32 %v9345, 7
      %v9347 = vsub.s32 %v9344, %v9346
      %v9348 = vrot.slane %v9334, %v9347
      %v9349 = vcombine.low %v9284, %v9300
      %v9350 = vcombine.high %v9284, %v9300
      %v9352 = vunpack.c.l.s4 1934713408
      %v9353 = vunpack.c.0.s8 %v9352
      %v9354 = vlaneseq
      %v9355 = vshrl.u32 %v9354, 7
      %v9356 = vsub.s32 %v9353, %v9355
      %v9357 = vrot.slane %v9349, %v9356
      %v9359 = vunpack.c.l.s4 1934713408
      %v9360 = vunpack.c.0.s8 %v9359
      %v9361 = vlaneseq
      %v9362 = vshrl.u32 %v9361, 7
      %v9363 = vsub.s32 %v9360, %v9362
      %v9364 = vrot.slane %v9350, %v9363
      %v9365 = vcombine.low %v9309, %v9341
      %v9366 = vcombine.high %v9309, %v9341
      %v9367 = vcombine.low %v9316, %v9348
      %v9368 = vcombine.high %v9316, %v9348
      %v9369 = vcombine.low %v9325, %v9357
      %v9370 = vcombine.high %v9325, %v9357
      %v9371 = vcombine.low %v9332, %v9364
      %v9372 = vcombine.high %v9332, %v9364
      %9374 = vrot.lane.b32.xlu0 %v9230, 16
      %v9375 = vpop.permute.xlu0 %9374
      %9378 = vrot.lane.b32.xlu0 %v9231, 32
      %v9379 = vpop.permute.xlu0 %9378
      %9382 = vrot.lane.b32.xlu0 %v9232, 48
      %v9383 = vpop.permute.xlu0 %9382
      %9386 = vrot.lane.b32.xlu0 %v9233, 64
      %v9387 = vpop.permute.xlu0 %9386
      %9390 = vrot.lane.b32.xlu0 %v9234, 80
      %v9391 = vpop.permute.xlu0 %9390
      %9394 = vrot.lane.b32.xlu0 %v9235, 96
      %v9395 = vpop.permute.xlu0 %9394
      %9398 = vrot.lane.b32.xlu0 %v9236, 112
      %v9399 = vpop.permute.xlu0 %9398
      %9402 = vrot.lane.b32.xlu0 %v9366, 16
      %v9403 = vpop.permute.xlu0 %9402
      %9406 = vrot.lane.b32.xlu0 %v9367, 32
      %v9407 = vpop.permute.xlu0 %9406
      %9410 = vrot.lane.b32.xlu0 %v9368, 48
      %v9411 = vpop.permute.xlu0 %9410
      %9414 = vrot.lane.b32.xlu0 %v9369, 64
      %v9415 = vpop.permute.xlu0 %9414
      %9418 = vrot.lane.b32.xlu0 %v9370, 80
      %v9419 = vpop.permute.xlu0 %9418
      %9422 = vrot.lane.b32.xlu0 %v9371, 96
      %v9423 = vpop.permute.xlu0 %9422
      %9426 = vrot.lane.b32.xlu0 %v9372, 112
      %v9427 = vpop.permute.xlu0 %9426
      %v9429 = vsel %vm588, %v9229, %v9375
      %v9430 = vsel %vm590, %v9429, %v9379
      %v9431 = vsel %vm592, %v9430, %v9383
      %v9432 = vsel %vm594, %v9431, %v9387
      %v9433 = vsel %vm596, %v9432, %v9391
      %v9434 = vsel %vm598, %v9433, %v9395
      %v9435 = vsel %vm600, %v9434, %v9399
      %v9436 = vsel %vm588, %v9365, %v9403
      %v9437 = vsel %vm590, %v9436, %v9407
      %v9438 = vsel %vm592, %v9437, %v9411
      %v9439 = vsel %vm594, %v9438, %v9415
      %v9440 = vsel %vm596, %v9439, %v9419
      %v9441 = vsel %vm598, %v9440, %v9423
      %v9442 = vsel %vm600, %v9441, %v9427
      %v9443 = vpack.c.bf16 %v6681, %v6275
      %v9444 = vpack.c.bf16 %v6688, %v6282
      %v9445 = vpack.c.bf16 %v7477, %v7071
      %v9446 = vpack.c.bf16 %v7484, %v7078
      %v9447 = vpack.c.bf16 %v8257, %v7867
      %v9448 = vpack.c.bf16 %v8264, %v7874
      %v9449 = vpack.c.bf16 %v9045, %v8655
      %v9450 = vpack.c.bf16 %v9052, %v8662
      %v9451 = vpack.c.bf16 %v9435, %v9435
      %v9452 = vpack.c.bf16 %v9442, %v9442
      %v9453 = vld [vmem:[%s7] sm:$0xf]
      %v9454 = vld [vmem:[%s8] sm:$0xff]
      %9456 = vset.pattern.permute.xlu0 0
      %9457 = vperm.xlu0 %9456, %v9454
      %v9458 = vpop.permute.xlu0 %9457
      %vm9460 = vcmask 588800
      %v9462 = vsel %vm9460, %v9453, 0
      %v9465 = vsel %vm3027, %v9451, 0
      %v9468 = vsel %vm3027, %v9452, 0
      %9470 = vmatprep.subr.bf16.mxu0 %v9444
      %9471 = vmatpush1.bf16.msra.mxu0 %v9443
      %9472 = vmatprep.subr.bf16.mxu0 %v9446
      %9473 = vmatpush1.bf16.msra.mxu0 %v9445
      %9474 = vmatprep.subr.bf16.mxu0 %v9448
      %9475 = vmatpush1.bf16.msra.mxu0 %v9447
      %9476 = vmatprep.subr.bf16.mxu0 %v9450
      %9477 = vmatpush1.bf16.msra.mxu0 %v9449
      %9478 = vmatprep.subr.bf16.mxu0 %v9468
      %9479 = vmatpush1.bf16.msra.mxu0 %v9465
      %9480 = vmatprep.subr.bf16.mxu0 0
      %9481 = vmatpush1.bf16.msra.mxu0 0
      %9482 = vmatprep.subr.bf16.mxu0 0
      %9483 = vmatpush1.bf16.msra.mxu0 0
      %9484 = vmatprep.subr.bf16.mxu0 0
      %9485 = vmatpush1.bf16.msra.mxu0 0
      %9486 = vmatprep.subr.bf16.mxu0 0
      %9487 = vmatpush1.bf16.msra.mxu0 0
      %9488 = vmatprep.subr.bf16.mxu0 0
      %9489 = vmatpush1.bf16.msra.mxu0 0
      %9490 = vmatprep.subr.bf16.mxu0 0
      %9491 = vmatpush1.bf16.msra.mxu0 0
      %9492 = vmatprep.subr.bf16.mxu0 0
      %9493 = vmatpush1.bf16.msra.mxu0 0
      %9494 = vmatprep.subr.bf16.mxu0 0
      %9495 = vmatpush1.bf16.msra.mxu0 0
      %9496 = vmatprep.subr.bf16.mxu0 0
      %9497 = vmatpush1.bf16.msra.mxu0 0
      %9498 = vmatprep.subr.bf16.mxu0 0
      %9499 = vmatpush1.bf16.msra.mxu0 0
      %9500 = vmatprep.subr.bf16.mxu0 0
      %9501 = vmatpush1.bf16.msra.mxu0 0
      %9502 = vmatprep.mubr.bf16.mxu0 0
      %9503 = vmatmul.mubr.bf16.gmra.mrb[0].mxu0 %v9462
      %v9504 = vpop.f32.mrb[0].mxu0
      %v9505 = vadd.f32 %v9458, %v9504
      %v9506 = vpop.f32.mrb[0].mxu0
      %v9507 = vadd.f32 %v9458, %v9506
      %v9508 = vpop.f32.mrb[0].mxu0
      %v9509 = vpop.f32.mrb[0].mxu0
      %9510 = vdwg.mxu0
      %v9511 = vmax.f32 %v9505, 0.0
      %v9512 = vmax.f32 %v9507, 0.0
      %9513 = vst.msk [vmem:[#allocation2] sm:$0xff] %vm688, -inf
      %9514 = vst.msk [vmem:[#allocation2 + $0x8] sm:$0xff] %vm688, -inf
      %9515 = vst.msk [vmem:[#allocation2 + $0x10] sm:$0x3] %vm691, -inf
      %9516 = vst.msk [vmem:[#allocation2 + $0x18] sm:$0xff] %vm688, -inf
      %9517 = vst.msk [vmem:[#allocation2 + $0x20] sm:$0xff] %vm688, -inf
      %9518 = vst.msk [vmem:[#allocation2 + $0x28] sm:$0x3] %vm691, -inf
      %9519 = vst.msk [vmem:[#allocation2 + $0x30] sm:$0xff] %vm688, -inf
      %9520 = vst.msk [vmem:[#allocation2 + $0x38] sm:$0xff] %vm688, -inf
      %9521 = vst.msk [vmem:[#allocation2 + $0x40] sm:$0x3] %vm691, -inf
      %9522 = vst.msk [vmem:[#allocation2 + $0x48] sm:$0xff] %vm688, -inf
      %9523 = vst.msk [vmem:[#allocation2 + $0x50] sm:$0xff] %vm688, -inf
      %9524 = vst.msk [vmem:[#allocation2 + $0x58] sm:$0x3] %vm691, -inf
      %9533 = vrot.lane.b32.xlu0 %v388, 1
      %v9534 = vpop.permute.xlu0 %9533
      %9535 = vrot.lane.b32.xlu0 %v389, 1
      %v9536 = vpop.permute.xlu0 %9535
      %9537 = vrot.lane.b32.xlu0 %v390, 1
      %v9538 = vpop.permute.xlu0 %9537
      %9539 = vrot.lane.b32.xlu0 %v391, 1
      %v9540 = vpop.permute.xlu0 %9539
      %9541 = vrot.lane.b32.xlu0 %v392, 1
      %v9542 = vpop.permute.xlu0 %9541
      %9543 = vrot.lane.b32.xlu0 %v393, 1
      %v9544 = vpop.permute.xlu0 %9543
      %9545 = vrot.lane.b32.xlu0 %v394, 1
      %v9546 = vpop.permute.xlu0 %9545
      %9547 = vrot.lane.b32.xlu0 %v395, 1
      %v9548 = vpop.permute.xlu0 %9547
      %9557 = vst.msk [vmem:[#allocation2 + $0x1] sm:$0xff] %vm914, %v9534
      %9558 = vst.msk [vmem:[#allocation2 + $0x9] sm:$0xff] %vm914, %v9536
      %9559 = vst.msk [vmem:[#allocation2 + $0x19] sm:$0xff] %vm914, %v9538
      %9560 = vst.msk [vmem:[#allocation2 + $0x21] sm:$0xff] %vm914, %v9540
      %9561 = vst.msk [vmem:[#allocation2 + $0x31] sm:$0xff] %vm914, %v9542
      %9562 = vst.msk [vmem:[#allocation2 + $0x39] sm:$0xff] %vm914, %v9544
      %9563 = vst.msk [vmem:[#allocation2 + $0x49] sm:$0xff] %vm914, %v9546
      %9564 = vst.msk [vmem:[#allocation2 + $0x51] sm:$0xff] %vm914, %v9548
      %v9565 = vld [vmem:[#allocation2] sm:$0xff]
      %v9566 = vld [vmem:[#allocation2 + $0x8] sm:$0xff]
      %v9567 = vld [vmem:[#allocation2 + $0x10] sm:$0x3]
      %v9568 = vld [vmem:[#allocation2 + $0x18] sm:$0xff]
      %v9569 = vld [vmem:[#allocation2 + $0x20] sm:$0xff]
      %v9570 = vld [vmem:[#allocation2 + $0x28] sm:$0x3]
      %v9571 = vld [vmem:[#allocation2 + $0x30] sm:$0xff]
      %v9572 = vld [vmem:[#allocation2 + $0x38] sm:$0xff]
      %v9573 = vld [vmem:[#allocation2 + $0x40] sm:$0x3]
      %v9574 = vld [vmem:[#allocation2 + $0x48] sm:$0xff]
      %v9575 = vld [vmem:[#allocation2 + $0x50] sm:$0xff]
      %v9576 = vld [vmem:[#allocation2 + $0x58] sm:$0x3]
      %9585 = vrot.lane.b32.xlu0 %v9565, 127
      %v9586 = vpop.permute.xlu0 %9585
      %9587 = vrot.lane.b32.xlu0 %v9566, 127
      %v9588 = vpop.permute.xlu0 %9587
      %9589 = vrot.lane.b32.xlu0 %v9568, 127
      %v9590 = vpop.permute.xlu0 %9589
      %9591 = vrot.lane.b32.xlu0 %v9569, 127
      %v9592 = vpop.permute.xlu0 %9591
      %9593 = vrot.lane.b32.xlu0 %v9571, 127
      %v9594 = vpop.permute.xlu0 %9593
      %9595 = vrot.lane.b32.xlu0 %v9572, 127
      %v9596 = vpop.permute.xlu0 %9595
      %9597 = vrot.lane.b32.xlu0 %v9574, 127
      %v9598 = vpop.permute.xlu0 %9597
      %9599 = vrot.lane.b32.xlu0 %v9575, 127
      %v9600 = vpop.permute.xlu0 %9599
      %v9609 = vmax.f32 %v9565, %v9586
      %v9610 = vmax.f32 %v9566, %v9588
      %v9611 = vmax.f32 %v9568, %v9590
      %v9612 = vmax.f32 %v9569, %v9592
      %v9613 = vmax.f32 %v9571, %v9594
      %v9614 = vmax.f32 %v9572, %v9596
      %v9615 = vmax.f32 %v9574, %v9598
      %v9616 = vmax.f32 %v9575, %v9600
      %9617 = vrot.lane.b32.xlu0 %v9565, 126
      %v9618 = vpop.permute.xlu0 %9617
      %9619 = vrot.lane.b32.xlu0 %v9566, 126
      %v9620 = vpop.permute.xlu0 %9619
      %9621 = vrot.lane.b32.xlu0 %v9568, 126
      %v9622 = vpop.permute.xlu0 %9621
      %9623 = vrot.lane.b32.xlu0 %v9569, 126
      %v9624 = vpop.permute.xlu0 %9623
      %9625 = vrot.lane.b32.xlu0 %v9571, 126
      %v9626 = vpop.permute.xlu0 %9625
      %9627 = vrot.lane.b32.xlu0 %v9572, 126
      %v9628 = vpop.permute.xlu0 %9627
      %9629 = vrot.lane.b32.xlu0 %v9574, 126
      %v9630 = vpop.permute.xlu0 %9629
      %9631 = vrot.lane.b32.xlu0 %v9575, 126
      %v9632 = vpop.permute.xlu0 %9631
      %v9641 = vmax.f32 %v9609, %v9618
      %v9642 = vmax.f32 %v9610, %v9620
      %v9643 = vmax.f32 %v9611, %v9622
      %v9644 = vmax.f32 %v9612, %v9624
      %v9645 = vmax.f32 %v9613, %v9626
      %v9646 = vmax.f32 %v9614, %v9628
      %v9647 = vmax.f32 %v9615, %v9630
      %v9648 = vmax.f32 %v9616, %v9632
      %v9653 = vrot.slane %v9565, 1
      %v9654 = vrot.slane %v9566, 1
      %v9655 = vsel %vm1613, %v9653, %v9654
      %v9656 = vrot.slane %v9567, 1
      %v9657 = vsel %vm1613, %v9654, %v9656
      %v9658 = vrot.slane %v9568, 1
      %v9659 = vrot.slane %v9569, 1
      %v9660 = vsel %vm1613, %v9658, %v9659
      %v9661 = vrot.slane %v9570, 1
      %v9662 = vsel %vm1613, %v9659, %v9661
      %v9663 = vrot.slane %v9571, 1
      %v9664 = vrot.slane %v9572, 1
      %v9665 = vsel %vm1613, %v9663, %v9664
      %v9666 = vrot.slane %v9573, 1
      %v9667 = vsel %vm1613, %v9664, %v9666
      %v9668 = vrot.slane %v9574, 1
      %v9669 = vrot.slane %v9575, 1
      %v9670 = vsel %vm1613, %v9668, %v9669
      %v9671 = vrot.slane %v9576, 1
      %v9672 = vsel %vm1613, %v9669, %v9671
      %v9681 = vmax.f32 %v9641, %v9655
      %v9682 = vmax.f32 %v9642, %v9657
      %v9683 = vmax.f32 %v9643, %v9660
      %v9684 = vmax.f32 %v9644, %v9662
      %v9685 = vmax.f32 %v9645, %v9665
      %v9686 = vmax.f32 %v9646, %v9667
      %v9687 = vmax.f32 %v9647, %v9670
      %v9688 = vmax.f32 %v9648, %v9672
      %9689 = vrot.lane.b32.xlu0 %v9655, 127
      %v9690 = vpop.permute.xlu0 %9689
      %9691 = vrot.lane.b32.xlu0 %v9657, 127
      %v9692 = vpop.permute.xlu0 %9691
      %9693 = vrot.lane.b32.xlu0 %v9660, 127
      %v9694 = vpop.permute.xlu0 %9693
      %9695 = vrot.lane.b32.xlu0 %v9662, 127
      %v9696 = vpop.permute.xlu0 %9695
      %9697 = vrot.lane.b32.xlu0 %v9665, 127
      %v9698 = vpop.permute.xlu0 %9697
      %9699 = vrot.lane.b32.xlu0 %v9667, 127
      %v9700 = vpop.permute.xlu0 %9699
      %9701 = vrot.lane.b32.xlu0 %v9670, 127
      %v9702 = vpop.permute.xlu0 %9701
      %9703 = vrot.lane.b32.xlu0 %v9672, 127
      %v9704 = vpop.permute.xlu0 %9703
      %v9713 = vmax.f32 %v9681, %v9690
      %v9714 = vmax.f32 %v9682, %v9692
      %v9715 = vmax.f32 %v9683, %v9694
      %v9716 = vmax.f32 %v9684, %v9696
      %v9717 = vmax.f32 %v9685, %v9698
      %v9718 = vmax.f32 %v9686, %v9700
      %v9719 = vmax.f32 %v9687, %v9702
      %v9720 = vmax.f32 %v9688, %v9704
      %9721 = vrot.lane.b32.xlu0 %v9655, 126
      %v9722 = vpop.permute.xlu0 %9721
      %9723 = vrot.lane.b32.xlu0 %v9657, 126
      %v9724 = vpop.permute.xlu0 %9723
      %9725 = vrot.lane.b32.xlu0 %v9660, 126
      %v9726 = vpop.permute.xlu0 %9725
      %9727 = vrot.lane.b32.xlu0 %v9662, 126
      %v9728 = vpop.permute.xlu0 %9727
      %9729 = vrot.lane.b32.xlu0 %v9665, 126
      %v9730 = vpop.permute.xlu0 %9729
      %9731 = vrot.lane.b32.xlu0 %v9667, 126
      %v9732 = vpop.permute.xlu0 %9731
      %9733 = vrot.lane.b32.xlu0 %v9670, 126
      %v9734 = vpop.permute.xlu0 %9733
      %9735 = vrot.lane.b32.xlu0 %v9672, 126
      %v9736 = vpop.permute.xlu0 %9735
      %v9745 = vmax.f32 %v9713, %v9722
      %v9746 = vmax.f32 %v9714, %v9724
      %v9747 = vmax.f32 %v9715, %v9726
      %v9748 = vmax.f32 %v9716, %v9728
      %v9749 = vmax.f32 %v9717, %v9730
      %v9750 = vmax.f32 %v9718, %v9732
      %v9751 = vmax.f32 %v9719, %v9734
      %v9752 = vmax.f32 %v9720, %v9736
      %v9753 = vrot.slane %v9565, 2
      %v9754 = vrot.slane %v9566, 2
      %v9755 = vsel %vm2308, %v9753, %v9754
      %v9756 = vrot.slane %v9567, 2
      %v9757 = vsel %vm2308, %v9754, %v9756
      %v9758 = vrot.slane %v9568, 2
      %v9759 = vrot.slane %v9569, 2
      %v9760 = vsel %vm2308, %v9758, %v9759
      %v9761 = vrot.slane %v9570, 2
      %v9762 = vsel %vm2308, %v9759, %v9761
      %v9763 = vrot.slane %v9571, 2
      %v9764 = vrot.slane %v9572, 2
      %v9765 = vsel %vm2308, %v9763, %v9764
      %v9766 = vrot.slane %v9573, 2
      %v9767 = vsel %vm2308, %v9764, %v9766
      %v9768 = vrot.slane %v9574, 2
      %v9769 = vrot.slane %v9575, 2
      %v9770 = vsel %vm2308, %v9768, %v9769
      %v9771 = vrot.slane %v9576, 2
      %v9772 = vsel %vm2308, %v9769, %v9771
      %v9781 = vmax.f32 %v9745, %v9755
      %v9782 = vmax.f32 %v9746, %v9757
      %v9783 = vmax.f32 %v9747, %v9760
      %v9784 = vmax.f32 %v9748, %v9762
      %v9785 = vmax.f32 %v9749, %v9765
      %v9786 = vmax.f32 %v9750, %v9767
      %v9787 = vmax.f32 %v9751, %v9770
      %v9788 = vmax.f32 %v9752, %v9772
      %9789 = vrot.lane.b32.xlu0 %v9755, 127
      %v9790 = vpop.permute.xlu0 %9789
      %9791 = vrot.lane.b32.xlu0 %v9757, 127
      %v9792 = vpop.permute.xlu0 %9791
      %9793 = vrot.lane.b32.xlu0 %v9760, 127
      %v9794 = vpop.permute.xlu0 %9793
      %9795 = vrot.lane.b32.xlu0 %v9762, 127
      %v9796 = vpop.permute.xlu0 %9795
      %9797 = vrot.lane.b32.xlu0 %v9765, 127
      %v9798 = vpop.permute.xlu0 %9797
      %9799 = vrot.lane.b32.xlu0 %v9767, 127
      %v9800 = vpop.permute.xlu0 %9799
      %9801 = vrot.lane.b32.xlu0 %v9770, 127
      %v9802 = vpop.permute.xlu0 %9801
      %9803 = vrot.lane.b32.xlu0 %v9772, 127
      %v9804 = vpop.permute.xlu0 %9803
      %v9813 = vmax.f32 %v9781, %v9790
      %v9814 = vmax.f32 %v9782, %v9792
      %v9815 = vmax.f32 %v9783, %v9794
      %v9816 = vmax.f32 %v9784, %v9796
      %v9817 = vmax.f32 %v9785, %v9798
      %v9818 = vmax.f32 %v9786, %v9800
      %v9819 = vmax.f32 %v9787, %v9802
      %v9820 = vmax.f32 %v9788, %v9804
      %9821 = vrot.lane.b32.xlu0 %v9755, 126
      %v9822 = vpop.permute.xlu0 %9821
      %9823 = vrot.lane.b32.xlu0 %v9757, 126
      %v9824 = vpop.permute.xlu0 %9823
      %9825 = vrot.lane.b32.xlu0 %v9760, 126
      %v9826 = vpop.permute.xlu0 %9825
      %9827 = vrot.lane.b32.xlu0 %v9762, 126
      %v9828 = vpop.permute.xlu0 %9827
      %9829 = vrot.lane.b32.xlu0 %v9765, 126
      %v9830 = vpop.permute.xlu0 %9829
      %9831 = vrot.lane.b32.xlu0 %v9767, 126
      %v9832 = vpop.permute.xlu0 %9831
      %9833 = vrot.lane.b32.xlu0 %v9770, 126
      %v9834 = vpop.permute.xlu0 %9833
      %9835 = vrot.lane.b32.xlu0 %v9772, 126
      %v9836 = vpop.permute.xlu0 %9835
      %v9845 = vmax.f32 %v9813, %v9822
      %v9846 = vmax.f32 %v9814, %v9824
      %v9847 = vmax.f32 %v9815, %v9826
      %v9848 = vmax.f32 %v9816, %v9828
      %v9849 = vmax.f32 %v9817, %v9830
      %v9850 = vmax.f32 %v9818, %v9832
      %v9851 = vmax.f32 %v9819, %v9834
      %v9852 = vmax.f32 %v9820, %v9836
      %v9853 = vld [vmem:[%s9] sm:$0xf]
      %v9854 = vcombine.low %v9845, %v9849
      %v9855 = vcombine.high %v9845, %v9849
      %v9857 = vunpack.c.l.s4 1983009808
      %v9858 = vunpack.c.0.s8 %v9857
      %v9859 = vlaneseq
      %v9860 = vshrl.u32 %v9859, 7
      %v9861 = vsub.s32 %v9858, %v9860
      %v9862 = vrot.slane %v9854, %v9861
      %v9864 = vunpack.c.l.s4 1983009808
      %v9865 = vunpack.c.0.s8 %v9864
      %v9866 = vlaneseq
      %v9867 = vshrl.u32 %v9866, 7
      %v9868 = vsub.s32 %v9865, %v9867
      %v9869 = vrot.slane %v9855, %v9868
      %v9870 = vcombine.low %v9847, %v9851
      %v9871 = vcombine.high %v9847, %v9851
      %v9873 = vunpack.c.l.s4 1983009808
      %v9874 = vunpack.c.0.s8 %v9873
      %v9875 = vlaneseq
      %v9876 = vshrl.u32 %v9875, 7
      %v9877 = vsub.s32 %v9874, %v9876
      %v9878 = vrot.slane %v9870, %v9877
      %v9880 = vunpack.c.l.s4 1983009808
      %v9881 = vunpack.c.0.s8 %v9880
      %v9882 = vlaneseq
      %v9883 = vshrl.u32 %v9882, 7
      %v9884 = vsub.s32 %v9881, %v9883
      %v9885 = vrot.slane %v9871, %v9884
      %v9886 = vcombine.low %v9862, %v9878
      %v9887 = vcombine.high %v9862, %v9878
      %v9889 = vunpack.c.l.s4 1934713408
      %v9890 = vunpack.c.0.s8 %v9889
      %v9891 = vlaneseq
      %v9892 = vshrl.u32 %v9891, 7
      %v9893 = vsub.s32 %v9890, %v9892
      %v9894 = vrot.slane %v9886, %v9893
      %v9896 = vunpack.c.l.s4 1934713408
      %v9897 = vunpack.c.0.s8 %v9896
      %v9898 = vlaneseq
      %v9899 = vshrl.u32 %v9898, 7
      %v9900 = vsub.s32 %v9897, %v9899
      %v9901 = vrot.slane %v9887, %v9900
      %v9902 = vcombine.low %v9869, %v9885
      %v9903 = vcombine.high %v9869, %v9885
      %v9905 = vunpack.c.l.s4 1934713408
      %v9906 = vunpack.c.0.s8 %v9905
      %v9907 = vlaneseq
      %v9908 = vshrl.u32 %v9907, 7
      %v9909 = vsub.s32 %v9906, %v9908
      %v9910 = vrot.slane %v9902, %v9909
      %v9912 = vunpack.c.l.s4 1934713408
      %v9913 = vunpack.c.0.s8 %v9912
      %v9914 = vlaneseq
      %v9915 = vshrl.u32 %v9914, 7
      %v9916 = vsub.s32 %v9913, %v9915
      %v9917 = vrot.slane %v9903, %v9916
      %v9918 = vcombine.high %v9894, 0.0
      %v9919 = vcombine.high %v9901, 0.0
      %v9920 = vcombine.high %v9910, 0.0
      %v9921 = vcombine.high %v9917, 0.0
      %v9922 = vcombine.low %v9846, %v9850
      %v9923 = vcombine.high %v9846, %v9850
      %v9925 = vunpack.c.l.s4 1983009808
      %v9926 = vunpack.c.0.s8 %v9925
      %v9927 = vlaneseq
      %v9928 = vshrl.u32 %v9927, 7
      %v9929 = vsub.s32 %v9926, %v9928
      %v9930 = vrot.slane %v9922, %v9929
      %v9932 = vunpack.c.l.s4 1983009808
      %v9933 = vunpack.c.0.s8 %v9932
      %v9934 = vlaneseq
      %v9935 = vshrl.u32 %v9934, 7
      %v9936 = vsub.s32 %v9933, %v9935
      %v9937 = vrot.slane %v9923, %v9936
      %v9938 = vcombine.low %v9848, %v9852
      %v9939 = vcombine.high %v9848, %v9852
      %v9941 = vunpack.c.l.s4 1983009808
      %v9942 = vunpack.c.0.s8 %v9941
      %v9943 = vlaneseq
      %v9944 = vshrl.u32 %v9943, 7
      %v9945 = vsub.s32 %v9942, %v9944
      %v9946 = vrot.slane %v9938, %v9945
      %v9948 = vunpack.c.l.s4 1983009808
      %v9949 = vunpack.c.0.s8 %v9948
      %v9950 = vlaneseq
      %v9951 = vshrl.u32 %v9950, 7
      %v9952 = vsub.s32 %v9949, %v9951
      %v9953 = vrot.slane %v9939, %v9952
      %v9954 = vcombine.low %v9930, %v9946
      %v9955 = vcombine.high %v9930, %v9946
      %v9957 = vunpack.c.l.s4 1934713408
      %v9958 = vunpack.c.0.s8 %v9957
      %v9959 = vlaneseq
      %v9960 = vshrl.u32 %v9959, 7
      %v9961 = vsub.s32 %v9958, %v9960
      %v9962 = vrot.slane %v9954, %v9961
      %v9964 = vunpack.c.l.s4 1934713408
      %v9965 = vunpack.c.0.s8 %v9964
      %v9966 = vlaneseq
      %v9967 = vshrl.u32 %v9966, 7
      %v9968 = vsub.s32 %v9965, %v9967
      %v9969 = vrot.slane %v9955, %v9968
      %v9970 = vcombine.low %v9937, %v9953
      %v9971 = vcombine.high %v9937, %v9953
      %v9973 = vunpack.c.l.s4 1934713408
      %v9974 = vunpack.c.0.s8 %v9973
      %v9975 = vlaneseq
      %v9976 = vshrl.u32 %v9975, 7
      %v9977 = vsub.s32 %v9974, %v9976
      %v9978 = vrot.slane %v9970, %v9977
      %v9980 = vunpack.c.l.s4 1934713408
      %v9981 = vunpack.c.0.s8 %v9980
      %v9982 = vlaneseq
      %v9983 = vshrl.u32 %v9982, 7
      %v9984 = vsub.s32 %v9981, %v9983
      %v9985 = vrot.slane %v9971, %v9984
      %v9986 = vcombine.high %v9962, 0.0
      %v9987 = vcombine.high %v9969, 0.0
      %v9988 = vcombine.high %v9978, 0.0
      %v9989 = vcombine.high %v9985, 0.0
      %9991 = vrot.lane.b32.xlu0 %v9918, 16
      %v9992 = vpop.permute.xlu0 %9991
      %9995 = vrot.lane.b32.xlu0 %v9901, 32
      %v9996 = vpop.permute.xlu0 %9995
      %9999 = vrot.lane.b32.xlu0 %v9919, 48
      %v10000 = vpop.permute.xlu0 %9999
      %10003 = vrot.lane.b32.xlu0 %v9910, 64
      %v10004 = vpop.permute.xlu0 %10003
      %10007 = vrot.lane.b32.xlu0 %v9920, 80
      %v10008 = vpop.permute.xlu0 %10007
      %10011 = vrot.lane.b32.xlu0 %v9917, 96
      %v10012 = vpop.permute.xlu0 %10011
      %10015 = vrot.lane.b32.xlu0 %v9921, 112
      %v10016 = vpop.permute.xlu0 %10015
      %10019 = vrot.lane.b32.xlu0 %v9986, 16
      %v10020 = vpop.permute.xlu0 %10019
      %10023 = vrot.lane.b32.xlu0 %v9969, 32
      %v10024 = vpop.permute.xlu0 %10023
      %10027 = vrot.lane.b32.xlu0 %v9987, 48
      %v10028 = vpop.permute.xlu0 %10027
      %10031 = vrot.lane.b32.xlu0 %v9978, 64
      %v10032 = vpop.permute.xlu0 %10031
      %10035 = vrot.lane.b32.xlu0 %v9988, 80
      %v10036 = vpop.permute.xlu0 %10035
      %10039 = vrot.lane.b32.xlu0 %v9985, 96
      %v10040 = vpop.permute.xlu0 %10039
      %10043 = vrot.lane.b32.xlu0 %v9989, 112
      %v10044 = vpop.permute.xlu0 %10043
      %v10046 = vsel %vm588, %v9894, %v9992
      %v10047 = vsel %vm590, %v10046, %v9996
      %v10048 = vsel %vm592, %v10047, %v10000
      %v10049 = vsel %vm594, %v10048, %v10004
      %v10050 = vsel %vm596, %v10049, %v10008
      %v10051 = vsel %vm598, %v10050, %v10012
      %v10052 = vsel %vm600, %v10051, %v10016
      %v10053 = vsel %vm588, %v9962, %v10020
      %v10054 = vsel %vm590, %v10053, %v10024
      %v10055 = vsel %vm592, %v10054, %v10028
      %v10056 = vsel %vm594, %v10055, %v10032
      %v10057 = vsel %vm596, %v10056, %v10036
      %v10058 = vsel %vm598, %v10057, %v10040
      %v10059 = vsel %vm600, %v10058, %v10044
      %v10060 = vpack.c.bf16 %v10052, %v10052
      %v10061 = vpack.c.bf16 %v10059, %v10059
      %v10062 = vld [vmem:[%s10] sm:$0xff]
      %10064 = vset.pattern.permute.xlu0 0
      %10065 = vperm.xlu0 %10064, %v10062
      %v10066 = vpop.permute.xlu0 %10065
      %v10069 = vsel %vm630, %v9853, 0
      %v10072 = vsel %vm634, %v10060, 0
      %v10075 = vsel %vm634, %v10061, 0
      %10077 = vmatprep.subr.bf16.mxu0 %v10075
      %10078 = vmatpush1.bf16.msra.mxu0 %v10072
      %10079 = vmatprep.subr.bf16.mxu0 0
      %10080 = vmatpush1.bf16.msra.mxu0 0
      %10081 = vmatprep.subr.bf16.mxu0 0
      %10082 = vmatpush1.bf16.msra.mxu0 0
      %10083 = vmatprep.subr.bf16.mxu0 0
      %10084 = vmatpush1.bf16.msra.mxu0 0
      %10085 = vmatprep.subr.bf16.mxu0 0
      %10086 = vmatpush1.bf16.msra.mxu0 0
      %10087 = vmatprep.subr.bf16.mxu0 0
      %10088 = vmatpush1.bf16.msra.mxu0 0
      %10089 = vmatprep.subr.bf16.mxu0 0
      %10090 = vmatpush1.bf16.msra.mxu0 0
      %10091 = vmatprep.subr.bf16.mxu0 0
      %10092 = vmatpush1.bf16.msra.mxu0 0
      %10093 = vmatprep.subr.bf16.mxu0 0
      %10094 = vmatpush1.bf16.msra.mxu0 0
      %10095 = vmatprep.subr.bf16.mxu0 0
      %10096 = vmatpush1.bf16.msra.mxu0 0
      %10097 = vmatprep.subr.bf16.mxu0 0
      %10098 = vmatpush1.bf16.msra.mxu0 0
      %10099 = vmatprep.subr.bf16.mxu0 0
      %10100 = vmatpush1.bf16.msra.mxu0 0
      %10101 = vmatprep.subr.bf16.mxu0 0
      %10102 = vmatpush1.bf16.msra.mxu0 0
      %10103 = vmatprep.subr.bf16.mxu0 0
      %10104 = vmatpush1.bf16.msra.mxu0 0
      %10105 = vmatprep.subr.bf16.mxu0 0
      %10106 = vmatpush1.bf16.msra.mxu0 0
      %10107 = vmatprep.subr.bf16.mxu0 0
      %10108 = vmatpush1.bf16.msra.mxu0 0
      %10109 = vmatprep.mubr.bf16.mxu0 0
      %10110 = vmatmul.mubr.bf16.gmra.mrb[0].mxu0 %v10069
      %v10111 = vpop.f32.mrb[0].mxu0
      %v10112 = vadd.f32 %v10066, %v10111
      %v10113 = vpop.f32.mrb[0].mxu0
      %v10114 = vadd.f32 %v10066, %v10113
      %v10115 = vpop.f32.mrb[0].mxu0
      %v10116 = vpop.f32.mrb[0].mxu0
      %10117 = vdwg.mxu0
      %v10118 = vmax.f32 %v10112, 0.0
      %v10119 = vmax.f32 %v10114, 0.0
      %10120 = vst [vmem:[%s386] sm:$0xff] %v684
      %10121 = vst [vmem:[%s386 + $0x8] sm:$0xff] %v685
      %10122 = vst [vmem:[%s386 + $0x10] sm:$0xff] %v3100
      %10123 = vst [vmem:[%s386 + $0x18] sm:$0xff] %v3101
      %10124 = vst [vmem:[%s386 + $0x20] sm:$0xff] %v9511
      %10125 = vst [vmem:[%s386 + $0x28] sm:$0xff] %v9512
      %10126 = vst [vmem:[%s386 + $0x30] sm:$0xff] %v10118
      %10127 = vst [vmem:[%s386 + $0x38] sm:$0xff] %v10119
      %p10128 = scmp.lt.s32.totalorder %s22, 1
      %s10129 = scalar_select %p10128, %s22, 1
      %s10130 = smul.addr %s10129, 8
      %s10131 = smul.addr %s10130, 8
      %s10132 = scalar_lea.vmem %s11, %s10131
      // Predicated region
      $region65: #{inception_forward.1} parent=63 // pred_check
        %p10133 = pneg %p276
      $region66: #{inception_forward.1} parent=63 // pred_check_branch
        %10135 = sbr.rel (%p10133) target = $region68
      $region67: #{inception_forward.1} parent=63 // pred_region
        _
      $region68: #{inception_forward.1} parent=63 // pred_fallthru
        _
    $region64: #{inception_forward.1} parent=5 // pred_fallthru
      _
    %p10136 = scmp.le.s32.totalorder 2, %s17
    // Predicated region
    $region69: #{inception_forward.1} parent=5 // pred_check
      %p10137 = pneg %p10136
    $region70: #{inception_forward.1} parent=5 // pred_check_branch
      %10139 = sbr.rel (%p10137) target = $region72
    $region71: #{inception_forward.1} parent=5 // pred_region
      %s10140 = ssub.s32 %s17, 2
      // Predicated region
      $region73: #{inception_forward.1} parent=71 // pred_check
        %p10141 = pneg %p282
      $region74: #{inception_forward.1} parent=71 // pred_check_branch
        %10143 = sbr.rel (%p10141) target = $region76
      $region75: #{inception_forward.1} parent=71 // pred_region
        %p10144 = scmp.lt.s32.totalorder %s23, 1
        %s10145 = scalar_select %p10144, %s23, 1
        %s10146 = smul.addr %s10145, 8
        %s10147 = smul.addr %s10146, 8
        %s10148 = scalar_lea.vmem %s11, %s10147
      $region76: #{inception_forward.1} parent=71 // pred_fallthru
        _
    $region72: #{inception_forward.1} parent=5 // pred_fallthru
      _
  $region6: #{inception_forward.1} parent=0 // loop_footer
    %s21 = sadd.s32 1, %s17
  $region7: #{inception_forward.1} parent=0 // loop_footer_branch
    %16 = sbr.rel target = $region3
  $region8: #{inception_forward.1} parent=0 // loop_exit
    _

</llo_original>
